<compile_context>
chip_gen: v5e
topology: v5e:2x2
jax: 0.10.0
libtpu: 0.0.40
codegen_flags: <defaults>
</compile_context>

<pallas_src>
import functools

import jax
import jax.numpy as jnp
from jax import lax
from jax.experimental import pallas as pl
from jax.experimental.pallas import tpu as pltpu

# ----------------------------- small config -----------------------------
CONFIG = {
    "context_length": 64,   # scaled down from 256
    "emb_dim": 128,         # scaled down from 768
    "n_heads": 4,           # scaled down from 12
    "drop_rate": 0.1,
    "qkv_bias": False,
}
EPS = 1e-5
NEG_INF = -1e30             # finite mask value (avoids inf-inf hazards)


# ------------------------------- kernel ---------------------------------
def _transformer_block_kernel(
    x_ref,                       # (Bt, S, D)  f32
    wqkv_ref,                    # (D, 3D)     bf16  (in, out), cols = [q|k|v]
    wo_ref,                      # (D, D)      bf16
    w1_ref,                      # (D, Dff)    bf16
    w2_ref,                      # (Dff, D)    bf16
    bo_ref,                      # (1, D)      f32
    b1_ref,                      # (1, Dff)    f32
    b2_ref,                      # (1, D)      f32
    ln_ref,                      # (6, D)      f32  rows = [g1,s1,g2,s2,g3,s3]
    o_ref,                       # (Bt, S, D)  f32
    *, num_heads: int,
):
    Bt, S, D = x_ref.shape
    H = num_heads
    hd = D // H
    M = Bt * S

    x = x_ref[...].reshape(M, D)                 # fold batch chunk into M

    ln = ln_ref[...]
    g1, s1 = ln[0:1], ln[1:2]
    g2, s2 = ln[2:3], ln[3:4]
    g3, s3 = ln[4:5], ln[5:6]

    def layernorm(v, g, s):
        # one-pass stats: var = E[v^2] - E[v]^2   (unbiased=False)
        mean = jnp.mean(v, axis=-1, keepdims=True)
        meansq = jnp.mean(v * v, axis=-1, keepdims=True)
        var = jnp.maximum(meansq - mean * mean, 0.0)
        return g * ((v - mean) * lax.rsqrt(var + EPS)) + s

    def linear(v, w, b=None):
        y = jnp.dot(v.astype(jnp.bfloat16), w,
                    preferred_element_type=jnp.float32)
        if b is not None:
            y = y + b
        return y

    def gelu(v):
        c = 0.7978845608028654                   # sqrt(2/pi)
        return 0.5 * v * (1.0 + jnp.tanh(c * (v + 0.044715 * v * v * v)))

    def feed_forward(v):
        h = gelu(linear(v, w1_ref[...], b1_ref[...]))
        return linear(h, w2_ref[...], b2_ref[...])

    # ----- attention branch (pre-LN) -----
    xn = layernorm(x, g1, s1)
    qkv = linear(xn, wqkv_ref[...])              # (M, 3D) fused projection
    scale = 1.0 / (float(hd) ** 0.5)
    q = (qkv[:, :D] * scale).astype(jnp.bfloat16).reshape(Bt, S, D)
    k = qkv[:, D:2 * D].astype(jnp.bfloat16).reshape(Bt, S, D)
    v = qkv[:, 2 * D:].astype(jnp.bfloat16).reshape(Bt, S, D)

    # additive causal bias, hoisted out of the head loop
    row = lax.broadcasted_iota(jnp.int32, (S, S), 0)
    col = lax.broadcasted_iota(jnp.int32, (S, S), 1)
    bias = jnp.where(col > row, NEG_INF, 0.0).astype(jnp.float32)   # (S, S)

    heads = []
    for h in range(H):                           # H small — unrolled
        sl = slice(h * hd, (h + 1) * hd)
        # scores over the whole batch chunk at once (batched MXU op)
        s_ = jnp.einsum('bqd,bkd->bqk', q[:, :, sl], k[:, :, sl],
                        preferred_element_type=jnp.float32)         # (Bt,S,S)
        s_ = s_ + bias
        m = jnp.max(s_, axis=-1, keepdims=True)
        e = jnp.exp(s_ - m)
        p = e * pl.reciprocal(jnp.sum(e, axis=-1, keepdims=True),
                              approx=True)
        heads.append(jnp.einsum('bqk,bkd->bqd', p.astype(jnp.bfloat16),
                                v[:, :, sl],
                                preferred_element_type=jnp.float32))
    ctx = jnp.concatenate(heads, axis=-1).reshape(M, D)             # (M, D)
    attn_out = linear(ctx, wo_ref[...], bo_ref[...])

    x1 = attn_out + x                            # residual 1 (dropout == id)

    # ----- MLP branch #1 -----
    x2 = feed_forward(layernorm(x1, g2, s2)) + x1

    # ----- MLP branch #2 (same FF weights — mirrors the PyTorch module) -----
    x3 = feed_forward(layernorm(x2, g3, s3)) + x2

    o_ref[...] = x3.reshape(Bt, S, D)


# ------------------------------- wrapper ---------------------------------
def transformer_block(x, params, *, block_b=2):
    B, S, D = x.shape
    H = CONFIG["n_heads"]
    Dff = params["w1"].shape[0]
    assert D == CONFIG["emb_dim"]
    assert D % H == 0
    assert B % block_b == 0

    # One-time weight prep (ordinary XLA ops outside the kernel):
    # fuse Q/K/V, pre-transpose all weights to (in, out), cast to bf16,
    # stack the six LayerNorm vectors into one operand.
    wqkv = jnp.concatenate([params["wq"], params["wk"], params["wv"]],
                           axis=0).T.astype(jnp.bfloat16)           # (D, 3D)
    wo_t = params["wo"].T.astype(jnp.bfloat16)                      # (D, D)
    w1_t = params["w1"].T.astype(jnp.bfloat16)                      # (D, Dff)
    w2_t = params["w2"].T.astype(jnp.bfloat16)                      # (Dff, D)
    ln = jnp.concatenate([params["g1"], params["s1"],
                          params["g2"], params["s2"],
                          params["g3"], params["s3"]], axis=0)      # (6, D)

    full = lambda shape: pl.BlockSpec(shape, lambda b: (0,) * len(shape))

    grid_spec = pltpu.PrefetchScalarGridSpec(
        num_scalar_prefetch=0,
        grid=(B // block_b,),
        in_specs=[
            pl.BlockSpec((block_b, S, D), lambda b: (b, 0, 0)),   # x
            full((D, 3 * D)),                                     # wqkv
            full((D, D)),                                         # wo
            full((D, Dff)),                                       # w1
            full((Dff, D)),                                       # w2
            full((1, D)),                                         # bo
            full((1, Dff)),                                       # b1
            full((1, D)),                                         # b2
            full((6, D)),                                         # LN params
        ],
        out_specs=pl.BlockSpec((block_b, S, D), lambda b: (b, 0, 0)),
    )

    # Advisory cost estimate for the whole call.
    M = B * S
    hd = D // H
    flops = (2 * M * D * 3 * D            # fused QKV projection
             + 4 * B * H * S * S * hd     # scores + p@v
             + 2 * M * D * D              # output projection
             + 8 * M * D * Dff)           # two FFN passes
    transcendentals = B * H * S * S + 2 * M * Dff + 3 * M
    bytes_accessed = (2 * M * D * 4                              # x in + out
                      + (3 * D * D + D * D + 2 * D * Dff) * 2    # bf16 weights
                      + (8 * D + Dff) * 4)                       # biases + LN

    kernel = pl.pallas_call(
        functools.partial(_transformer_block_kernel, num_heads=H),
        out_shape=jax.ShapeDtypeStruct((B, S, D), x.dtype),
        grid_spec=grid_spec,
        compiler_params=pltpu.CompilerParams(
            dimension_semantics=("parallel",),
        ),
        cost_estimate=pl.CostEstimate(
            flops=flops,
            transcendentals=transcendentals,
            bytes_accessed=bytes_accessed),
    )
    return kernel(
        x, wqkv, wo_t, w1_t, w2_t,
        params["bo"], params["b1"], params["b2"], ln,
    )


# --------------------------- pure-JAX reference ---------------------------
def _reference(x, p):
    D = CONFIG["emb_dim"]
    H = CONFIG["n_heads"]
    hd = D // H

    def ln(v, g, s):
        mean = jnp.mean(v, axis=-1, keepdims=True)
        var = jnp.mean((v - mean) ** 2, axis=-1, keepdims=True)
        return g * ((v - mean) / jnp.sqrt(var + EPS)) + s

    def gelu(v):
        c = jnp.sqrt(jnp.float32(2.0 / jnp.pi))
        return 0.5 * v * (1.0 + jnp.tanh(c * (v + 0.044715 * v ** 3)))

    def ff(v):
        h = gelu(v @ p["w1"].T + p["b1"])
        return h @ p["w2"].T + p["b2"]

    B, S, _ = x.shape
    xn = ln(x, p["g1"], p["s1"])
    q = (xn @ p["wq"].T).reshape(B, S, H, hd).transpose(0, 2, 1, 3)
    k = (xn @ p["wk"].T).reshape(B, S, H, hd).transpose(0, 2, 1, 3)
    v = (xn @ p["wv"].T).reshape(B, S, H, hd).transpose(0, 2, 1, 3)
    scores = q @ k.transpose(0, 1, 3, 2)
    mask = jnp.triu(jnp.ones((S, S), bool), k=1)
    scores = jnp.where(mask, -jnp.inf, scores)
    w = jax.nn.softmax(scores / jnp.sqrt(jnp.float32(hd)), axis=-1)
    ctx = (w @ v).transpose(0, 2, 1, 3).reshape(B, S, D)
    attn = ctx @ p["wo"].T + p["bo"]
    x1 = attn + x
    x2 = ff(ln(x1, p["g2"], p["s2"])) + x1
    x3 = ff(ln(x2, p["g3"], p["s3"])) + x2
    return x3


# --------------------------------- main -----------------------------------
if __name__ == "__main__":
    B, S = 4, CONFIG["context_length"]       # B=4 -> grid=(2,), M=128 per step
    D = CONFIG["emb_dim"]
    Dff = 4 * D

    key = jax.random.PRNGKey(0)
    keys = jax.random.split(key, 8)

    def init(k, shape, fan_in):
        return (jax.random.uniform(k, shape, jnp.float32, -1.0, 1.0)
                / jnp.sqrt(jnp.float32(fan_in)))

    params = {
        "wq": init(keys[0], (D, D), D),
        "wk": init(keys[1], (D, D), D),
        "wv": init(keys[2], (D, D), D),
        "wo": init(keys[3], (D, D), D),
        "bo": init(keys[4], (1, D), D),
        "w1": init(keys[5], (Dff, D), D),
        "b1": init(keys[6], (1, Dff), D),
        "w2": init(keys[7], (D, Dff), Dff),
        "b2": jnp.zeros((1, D), jnp.float32),
        "g1": jnp.ones((1, D), jnp.float32),
        "s1": jnp.zeros((1, D), jnp.float32),
        "g2": jnp.ones((1, D), jnp.float32),
        "s2": jnp.zeros((1, D), jnp.float32),
        "g3": jnp.ones((1, D), jnp.float32),
        "s3": jnp.zeros((1, D), jnp.float32),
    }

    x = jax.random.normal(jax.random.PRNGKey(1), (B, S, D), jnp.float32)

    out = transformer_block(x, params, block_b=2)
    out = jax.block_until_ready(out)

    ref = jax.block_until_ready(_reference(x, params))
    assert out.shape == (B, S, D)
    # bf16 matmul inputs (f32 accumulation) vs the all-f32 reference.
    assert jnp.allclose(out, ref, atol=5e-2, rtol=5e-2), "mismatch vs reference"

    print("KERNEL_OK")
</pallas_src>

<mosaic_0001>
module attributes {stable_mosaic.version = 11 : i64} {
  func.func @_transformer_block_kernel(%arg0: i32, %arg1: memref<2x64x128xf32, #tpu.memory_space<vmem>>, %arg2: memref<128x384xbf16, #tpu.memory_space<vmem>>, %arg3: memref<128x128xbf16, #tpu.memory_space<vmem>>, %arg4: memref<128x512xbf16, #tpu.memory_space<vmem>>, %arg5: memref<512x128xbf16, #tpu.memory_space<vmem>>, %arg6: memref<1x128xf32, #tpu.memory_space<vmem>>, %arg7: memref<1x512xf32, #tpu.memory_space<vmem>>, %arg8: memref<1x128xf32, #tpu.memory_space<vmem>>, %arg9: memref<6x128xf32, #tpu.memory_space<vmem>>, %arg10: memref<2x64x128xf32, #tpu.memory_space<vmem>>) attributes {dimension_semantics = [#tpu.dimension_semantics<parallel>], iteration_bounds = array<i64: 2>, scalar_prefetch = 0 : i64, scratch_operands = 0 : i64, tpu.core_type = #tpu.core_type<tc>, window_params = [{transform_indices = @transform_0, window_bounds = array<i64: 2, 64, 128>}, {pipeline_mode = #tpu.pipeline_mode<synchronous>, transform_indices = @transform_1, window_bounds = array<i64: 128, 384>}, {pipeline_mode = #tpu.pipeline_mode<synchronous>, transform_indices = @transform_2, window_bounds = array<i64: 128, 128>}, {pipeline_mode = #tpu.pipeline_mode<synchronous>, transform_indices = @transform_3, window_bounds = array<i64: 128, 512>}, {pipeline_mode = #tpu.pipeline_mode<synchronous>, transform_indices = @transform_4, window_bounds = array<i64: 512, 128>}, {pipeline_mode = #tpu.pipeline_mode<synchronous>, transform_indices = @transform_5, window_bounds = array<i64: 1, 128>}, {pipeline_mode = #tpu.pipeline_mode<synchronous>, transform_indices = @transform_6, window_bounds = array<i64: 1, 512>}, {pipeline_mode = #tpu.pipeline_mode<synchronous>, transform_indices = @transform_7, window_bounds = array<i64: 1, 128>}, {pipeline_mode = #tpu.pipeline_mode<synchronous>, transform_indices = @transform_8, window_bounds = array<i64: 6, 128>}, {transform_indices = @transform_9, window_bounds = array<i64: 2, 64, 128>}]} {
    %c0 = arith.constant 0 : index
    %c0_0 = arith.constant 0 : index
    %c0_1 = arith.constant 0 : index
    %0 = vector.load %arg1[%c0, %c0_0, %c0_1] : memref<2x64x128xf32, #tpu.memory_space<vmem>>, vector<2x64x128xf32>
    %1 = vector.shape_cast %0 : vector<2x64x128xf32> to vector<128x128xf32>
    %c0_2 = arith.constant 0 : index
    %c0_3 = arith.constant 0 : index
    %2 = vector.load %arg9[%c0_2, %c0_3] : memref<6x128xf32, #tpu.memory_space<vmem>>, vector<6x128xf32>
    %3 = vector.extract_strided_slice %2 {offsets = [0, 0], sizes = [1, 128], strides = [1, 1]} : vector<6x128xf32> to vector<1x128xf32>
    %4 = vector.extract_strided_slice %2 {offsets = [1, 0], sizes = [1, 128], strides = [1, 1]} : vector<6x128xf32> to vector<1x128xf32>
    %5 = vector.extract_strided_slice %2 {offsets = [2, 0], sizes = [1, 128], strides = [1, 1]} : vector<6x128xf32> to vector<1x128xf32>
    %6 = vector.extract_strided_slice %2 {offsets = [3, 0], sizes = [1, 128], strides = [1, 1]} : vector<6x128xf32> to vector<1x128xf32>
    %7 = vector.extract_strided_slice %2 {offsets = [4, 0], sizes = [1, 128], strides = [1, 1]} : vector<6x128xf32> to vector<1x128xf32>
    %8 = vector.extract_strided_slice %2 {offsets = [5, 0], sizes = [1, 128], strides = [1, 1]} : vector<6x128xf32> to vector<1x128xf32>
    %cst = arith.constant dense<0.000000e+00> : vector<128xf32>
    %9 = vector.multi_reduction <add>, %1, %cst [1] : vector<128x128xf32> to vector<128xf32>
    %10 = vector.shape_cast %9 : vector<128xf32> to vector<128x1xf32>
    %cst_4 = arith.constant 1.280000e+02 : f32
    %11 = vector.broadcast %cst_4 : f32 to vector<128x1xf32>
    %12 = arith.divf %10, %11 : vector<128x1xf32>
    %13 = arith.mulf %1, %1 : vector<128x128xf32>
    %cst_5 = arith.constant dense<0.000000e+00> : vector<128xf32>
    %14 = vector.multi_reduction <add>, %13, %cst_5 [1] : vector<128x128xf32> to vector<128xf32>
    %15 = vector.shape_cast %14 : vector<128xf32> to vector<128x1xf32>
    %cst_6 = arith.constant 1.280000e+02 : f32
    %16 = vector.broadcast %cst_6 : f32 to vector<128x1xf32>
    %17 = arith.divf %15, %16 : vector<128x1xf32>
    %18 = arith.mulf %12, %12 : vector<128x1xf32>
    %19 = arith.subf %17, %18 : vector<128x1xf32>
    %cst_7 = arith.constant 0.000000e+00 : f32
    %20 = vector.broadcast %cst_7 : f32 to vector<128x1xf32>
    %21 = arith.maximumf %19, %20 : vector<128x1xf32>
    %22 = vector.broadcast %12 : vector<128x1xf32> to vector<128x128xf32>
    %23 = arith.subf %1, %22 : vector<128x128xf32>
    %cst_8 = arith.constant 9.99999974E-6 : f32
    %24 = vector.broadcast %cst_8 : f32 to vector<128x1xf32>
    %25 = arith.addf %21, %24 : vector<128x1xf32>
    %26 = math.rsqrt %25 : vector<128x1xf32>
    %27 = vector.broadcast %26 : vector<128x1xf32> to vector<128x128xf32>
    %28 = arith.mulf %23, %27 : vector<128x128xf32>
    %29 = vector.broadcast %3 : vector<1x128xf32> to vector<128x128xf32>
    %30 = arith.mulf %29, %28 : vector<128x128xf32>
    %31 = vector.broadcast %4 : vector<1x128xf32> to vector<128x128xf32>
    %32 = arith.addf %30, %31 : vector<128x128xf32>
    %c0_9 = arith.constant 0 : index
    %c0_10 = arith.constant 0 : index
    %33 = vector.load %arg2[%c0_9, %c0_10] : memref<128x384xbf16, #tpu.memory_space<vmem>>, vector<128x384xbf16>
    %34 = arith.truncf %32 : vector<128x128xf32> to vector<128x128xbf16>
    %cst_11 = arith.constant dense<0.000000e+00> : vector<128x384xf32>
    %35 = tpu.matmul %34, %33, %cst_11 {dimension_numbers = #tpu.dot_dimension_numbers<[1], [0], [0], [1], [0, 0, 1, 1], [], []>} : vector<128x128xbf16>, vector<128x384xbf16>, vector<128x384xf32> -> vector<128x384xf32>
    %36 = vector.extract_strided_slice %35 {offsets = [0, 0], sizes = [128, 128], strides = [1, 1]} : vector<128x384xf32> to vector<128x128xf32>
    %cst_12 = arith.constant 0.176776692 : f32
    %37 = vector.broadcast %cst_12 : f32 to vector<128x128xf32>
    %38 = arith.mulf %36, %37 : vector<128x128xf32>
    %39 = arith.truncf %38 : vector<128x128xf32> to vector<128x128xbf16>
    %40 = vector.shape_cast %39 : vector<128x128xbf16> to vector<2x64x128xbf16>
    %41 = vector.extract_strided_slice %35 {offsets = [0, 128], sizes = [128, 128], strides = [1, 1]} : vector<128x384xf32> to vector<128x128xf32>
    %42 = arith.truncf %41 : vector<128x128xf32> to vector<128x128xbf16>
    %43 = vector.shape_cast %42 : vector<128x128xbf16> to vector<2x64x128xbf16>
    %44 = vector.extract_strided_slice %35 {offsets = [0, 256], sizes = [128, 128], strides = [1, 1]} : vector<128x384xf32> to vector<128x128xf32>
    %45 = arith.truncf %44 : vector<128x128xf32> to vector<128x128xbf16>
    %46 = vector.shape_cast %45 : vector<128x128xbf16> to vector<2x64x128xbf16>
    %47 = tpu.iota {dimensions = array<i32: 0>} : vector<64x64xi32>
    %48 = tpu.iota {dimensions = array<i32: 1>} : vector<64x64xi32>
    %49 = arith.cmpi sgt, %48, %47 : vector<64x64xi32>
    %cst_13 = arith.constant -1.000000e+30 : f32
    %cst_14 = arith.constant 0.000000e+00 : f32
    %50 = vector.broadcast %cst_13 : f32 to vector<64x64xf32>
    %51 = vector.broadcast %cst_14 : f32 to vector<64x64xf32>
    %52 = arith.select %49, %50, %51 : vector<64x64xi1>, vector<64x64xf32>
    %53 = vector.extract_strided_slice %40 {offsets = [0, 0, 0], sizes = [2, 64, 32], strides = [1, 1, 1]} : vector<2x64x128xbf16> to vector<2x64x32xbf16>
    %54 = vector.extract_strided_slice %43 {offsets = [0, 0, 0], sizes = [2, 64, 32], strides = [1, 1, 1]} : vector<2x64x128xbf16> to vector<2x64x32xbf16>
    "tpu.trace_start"() <{level = 10 : i32, message = "bqd,bkd->bqk"}> : () -> ()
    %cst_15 = arith.constant dense<0.000000e+00> : vector<2x64x64xf32>
    %55 = tpu.matmul %53, %54, %cst_15 {dimension_numbers = #tpu.dot_dimension_numbers<[2], [2], [1], [1], [0, 0, 0, 1, 1, 1], [0], [0]>} : vector<2x64x32xbf16>, vector<2x64x32xbf16>, vector<2x64x64xf32> -> vector<2x64x64xf32>
    "tpu.trace_stop"() : () -> ()
    %56 = vector.shape_cast %52 : vector<64x64xf32> to vector<1x64x64xf32>
    %57 = vector.broadcast %56 : vector<1x64x64xf32> to vector<2x64x64xf32>
    %58 = arith.addf %55, %57 : vector<2x64x64xf32>
    %cst_16 = arith.constant dense<0xFF800000> : vector<2x64xf32>
    %59 = vector.multi_reduction <maximumf>, %58, %cst_16 [2] : vector<2x64x64xf32> to vector<2x64xf32>
    %60 = vector.shape_cast %59 : vector<2x64xf32> to vector<2x64x1xf32>
    %61 = vector.broadcast %60 : vector<2x64x1xf32> to vector<2x64x64xf32>
    %62 = arith.subf %58, %61 : vector<2x64x64xf32>
    %63 = math.exp %62 : vector<2x64x64xf32>
    %cst_17 = arith.constant dense<0.000000e+00> : vector<2x64xf32>
    %64 = vector.multi_reduction <add>, %63, %cst_17 [2] : vector<2x64x64xf32> to vector<2x64xf32>
    %65 = vector.shape_cast %64 : vector<2x64xf32> to vector<2x64x1xf32>
    %66 = tpu.reciprocal %65 {approx = true} : vector<2x64x1xf32> -> vector<2x64x1xf32>
    %67 = vector.broadcast %66 : vector<2x64x1xf32> to vector<2x64x64xf32>
    %68 = arith.mulf %63, %67 : vector<2x64x64xf32>
    %69 = arith.truncf %68 : vector<2x64x64xf32> to vector<2x64x64xbf16>
    %70 = vector.extract_strided_slice %46 {offsets = [0, 0, 0], sizes = [2, 64, 32], strides = [1, 1, 1]} : vector<2x64x128xbf16> to vector<2x64x32xbf16>
    "tpu.trace_start"() <{level = 10 : i32, message = "bqk,bkd->bqd"}> : () -> ()
    %cst_18 = arith.constant dense<0.000000e+00> : vector<2x64x32xf32>
    %71 = tpu.matmul %69, %70, %cst_18 {dimension_numbers = #tpu.dot_dimension_numbers<[2], [1], [1], [2], [0, 0, 0, 1, 1, 2], [0], [0]>} : vector<2x64x64xbf16>, vector<2x64x32xbf16>, vector<2x64x32xf32> -> vector<2x64x32xf32>
    "tpu.trace_stop"() : () -> ()
    %72 = vector.extract_strided_slice %40 {offsets = [0, 0, 32], sizes = [2, 64, 32], strides = [1, 1, 1]} : vector<2x64x128xbf16> to vector<2x64x32xbf16>
    %73 = vector.extract_strided_slice %43 {offsets = [0, 0, 32], sizes = [2, 64, 32], strides = [1, 1, 1]} : vector<2x64x128xbf16> to vector<2x64x32xbf16>
    "tpu.trace_start"() <{level = 10 : i32, message = "bqd,bkd->bqk"}> : () -> ()
    %cst_19 = arith.constant dense<0.000000e+00> : vector<2x64x64xf32>
    %74 = tpu.matmul %72, %73, %cst_19 {dimension_numbers = #tpu.dot_dimension_numbers<[2], [2], [1], [1], [0, 0, 0, 1, 1, 1], [0], [0]>} : vector<2x64x32xbf16>, vector<2x64x32xbf16>, vector<2x64x64xf32> -> vector<2x64x64xf32>
    "tpu.trace_stop"() : () -> ()
    %75 = vector.shape_cast %52 : vector<64x64xf32> to vector<1x64x64xf32>
    %76 = vector.broadcast %75 : vector<1x64x64xf32> to vector<2x64x64xf32>
    %77 = arith.addf %74, %76 : vector<2x64x64xf32>
    %cst_20 = arith.constant dense<0xFF800000> : vector<2x64xf32>
    %78 = vector.multi_reduction <maximumf>, %77, %cst_20 [2] : vector<2x64x64xf32> to vector<2x64xf32>
    %79 = vector.shape_cast %78 : vector<2x64xf32> to vector<2x64x1xf32>
    %80 = vector.broadcast %79 : vector<2x64x1xf32> to vector<2x64x64xf32>
    %81 = arith.subf %77, %80 : vector<2x64x64xf32>
    %82 = math.exp %81 : vector<2x64x64xf32>
    %cst_21 = arith.constant dense<0.000000e+00> : vector<2x64xf32>
    %83 = vector.multi_reduction <add>, %82, %cst_21 [2] : vector<2x64x64xf32> to vector<2x64xf32>
    %84 = vector.shape_cast %83 : vector<2x64xf32> to vector<2x64x1xf32>
    %85 = tpu.reciprocal %84 {approx = true} : vector<2x64x1xf32> -> vector<2x64x1xf32>
    %86 = vector.broadcast %85 : vector<2x64x1xf32> to vector<2x64x64xf32>
    %87 = arith.mulf %82, %86 : vector<2x64x64xf32>
    %88 = arith.truncf %87 : vector<2x64x64xf32> to vector<2x64x64xbf16>
    %89 = vector.extract_strided_slice %46 {offsets = [0, 0, 32], sizes = [2, 64, 32], strides = [1, 1, 1]} : vector<2x64x128xbf16> to vector<2x64x32xbf16>
    "tpu.trace_start"() <{level = 10 : i32, message = "bqk,bkd->bqd"}> : () -> ()
    %cst_22 = arith.constant dense<0.000000e+00> : vector<2x64x32xf32>
    %90 = tpu.matmul %88, %89, %cst_22 {dimension_numbers = #tpu.dot_dimension_numbers<[2], [1], [1], [2], [0, 0, 0, 1, 1, 2], [0], [0]>} : vector<2x64x64xbf16>, vector<2x64x32xbf16>, vector<2x64x32xf32> -> vector<2x64x32xf32>
    "tpu.trace_stop"() : () -> ()
    %91 = vector.extract_strided_slice %40 {offsets = [0, 0, 64], sizes = [2, 64, 32], strides = [1, 1, 1]} : vector<2x64x128xbf16> to vector<2x64x32xbf16>
    %92 = vector.extract_strided_slice %43 {offsets = [0, 0, 64], sizes = [2, 64, 32], strides = [1, 1, 1]} : vector<2x64x128xbf16> to vector<2x64x32xbf16>
    "tpu.trace_start"() <{level = 10 : i32, message = "bqd,bkd->bqk"}> : () -> ()
    %cst_23 = arith.constant dense<0.000000e+00> : vector<2x64x64xf32>
    %93 = tpu.matmul %91, %92, %cst_23 {dimension_numbers = #tpu.dot_dimension_numbers<[2], [2], [1], [1], [0, 0, 0, 1, 1, 1], [0], [0]>} : vector<2x64x32xbf16>, vector<2x64x32xbf16>, vector<2x64x64xf32> -> vector<2x64x64xf32>
    "tpu.trace_stop"() : () -> ()
    %94 = vector.shape_cast %52 : vector<64x64xf32> to vector<1x64x64xf32>
    %95 = vector.broadcast %94 : vector<1x64x64xf32> to vector<2x64x64xf32>
    %96 = arith.addf %93, %95 : vector<2x64x64xf32>
    %cst_24 = arith.constant dense<0xFF800000> : vector<2x64xf32>
    %97 = vector.multi_reduction <maximumf>, %96, %cst_24 [2] : vector<2x64x64xf32> to vector<2x64xf32>
    %98 = vector.shape_cast %97 : vector<2x64xf32> to vector<2x64x1xf32>
    %99 = vector.broadcast %98 : vector<2x64x1xf32> to vector<2x64x64xf32>
    %100 = arith.subf %96, %99 : vector<2x64x64xf32>
    %101 = math.exp %100 : vector<2x64x64xf32>
    %cst_25 = arith.constant dense<0.000000e+00> : vector<2x64xf32>
    %102 = vector.multi_reduction <add>, %101, %cst_25 [2] : vector<2x64x64xf32> to vector<2x64xf32>
    %103 = vector.shape_cast %102 : vector<2x64xf32> to vector<2x64x1xf32>
    %104 = tpu.reciprocal %103 {approx = true} : vector<2x64x1xf32> -> vector<2x64x1xf32>
    %105 = vector.broadcast %104 : vector<2x64x1xf32> to vector<2x64x64xf32>
    %106 = arith.mulf %101, %105 : vector<2x64x64xf32>
    %107 = arith.truncf %106 : vector<2x64x64xf32> to vector<2x64x64xbf16>
    %108 = vector.extract_strided_slice %46 {offsets = [0, 0, 64], sizes = [2, 64, 32], strides = [1, 1, 1]} : vector<2x64x128xbf16> to vector<2x64x32xbf16>
    "tpu.trace_start"() <{level = 10 : i32, message = "bqk,bkd->bqd"}> : () -> ()
    %cst_26 = arith.constant dense<0.000000e+00> : vector<2x64x32xf32>
    %109 = tpu.matmul %107, %108, %cst_26 {dimension_numbers = #tpu.dot_dimension_numbers<[2], [1], [1], [2], [0, 0, 0, 1, 1, 2], [0], [0]>} : vector<2x64x64xbf16>, vector<2x64x32xbf16>, vector<2x64x32xf32> -> vector<2x64x32xf32>
    "tpu.trace_stop"() : () -> ()
    %110 = vector.extract_strided_slice %40 {offsets = [0, 0, 96], sizes = [2, 64, 32], strides = [1, 1, 1]} : vector<2x64x128xbf16> to vector<2x64x32xbf16>
    %111 = vector.extract_strided_slice %43 {offsets = [0, 0, 96], sizes = [2, 64, 32], strides = [1, 1, 1]} : vector<2x64x128xbf16> to vector<2x64x32xbf16>
    "tpu.trace_start"() <{level = 10 : i32, message = "bqd,bkd->bqk"}> : () -> ()
    %cst_27 = arith.constant dense<0.000000e+00> : vector<2x64x64xf32>
    %112 = tpu.matmul %110, %111, %cst_27 {dimension_numbers = #tpu.dot_dimension_numbers<[2], [2], [1], [1], [0, 0, 0, 1, 1, 1], [0], [0]>} : vector<2x64x32xbf16>, vector<2x64x32xbf16>, vector<2x64x64xf32> -> vector<2x64x64xf32>
    "tpu.trace_stop"() : () -> ()
    %113 = vector.shape_cast %52 : vector<64x64xf32> to vector<1x64x64xf32>
    %114 = vector.broadcast %113 : vector<1x64x64xf32> to vector<2x64x64xf32>
    %115 = arith.addf %112, %114 : vector<2x64x64xf32>
    %cst_28 = arith.constant dense<0xFF800000> : vector<2x64xf32>
    %116 = vector.multi_reduction <maximumf>, %115, %cst_28 [2] : vector<2x64x64xf32> to vector<2x64xf32>
    %117 = vector.shape_cast %116 : vector<2x64xf32> to vector<2x64x1xf32>
    %118 = vector.broadcast %117 : vector<2x64x1xf32> to vector<2x64x64xf32>
    %119 = arith.subf %115, %118 : vector<2x64x64xf32>
    %120 = math.exp %119 : vector<2x64x64xf32>
    %cst_29 = arith.constant dense<0.000000e+00> : vector<2x64xf32>
    %121 = vector.multi_reduction <add>, %120, %cst_29 [2] : vector<2x64x64xf32> to vector<2x64xf32>
    %122 = vector.shape_cast %121 : vector<2x64xf32> to vector<2x64x1xf32>
    %123 = tpu.reciprocal %122 {approx = true} : vector<2x64x1xf32> -> vector<2x64x1xf32>
    %124 = vector.broadcast %123 : vector<2x64x1xf32> to vector<2x64x64xf32>
    %125 = arith.mulf %120, %124 : vector<2x64x64xf32>
    %126 = arith.truncf %125 : vector<2x64x64xf32> to vector<2x64x64xbf16>
    %127 = vector.extract_strided_slice %46 {offsets = [0, 0, 96], sizes = [2, 64, 32], strides = [1, 1, 1]} : vector<2x64x128xbf16> to vector<2x64x32xbf16>
    "tpu.trace_start"() <{level = 10 : i32, message = "bqk,bkd->bqd"}> : () -> ()
    %cst_30 = arith.constant dense<0.000000e+00> : vector<2x64x32xf32>
    %128 = tpu.matmul %126, %127, %cst_30 {dimension_numbers = #tpu.dot_dimension_numbers<[2], [1], [1], [2], [0, 0, 0, 1, 1, 2], [0], [0]>} : vector<2x64x64xbf16>, vector<2x64x32xbf16>, vector<2x64x32xf32> -> vector<2x64x32xf32>
    "tpu.trace_stop"() : () -> ()
    %129 = tpu.concatenate %71, %90, %109, %128 in 2 : vector<2x64x32xf32>, vector<2x64x32xf32>, vector<2x64x32xf32>, vector<2x64x32xf32> -> vector<2x64x128xf32>
    %130 = vector.shape_cast %129 : vector<2x64x128xf32> to vector<128x128xf32>
    %c0_31 = arith.constant 0 : index
    %c0_32 = arith.constant 0 : index
    %131 = vector.load %arg3[%c0_31, %c0_32] : memref<128x128xbf16, #tpu.memory_space<vmem>>, vector<128x128xbf16>
    %c0_33 = arith.constant 0 : index
    %c0_34 = arith.constant 0 : index
    %132 = vector.load %arg6[%c0_33, %c0_34] : memref<1x128xf32, #tpu.memory_space<vmem>>, vector<1x128xf32>
    %133 = arith.truncf %130 : vector<128x128xf32> to vector<128x128xbf16>
    %cst_35 = arith.constant dense<0.000000e+00> : vector<128x128xf32>
    %134 = tpu.matmul %133, %131, %cst_35 {dimension_numbers = #tpu.dot_dimension_numbers<[1], [0], [0], [1], [0, 0, 1, 1], [], []>} : vector<128x128xbf16>, vector<128x128xbf16>, vector<128x128xf32> -> vector<128x128xf32>
    %135 = vector.broadcast %132 : vector<1x128xf32> to vector<128x128xf32>
    %136 = arith.addf %134, %135 : vector<128x128xf32>
    %137 = arith.addf %136, %1 : vector<128x128xf32>
    %cst_36 = arith.constant dense<0.000000e+00> : vector<128xf32>
    %138 = vector.multi_reduction <add>, %137, %cst_36 [1] : vector<128x128xf32> to vector<128xf32>
    %139 = vector.shape_cast %138 : vector<128xf32> to vector<128x1xf32>
    %cst_37 = arith.constant 1.280000e+02 : f32
    %140 = vector.broadcast %cst_37 : f32 to vector<128x1xf32>
    %141 = arith.divf %139, %140 : vector<128x1xf32>
    %142 = arith.mulf %137, %137 : vector<128x128xf32>
    %cst_38 = arith.constant dense<0.000000e+00> : vector<128xf32>
    %143 = vector.multi_reduction <add>, %142, %cst_38 [1] : vector<128x128xf32> to vector<128xf32>
    %144 = vector.shape_cast %143 : vector<128xf32> to vector<128x1xf32>
    %cst_39 = arith.constant 1.280000e+02 : f32
    %145 = vector.broadcast %cst_39 : f32 to vector<128x1xf32>
    %146 = arith.divf %144, %145 : vector<128x1xf32>
    %147 = arith.mulf %141, %141 : vector<128x1xf32>
    %148 = arith.subf %146, %147 : vector<128x1xf32>
    %cst_40 = arith.constant 0.000000e+00 : f32
    %149 = vector.broadcast %cst_40 : f32 to vector<128x1xf32>
    %150 = arith.maximumf %148, %149 : vector<128x1xf32>
    %151 = vector.broadcast %141 : vector<128x1xf32> to vector<128x128xf32>
    %152 = arith.subf %137, %151 : vector<128x128xf32>
    %cst_41 = arith.constant 9.99999974E-6 : f32
    %153 = vector.broadcast %cst_41 : f32 to vector<128x1xf32>
    %154 = arith.addf %150, %153 : vector<128x1xf32>
    %155 = math.rsqrt %154 : vector<128x1xf32>
    %156 = vector.broadcast %155 : vector<128x1xf32> to vector<128x128xf32>
    %157 = arith.mulf %152, %156 : vector<128x128xf32>
    %158 = vector.broadcast %5 : vector<1x128xf32> to vector<128x128xf32>
    %159 = arith.mulf %158, %157 : vector<128x128xf32>
    %160 = vector.broadcast %6 : vector<1x128xf32> to vector<128x128xf32>
    %161 = arith.addf %159, %160 : vector<128x128xf32>
    %c0_42 = arith.constant 0 : index
    %c0_43 = arith.constant 0 : index
    %162 = vector.load %arg4[%c0_42, %c0_43] : memref<128x512xbf16, #tpu.memory_space<vmem>>, vector<128x512xbf16>
    %c0_44 = arith.constant 0 : index
    %c0_45 = arith.constant 0 : index
    %163 = vector.load %arg7[%c0_44, %c0_45] : memref<1x512xf32, #tpu.memory_space<vmem>>, vector<1x512xf32>
    %164 = arith.truncf %161 : vector<128x128xf32> to vector<128x128xbf16>
    %cst_46 = arith.constant dense<0.000000e+00> : vector<128x512xf32>
    %165 = tpu.matmul %164, %162, %cst_46 {dimension_numbers = #tpu.dot_dimension_numbers<[1], [0], [0], [1], [0, 0, 1, 1], [], []>} : vector<128x128xbf16>, vector<128x512xbf16>, vector<128x512xf32> -> vector<128x512xf32>
    %166 = vector.broadcast %163 : vector<1x512xf32> to vector<128x512xf32>
    %167 = arith.addf %165, %166 : vector<128x512xf32>
    %cst_47 = arith.constant 5.000000e-01 : f32
    %168 = vector.broadcast %cst_47 : f32 to vector<128x512xf32>
    %169 = arith.mulf %168, %167 : vector<128x512xf32>
    %cst_48 = arith.constant 4.471500e-02 : f32
    %170 = vector.broadcast %cst_48 : f32 to vector<128x512xf32>
    %171 = arith.mulf %170, %167 : vector<128x512xf32>
    %172 = arith.mulf %171, %167 : vector<128x512xf32>
    %173 = arith.mulf %172, %167 : vector<128x512xf32>
    %174 = arith.addf %167, %173 : vector<128x512xf32>
    %cst_49 = arith.constant 0.797884583 : f32
    %175 = vector.broadcast %cst_49 : f32 to vector<128x512xf32>
    %176 = arith.mulf %175, %174 : vector<128x512xf32>
    %177 = math.tanh %176 : vector<128x512xf32>
    %cst_50 = arith.constant 1.000000e+00 : f32
    %178 = vector.broadcast %cst_50 : f32 to vector<128x512xf32>
    %179 = arith.addf %178, %177 : vector<128x512xf32>
    %180 = arith.mulf %169, %179 : vector<128x512xf32>
    %c0_51 = arith.constant 0 : index
    %c0_52 = arith.constant 0 : index
    %181 = vector.load %arg5[%c0_51, %c0_52] : memref<512x128xbf16, #tpu.memory_space<vmem>>, vector<512x128xbf16>
    %c0_53 = arith.constant 0 : index
    %c0_54 = arith.constant 0 : index
    %182 = vector.load %arg8[%c0_53, %c0_54] : memref<1x128xf32, #tpu.memory_space<vmem>>, vector<1x128xf32>
    %183 = arith.truncf %180 : vector<128x512xf32> to vector<128x512xbf16>
    %cst_55 = arith.constant dense<0.000000e+00> : vector<128x128xf32>
    %184 = tpu.matmul %183, %181, %cst_55 {dimension_numbers = #tpu.dot_dimension_numbers<[1], [0], [0], [1], [0, 0, 1, 1], [], []>} : vector<128x512xbf16>, vector<512x128xbf16>, vector<128x128xf32> -> vector<128x128xf32>
    %185 = vector.broadcast %182 : vector<1x128xf32> to vector<128x128xf32>
    %186 = arith.addf %184, %185 : vector<128x128xf32>
    %187 = arith.addf %186, %137 : vector<128x128xf32>
    %cst_56 = arith.constant dense<0.000000e+00> : vector<128xf32>
    %188 = vector.multi_reduction <add>, %187, %cst_56 [1] : vector<128x128xf32> to vector<128xf32>
    %189 = vector.shape_cast %188 : vector<128xf32> to vector<128x1xf32>
    %cst_57 = arith.constant 1.280000e+02 : f32
    %190 = vector.broadcast %cst_57 : f32 to vector<128x1xf32>
    %191 = arith.divf %189, %190 : vector<128x1xf32>
    %192 = arith.mulf %187, %187 : vector<128x128xf32>
    %cst_58 = arith.constant dense<0.000000e+00> : vector<128xf32>
    %193 = vector.multi_reduction <add>, %192, %cst_58 [1] : vector<128x128xf32> to vector<128xf32>
    %194 = vector.shape_cast %193 : vector<128xf32> to vector<128x1xf32>
    %cst_59 = arith.constant 1.280000e+02 : f32
    %195 = vector.broadcast %cst_59 : f32 to vector<128x1xf32>
    %196 = arith.divf %194, %195 : vector<128x1xf32>
    %197 = arith.mulf %191, %191 : vector<128x1xf32>
    %198 = arith.subf %196, %197 : vector<128x1xf32>
    %cst_60 = arith.constant 0.000000e+00 : f32
    %199 = vector.broadcast %cst_60 : f32 to vector<128x1xf32>
    %200 = arith.maximumf %198, %199 : vector<128x1xf32>
    %201 = vector.broadcast %191 : vector<128x1xf32> to vector<128x128xf32>
    %202 = arith.subf %187, %201 : vector<128x128xf32>
    %cst_61 = arith.constant 9.99999974E-6 : f32
    %203 = vector.broadcast %cst_61 : f32 to vector<128x1xf32>
    %204 = arith.addf %200, %203 : vector<128x1xf32>
    %205 = math.rsqrt %204 : vector<128x1xf32>
    %206 = vector.broadcast %205 : vector<128x1xf32> to vector<128x128xf32>
    %207 = arith.mulf %202, %206 : vector<128x128xf32>
    %208 = vector.broadcast %7 : vector<1x128xf32> to vector<128x128xf32>
    %209 = arith.mulf %208, %207 : vector<128x128xf32>
    %210 = vector.broadcast %8 : vector<1x128xf32> to vector<128x128xf32>
    %211 = arith.addf %209, %210 : vector<128x128xf32>
    %c0_62 = arith.constant 0 : index
    %c0_63 = arith.constant 0 : index
    %212 = vector.load %arg4[%c0_62, %c0_63] : memref<128x512xbf16, #tpu.memory_space<vmem>>, vector<128x512xbf16>
    %c0_64 = arith.constant 0 : index
    %c0_65 = arith.constant 0 : index
    %213 = vector.load %arg7[%c0_64, %c0_65] : memref<1x512xf32, #tpu.memory_space<vmem>>, vector<1x512xf32>
    %214 = arith.truncf %211 : vector<128x128xf32> to vector<128x128xbf16>
    %cst_66 = arith.constant dense<0.000000e+00> : vector<128x512xf32>
    %215 = tpu.matmul %214, %212, %cst_66 {dimension_numbers = #tpu.dot_dimension_numbers<[1], [0], [0], [1], [0, 0, 1, 1], [], []>} : vector<128x128xbf16>, vector<128x512xbf16>, vector<128x512xf32> -> vector<128x512xf32>
    %216 = vector.broadcast %213 : vector<1x512xf32> to vector<128x512xf32>
    %217 = arith.addf %215, %216 : vector<128x512xf32>
    %cst_67 = arith.constant 5.000000e-01 : f32
    %218 = vector.broadcast %cst_67 : f32 to vector<128x512xf32>
    %219 = arith.mulf %218, %217 : vector<128x512xf32>
    %cst_68 = arith.constant 4.471500e-02 : f32
    %220 = vector.broadcast %cst_68 : f32 to vector<128x512xf32>
    %221 = arith.mulf %220, %217 : vector<128x512xf32>
    %222 = arith.mulf %221, %217 : vector<128x512xf32>
    %223 = arith.mulf %222, %217 : vector<128x512xf32>
    %224 = arith.addf %217, %223 : vector<128x512xf32>
    %cst_69 = arith.constant 0.797884583 : f32
    %225 = vector.broadcast %cst_69 : f32 to vector<128x512xf32>
    %226 = arith.mulf %225, %224 : vector<128x512xf32>
    %227 = math.tanh %226 : vector<128x512xf32>
    %cst_70 = arith.constant 1.000000e+00 : f32
    %228 = vector.broadcast %cst_70 : f32 to vector<128x512xf32>
    %229 = arith.addf %228, %227 : vector<128x512xf32>
    %230 = arith.mulf %219, %229 : vector<128x512xf32>
    %c0_71 = arith.constant 0 : index
    %c0_72 = arith.constant 0 : index
    %231 = vector.load %arg5[%c0_71, %c0_72] : memref<512x128xbf16, #tpu.memory_space<vmem>>, vector<512x128xbf16>
    %c0_73 = arith.constant 0 : index
    %c0_74 = arith.constant 0 : index
    %232 = vector.load %arg8[%c0_73, %c0_74] : memref<1x128xf32, #tpu.memory_space<vmem>>, vector<1x128xf32>
    %233 = arith.truncf %230 : vector<128x512xf32> to vector<128x512xbf16>
    %cst_75 = arith.constant dense<0.000000e+00> : vector<128x128xf32>
    %234 = tpu.matmul %233, %231, %cst_75 {dimension_numbers = #tpu.dot_dimension_numbers<[1], [0], [0], [1], [0, 0, 1, 1], [], []>} : vector<128x512xbf16>, vector<512x128xbf16>, vector<128x128xf32> -> vector<128x128xf32>
    %235 = vector.broadcast %232 : vector<1x128xf32> to vector<128x128xf32>
    %236 = arith.addf %234, %235 : vector<128x128xf32>
    %237 = arith.addf %236, %187 : vector<128x128xf32>
    %238 = vector.shape_cast %237 : vector<128x128xf32> to vector<2x64x128xf32>
    %c0_76 = arith.constant 0 : index
    %c0_77 = arith.constant 0 : index
    %c0_78 = arith.constant 0 : index
    %239 = vector.load %arg10[%c0_76, %c0_77, %c0_78] : memref<2x64x128xf32, #tpu.memory_space<vmem>>, vector<2x64x128xf32>
    tpu.vector_store %arg10[%c0_76, %c0_77, %c0_78], %238 {strides = array<i32>} : memref<2x64x128xf32, #tpu.memory_space<vmem>>, vector<2x64x128xf32>,
    return
  }
  func.func @transform_0(%arg0: i32) -> (i32, i32, i32) {
    %c0_i32 = arith.constant 0 : i32
    %c0_i32_0 = arith.constant 0 : i32
    %c0_i32_1 = arith.constant 0 : i32
    return %arg0, %c0_i32, %c0_i32_0 : i32, i32, i32
  }
  func.func @transform_1(%arg0: i32) -> (i32, i32) {
    %c0_i32 = arith.constant 0 : i32
    %c0_i32_0 = arith.constant 0 : i32
    %c0_i32_1 = arith.constant 0 : i32
    return %c0_i32, %c0_i32_0 : i32, i32
  }
  func.func @transform_2(%arg0: i32) -> (i32, i32) {
    %c0_i32 = arith.constant 0 : i32
    %c0_i32_0 = arith.constant 0 : i32
    %c0_i32_1 = arith.constant 0 : i32
    return %c0_i32, %c0_i32_0 : i32, i32
  }
  func.func @transform_3(%arg0: i32) -> (i32, i32) {
    %c0_i32 = arith.constant 0 : i32
    %c0_i32_0 = arith.constant 0 : i32
    %c0_i32_1 = arith.constant 0 : i32
    return %c0_i32, %c0_i32_0 : i32, i32
  }
  func.func @transform_4(%arg0: i32) -> (i32, i32) {
    %c0_i32 = arith.constant 0 : i32
    %c0_i32_0 = arith.constant 0 : i32
    %c0_i32_1 = arith.constant 0 : i32
    return %c0_i32, %c0_i32_0 : i32, i32
  }
  func.func @transform_5(%arg0: i32) -> (i32, i32) {
    %c0_i32 = arith.constant 0 : i32
    %c0_i32_0 = arith.constant 0 : i32
    %c0_i32_1 = arith.constant 0 : i32
    return %c0_i32, %c0_i32_0 : i32, i32
  }
  func.func @transform_6(%arg0: i32) -> (i32, i32) {
    %c0_i32 = arith.constant 0 : i32
    %c0_i32_0 = arith.constant 0 : i32
    %c0_i32_1 = arith.constant 0 : i32
    return %c0_i32, %c0_i32_0 : i32, i32
  }
  func.func @transform_7(%arg0: i32) -> (i32, i32) {
    %c0_i32 = arith.constant 0 : i32
    %c0_i32_0 = arith.constant 0 : i32
    %c0_i32_1 = arith.constant 0 : i32
    return %c0_i32, %c0_i32_0 : i32, i32
  }
  func.func @transform_8(%arg0: i32) -> (i32, i32) {
    %c0_i32 = arith.constant 0 : i32
    %c0_i32_0 = arith.constant 0 : i32
    %c0_i32_1 = arith.constant 0 : i32
    return %c0_i32, %c0_i32_0 : i32, i32
  }
  func.func @transform_9(%arg0: i32) -> (i32, i32, i32) {
    %c0_i32 = arith.constant 0 : i32
    %c0_i32_0 = arith.constant 0 : i32
    %c0_i32_1 = arith.constant 0 : i32
    return %arg0, %c0_i32, %c0_i32_0 : i32, i32, i32
  }
}

</mosaic_0001>

<llo_original>
// kernel: tpu_custom_call.1
$region0: #{tpu_custom_call.1}
  #allocation0 [shape = 'u32[]', space=smem, size = 0x4, offset = 0x4, fixed_abs, tag = 'smem constant byte address 0x4 - core index']
  #allocation1 [shape = 'u32[72,128]{1,0:T(1,128)}', space=vmem, size = 0x9000, scoped, tag = 'internal scratch']
  %s0 = inlined_call_operand.hbm [shape: f32[4,64,128], index: 0, kind: input, shape index: {}]
  %s1 = inlined_call_operand.hbm [shape: bf16[128,384], index: 1, kind: input, shape index: {}]
  %s2 = inlined_call_operand.hbm [shape: bf16[128,128], index: 2, kind: input, shape index: {}]
  %s3 = inlined_call_operand.hbm [shape: bf16[128,512], index: 3, kind: input, shape index: {}]
  %s4 = inlined_call_operand.hbm [shape: bf16[512,128], index: 4, kind: input, shape index: {}]
  %s5 = inlined_call_operand.vmem [shape: f32[1,128], index: 5, kind: input, shape index: {}]
  %s6 = inlined_call_operand.vmem [shape: f32[1,512], index: 6, kind: input, shape index: {}]
  %s7 = inlined_call_operand.vmem [shape: f32[1,128], index: 7, kind: input, shape index: {}]
  %s8 = inlined_call_operand.hbm [shape: f32[6,128], index: 8, kind: input, shape index: {}]
  %s9 = inlined_call_operand.hbm [shape: f32[4,64,128], index: 9, kind: output, shape index: {}]
  %s10 = sld [smem:[#allocation0]]
  $region93: #{tpu_custom_call.1} parent=0
    _
  %s12 = ssub.s32 1, %s10
  %s13 = scalar_select 0, %s12, %s10
  $region1: #{tpu_custom_call.1} parent=0
    #allocation2 [shape = 'u8[131072]{0}', space=vmem, size = 0x20000, scoped, tag = 'input window, operand 0']
    #allocation3 [shape = 's32[2]{0}', space=sflag, size = 0x8, scoped, tag = 'scoped memory for tpu_custom_call.1']
    #allocation4 [shape = 's32[2]{0}', space=sflag, size = 0x8, scoped, tag = 'scoped memory for tpu_custom_call.1']
    #allocation5 [shape = 'u8[98304]{0}', space=vmem, size = 0x18000, scoped, tag = 'input window, operand 1, single buffered']
    #allocation6 [shape = 's32[1]{0}', space=sflag, size = 0x4, scoped, tag = 'scoped memory for tpu_custom_call.1']
    #allocation7 [shape = 'u8[32768]{0}', space=vmem, size = 0x8000, scoped, tag = 'input window, operand 2, single buffered']
    #allocation8 [shape = 'u8[131072]{0}', space=vmem, size = 0x20000, scoped, tag = 'input window, operand 3, single buffered']
    #allocation9 [shape = 's32[1]{0}', space=sflag, size = 0x4, scoped, tag = 'scoped memory for tpu_custom_call.1']
    #allocation10 [shape = 'u8[131072]{0}', space=vmem, size = 0x20000, scoped, tag = 'input window, operand 4, single buffered']
    #allocation11 [shape = 'u8[4096]{0}', space=vmem, size = 0x1000, scoped, tag = 'input window, operand 8, single buffered']
    #allocation12 [shape = 's32[1]{0}', space=sflag, size = 0x4, scoped, tag = 'scoped memory for tpu_custom_call.1']
    #allocation13 [shape = 'u8[131072]{0}', space=vmem, size = 0x20000, scoped, tag = 'output window, operand 0']
    %14 = vsyncpa [#allocation3], 0
    %s15 = scalar_lea.sflag [#allocation3], 1
    %16 = vsyncpa %s15, 0
    %17 = vsyncpa [#allocation6], 0
    %18 = vsyncpa [#allocation9], 0
    %19 = vsyncpa [#allocation12], 0
    %20 = vsyncpa [#allocation4], 0
    %s21 = scalar_lea.sflag [#allocation4], 1
    %22 = vsyncpa %s21, 0
    loop: start=0, step=1, limit=4
    $region2: #{tpu_custom_call.1} parent=1 // loop_pre_header
      _
    $region3: #{tpu_custom_call.1} parent=1 // loop_header
      %s24 = sphi 0, %s28
      %p25 = scmp.ge.s32.totalorder %s24, 4
      %s34 = sphi 0, %s36
      %s37 = sphi 0, %s34
      %s38 = sphi 0, %s37
      %s54 = sphi 0, %s38
      %s58 = sphi 0, %s58
      %s60 = sphi 0, %s58
      %s61 = sphi 0, %s60
      %s75 = sphi 0, %s61
      %s79 = sphi 0, %s79
      %s81 = sphi 0, %s79
      %s82 = sphi 0, %s81
      %s96 = sphi 0, %s82
      %s100 = sphi 0, %s100
      %s102 = sphi 0, %s100
      %s103 = sphi 0, %s102
      %s117 = sphi 0, %s103
      %s121 = sphi 0, %s121
      %s123 = sphi 0, %s121
      %s124 = sphi 0, %s123
      %s138 = sphi 0, %s124
      %s142 = sphi 0, %s142
      %s144 = sphi 0, %s142
      %s145 = sphi 0, %s144
      %s159 = sphi 0, %s145
      %s163 = sphi 0, %s163
      %s165 = sphi 0, %s163
      %s166 = sphi 0, %s165
      %s180 = sphi 0, %s166
      %s184 = sphi 0, %s184
      %s186 = sphi 0, %s184
      %s187 = sphi 0, %s186
      %s201 = sphi 0, %s187
      %s205 = sphi 0, %s205
      %s207 = sphi 0, %s205
      %s208 = sphi 0, %s207
      %s222 = sphi 0, %s208
      %s228 = sphi 0, %s230
      %s231 = sphi 0, %s228
      %s232 = sphi 0, %s231
      %s248 = sphi 0, %s232
    $region4: #{tpu_custom_call.1} parent=1 // loop_header_branch
      %27 = sbr.rel (%p25) target = $region8
    $region5: #{tpu_custom_call.1} parent=1 // loop_body
      %s29 = ssub.s32 %s24, 1
      %s30 = ssub.s32 %s24, 2
      %s31 = sadd.s32 %s24, 1
      %s32 = ssub.s32 %s24, %s31
      %p33 = scmp.eq.s32.totalorder %s32, 0
      %s35 = sadd.s32 %s34, 1
      %s36 = scalar_select %p33, %s34, %s35
      %p39 = pneg %p33
      %p40 = scmp.eq.s32.totalorder %s24, 1
      %p41 = por %p39, %p40
      %p42 = scmp.ne.s32.totalorder %s34, %s37
      %p43 = scmp.eq.s32.totalorder %s24, 0
      %p44 = por %p42, %p43
      %p45 = scmp.ne.s32.totalorder %s34, %s37
      %p46 = scmp.eq.s32.totalorder %s29, 1
      %p47 = por %p45, %p46
      %p48 = scmp.ne.s32.totalorder %s37, %s38
      %p49 = scmp.eq.s32.totalorder %s29, 0
      %p50 = por %p48, %p49
      %p51 = scmp.ne.s32.totalorder %s37, %s38
      %p52 = scmp.eq.s32.totalorder %s30, 1
      %p53 = por %p51, %p52
      %p55 = scmp.ne.s32.totalorder %s38, %s54
      %p56 = scmp.eq.s32.totalorder %s30, 0
      %p57 = por %p55, %p56
      %s59 = sadd.s32 %s58, 1
      %p62 = scmp.eq.s32.totalorder %s24, 1
      %p63 = scmp.ne.s32.totalorder %s58, %s60
      %p64 = scmp.eq.s32.totalorder %s24, 0
      %p65 = por %p63, %p64
      %p66 = scmp.ne.s32.totalorder %s58, %s60
      %p67 = scmp.eq.s32.totalorder %s29, 1
      %p68 = por %p66, %p67
      %p69 = scmp.ne.s32.totalorder %s60, %s61
      %p70 = scmp.eq.s32.totalorder %s29, 0
      %p71 = por %p69, %p70
      %p72 = scmp.ne.s32.totalorder %s60, %s61
      %p73 = scmp.eq.s32.totalorder %s30, 1
      %p74 = por %p72, %p73
      %p76 = scmp.ne.s32.totalorder %s61, %s75
      %p77 = scmp.eq.s32.totalorder %s30, 0
      %p78 = por %p76, %p77
      %s80 = sadd.s32 %s79, 1
      %p83 = scmp.eq.s32.totalorder %s24, 1
      %p84 = scmp.ne.s32.totalorder %s79, %s81
      %p85 = scmp.eq.s32.totalorder %s24, 0
      %p86 = por %p84, %p85
      %p87 = scmp.ne.s32.totalorder %s79, %s81
      %p88 = scmp.eq.s32.totalorder %s29, 1
      %p89 = por %p87, %p88
      %p90 = scmp.ne.s32.totalorder %s81, %s82
      %p91 = scmp.eq.s32.totalorder %s29, 0
      %p92 = por %p90, %p91
      %p93 = scmp.ne.s32.totalorder %s81, %s82
      %p94 = scmp.eq.s32.totalorder %s30, 1
      %p95 = por %p93, %p94
      %p97 = scmp.ne.s32.totalorder %s82, %s96
      %p98 = scmp.eq.s32.totalorder %s30, 0
      %p99 = por %p97, %p98
      %s101 = sadd.s32 %s100, 1
      %p104 = scmp.eq.s32.totalorder %s24, 1
      %p105 = scmp.ne.s32.totalorder %s100, %s102
      %p106 = scmp.eq.s32.totalorder %s24, 0
      %p107 = por %p105, %p106
      %p108 = scmp.ne.s32.totalorder %s100, %s102
      %p109 = scmp.eq.s32.totalorder %s29, 1
      %p110 = por %p108, %p109
      %p111 = scmp.ne.s32.totalorder %s102, %s103
      %p112 = scmp.eq.s32.totalorder %s29, 0
      %p113 = por %p111, %p112
      %p114 = scmp.ne.s32.totalorder %s102, %s103
      %p115 = scmp.eq.s32.totalorder %s30, 1
      %p116 = por %p114, %p115
      %p118 = scmp.ne.s32.totalorder %s103, %s117
      %p119 = scmp.eq.s32.totalorder %s30, 0
      %p120 = por %p118, %p119
      %s122 = sadd.s32 %s121, 1
      %p125 = scmp.eq.s32.totalorder %s24, 1
      %p126 = scmp.ne.s32.totalorder %s121, %s123
      %p127 = scmp.eq.s32.totalorder %s24, 0
      %p128 = por %p126, %p127
      %p129 = scmp.ne.s32.totalorder %s121, %s123
      %p130 = scmp.eq.s32.totalorder %s29, 1
      %p131 = por %p129, %p130
      %p132 = scmp.ne.s32.totalorder %s123, %s124
      %p133 = scmp.eq.s32.totalorder %s29, 0
      %p134 = por %p132, %p133
      %p135 = scmp.ne.s32.totalorder %s123, %s124
      %p136 = scmp.eq.s32.totalorder %s30, 1
      %p137 = por %p135, %p136
      %p139 = scmp.ne.s32.totalorder %s124, %s138
      %p140 = scmp.eq.s32.totalorder %s30, 0
      %p141 = por %p139, %p140
      %s143 = sadd.s32 %s142, 1
      %p146 = scmp.eq.s32.totalorder %s24, 1
      %p147 = scmp.ne.s32.totalorder %s142, %s144
      %p148 = scmp.eq.s32.totalorder %s24, 0
      %p149 = por %p147, %p148
      %p150 = scmp.ne.s32.totalorder %s142, %s144
      %p151 = scmp.eq.s32.totalorder %s29, 1
      %p152 = por %p150, %p151
      %p153 = scmp.ne.s32.totalorder %s144, %s145
      %p154 = scmp.eq.s32.totalorder %s29, 0
      %p155 = por %p153, %p154
      %p156 = scmp.ne.s32.totalorder %s144, %s145
      %p157 = scmp.eq.s32.totalorder %s30, 1
      %p158 = por %p156, %p157
      %p160 = scmp.ne.s32.totalorder %s145, %s159
      %p161 = scmp.eq.s32.totalorder %s30, 0
      %p162 = por %p160, %p161
      %s164 = sadd.s32 %s163, 1
      %p167 = scmp.eq.s32.totalorder %s24, 1
      %p168 = scmp.ne.s32.totalorder %s163, %s165
      %p169 = scmp.eq.s32.totalorder %s24, 0
      %p170 = por %p168, %p169
      %p171 = scmp.ne.s32.totalorder %s163, %s165
      %p172 = scmp.eq.s32.totalorder %s29, 1
      %p173 = por %p171, %p172
      %p174 = scmp.ne.s32.totalorder %s165, %s166
      %p175 = scmp.eq.s32.totalorder %s29, 0
      %p176 = por %p174, %p175
      %p177 = scmp.ne.s32.totalorder %s165, %s166
      %p178 = scmp.eq.s32.totalorder %s30, 1
      %p179 = por %p177, %p178
      %p181 = scmp.ne.s32.totalorder %s166, %s180
      %p182 = scmp.eq.s32.totalorder %s30, 0
      %p183 = por %p181, %p182
      %s185 = sadd.s32 %s184, 1
      %p188 = scmp.eq.s32.totalorder %s24, 1
      %p189 = scmp.ne.s32.totalorder %s184, %s186
      %p190 = scmp.eq.s32.totalorder %s24, 0
      %p191 = por %p189, %p190
      %p192 = scmp.ne.s32.totalorder %s184, %s186
      %p193 = scmp.eq.s32.totalorder %s29, 1
      %p194 = por %p192, %p193
      %p195 = scmp.ne.s32.totalorder %s186, %s187
      %p196 = scmp.eq.s32.totalorder %s29, 0
      %p197 = por %p195, %p196
      %p198 = scmp.ne.s32.totalorder %s186, %s187
      %p199 = scmp.eq.s32.totalorder %s30, 1
      %p200 = por %p198, %p199
      %p202 = scmp.ne.s32.totalorder %s187, %s201
      %p203 = scmp.eq.s32.totalorder %s30, 0
      %p204 = por %p202, %p203
      %s206 = sadd.s32 %s205, 1
      %p209 = scmp.eq.s32.totalorder %s24, 1
      %p210 = scmp.ne.s32.totalorder %s205, %s207
      %p211 = scmp.eq.s32.totalorder %s24, 0
      %p212 = por %p210, %p211
      %p213 = scmp.ne.s32.totalorder %s205, %s207
      %p214 = scmp.eq.s32.totalorder %s29, 1
      %p215 = por %p213, %p214
      %p216 = scmp.ne.s32.totalorder %s207, %s208
      %p217 = scmp.eq.s32.totalorder %s29, 0
      %p218 = por %p216, %p217
      %p219 = scmp.ne.s32.totalorder %s207, %s208
      %p220 = scmp.eq.s32.totalorder %s30, 1
      %p221 = por %p219, %p220
      %p223 = scmp.ne.s32.totalorder %s208, %s222
      %p224 = scmp.eq.s32.totalorder %s30, 0
      %p225 = por %p223, %p224
      %s226 = ssub.s32 %s24, %s31
      %p227 = scmp.eq.s32.totalorder %s226, 0
      %s229 = sadd.s32 %s228, 1
      %s230 = scalar_select %p227, %s228, %s229
      %p233 = pneg %p227
      %p234 = scmp.eq.s32.totalorder %s24, 1
      %p235 = por %p233, %p234
      %p236 = scmp.ne.s32.totalorder %s228, %s231
      %p237 = scmp.eq.s32.totalorder %s24, 0
      %p238 = por %p236, %p237
      %p239 = scmp.ne.s32.totalorder %s228, %s231
      %p240 = scmp.eq.s32.totalorder %s29, 1
      %p241 = por %p239, %p240
      %p242 = scmp.ne.s32.totalorder %s231, %s232
      %p243 = scmp.eq.s32.totalorder %s29, 0
      %p244 = por %p242, %p243
      %p245 = scmp.ne.s32.totalorder %s231, %s232
      %p246 = scmp.eq.s32.totalorder %s30, 1
      %p247 = por %p245, %p246
      %p249 = scmp.ne.s32.totalorder %s232, %s248
      %p250 = scmp.eq.s32.totalorder %s30, 0
      %p251 = por %p249, %p250
      %p252 = scmp.le.s32.totalorder 1, %s24
      %p253 = scmp.lt.s32.totalorder %s24, 3
      %p254 = pnand %p252, %p253
      %p255 = pneg %p254
      // Predicated region
      $region9: #{tpu_custom_call.1} parent=5 // pred_check
        _
      $region10: #{tpu_custom_call.1} parent=5 // pred_check_branch
        %257 = sbr.rel (%p254) target = $region12
      $region11: #{tpu_custom_call.1} parent=5 // pred_region
        %s258 = ssub.s32 %s24, 1
        // Predicated region
        $region13: #{tpu_custom_call.1} parent=11 // pred_check
          %p259 = pneg %p71
        $region14: #{tpu_custom_call.1} parent=11 // pred_check_branch
          %261 = sbr.rel (%p259) target = $region16
        $region15: #{tpu_custom_call.1} parent=11 // pred_region
          %263 = vsyncadd [#allocation6], 0
          %s264 = sshll.u32 %s1, 4
          %s265 = int_to_ptr.hbm [resolvable:$true] %s264
          %s266 = sshll.u32 [#allocation5], 4
          %s267 = int_to_ptr.vmem [resolvable:$true] %s266
          %272 = dma.hbm_to_vmem [thread:$0]  %s265, 3072, %s267, [#allocation6], 192, 192, 12
        $region16: #{tpu_custom_call.1} parent=11 // pred_fallthru
          _
        // Predicated region
        $region17: #{tpu_custom_call.1} parent=11 // pred_check
          %p273 = pneg %p92
        $region18: #{tpu_custom_call.1} parent=11 // pred_check_branch
          %275 = sbr.rel (%p273) target = $region20
        $region19: #{tpu_custom_call.1} parent=11 // pred_region
          %277 = vsyncadd [#allocation6], 0
          %s278 = sshll.u32 %s2, 4
          %s279 = int_to_ptr.hbm [resolvable:$true] %s278
          %s280 = sshll.u32 [#allocation7], 4
          %s281 = int_to_ptr.vmem [resolvable:$true] %s280
          %286 = dma.hbm_to_vmem [thread:$0]  %s279, 1024, %s281, [#allocation6], 64, 64, 4
        $region20: #{tpu_custom_call.1} parent=11 // pred_fallthru
          _
        // Predicated region
        $region21: #{tpu_custom_call.1} parent=11 // pred_check
          %p287 = pneg %p113
        $region22: #{tpu_custom_call.1} parent=11 // pred_check_branch
          %289 = sbr.rel (%p287) target = $region24
        $region23: #{tpu_custom_call.1} parent=11 // pred_region
          %291 = vsyncadd [#allocation9], 0
          %s292 = sshll.u32 %s3, 4
          %s293 = int_to_ptr.hbm [resolvable:$true] %s292
          %s294 = sshll.u32 [#allocation8], 4
          %s295 = int_to_ptr.vmem [resolvable:$true] %s294
          %300 = dma.hbm_to_vmem [thread:$0]  %s293, 4096, %s295, [#allocation9], 256, 256, 16
        $region24: #{tpu_custom_call.1} parent=11 // pred_fallthru
          _
        // Predicated region
        $region25: #{tpu_custom_call.1} parent=11 // pred_check
          %p301 = pneg %p134
        $region26: #{tpu_custom_call.1} parent=11 // pred_check_branch
          %303 = sbr.rel (%p301) target = $region28
        $region27: #{tpu_custom_call.1} parent=11 // pred_region
          %305 = vsyncadd [#allocation9], 0
          %s306 = sshll.u32 %s4, 4
          %s307 = int_to_ptr.hbm [resolvable:$true] %s306
          %s308 = sshll.u32 [#allocation10], 4
          %s309 = int_to_ptr.vmem [resolvable:$true] %s308
          %314 = dma.hbm_to_vmem [thread:$0]  %s307, 4096, %s309, [#allocation9], 64, 64, 4
        $region28: #{tpu_custom_call.1} parent=11 // pred_fallthru
          _
        // Predicated region
        $region29: #{tpu_custom_call.1} parent=11 // pred_check
          %p315 = pneg %p155
        $region30: #{tpu_custom_call.1} parent=11 // pred_check_branch
          %317 = sbr.rel (%p315) target = $region32
        $region31: #{tpu_custom_call.1} parent=11 // pred_region
          _
        $region32: #{tpu_custom_call.1} parent=11 // pred_fallthru
          _
        // Predicated region
        $region33: #{tpu_custom_call.1} parent=11 // pred_check
          %p318 = pneg %p176
        $region34: #{tpu_custom_call.1} parent=11 // pred_check_branch
          %320 = sbr.rel (%p318) target = $region36
        $region35: #{tpu_custom_call.1} parent=11 // pred_region
          _
        $region36: #{tpu_custom_call.1} parent=11 // pred_fallthru
          _
        // Predicated region
        $region37: #{tpu_custom_call.1} parent=11 // pred_check
          %p321 = pneg %p197
        $region38: #{tpu_custom_call.1} parent=11 // pred_check_branch
          %323 = sbr.rel (%p321) target = $region40
        $region39: #{tpu_custom_call.1} parent=11 // pred_region
          _
        $region40: #{tpu_custom_call.1} parent=11 // pred_fallthru
          _
        // Predicated region
        $region41: #{tpu_custom_call.1} parent=11 // pred_check
          %p324 = pneg %p218
        $region42: #{tpu_custom_call.1} parent=11 // pred_check_branch
          %326 = sbr.rel (%p324) target = $region44
        $region43: #{tpu_custom_call.1} parent=11 // pred_region
          %328 = vsyncadd [#allocation12], 0
          %s330 = sshll.u32 %s8, 4
          %s331 = int_to_ptr.hbm [resolvable:$true] %s330
          %s332 = sshll.u32 [#allocation11], 4
          %s333 = int_to_ptr.vmem [resolvable:$true] %s332
          %335 = dma.hbm_to_vmem [thread:$0]  %s331, 128, %s333, [#allocation12]
        $region44: #{tpu_custom_call.1} parent=11 // pred_fallthru
          _
      $region12: #{tpu_custom_call.1} parent=5 // pred_fallthru
        _
      %p336 = scmp.lt.s32.totalorder %s24, 2
      // Predicated region
      $region45: #{tpu_custom_call.1} parent=5 // pred_check
        %p337 = pneg %p336
      $region46: #{tpu_custom_call.1} parent=5 // pred_check_branch
        %339 = sbr.rel (%p337) target = $region48
      $region47: #{tpu_custom_call.1} parent=5 // pred_region
        // Predicated region
        $region49: #{tpu_custom_call.1} parent=47 // pred_check
          %p340 = pneg %p44
        $region50: #{tpu_custom_call.1} parent=47 // pred_check_branch
          %342 = sbr.rel (%p340) target = $region52
        $region51: #{tpu_custom_call.1} parent=47 // pred_region
          %s343 = sand.u32 %s34, 1
          %s344 = scalar_lea.sflag [#allocation3], %s343
          %s345 = sand.u32 %s34, 1
          %s346 = smul.addr %s345, 128
          %s347 = scalar_lea.vmem [#allocation2], %s346
          %s348 = smul.u32 2, %s24
          %350 = vsyncadd %s344, 0
          %s351 = smul.addr %s348, 8
          %s352 = smul.addr %s351, 8
          %s353 = scalar_lea.hbm %s0, %s352
          %s354 = sshll.u32 %s353, 4
          %s355 = int_to_ptr.hbm [resolvable:$true] %s354
          %s356 = sshll.u32 %s347, 4
          %s357 = int_to_ptr.vmem [resolvable:$true] %s356
          %362 = dma.hbm_to_vmem [thread:$0]  %s355, 2048, %s357, %s344, 128, 128, 8
        $region52: #{tpu_custom_call.1} parent=47 // pred_fallthru
          _
      $region48: #{tpu_custom_call.1} parent=5 // pred_fallthru
        _
      %p363 = scmp.le.s32.totalorder 1, %s24
      %p364 = scmp.lt.s32.totalorder %s24, 3
      %p365 = pnand %p363, %p364
      %p366 = pneg %p365
      // Predicated region
      $region53: #{tpu_custom_call.1} parent=5 // pred_check
        _
      $region54: #{tpu_custom_call.1} parent=5 // pred_check_branch
        %368 = sbr.rel (%p365) target = $region56
      $region55: #{tpu_custom_call.1} parent=5 // pred_region
        %s369 = ssub.s32 %s24, 1
        %s370 = sand.u32 %s37, 1
        %s371 = scalar_lea.sflag [#allocation3], %s370
        %s372 = sand.u32 %s37, 1
        %s373 = smul.addr %s372, 128
        %s374 = scalar_lea.vmem [#allocation2], %s373
        // Predicated region
        $region57: #{tpu_custom_call.1} parent=55 // pred_check
          %p375 = pneg %p50
        $region58: #{tpu_custom_call.1} parent=55 // pred_check_branch
          %377 = sbr.rel (%p375) target = $region60
        $region59: #{tpu_custom_call.1} parent=55 // pred_region
          %379 = dma.done %s371, 2048
        $region60: #{tpu_custom_call.1} parent=55 // pred_fallthru
          _
        // Predicated region
        $region61: #{tpu_custom_call.1} parent=55 // pred_check
          %p380 = pneg %p71
        $region62: #{tpu_custom_call.1} parent=55 // pred_check_branch
          %382 = sbr.rel (%p380) target = $region64
        $region63: #{tpu_custom_call.1} parent=55 // pred_region
          %384 = dma.done [#allocation6], 3072
        $region64: #{tpu_custom_call.1} parent=55 // pred_fallthru
          _
        // Predicated region
        $region65: #{tpu_custom_call.1} parent=55 // pred_check
          %p385 = pneg %p92
        $region66: #{tpu_custom_call.1} parent=55 // pred_check_branch
          %387 = sbr.rel (%p385) target = $region68
        $region67: #{tpu_custom_call.1} parent=55 // pred_region
          %389 = dma.done [#allocation6], 1024
        $region68: #{tpu_custom_call.1} parent=55 // pred_fallthru
          _
        // Predicated region
        $region69: #{tpu_custom_call.1} parent=55 // pred_check
          %p390 = pneg %p113
        $region70: #{tpu_custom_call.1} parent=55 // pred_check_branch
          %392 = sbr.rel (%p390) target = $region72
        $region71: #{tpu_custom_call.1} parent=55 // pred_region
          %394 = dma.done [#allocation9], 4096
        $region72: #{tpu_custom_call.1} parent=55 // pred_fallthru
          _
        // Predicated region
        $region73: #{tpu_custom_call.1} parent=55 // pred_check
          %p395 = pneg %p134
        $region74: #{tpu_custom_call.1} parent=55 // pred_check_branch
          %397 = sbr.rel (%p395) target = $region76
        $region75: #{tpu_custom_call.1} parent=55 // pred_region
          %399 = dma.done [#allocation9], 4096
        $region76: #{tpu_custom_call.1} parent=55 // pred_fallthru
          _
        // Predicated region
        $region77: #{tpu_custom_call.1} parent=55 // pred_check
          %p400 = pneg %p218
        $region78: #{tpu_custom_call.1} parent=55 // pred_check_branch
          %402 = sbr.rel (%p400) target = $region80
        $region79: #{tpu_custom_call.1} parent=55 // pred_region
          %404 = dma.done [#allocation12], 128
        $region80: #{tpu_custom_call.1} parent=55 // pred_fallthru
          _
        %s405 = sand.u32 %s37, 1
        %s406 = scalar_lea.sflag [#allocation3], %s405
        %s407 = sand.u32 %s37, 1
        %s408 = smul.addr %s407, 128
        %s409 = scalar_lea.vmem [#allocation2], %s408
        %p410 = pneg %p50
        %p411 = pneg %p47
        %p412 = pneg %p71
        %p413 = pneg %p68
        %p414 = pneg %p92
        %p415 = pneg %p89
        %p416 = pneg %p113
        %p417 = pneg %p110
        %p418 = pneg %p134
        %p419 = pneg %p131
        %p420 = pneg %p155
        %p421 = pneg %p152
        %p422 = pneg %p176
        %p423 = pneg %p173
        %p424 = pneg %p197
        %p425 = pneg %p194
        %p426 = pneg %p218
        %p427 = pneg %p215
        %p428 = pneg %p244
        %p429 = pneg %p241
        %s430 = sand.u32 %s231, 1
        %s431 = scalar_lea.sflag [#allocation4], %s430
        %s432 = sand.u32 %s231, 1
        %s433 = smul.addr %s432, 128
        %s434 = scalar_lea.vmem [#allocation13], %s433
        %s435 = smul.u32 2, %s29
        %s436 = smul.u32 2, %s29
        %v438 = vld [vmem:[%s374] sm:$0xff]
        %v439 = vld [vmem:[%s374 + $0x8] sm:$0xff]
        %v440 = vld [vmem:[%s374 + $0x10] sm:$0xff]
        %v441 = vld [vmem:[%s374 + $0x18] sm:$0xff]
        %v442 = vld [vmem:[%s374 + $0x20] sm:$0xff]
        %v443 = vld [vmem:[%s374 + $0x28] sm:$0xff]
        %v444 = vld [vmem:[%s374 + $0x30] sm:$0xff]
        %v445 = vld [vmem:[%s374 + $0x38] sm:$0xff]
        %v446 = vld [vmem:[%s374 + $0x40] sm:$0xff]
        %v447 = vld [vmem:[%s374 + $0x48] sm:$0xff]
        %v448 = vld [vmem:[%s374 + $0x50] sm:$0xff]
        %v449 = vld [vmem:[%s374 + $0x58] sm:$0xff]
        %v450 = vld [vmem:[%s374 + $0x60] sm:$0xff]
        %v451 = vld [vmem:[%s374 + $0x68] sm:$0xff]
        %v452 = vld [vmem:[%s374 + $0x70] sm:$0xff]
        %v453 = vld [vmem:[%s374 + $0x78] sm:$0xff]
        %v454 = vld [vmem:[#allocation11] sm:$0x3f]
        %455 = vadd.xlane.f32.xlu0 %v438
        %v456 = vpop.xlane.xlu0 %455
        %457 = vadd.xlane.f32.xlu0 %v439
        %v458 = vpop.xlane.xlu0 %457
        %459 = vadd.xlane.f32.xlu0 %v440
        %v460 = vpop.xlane.xlu0 %459
        %461 = vadd.xlane.f32.xlu0 %v441
        %v462 = vpop.xlane.xlu0 %461
        %463 = vadd.xlane.f32.xlu0 %v442
        %v464 = vpop.xlane.xlu0 %463
        %465 = vadd.xlane.f32.xlu0 %v443
        %v466 = vpop.xlane.xlu0 %465
        %467 = vadd.xlane.f32.xlu0 %v444
        %v468 = vpop.xlane.xlu0 %467
        %469 = vadd.xlane.f32.xlu0 %v445
        %v470 = vpop.xlane.xlu0 %469
        %471 = vadd.xlane.f32.xlu0 %v446
        %v472 = vpop.xlane.xlu0 %471
        %473 = vadd.xlane.f32.xlu0 %v447
        %v474 = vpop.xlane.xlu0 %473
        %475 = vadd.xlane.f32.xlu0 %v448
        %v476 = vpop.xlane.xlu0 %475
        %477 = vadd.xlane.f32.xlu0 %v449
        %v478 = vpop.xlane.xlu0 %477
        %479 = vadd.xlane.f32.xlu0 %v450
        %v480 = vpop.xlane.xlu0 %479
        %481 = vadd.xlane.f32.xlu0 %v451
        %v482 = vpop.xlane.xlu0 %481
        %483 = vadd.xlane.f32.xlu0 %v452
        %v484 = vpop.xlane.xlu0 %483
        %485 = vadd.xlane.f32.xlu0 %v453
        %v486 = vpop.xlane.xlu0 %485
        %v487 = vrcp.pop 128.0
        %v488 = vmul.f32 128.0, %v487
        %v489 = vsub.f32 1.0, %v488
        %v490 = vmul.f32 %v487, %v489
        %v491 = vadd.f32 %v487, %v490
        %vm492 = vweird.f32 %v487
        %v493 = vsel %vm492, %v487, %v491
        %v494 = vmul.f32 %v456, %v493
        %v495 = vmul.f32 %v458, %v493
        %v496 = vmul.f32 %v460, %v493
        %v497 = vmul.f32 %v462, %v493
        %v498 = vmul.f32 %v464, %v493
        %v499 = vmul.f32 %v466, %v493
        %v500 = vmul.f32 %v468, %v493
        %v501 = vmul.f32 %v470, %v493
        %v502 = vmul.f32 %v472, %v493
        %v503 = vmul.f32 %v474, %v493
        %v504 = vmul.f32 %v476, %v493
        %v505 = vmul.f32 %v478, %v493
        %v506 = vmul.f32 %v480, %v493
        %v507 = vmul.f32 %v482, %v493
        %v508 = vmul.f32 %v484, %v493
        %v509 = vmul.f32 %v486, %v493
        %v510 = vmul.f32 %v438, %v438
        %v511 = vmul.f32 %v439, %v439
        %v512 = vmul.f32 %v440, %v440
        %v513 = vmul.f32 %v441, %v441
        %v514 = vmul.f32 %v442, %v442
        %v515 = vmul.f32 %v443, %v443
        %v516 = vmul.f32 %v444, %v444
        %v517 = vmul.f32 %v445, %v445
        %v518 = vmul.f32 %v446, %v446
        %v519 = vmul.f32 %v447, %v447
        %v520 = vmul.f32 %v448, %v448
        %v521 = vmul.f32 %v449, %v449
        %v522 = vmul.f32 %v450, %v450
        %v523 = vmul.f32 %v451, %v451
        %v524 = vmul.f32 %v452, %v452
        %v525 = vmul.f32 %v453, %v453
        %526 = vadd.xlane.f32.xlu0 %v510
        %v527 = vpop.xlane.xlu0 %526
        %528 = vadd.xlane.f32.xlu0 %v511
        %v529 = vpop.xlane.xlu0 %528
        %530 = vadd.xlane.f32.xlu0 %v512
        %v531 = vpop.xlane.xlu0 %530
        %532 = vadd.xlane.f32.xlu0 %v513
        %v533 = vpop.xlane.xlu0 %532
        %534 = vadd.xlane.f32.xlu0 %v514
        %v535 = vpop.xlane.xlu0 %534
        %536 = vadd.xlane.f32.xlu0 %v515
        %v537 = vpop.xlane.xlu0 %536
        %538 = vadd.xlane.f32.xlu0 %v516
        %v539 = vpop.xlane.xlu0 %538
        %540 = vadd.xlane.f32.xlu0 %v517
        %v541 = vpop.xlane.xlu0 %540
        %542 = vadd.xlane.f32.xlu0 %v518
        %v543 = vpop.xlane.xlu0 %542
        %544 = vadd.xlane.f32.xlu0 %v519
        %v545 = vpop.xlane.xlu0 %544
        %546 = vadd.xlane.f32.xlu0 %v520
        %v547 = vpop.xlane.xlu0 %546
        %548 = vadd.xlane.f32.xlu0 %v521
        %v549 = vpop.xlane.xlu0 %548
        %550 = vadd.xlane.f32.xlu0 %v522
        %v551 = vpop.xlane.xlu0 %550
        %552 = vadd.xlane.f32.xlu0 %v523
        %v553 = vpop.xlane.xlu0 %552
        %554 = vadd.xlane.f32.xlu0 %v524
        %v555 = vpop.xlane.xlu0 %554
        %556 = vadd.xlane.f32.xlu0 %v525
        %v557 = vpop.xlane.xlu0 %556
        %v558 = vmul.f32 %v527, %v493
        %v559 = vmul.f32 %v529, %v493
        %v560 = vmul.f32 %v531, %v493
        %v561 = vmul.f32 %v533, %v493
        %v562 = vmul.f32 %v535, %v493
        %v563 = vmul.f32 %v537, %v493
        %v564 = vmul.f32 %v539, %v493
        %v565 = vmul.f32 %v541, %v493
        %v566 = vmul.f32 %v543, %v493
        %v567 = vmul.f32 %v545, %v493
        %v568 = vmul.f32 %v547, %v493
        %v569 = vmul.f32 %v549, %v493
        %v570 = vmul.f32 %v551, %v493
        %v571 = vmul.f32 %v553, %v493
        %v572 = vmul.f32 %v555, %v493
        %v573 = vmul.f32 %v557, %v493
        %v574 = vmul.f32 %v494, %v494
        %v575 = vmul.f32 %v495, %v495
        %v576 = vmul.f32 %v496, %v496
        %v577 = vmul.f32 %v497, %v497
        %v578 = vmul.f32 %v498, %v498
        %v579 = vmul.f32 %v499, %v499
        %v580 = vmul.f32 %v500, %v500
        %v581 = vmul.f32 %v501, %v501
        %v582 = vmul.f32 %v502, %v502
        %v583 = vmul.f32 %v503, %v503
        %v584 = vmul.f32 %v504, %v504
        %v585 = vmul.f32 %v505, %v505
        %v586 = vmul.f32 %v506, %v506
        %v587 = vmul.f32 %v507, %v507
        %v588 = vmul.f32 %v508, %v508
        %v589 = vmul.f32 %v509, %v509
        %v590 = vsub.f32 %v558, %v574
        %v591 = vsub.f32 %v559, %v575
        %v592 = vsub.f32 %v560, %v576
        %v593 = vsub.f32 %v561, %v577
        %v594 = vsub.f32 %v562, %v578
        %v595 = vsub.f32 %v563, %v579
        %v596 = vsub.f32 %v564, %v580
        %v597 = vsub.f32 %v565, %v581
        %v598 = vsub.f32 %v566, %v582
        %v599 = vsub.f32 %v567, %v583
        %v600 = vsub.f32 %v568, %v584
        %v601 = vsub.f32 %v569, %v585
        %v602 = vsub.f32 %v570, %v586
        %v603 = vsub.f32 %v571, %v587
        %v604 = vsub.f32 %v572, %v588
        %v605 = vsub.f32 %v573, %v589
        %v606 = vmax.f32 %v590, 0.0
        %v607 = vmax.f32 %v591, 0.0
        %v608 = vmax.f32 %v592, 0.0
        %v609 = vmax.f32 %v593, 0.0
        %v610 = vmax.f32 %v594, 0.0
        %v611 = vmax.f32 %v595, 0.0
        %v612 = vmax.f32 %v596, 0.0
        %v613 = vmax.f32 %v597, 0.0
        %v614 = vmax.f32 %v598, 0.0
        %v615 = vmax.f32 %v599, 0.0
        %v616 = vmax.f32 %v600, 0.0
        %v617 = vmax.f32 %v601, 0.0
        %v618 = vmax.f32 %v602, 0.0
        %v619 = vmax.f32 %v603, 0.0
        %v620 = vmax.f32 %v604, 0.0
        %v621 = vmax.f32 %v605, 0.0
        %v622 = vsub.f32 %v438, %v494
        %v623 = vsub.f32 %v439, %v495
        %v624 = vsub.f32 %v440, %v496
        %v625 = vsub.f32 %v441, %v497
        %v626 = vsub.f32 %v442, %v498
        %v627 = vsub.f32 %v443, %v499
        %v628 = vsub.f32 %v444, %v500
        %v629 = vsub.f32 %v445, %v501
        %v630 = vsub.f32 %v446, %v502
        %v631 = vsub.f32 %v447, %v503
        %v632 = vsub.f32 %v448, %v504
        %v633 = vsub.f32 %v449, %v505
        %v634 = vsub.f32 %v450, %v506
        %v635 = vsub.f32 %v451, %v507
        %v636 = vsub.f32 %v452, %v508
        %v637 = vsub.f32 %v453, %v509
        %v638 = vadd.f32 %v606, 1e-05
        %v639 = vadd.f32 %v607, 1e-05
        %v640 = vadd.f32 %v608, 1e-05
        %v641 = vadd.f32 %v609, 1e-05
        %v642 = vadd.f32 %v610, 1e-05
        %v643 = vadd.f32 %v611, 1e-05
        %v644 = vadd.f32 %v612, 1e-05
        %v645 = vadd.f32 %v613, 1e-05
        %v646 = vadd.f32 %v614, 1e-05
        %v647 = vadd.f32 %v615, 1e-05
        %v648 = vadd.f32 %v616, 1e-05
        %v649 = vadd.f32 %v617, 1e-05
        %v650 = vadd.f32 %v618, 1e-05
        %v651 = vadd.f32 %v619, 1e-05
        %v652 = vadd.f32 %v620, 1e-05
        %v653 = vadd.f32 %v621, 1e-05
        %v654 = vrsqrt.pop %v638
        %v655 = vmul.f32 %v654, %v638
        %v656 = vmul.f32 %v655, %v654
        %v657 = vmul.f32 0.5, %v656
        %v658 = vsub.f32 1.5, %v657
        %v659 = vmul.f32 %v654, %v658
        %vm660 = vweird.f32 %v638
        %vm661 = vweird.f32 %v654
        %vm662 = vmor %vm660, %vm661
        %v663 = vsel %vm662, %v654, %v659
        %v664 = vrsqrt.pop %v639
        %v665 = vmul.f32 %v664, %v639
        %v666 = vmul.f32 %v665, %v664
        %v667 = vmul.f32 0.5, %v666
        %v668 = vsub.f32 1.5, %v667
        %v669 = vmul.f32 %v664, %v668
        %vm670 = vweird.f32 %v639
        %vm671 = vweird.f32 %v664
        %vm672 = vmor %vm670, %vm671
        %v673 = vsel %vm672, %v664, %v669
        %v674 = vrsqrt.pop %v640
        %v675 = vmul.f32 %v674, %v640
        %v676 = vmul.f32 %v675, %v674
        %v677 = vmul.f32 0.5, %v676
        %v678 = vsub.f32 1.5, %v677
        %v679 = vmul.f32 %v674, %v678
        %vm680 = vweird.f32 %v640
        %vm681 = vweird.f32 %v674
        %vm682 = vmor %vm680, %vm681
        %v683 = vsel %vm682, %v674, %v679
        %v684 = vrsqrt.pop %v641
        %v685 = vmul.f32 %v684, %v641
        %v686 = vmul.f32 %v685, %v684
        %v687 = vmul.f32 0.5, %v686
        %v688 = vsub.f32 1.5, %v687
        %v689 = vmul.f32 %v684, %v688
        %vm690 = vweird.f32 %v641
        %vm691 = vweird.f32 %v684
        %vm692 = vmor %vm690, %vm691
        %v693 = vsel %vm692, %v684, %v689
        %v694 = vrsqrt.pop %v642
        %v695 = vmul.f32 %v694, %v642
        %v696 = vmul.f32 %v695, %v694
        %v697 = vmul.f32 0.5, %v696
        %v698 = vsub.f32 1.5, %v697
        %v699 = vmul.f32 %v694, %v698
        %vm700 = vweird.f32 %v642
        %vm701 = vweird.f32 %v694
        %vm702 = vmor %vm700, %vm701
        %v703 = vsel %vm702, %v694, %v699
        %v704 = vrsqrt.pop %v643
        %v705 = vmul.f32 %v704, %v643
        %v706 = vmul.f32 %v705, %v704
        %v707 = vmul.f32 0.5, %v706
        %v708 = vsub.f32 1.5, %v707
        %v709 = vmul.f32 %v704, %v708
        %vm710 = vweird.f32 %v643
        %vm711 = vweird.f32 %v704
        %vm712 = vmor %vm710, %vm711
        %v713 = vsel %vm712, %v704, %v709
        %v714 = vrsqrt.pop %v644
        %v715 = vmul.f32 %v714, %v644
        %v716 = vmul.f32 %v715, %v714
        %v717 = vmul.f32 0.5, %v716
        %v718 = vsub.f32 1.5, %v717
        %v719 = vmul.f32 %v714, %v718
        %vm720 = vweird.f32 %v644
        %vm721 = vweird.f32 %v714
        %vm722 = vmor %vm720, %vm721
        %v723 = vsel %vm722, %v714, %v719
        %v724 = vrsqrt.pop %v645
        %v725 = vmul.f32 %v724, %v645
        %v726 = vmul.f32 %v725, %v724
        %v727 = vmul.f32 0.5, %v726
        %v728 = vsub.f32 1.5, %v727
        %v729 = vmul.f32 %v724, %v728
        %vm730 = vweird.f32 %v645
        %vm731 = vweird.f32 %v724
        %vm732 = vmor %vm730, %vm731
        %v733 = vsel %vm732, %v724, %v729
        %v734 = vrsqrt.pop %v646
        %v735 = vmul.f32 %v734, %v646
        %v736 = vmul.f32 %v735, %v734
        %v737 = vmul.f32 0.5, %v736
        %v738 = vsub.f32 1.5, %v737
        %v739 = vmul.f32 %v734, %v738
        %vm740 = vweird.f32 %v646
        %vm741 = vweird.f32 %v734
        %vm742 = vmor %vm740, %vm741
        %v743 = vsel %vm742, %v734, %v739
        %v744 = vrsqrt.pop %v647
        %v745 = vmul.f32 %v744, %v647
        %v746 = vmul.f32 %v745, %v744
        %v747 = vmul.f32 0.5, %v746
        %v748 = vsub.f32 1.5, %v747
        %v749 = vmul.f32 %v744, %v748
        %vm750 = vweird.f32 %v647
        %vm751 = vweird.f32 %v744
        %vm752 = vmor %vm750, %vm751
        %v753 = vsel %vm752, %v744, %v749
        %v754 = vrsqrt.pop %v648
        %v755 = vmul.f32 %v754, %v648
        %v756 = vmul.f32 %v755, %v754
        %v757 = vmul.f32 0.5, %v756
        %v758 = vsub.f32 1.5, %v757
        %v759 = vmul.f32 %v754, %v758
        %vm760 = vweird.f32 %v648
        %vm761 = vweird.f32 %v754
        %vm762 = vmor %vm760, %vm761
        %v763 = vsel %vm762, %v754, %v759
        %v764 = vrsqrt.pop %v649
        %v765 = vmul.f32 %v764, %v649
        %v766 = vmul.f32 %v765, %v764
        %v767 = vmul.f32 0.5, %v766
        %v768 = vsub.f32 1.5, %v767
        %v769 = vmul.f32 %v764, %v768
        %vm770 = vweird.f32 %v649
        %vm771 = vweird.f32 %v764
        %vm772 = vmor %vm770, %vm771
        %v773 = vsel %vm772, %v764, %v769
        %v774 = vrsqrt.pop %v650
        %v775 = vmul.f32 %v774, %v650
        %v776 = vmul.f32 %v775, %v774
        %v777 = vmul.f32 0.5, %v776
        %v778 = vsub.f32 1.5, %v777
        %v779 = vmul.f32 %v774, %v778
        %vm780 = vweird.f32 %v650
        %vm781 = vweird.f32 %v774
        %vm782 = vmor %vm780, %vm781
        %v783 = vsel %vm782, %v774, %v779
        %v784 = vrsqrt.pop %v651
        %v785 = vmul.f32 %v784, %v651
        %v786 = vmul.f32 %v785, %v784
        %v787 = vmul.f32 0.5, %v786
        %v788 = vsub.f32 1.5, %v787
        %v789 = vmul.f32 %v784, %v788
        %vm790 = vweird.f32 %v651
        %vm791 = vweird.f32 %v784
        %vm792 = vmor %vm790, %vm791
        %v793 = vsel %vm792, %v784, %v789
        %v794 = vrsqrt.pop %v652
        %v795 = vmul.f32 %v794, %v652
        %v796 = vmul.f32 %v795, %v794
        %v797 = vmul.f32 0.5, %v796
        %v798 = vsub.f32 1.5, %v797
        %v799 = vmul.f32 %v794, %v798
        %vm800 = vweird.f32 %v652
        %vm801 = vweird.f32 %v794
        %vm802 = vmor %vm800, %vm801
        %v803 = vsel %vm802, %v794, %v799
        %v804 = vrsqrt.pop %v653
        %v805 = vmul.f32 %v804, %v653
        %v806 = vmul.f32 %v805, %v804
        %v807 = vmul.f32 0.5, %v806
        %v808 = vsub.f32 1.5, %v807
        %v809 = vmul.f32 %v804, %v808
        %vm810 = vweird.f32 %v653
        %vm811 = vweird.f32 %v804
        %vm812 = vmor %vm810, %vm811
        %v813 = vsel %vm812, %v804, %v809
        %v814 = vmul.f32 %v622, %v663
        %v815 = vmul.f32 %v623, %v673
        %v816 = vmul.f32 %v624, %v683
        %v817 = vmul.f32 %v625, %v693
        %v818 = vmul.f32 %v626, %v703
        %v819 = vmul.f32 %v627, %v713
        %v820 = vmul.f32 %v628, %v723
        %v821 = vmul.f32 %v629, %v733
        %v822 = vmul.f32 %v630, %v743
        %v823 = vmul.f32 %v631, %v753
        %v824 = vmul.f32 %v632, %v763
        %v825 = vmul.f32 %v633, %v773
        %v826 = vmul.f32 %v634, %v783
        %v827 = vmul.f32 %v635, %v793
        %v828 = vmul.f32 %v636, %v803
        %v829 = vmul.f32 %v637, %v813
        %v830 = vperm.slane %v454, 0
        %v831 = vmul.f32 %v830, %v814
        %v832 = vmul.f32 %v830, %v815
        %v833 = vmul.f32 %v830, %v816
        %v834 = vmul.f32 %v830, %v817
        %v835 = vmul.f32 %v830, %v818
        %v836 = vmul.f32 %v830, %v819
        %v837 = vmul.f32 %v830, %v820
        %v838 = vmul.f32 %v830, %v821
        %v839 = vmul.f32 %v830, %v822
        %v840 = vmul.f32 %v830, %v823
        %v841 = vmul.f32 %v830, %v824
        %v842 = vmul.f32 %v830, %v825
        %v843 = vmul.f32 %v830, %v826
        %v844 = vmul.f32 %v830, %v827
        %v845 = vmul.f32 %v830, %v828
        %v846 = vmul.f32 %v830, %v829
        %v847 = vperm.slane %v454, 1
        %v848 = vadd.f32 %v831, %v847
        %v849 = vadd.f32 %v832, %v847
        %v850 = vadd.f32 %v833, %v847
        %v851 = vadd.f32 %v834, %v847
        %v852 = vadd.f32 %v835, %v847
        %v853 = vadd.f32 %v836, %v847
        %v854 = vadd.f32 %v837, %v847
        %v855 = vadd.f32 %v838, %v847
        %v856 = vadd.f32 %v839, %v847
        %v857 = vadd.f32 %v840, %v847
        %v858 = vadd.f32 %v841, %v847
        %v859 = vadd.f32 %v842, %v847
        %v860 = vadd.f32 %v843, %v847
        %v861 = vadd.f32 %v844, %v847
        %v862 = vadd.f32 %v845, %v847
        %v863 = vadd.f32 %v846, %v847
        %v864 = vld [vmem:[#allocation5] sm:$0xff]
        %v865 = vld [vmem:[#allocation5 + $0x8] sm:$0xf]
        %v866 = vld [vmem:[#allocation5 + $0xc] sm:$0xff]
        %v867 = vld [vmem:[#allocation5 + $0x14] sm:$0xf]
        %v868 = vld [vmem:[#allocation5 + $0x18] sm:$0xff]
        %v869 = vld [vmem:[#allocation5 + $0x20] sm:$0xf]
        %v870 = vld [vmem:[#allocation5 + $0x24] sm:$0xff]
        %v871 = vld [vmem:[#allocation5 + $0x2c] sm:$0xf]
        %v872 = vld [vmem:[#allocation5 + $0x30] sm:$0xff]
        %v873 = vld [vmem:[#allocation5 + $0x38] sm:$0xf]
        %v874 = vld [vmem:[#allocation5 + $0x3c] sm:$0xff]
        %v875 = vld [vmem:[#allocation5 + $0x44] sm:$0xf]
        %v876 = vld [vmem:[#allocation5 + $0x48] sm:$0xff]
        %v877 = vld [vmem:[#allocation5 + $0x50] sm:$0xf]
        %v878 = vld [vmem:[#allocation5 + $0x54] sm:$0xff]
        %v879 = vld [vmem:[#allocation5 + $0x5c] sm:$0xf]
        %v880 = vld [vmem:[#allocation5 + $0x60] sm:$0xff]
        %v881 = vld [vmem:[#allocation5 + $0x68] sm:$0xf]
        %v882 = vld [vmem:[#allocation5 + $0x6c] sm:$0xff]
        %v883 = vld [vmem:[#allocation5 + $0x74] sm:$0xf]
        %v884 = vld [vmem:[#allocation5 + $0x78] sm:$0xff]
        %v885 = vld [vmem:[#allocation5 + $0x80] sm:$0xf]
        %v886 = vld [vmem:[#allocation5 + $0x84] sm:$0xff]
        %v887 = vld [vmem:[#allocation5 + $0x8c] sm:$0xf]
        %v888 = vld [vmem:[#allocation5 + $0x90] sm:$0xff]
        %v889 = vld [vmem:[#allocation5 + $0x98] sm:$0xf]
        %v890 = vld [vmem:[#allocation5 + $0x9c] sm:$0xff]
        %v891 = vld [vmem:[#allocation5 + $0xa4] sm:$0xf]
        %v892 = vld [vmem:[#allocation5 + $0xa8] sm:$0xff]
        %v893 = vld [vmem:[#allocation5 + $0xb0] sm:$0xf]
        %v894 = vld [vmem:[#allocation5 + $0xb4] sm:$0xff]
        %v895 = vld [vmem:[#allocation5 + $0xbc] sm:$0xf]
        %v896 = vpack.c.bf16 %v849, %v848
        %v897 = vpack.c.bf16 %v851, %v850
        %v898 = vpack.c.bf16 %v853, %v852
        %v899 = vpack.c.bf16 %v855, %v854
        %v900 = vpack.c.bf16 %v857, %v856
        %v901 = vpack.c.bf16 %v859, %v858
        %v902 = vpack.c.bf16 %v861, %v860
        %v903 = vpack.c.bf16 %v863, %v862
        %v936 = vunpack.c.l.b16 %v864
        %v937 = vunpack.c.h.b16 %v864
        %v938 = vunpack.c.l.b16 %v865
        %v939 = vunpack.c.l.b16 %v866
        %v940 = vunpack.c.h.b16 %v866
        %v941 = vunpack.c.l.b16 %v867
        %v942 = vunpack.c.l.b16 %v868
        %v943 = vunpack.c.h.b16 %v868
        %v944 = vunpack.c.l.b16 %v869
        %v945 = vunpack.c.l.b16 %v870
        %v946 = vunpack.c.h.b16 %v870
        %v947 = vunpack.c.l.b16 %v871
        %v948 = vunpack.c.l.b16 %v872
        %v949 = vunpack.c.h.b16 %v872
        %v950 = vunpack.c.l.b16 %v873
        %v951 = vunpack.c.l.b16 %v874
        %v952 = vunpack.c.h.b16 %v874
        %v953 = vunpack.c.l.b16 %v875
        %v954 = vunpack.c.l.b16 %v876
        %v955 = vunpack.c.h.b16 %v876
        %v956 = vunpack.c.l.b16 %v877
        %v957 = vunpack.c.l.b16 %v878
        %v958 = vunpack.c.h.b16 %v878
        %v959 = vunpack.c.l.b16 %v879
        %v960 = vunpack.c.l.b16 %v880
        %v961 = vunpack.c.h.b16 %v880
        %v962 = vunpack.c.l.b16 %v881
        %v963 = vunpack.c.l.b16 %v882
        %v964 = vunpack.c.h.b16 %v882
        %v965 = vunpack.c.l.b16 %v883
        %v966 = vunpack.c.l.b16 %v884
        %v967 = vunpack.c.h.b16 %v884
        %v968 = vunpack.c.l.b16 %v885
        %v969 = vunpack.c.l.b16 %v886
        %v970 = vunpack.c.h.b16 %v886
        %v971 = vunpack.c.l.b16 %v887
        %v972 = vunpack.c.l.b16 %v888
        %v973 = vunpack.c.h.b16 %v888
        %v974 = vunpack.c.l.b16 %v889
        %v975 = vunpack.c.l.b16 %v890
        %v976 = vunpack.c.h.b16 %v890
        %v977 = vunpack.c.l.b16 %v891
        %v978 = vunpack.c.l.b16 %v892
        %v979 = vunpack.c.h.b16 %v892
        %v980 = vunpack.c.l.b16 %v893
        %v981 = vunpack.c.l.b16 %v894
        %v982 = vunpack.c.h.b16 %v894
        %v983 = vunpack.c.l.b16 %v895
        %v984 = vpack.c.b16 %v939, %v936
        %v985 = vpack.c.b16 %v940, %v937
        %v986 = vpack.c.b16 %v941, %v938
        %v987 = vpack.c.b16 %v945, %v942
        %v988 = vpack.c.b16 %v946, %v943
        %v989 = vpack.c.b16 %v947, %v944
        %v990 = vpack.c.b16 %v951, %v948
        %v991 = vpack.c.b16 %v952, %v949
        %v992 = vpack.c.b16 %v953, %v950
        %v993 = vpack.c.b16 %v957, %v954
        %v994 = vpack.c.b16 %v958, %v955
        %v995 = vpack.c.b16 %v959, %v956
        %v996 = vpack.c.b16 %v963, %v960
        %v997 = vpack.c.b16 %v964, %v961
        %v998 = vpack.c.b16 %v965, %v962
        %v999 = vpack.c.b16 %v969, %v966
        %v1000 = vpack.c.b16 %v970, %v967
        %v1001 = vpack.c.b16 %v971, %v968
        %v1002 = vpack.c.b16 %v975, %v972
        %v1003 = vpack.c.b16 %v976, %v973
        %v1004 = vpack.c.b16 %v977, %v974
        %v1005 = vpack.c.b16 %v981, %v978
        %v1006 = vpack.c.b16 %v982, %v979
        %v1007 = vpack.c.b16 %v983, %v980
        %1032 = vmatpush.bf16.msra.mxu0 %v1005
        %1033 = vmatpush.bf16.msra.mxu0 %v1002
        %1034 = vmatpush.bf16.msra.mxu0 %v999
        %1035 = vmatpush.bf16.msra.mxu0 %v996
        %1036 = vmatpush.bf16.msra.mxu0 %v993
        %1037 = vmatpush.bf16.msra.mxu0 %v990
        %1038 = vmatpush.bf16.msra.mxu0 %v987
        %1039 = vmatpush.bf16.msra.mxu0 %v984
        %1040 = vmatmul.bf16.gmra.mxu0 %v896
        %v1041 = vpop.f32.mrf.mxu0
        %v1042 = vadd.f32 0.0, %v1041
        %v1043 = vpop.f32.mrf.mxu0
        %v1044 = vadd.f32 0.0, %v1043
        %1045 = vmatmul.bf16.gmra.mxu0 %v897
        %v1046 = vpop.f32.mrf.mxu0
        %v1047 = vadd.f32 0.0, %v1046
        %v1048 = vpop.f32.mrf.mxu0
        %v1049 = vadd.f32 0.0, %v1048
        %1050 = vmatmul.bf16.gmra.mxu0 %v898
        %v1051 = vpop.f32.mrf.mxu0
        %v1052 = vadd.f32 0.0, %v1051
        %v1053 = vpop.f32.mrf.mxu0
        %v1054 = vadd.f32 0.0, %v1053
        %1055 = vmatmul.bf16.gmra.mxu0 %v899
        %v1056 = vpop.f32.mrf.mxu0
        %v1057 = vadd.f32 0.0, %v1056
        %v1058 = vpop.f32.mrf.mxu0
        %v1059 = vadd.f32 0.0, %v1058
        %1060 = vmatmul.bf16.gmra.mxu0 %v900
        %v1061 = vpop.f32.mrf.mxu0
        %v1062 = vadd.f32 0.0, %v1061
        %v1063 = vpop.f32.mrf.mxu0
        %v1064 = vadd.f32 0.0, %v1063
        %1065 = vmatmul.bf16.gmra.mxu0 %v901
        %v1066 = vpop.f32.mrf.mxu0
        %v1067 = vadd.f32 0.0, %v1066
        %v1068 = vpop.f32.mrf.mxu0
        %v1069 = vadd.f32 0.0, %v1068
        %1070 = vmatmul.bf16.gmra.mxu0 %v902
        %v1071 = vpop.f32.mrf.mxu0
        %v1072 = vadd.f32 0.0, %v1071
        %v1073 = vpop.f32.mrf.mxu0
        %v1074 = vadd.f32 0.0, %v1073
        %1075 = vmatmul.bf16.gmra.mxu0 %v903
        %v1076 = vpop.f32.mrf.mxu0
        %v1077 = vadd.f32 0.0, %v1076
        %v1078 = vpop.f32.mrf.mxu0
        %v1079 = vadd.f32 0.0, %v1078
        %1080 = vdwg.mxu0
        %1081 = vmatpush.bf16.msra.mxu0 %v1006
        %1082 = vmatpush.bf16.msra.mxu0 %v1003
        %1083 = vmatpush.bf16.msra.mxu0 %v1000
        %1084 = vmatpush.bf16.msra.mxu0 %v997
        %1085 = vmatpush.bf16.msra.mxu0 %v994
        %1086 = vmatpush.bf16.msra.mxu0 %v991
        %1087 = vmatpush.bf16.msra.mxu0 %v988
        %1088 = vmatpush.bf16.msra.mxu0 %v985
        %1089 = vmatmul.bf16.gmra.mxu0 %v896
        %v1090 = vpop.f32.mrf.mxu0
        %v1091 = vadd.f32 0.0, %v1090
        %v1092 = vpop.f32.mrf.mxu0
        %v1093 = vadd.f32 0.0, %v1092
        %1094 = vmatmul.bf16.gmra.mxu0 %v897
        %v1095 = vpop.f32.mrf.mxu0
        %v1096 = vadd.f32 0.0, %v1095
        %v1097 = vpop.f32.mrf.mxu0
        %v1098 = vadd.f32 0.0, %v1097
        %1099 = vmatmul.bf16.gmra.mxu0 %v898
        %v1100 = vpop.f32.mrf.mxu0
        %v1101 = vadd.f32 0.0, %v1100
        %v1102 = vpop.f32.mrf.mxu0
        %v1103 = vadd.f32 0.0, %v1102
        %1104 = vmatmul.bf16.gmra.mxu0 %v899
        %v1105 = vpop.f32.mrf.mxu0
        %v1106 = vadd.f32 0.0, %v1105
        %v1107 = vpop.f32.mrf.mxu0
        %v1108 = vadd.f32 0.0, %v1107
        %1109 = vmatmul.bf16.gmra.mxu0 %v900
        %v1110 = vpop.f32.mrf.mxu0
        %v1111 = vadd.f32 0.0, %v1110
        %v1112 = vpop.f32.mrf.mxu0
        %v1113 = vadd.f32 0.0, %v1112
        %1114 = vmatmul.bf16.gmra.mxu0 %v901
        %v1115 = vpop.f32.mrf.mxu0
        %v1116 = vadd.f32 0.0, %v1115
        %v1117 = vpop.f32.mrf.mxu0
        %v1118 = vadd.f32 0.0, %v1117
        %1119 = vmatmul.bf16.gmra.mxu0 %v902
        %v1120 = vpop.f32.mrf.mxu0
        %v1121 = vadd.f32 0.0, %v1120
        %v1122 = vpop.f32.mrf.mxu0
        %v1123 = vadd.f32 0.0, %v1122
        %1124 = vmatmul.bf16.gmra.mxu0 %v903
        %v1125 = vpop.f32.mrf.mxu0
        %v1126 = vadd.f32 0.0, %v1125
        %v1127 = vpop.f32.mrf.mxu0
        %v1128 = vadd.f32 0.0, %v1127
        %1129 = vdwg.mxu0
        %1130 = vmatpush.bf16.msra.mxu0 %v1007
        %1131 = vmatpush.bf16.msra.mxu0 %v1004
        %1132 = vmatpush.bf16.msra.mxu0 %v1001
        %1133 = vmatpush.bf16.msra.mxu0 %v998
        %1134 = vmatpush.bf16.msra.mxu0 %v995
        %1135 = vmatpush.bf16.msra.mxu0 %v992
        %1136 = vmatpush.bf16.msra.mxu0 %v989
        %1137 = vmatpush.bf16.msra.mxu0 %v986
        %1138 = vmatmul.bf16.gmra.mxu0 %v896
        %v1139 = vpop.f32.mrf.mxu0
        %v1140 = vadd.f32 0.0, %v1139
        %v1141 = vpop.f32.mrf.mxu0
        %v1142 = vadd.f32 0.0, %v1141
        %1143 = vmatmul.bf16.gmra.mxu0 %v897
        %v1144 = vpop.f32.mrf.mxu0
        %v1145 = vadd.f32 0.0, %v1144
        %v1146 = vpop.f32.mrf.mxu0
        %v1147 = vadd.f32 0.0, %v1146
        %1148 = vmatmul.bf16.gmra.mxu0 %v898
        %v1149 = vpop.f32.mrf.mxu0
        %v1150 = vadd.f32 0.0, %v1149
        %v1151 = vpop.f32.mrf.mxu0
        %v1152 = vadd.f32 0.0, %v1151
        %1153 = vmatmul.bf16.gmra.mxu0 %v899
        %v1154 = vpop.f32.mrf.mxu0
        %v1155 = vadd.f32 0.0, %v1154
        %v1156 = vpop.f32.mrf.mxu0
        %v1157 = vadd.f32 0.0, %v1156
        %1158 = vmatmul.bf16.gmra.mxu0 %v900
        %v1159 = vpop.f32.mrf.mxu0
        %v1160 = vadd.f32 0.0, %v1159
        %v1161 = vpop.f32.mrf.mxu0
        %v1162 = vadd.f32 0.0, %v1161
        %1163 = vmatmul.bf16.gmra.mxu0 %v901
        %v1164 = vpop.f32.mrf.mxu0
        %v1165 = vadd.f32 0.0, %v1164
        %v1166 = vpop.f32.mrf.mxu0
        %v1167 = vadd.f32 0.0, %v1166
        %1168 = vmatmul.bf16.gmra.mxu0 %v902
        %v1169 = vpop.f32.mrf.mxu0
        %v1170 = vadd.f32 0.0, %v1169
        %v1171 = vpop.f32.mrf.mxu0
        %v1172 = vadd.f32 0.0, %v1171
        %1173 = vmatmul.bf16.gmra.mxu0 %v903
        %v1174 = vpop.f32.mrf.mxu0
        %v1175 = vadd.f32 0.0, %v1174
        %v1176 = vpop.f32.mrf.mxu0
        %v1177 = vadd.f32 0.0, %v1176
        %1178 = vdwg.mxu0
        %v1179 = vmul.f32 %v1042, 0.17677669
        %v1180 = vmul.f32 %v1044, 0.17677669
        %v1181 = vmul.f32 %v1047, 0.17677669
        %v1182 = vmul.f32 %v1049, 0.17677669
        %v1183 = vmul.f32 %v1052, 0.17677669
        %v1184 = vmul.f32 %v1054, 0.17677669
        %v1185 = vmul.f32 %v1057, 0.17677669
        %v1186 = vmul.f32 %v1059, 0.17677669
        %v1187 = vmul.f32 %v1062, 0.17677669
        %v1188 = vmul.f32 %v1064, 0.17677669
        %v1189 = vmul.f32 %v1067, 0.17677669
        %v1190 = vmul.f32 %v1069, 0.17677669
        %v1191 = vmul.f32 %v1072, 0.17677669
        %v1192 = vmul.f32 %v1074, 0.17677669
        %v1193 = vmul.f32 %v1077, 0.17677669
        %v1194 = vmul.f32 %v1079, 0.17677669
        %v1195 = vpack.c.bf16 %v1179, %v1179
        %v1196 = vpack.c.bf16 %v1180, %v1180
        %v1197 = vpack.c.bf16 %v1181, %v1181
        %v1198 = vpack.c.bf16 %v1182, %v1182
        %v1199 = vpack.c.bf16 %v1183, %v1183
        %v1200 = vpack.c.bf16 %v1184, %v1184
        %v1201 = vpack.c.bf16 %v1185, %v1185
        %v1202 = vpack.c.bf16 %v1186, %v1186
        %v1203 = vpack.c.bf16 %v1187, %v1187
        %v1204 = vpack.c.bf16 %v1188, %v1188
        %v1205 = vpack.c.bf16 %v1189, %v1189
        %v1206 = vpack.c.bf16 %v1190, %v1190
        %v1207 = vpack.c.bf16 %v1191, %v1191
        %v1208 = vpack.c.bf16 %v1192, %v1192
        %v1209 = vpack.c.bf16 %v1193, %v1193
        %v1210 = vpack.c.bf16 %v1194, %v1194
        %v1211 = vpack.c.bf16 %v1091, %v1091
        %v1212 = vpack.c.bf16 %v1093, %v1093
        %v1213 = vpack.c.bf16 %v1096, %v1096
        %v1214 = vpack.c.bf16 %v1098, %v1098
        %v1215 = vpack.c.bf16 %v1101, %v1101
        %v1216 = vpack.c.bf16 %v1103, %v1103
        %v1217 = vpack.c.bf16 %v1106, %v1106
        %v1218 = vpack.c.bf16 %v1108, %v1108
        %v1219 = vpack.c.bf16 %v1111, %v1111
        %v1220 = vpack.c.bf16 %v1113, %v1113
        %v1221 = vpack.c.bf16 %v1116, %v1116
        %v1222 = vpack.c.bf16 %v1118, %v1118
        %v1223 = vpack.c.bf16 %v1121, %v1121
        %v1224 = vpack.c.bf16 %v1123, %v1123
        %v1225 = vpack.c.bf16 %v1126, %v1126
        %v1226 = vpack.c.bf16 %v1128, %v1128
        %v1227 = vpack.c.bf16 %v1140, %v1140
        %v1228 = vpack.c.bf16 %v1142, %v1142
        %v1229 = vpack.c.bf16 %v1145, %v1145
        %v1230 = vpack.c.bf16 %v1147, %v1147
        %v1231 = vpack.c.bf16 %v1150, %v1150
        %v1232 = vpack.c.bf16 %v1152, %v1152
        %v1233 = vpack.c.bf16 %v1155, %v1155
        %v1234 = vpack.c.bf16 %v1157, %v1157
        %v1235 = vpack.c.bf16 %v1160, %v1160
        %v1236 = vpack.c.bf16 %v1162, %v1162
        %v1237 = vpack.c.bf16 %v1165, %v1165
        %v1238 = vpack.c.bf16 %v1167, %v1167
        %v1239 = vpack.c.bf16 %v1170, %v1170
        %v1240 = vpack.c.bf16 %v1172, %v1172
        %v1241 = vpack.c.bf16 %v1175, %v1175
        %v1242 = vpack.c.bf16 %v1177, %v1177
        %v1243 = vlaneseq
        %v1244 = vshrl.u32 %v1243, 7
        %v1245 = vadd.s32 %v1244, 8
        %v1246 = vadd.s32 %v1244, 16
        %v1247 = vadd.s32 %v1244, 24
        %v1248 = vadd.s32 %v1244, 32
        %v1249 = vadd.s32 %v1244, 40
        %v1250 = vadd.s32 %v1244, 48
        %v1251 = vadd.s32 %v1244, 56
        %v1252 = vlaneseq
        %v1253 = vand.u32 %v1252, 127
        %vm1254 = vcmp.gt.s32.totalorder %v1253, %v1244
        %vm1255 = vcmp.gt.s32.totalorder %v1253, %v1245
        %vm1256 = vcmp.gt.s32.totalorder %v1253, %v1246
        %vm1257 = vcmp.gt.s32.totalorder %v1253, %v1247
        %vm1258 = vcmp.gt.s32.totalorder %v1253, %v1248
        %vm1259 = vcmp.gt.s32.totalorder %v1253, %v1249
        %vm1260 = vcmp.gt.s32.totalorder %v1253, %v1250
        %vm1261 = vcmp.gt.s32.totalorder %v1253, %v1251
        %v1262 = vsel %vm1254, -1e+30, 0.0
        %v1263 = vsel %vm1255, -1e+30, 0.0
        %v1264 = vsel %vm1256, -1e+30, 0.0
        %v1265 = vsel %vm1257, -1e+30, 0.0
        %v1266 = vsel %vm1258, -1e+30, 0.0
        %v1267 = vsel %vm1259, -1e+30, 0.0
        %v1268 = vsel %vm1260, -1e+30, 0.0
        %v1269 = vsel %vm1261, -1e+30, 0.0
        %v1278 = vunpack.c.l.b16 %v1195
        %v1279 = vunpack.c.l.b16 %v1196
        %v1280 = vunpack.c.l.b16 %v1197
        %v1281 = vunpack.c.l.b16 %v1198
        %v1282 = vunpack.c.l.b16 %v1199
        %v1283 = vunpack.c.l.b16 %v1200
        %v1284 = vunpack.c.l.b16 %v1201
        %v1285 = vunpack.c.l.b16 %v1202
        %v1286 = vpack.c.b16 %v1279, %v1278
        %v1287 = vpack.c.b16 %v1281, %v1280
        %v1288 = vpack.c.b16 %v1283, %v1282
        %v1289 = vpack.c.b16 %v1285, %v1284
        %v1298 = vunpack.c.l.b16 %v1211
        %v1299 = vunpack.c.l.b16 %v1212
        %v1300 = vunpack.c.l.b16 %v1213
        %v1301 = vunpack.c.l.b16 %v1214
        %v1302 = vunpack.c.l.b16 %v1215
        %v1303 = vunpack.c.l.b16 %v1216
        %v1304 = vunpack.c.l.b16 %v1217
        %v1305 = vunpack.c.l.b16 %v1218
        %v1306 = vpack.c.b16 %v1299, %v1298
        %v1307 = vpack.c.b16 %v1301, %v1300
        %v1308 = vpack.c.b16 %v1303, %v1302
        %v1309 = vpack.c.b16 %v1305, %v1304
        %vm1310 = vcmask 261120
        %v1312 = vsel %vm1310, %v1286, 0
        %v1315 = vsel %vm1310, %v1287, 0
        %v1318 = vsel %vm1310, %v1288, 0
        %v1321 = vsel %vm1310, %v1289, 0
        %v1324 = vsel %vm1310, %v1306, 0
        %v1327 = vsel %vm1310, %v1307, 0
        %v1330 = vsel %vm1310, %v1308, 0
        %v1333 = vsel %vm1310, %v1309, 0
        %1335 = vmatpush.bf16.xpose.msra.mxu0 0
        %1336 = vmatpush.bf16.xpose.msra.mxu0 0
        %1337 = vmatpush.bf16.xpose.msra.mxu0 0
        %1338 = vmatpush.bf16.xpose.msra.mxu0 0
        %1339 = vmatpush.bf16.xpose.msra.mxu0 %v1333
        %1340 = vmatpush.bf16.xpose.msra.mxu0 %v1330
        %1341 = vmatpush.bf16.xpose.msra.mxu0 %v1327
        %1342 = vmatpush.bf16.xpose.msra.mxu0 %v1324
        %1343 = vmatmul.bf16.gmra.mxu0 %v1312
        %v1344 = vpop.f32.mrf.mxu0
        %v1345 = vadd.f32 %v1262, %v1344
        %v1346 = vpop.f32.mrf.mxu0
        %v1347 = vadd.f32 %v1263, %v1346
        %1348 = vmatmul.bf16.gmra.mxu0 %v1315
        %v1349 = vpop.f32.mrf.mxu0
        %v1350 = vadd.f32 %v1264, %v1349
        %v1351 = vpop.f32.mrf.mxu0
        %v1352 = vadd.f32 %v1265, %v1351
        %1353 = vmatmul.bf16.gmra.mxu0 %v1318
        %v1354 = vpop.f32.mrf.mxu0
        %v1355 = vadd.f32 %v1266, %v1354
        %v1356 = vpop.f32.mrf.mxu0
        %v1357 = vadd.f32 %v1267, %v1356
        %1358 = vmatmul.bf16.gmra.mxu0 %v1321
        %v1359 = vpop.f32.mrf.mxu0
        %v1360 = vadd.f32 %v1268, %v1359
        %v1361 = vpop.f32.mrf.mxu0
        %v1362 = vadd.f32 %v1269, %v1361
        %1363 = vdwg.mxu0
        %v1372 = vunpack.c.l.b16 %v1203
        %v1373 = vunpack.c.l.b16 %v1204
        %v1374 = vunpack.c.l.b16 %v1205
        %v1375 = vunpack.c.l.b16 %v1206
        %v1376 = vunpack.c.l.b16 %v1207
        %v1377 = vunpack.c.l.b16 %v1208
        %v1378 = vunpack.c.l.b16 %v1209
        %v1379 = vunpack.c.l.b16 %v1210
        %v1380 = vpack.c.b16 %v1373, %v1372
        %v1381 = vpack.c.b16 %v1375, %v1374
        %v1382 = vpack.c.b16 %v1377, %v1376
        %v1383 = vpack.c.b16 %v1379, %v1378
        %v1392 = vunpack.c.l.b16 %v1219
        %v1393 = vunpack.c.l.b16 %v1220
        %v1394 = vunpack.c.l.b16 %v1221
        %v1395 = vunpack.c.l.b16 %v1222
        %v1396 = vunpack.c.l.b16 %v1223
        %v1397 = vunpack.c.l.b16 %v1224
        %v1398 = vunpack.c.l.b16 %v1225
        %v1399 = vunpack.c.l.b16 %v1226
        %v1400 = vpack.c.b16 %v1393, %v1392
        %v1401 = vpack.c.b16 %v1395, %v1394
        %v1402 = vpack.c.b16 %v1397, %v1396
        %v1403 = vpack.c.b16 %v1399, %v1398
        %v1405 = vsel %vm1310, %v1380, 0
        %v1408 = vsel %vm1310, %v1381, 0
        %v1411 = vsel %vm1310, %v1382, 0
        %v1414 = vsel %vm1310, %v1383, 0
        %v1417 = vsel %vm1310, %v1400, 0
        %v1420 = vsel %vm1310, %v1401, 0
        %v1423 = vsel %vm1310, %v1402, 0
        %v1426 = vsel %vm1310, %v1403, 0
        %1428 = vmatpush.bf16.xpose.msra.mxu0 0
        %1429 = vmatpush.bf16.xpose.msra.mxu0 0
        %1430 = vmatpush.bf16.xpose.msra.mxu0 0
        %1431 = vmatpush.bf16.xpose.msra.mxu0 0
        %1432 = vmatpush.bf16.xpose.msra.mxu0 %v1426
        %1433 = vmatpush.bf16.xpose.msra.mxu0 %v1423
        %1434 = vmatpush.bf16.xpose.msra.mxu0 %v1420
        %1435 = vmatpush.bf16.xpose.msra.mxu0 %v1417
        %1436 = vmatmul.bf16.gmra.mxu0 %v1405
        %v1437 = vpop.f32.mrf.mxu0
        %v1438 = vadd.f32 %v1262, %v1437
        %v1439 = vpop.f32.mrf.mxu0
        %v1440 = vadd.f32 %v1263, %v1439
        %1441 = vmatmul.bf16.gmra.mxu0 %v1408
        %v1442 = vpop.f32.mrf.mxu0
        %v1443 = vadd.f32 %v1264, %v1442
        %v1444 = vpop.f32.mrf.mxu0
        %v1445 = vadd.f32 %v1265, %v1444
        %1446 = vmatmul.bf16.gmra.mxu0 %v1411
        %v1447 = vpop.f32.mrf.mxu0
        %v1448 = vadd.f32 %v1266, %v1447
        %v1449 = vpop.f32.mrf.mxu0
        %v1450 = vadd.f32 %v1267, %v1449
        %1451 = vmatmul.bf16.gmra.mxu0 %v1414
        %v1452 = vpop.f32.mrf.mxu0
        %v1453 = vadd.f32 %v1268, %v1452
        %v1454 = vpop.f32.mrf.mxu0
        %v1455 = vadd.f32 %v1269, %v1454
        %1456 = vdwg.mxu0
        %vm1457 = vcmask 523264
        %v1458 = vsel %vm1457, %v1345, -inf
        %1459 = vmax.xlane.f32.xlu0 %v1458
        %v1460 = vpop.xlane.xlu0 %1459
        %v1461 = vsel %vm1457, %v1347, -inf
        %1462 = vmax.xlane.f32.xlu0 %v1461
        %v1463 = vpop.xlane.xlu0 %1462
        %v1464 = vsel %vm1457, %v1350, -inf
        %1465 = vmax.xlane.f32.xlu0 %v1464
        %v1466 = vpop.xlane.xlu0 %1465
        %v1467 = vsel %vm1457, %v1352, -inf
        %1468 = vmax.xlane.f32.xlu0 %v1467
        %v1469 = vpop.xlane.xlu0 %1468
        %v1470 = vsel %vm1457, %v1355, -inf
        %1471 = vmax.xlane.f32.xlu0 %v1470
        %v1472 = vpop.xlane.xlu0 %1471
        %v1473 = vsel %vm1457, %v1357, -inf
        %1474 = vmax.xlane.f32.xlu0 %v1473
        %v1475 = vpop.xlane.xlu0 %1474
        %v1476 = vsel %vm1457, %v1360, -inf
        %1477 = vmax.xlane.f32.xlu0 %v1476
        %v1478 = vpop.xlane.xlu0 %1477
        %v1479 = vsel %vm1457, %v1362, -inf
        %1480 = vmax.xlane.f32.xlu0 %v1479
        %v1481 = vpop.xlane.xlu0 %1480
        %v1482 = vsel %vm1457, %v1438, -inf
        %1483 = vmax.xlane.f32.xlu0 %v1482
        %v1484 = vpop.xlane.xlu0 %1483
        %v1485 = vsel %vm1457, %v1440, -inf
        %1486 = vmax.xlane.f32.xlu0 %v1485
        %v1487 = vpop.xlane.xlu0 %1486
        %v1488 = vsel %vm1457, %v1443, -inf
        %1489 = vmax.xlane.f32.xlu0 %v1488
        %v1490 = vpop.xlane.xlu0 %1489
        %v1491 = vsel %vm1457, %v1445, -inf
        %1492 = vmax.xlane.f32.xlu0 %v1491
        %v1493 = vpop.xlane.xlu0 %1492
        %v1494 = vsel %vm1457, %v1448, -inf
        %1495 = vmax.xlane.f32.xlu0 %v1494
        %v1496 = vpop.xlane.xlu0 %1495
        %v1497 = vsel %vm1457, %v1450, -inf
        %1498 = vmax.xlane.f32.xlu0 %v1497
        %v1499 = vpop.xlane.xlu0 %1498
        %v1500 = vsel %vm1457, %v1453, -inf
        %1501 = vmax.xlane.f32.xlu0 %v1500
        %v1502 = vpop.xlane.xlu0 %1501
        %v1503 = vsel %vm1457, %v1455, -inf
        %1504 = vmax.xlane.f32.xlu0 %v1503
        %v1505 = vpop.xlane.xlu0 %1504
        %v1506 = vsub.f32 %v1345, %v1460
        %v1507 = vsub.f32 %v1347, %v1463
        %v1508 = vsub.f32 %v1350, %v1466
        %v1509 = vsub.f32 %v1352, %v1469
        %v1510 = vsub.f32 %v1355, %v1472
        %v1511 = vsub.f32 %v1357, %v1475
        %v1512 = vsub.f32 %v1360, %v1478
        %v1513 = vsub.f32 %v1362, %v1481
        %v1514 = vsub.f32 %v1438, %v1484
        %v1515 = vsub.f32 %v1440, %v1487
        %v1516 = vsub.f32 %v1443, %v1490
        %v1517 = vsub.f32 %v1445, %v1493
        %v1518 = vsub.f32 %v1448, %v1496
        %v1519 = vsub.f32 %v1450, %v1499
        %v1520 = vsub.f32 %v1453, %v1502
        %v1521 = vsub.f32 %v1455, %v1505
        %v1522 = vmul.f32 %v1506, 1.442695
        %v1523 = vpow.pop %v1522
        %v1524 = vmul.f32 %v1507, 1.442695
        %v1525 = vpow.pop %v1524
        %v1526 = vmul.f32 %v1508, 1.442695
        %v1527 = vpow.pop %v1526
        %v1528 = vmul.f32 %v1509, 1.442695
        %v1529 = vpow.pop %v1528
        %v1530 = vmul.f32 %v1510, 1.442695
        %v1531 = vpow.pop %v1530
        %v1532 = vmul.f32 %v1511, 1.442695
        %v1533 = vpow.pop %v1532
        %v1534 = vmul.f32 %v1512, 1.442695
        %v1535 = vpow.pop %v1534
        %v1536 = vmul.f32 %v1513, 1.442695
        %v1537 = vpow.pop %v1536
        %v1538 = vmul.f32 %v1514, 1.442695
        %v1539 = vpow.pop %v1538
        %v1540 = vmul.f32 %v1515, 1.442695
        %v1541 = vpow.pop %v1540
        %v1542 = vmul.f32 %v1516, 1.442695
        %v1543 = vpow.pop %v1542
        %v1544 = vmul.f32 %v1517, 1.442695
        %v1545 = vpow.pop %v1544
        %v1546 = vmul.f32 %v1518, 1.442695
        %v1547 = vpow.pop %v1546
        %v1548 = vmul.f32 %v1519, 1.442695
        %v1549 = vpow.pop %v1548
        %v1550 = vmul.f32 %v1520, 1.442695
        %v1551 = vpow.pop %v1550
        %v1552 = vmul.f32 %v1521, 1.442695
        %v1553 = vpow.pop %v1552
        %v1554 = vsel %vm1457, %v1523, 0.0
        %1555 = vadd.xlane.f32.xlu0 %v1554
        %v1556 = vpop.xlane.xlu0 %1555
        %v1557 = vsel %vm1457, %v1525, 0.0
        %1558 = vadd.xlane.f32.xlu0 %v1557
        %v1559 = vpop.xlane.xlu0 %1558
        %v1560 = vsel %vm1457, %v1527, 0.0
        %1561 = vadd.xlane.f32.xlu0 %v1560
        %v1562 = vpop.xlane.xlu0 %1561
        %v1563 = vsel %vm1457, %v1529, 0.0
        %1564 = vadd.xlane.f32.xlu0 %v1563
        %v1565 = vpop.xlane.xlu0 %1564
        %v1566 = vsel %vm1457, %v1531, 0.0
        %1567 = vadd.xlane.f32.xlu0 %v1566
        %v1568 = vpop.xlane.xlu0 %1567
        %v1569 = vsel %vm1457, %v1533, 0.0
        %1570 = vadd.xlane.f32.xlu0 %v1569
        %v1571 = vpop.xlane.xlu0 %1570
        %v1572 = vsel %vm1457, %v1535, 0.0
        %1573 = vadd.xlane.f32.xlu0 %v1572
        %v1574 = vpop.xlane.xlu0 %1573
        %v1575 = vsel %vm1457, %v1537, 0.0
        %1576 = vadd.xlane.f32.xlu0 %v1575
        %v1577 = vpop.xlane.xlu0 %1576
        %v1578 = vsel %vm1457, %v1539, 0.0
        %1579 = vadd.xlane.f32.xlu0 %v1578
        %v1580 = vpop.xlane.xlu0 %1579
        %v1581 = vsel %vm1457, %v1541, 0.0
        %1582 = vadd.xlane.f32.xlu0 %v1581
        %v1583 = vpop.xlane.xlu0 %1582
        %v1584 = vsel %vm1457, %v1543, 0.0
        %1585 = vadd.xlane.f32.xlu0 %v1584
        %v1586 = vpop.xlane.xlu0 %1585
        %v1587 = vsel %vm1457, %v1545, 0.0
        %1588 = vadd.xlane.f32.xlu0 %v1587
        %v1589 = vpop.xlane.xlu0 %1588
        %v1590 = vsel %vm1457, %v1547, 0.0
        %1591 = vadd.xlane.f32.xlu0 %v1590
        %v1592 = vpop.xlane.xlu0 %1591
        %v1593 = vsel %vm1457, %v1549, 0.0
        %1594 = vadd.xlane.f32.xlu0 %v1593
        %v1595 = vpop.xlane.xlu0 %1594
        %v1596 = vsel %vm1457, %v1551, 0.0
        %1597 = vadd.xlane.f32.xlu0 %v1596
        %v1598 = vpop.xlane.xlu0 %1597
        %v1599 = vsel %vm1457, %v1553, 0.0
        %1600 = vadd.xlane.f32.xlu0 %v1599
        %v1601 = vpop.xlane.xlu0 %1600
        %v1602 = vrcp.pop %v1556
        %v1603 = vrcp.pop %v1559
        %v1604 = vrcp.pop %v1562
        %v1605 = vrcp.pop %v1565
        %v1606 = vrcp.pop %v1568
        %v1607 = vrcp.pop %v1571
        %v1608 = vrcp.pop %v1574
        %v1609 = vrcp.pop %v1577
        %v1610 = vrcp.pop %v1580
        %v1611 = vrcp.pop %v1583
        %v1612 = vrcp.pop %v1586
        %v1613 = vrcp.pop %v1589
        %v1614 = vrcp.pop %v1592
        %v1615 = vrcp.pop %v1595
        %v1616 = vrcp.pop %v1598
        %v1617 = vrcp.pop %v1601
        %v1618 = vmul.f32 %v1523, %v1602
        %v1619 = vmul.f32 %v1525, %v1603
        %v1620 = vmul.f32 %v1527, %v1604
        %v1621 = vmul.f32 %v1529, %v1605
        %v1622 = vmul.f32 %v1531, %v1606
        %v1623 = vmul.f32 %v1533, %v1607
        %v1624 = vmul.f32 %v1535, %v1608
        %v1625 = vmul.f32 %v1537, %v1609
        %v1626 = vmul.f32 %v1539, %v1610
        %v1627 = vmul.f32 %v1541, %v1611
        %v1628 = vmul.f32 %v1543, %v1612
        %v1629 = vmul.f32 %v1545, %v1613
        %v1630 = vmul.f32 %v1547, %v1614
        %v1631 = vmul.f32 %v1549, %v1615
        %v1632 = vmul.f32 %v1551, %v1616
        %v1633 = vmul.f32 %v1553, %v1617
        %v1634 = vpack.c.bf16 %v1618, %v1618
        %v1635 = vpack.c.bf16 %v1619, %v1619
        %v1636 = vpack.c.bf16 %v1620, %v1620
        %v1637 = vpack.c.bf16 %v1621, %v1621
        %v1638 = vpack.c.bf16 %v1622, %v1622
        %v1639 = vpack.c.bf16 %v1623, %v1623
        %v1640 = vpack.c.bf16 %v1624, %v1624
        %v1641 = vpack.c.bf16 %v1625, %v1625
        %v1642 = vpack.c.bf16 %v1626, %v1626
        %v1643 = vpack.c.bf16 %v1627, %v1627
        %v1644 = vpack.c.bf16 %v1628, %v1628
        %v1645 = vpack.c.bf16 %v1629, %v1629
        %v1646 = vpack.c.bf16 %v1630, %v1630
        %v1647 = vpack.c.bf16 %v1631, %v1631
        %v1648 = vpack.c.bf16 %v1632, %v1632
        %v1649 = vpack.c.bf16 %v1633, %v1633
        %v1658 = vunpack.c.l.b16 %v1634
        %v1659 = vunpack.c.l.b16 %v1635
        %v1660 = vunpack.c.l.b16 %v1636
        %v1661 = vunpack.c.l.b16 %v1637
        %v1662 = vunpack.c.l.b16 %v1638
        %v1663 = vunpack.c.l.b16 %v1639
        %v1664 = vunpack.c.l.b16 %v1640
        %v1665 = vunpack.c.l.b16 %v1641
        %v1666 = vpack.c.b16 %v1659, %v1658
        %v1667 = vpack.c.b16 %v1661, %v1660
        %v1668 = vpack.c.b16 %v1663, %v1662
        %v1669 = vpack.c.b16 %v1665, %v1664
        %v1678 = vunpack.c.l.b16 %v1227
        %v1679 = vunpack.c.l.b16 %v1228
        %v1680 = vunpack.c.l.b16 %v1229
        %v1681 = vunpack.c.l.b16 %v1230
        %v1682 = vunpack.c.l.b16 %v1231
        %v1683 = vunpack.c.l.b16 %v1232
        %v1684 = vunpack.c.l.b16 %v1233
        %v1685 = vunpack.c.l.b16 %v1234
        %v1686 = vpack.c.b16 %v1679, %v1678
        %v1687 = vpack.c.b16 %v1681, %v1680
        %v1688 = vpack.c.b16 %v1683, %v1682
        %v1689 = vpack.c.b16 %v1685, %v1684
        %v1695 = vsel %vm1457, %v1666, 0
        %v1698 = vsel %vm1457, %v1667, 0
        %v1701 = vsel %vm1457, %v1668, 0
        %v1704 = vsel %vm1457, %v1669, 0
        %1706 = vmatpush.bf16.msra.mxu0 0
        %1707 = vmatpush.bf16.msra.mxu0 0
        %1708 = vmatpush.bf16.msra.mxu0 0
        %1709 = vmatpush.bf16.msra.mxu0 0
        %1710 = vmatpush.bf16.msra.mxu0 %v1689
        %1711 = vmatpush.bf16.msra.mxu0 %v1688
        %1712 = vmatpush.bf16.msra.mxu0 %v1687
        %1713 = vmatpush.bf16.msra.mxu0 %v1686
        %1714 = vmatmul.bf16.gmra.mxu0 %v1695
        %v1715 = vpop.f32.mrf.mxu0
        %v1716 = vadd.f32 0.0, %v1715
        %v1717 = vpop.f32.mrf.mxu0
        %v1718 = vadd.f32 0.0, %v1717
        %1719 = vmatmul.bf16.gmra.mxu0 %v1698
        %v1720 = vpop.f32.mrf.mxu0
        %v1721 = vadd.f32 0.0, %v1720
        %v1722 = vpop.f32.mrf.mxu0
        %v1723 = vadd.f32 0.0, %v1722
        %1724 = vmatmul.bf16.gmra.mxu0 %v1701
        %v1725 = vpop.f32.mrf.mxu0
        %v1726 = vadd.f32 0.0, %v1725
        %v1727 = vpop.f32.mrf.mxu0
        %v1728 = vadd.f32 0.0, %v1727
        %1729 = vmatmul.bf16.gmra.mxu0 %v1704
        %v1730 = vpop.f32.mrf.mxu0
        %v1731 = vadd.f32 0.0, %v1730
        %v1732 = vpop.f32.mrf.mxu0
        %v1733 = vadd.f32 0.0, %v1732
        %1734 = vdwg.mxu0
        %v1743 = vunpack.c.l.b16 %v1642
        %v1744 = vunpack.c.l.b16 %v1643
        %v1745 = vunpack.c.l.b16 %v1644
        %v1746 = vunpack.c.l.b16 %v1645
        %v1747 = vunpack.c.l.b16 %v1646
        %v1748 = vunpack.c.l.b16 %v1647
        %v1749 = vunpack.c.l.b16 %v1648
        %v1750 = vunpack.c.l.b16 %v1649
        %v1751 = vpack.c.b16 %v1744, %v1743
        %v1752 = vpack.c.b16 %v1746, %v1745
        %v1753 = vpack.c.b16 %v1748, %v1747
        %v1754 = vpack.c.b16 %v1750, %v1749
        %v1763 = vunpack.c.l.b16 %v1235
        %v1764 = vunpack.c.l.b16 %v1236
        %v1765 = vunpack.c.l.b16 %v1237
        %v1766 = vunpack.c.l.b16 %v1238
        %v1767 = vunpack.c.l.b16 %v1239
        %v1768 = vunpack.c.l.b16 %v1240
        %v1769 = vunpack.c.l.b16 %v1241
        %v1770 = vunpack.c.l.b16 %v1242
        %v1771 = vpack.c.b16 %v1764, %v1763
        %v1772 = vpack.c.b16 %v1766, %v1765
        %v1773 = vpack.c.b16 %v1768, %v1767
        %v1774 = vpack.c.b16 %v1770, %v1769
        %v1780 = vsel %vm1457, %v1751, 0
        %v1783 = vsel %vm1457, %v1752, 0
        %v1786 = vsel %vm1457, %v1753, 0
        %v1789 = vsel %vm1457, %v1754, 0
        %1791 = vmatpush.bf16.msra.mxu0 0
        %1792 = vmatpush.bf16.msra.mxu0 0
        %1793 = vmatpush.bf16.msra.mxu0 0
        %1794 = vmatpush.bf16.msra.mxu0 0
        %1795 = vmatpush.bf16.msra.mxu0 %v1774
        %1796 = vmatpush.bf16.msra.mxu0 %v1773
        %1797 = vmatpush.bf16.msra.mxu0 %v1772
        %1798 = vmatpush.bf16.msra.mxu0 %v1771
        %1799 = vmatmul.bf16.gmra.mxu0 %v1780
        %v1800 = vpop.f32.mrf.mxu0
        %v1801 = vadd.f32 0.0, %v1800
        %v1802 = vpop.f32.mrf.mxu0
        %v1803 = vadd.f32 0.0, %v1802
        %1804 = vmatmul.bf16.gmra.mxu0 %v1783
        %v1805 = vpop.f32.mrf.mxu0
        %v1806 = vadd.f32 0.0, %v1805
        %v1807 = vpop.f32.mrf.mxu0
        %v1808 = vadd.f32 0.0, %v1807
        %1809 = vmatmul.bf16.gmra.mxu0 %v1786
        %v1810 = vpop.f32.mrf.mxu0
        %v1811 = vadd.f32 0.0, %v1810
        %v1812 = vpop.f32.mrf.mxu0
        %v1813 = vadd.f32 0.0, %v1812
        %1814 = vmatmul.bf16.gmra.mxu0 %v1789
        %v1815 = vpop.f32.mrf.mxu0
        %v1816 = vadd.f32 0.0, %v1815
        %v1817 = vpop.f32.mrf.mxu0
        %v1818 = vadd.f32 0.0, %v1817
        %1819 = vdwg.mxu0
        %1820 = vrot.lane.b32.xlu0 %v1286, 96
        %v1821 = vpop.permute.xlu0 %1820
        %1822 = vrot.lane.b32.xlu0 %v1287, 96
        %v1823 = vpop.permute.xlu0 %1822
        %1824 = vrot.lane.b32.xlu0 %v1288, 96
        %v1825 = vpop.permute.xlu0 %1824
        %1826 = vrot.lane.b32.xlu0 %v1289, 96
        %v1827 = vpop.permute.xlu0 %1826
        %1828 = vrot.lane.b32.xlu0 %v1306, 96
        %v1829 = vpop.permute.xlu0 %1828
        %1830 = vrot.lane.b32.xlu0 %v1307, 96
        %v1831 = vpop.permute.xlu0 %1830
        %1832 = vrot.lane.b32.xlu0 %v1308, 96
        %v1833 = vpop.permute.xlu0 %1832
        %1834 = vrot.lane.b32.xlu0 %v1309, 96
        %v1835 = vpop.permute.xlu0 %1834
        %v1837 = vsel %vm1310, %v1821, 0
        %v1840 = vsel %vm1310, %v1823, 0
        %v1843 = vsel %vm1310, %v1825, 0
        %v1846 = vsel %vm1310, %v1827, 0
        %v1849 = vsel %vm1310, %v1829, 0
        %v1852 = vsel %vm1310, %v1831, 0
        %v1855 = vsel %vm1310, %v1833, 0
        %v1858 = vsel %vm1310, %v1835, 0
        %1860 = vmatpush.bf16.xpose.msra.mxu0 0
        %1861 = vmatpush.bf16.xpose.msra.mxu0 0
        %1862 = vmatpush.bf16.xpose.msra.mxu0 0
        %1863 = vmatpush.bf16.xpose.msra.mxu0 0
        %1864 = vmatpush.bf16.xpose.msra.mxu0 %v1858
        %1865 = vmatpush.bf16.xpose.msra.mxu0 %v1855
        %1866 = vmatpush.bf16.xpose.msra.mxu0 %v1852
        %1867 = vmatpush.bf16.xpose.msra.mxu0 %v1849
        %1868 = vmatmul.bf16.gmra.mxu0 %v1837
        %v1869 = vpop.f32.mrf.mxu0
        %v1870 = vadd.f32 %v1262, %v1869
        %v1871 = vpop.f32.mrf.mxu0
        %v1872 = vadd.f32 %v1263, %v1871
        %1873 = vmatmul.bf16.gmra.mxu0 %v1840
        %v1874 = vpop.f32.mrf.mxu0
        %v1875 = vadd.f32 %v1264, %v1874
        %v1876 = vpop.f32.mrf.mxu0
        %v1877 = vadd.f32 %v1265, %v1876
        %1878 = vmatmul.bf16.gmra.mxu0 %v1843
        %v1879 = vpop.f32.mrf.mxu0
        %v1880 = vadd.f32 %v1266, %v1879
        %v1881 = vpop.f32.mrf.mxu0
        %v1882 = vadd.f32 %v1267, %v1881
        %1883 = vmatmul.bf16.gmra.mxu0 %v1846
        %v1884 = vpop.f32.mrf.mxu0
        %v1885 = vadd.f32 %v1268, %v1884
        %v1886 = vpop.f32.mrf.mxu0
        %v1887 = vadd.f32 %v1269, %v1886
        %1888 = vdwg.mxu0
        %1889 = vrot.lane.b32.xlu0 %v1380, 96
        %v1890 = vpop.permute.xlu0 %1889
        %1891 = vrot.lane.b32.xlu0 %v1381, 96
        %v1892 = vpop.permute.xlu0 %1891
        %1893 = vrot.lane.b32.xlu0 %v1382, 96
        %v1894 = vpop.permute.xlu0 %1893
        %1895 = vrot.lane.b32.xlu0 %v1383, 96
        %v1896 = vpop.permute.xlu0 %1895
        %1897 = vrot.lane.b32.xlu0 %v1400, 96
        %v1898 = vpop.permute.xlu0 %1897
        %1899 = vrot.lane.b32.xlu0 %v1401, 96
        %v1900 = vpop.permute.xlu0 %1899
        %1901 = vrot.lane.b32.xlu0 %v1402, 96
        %v1902 = vpop.permute.xlu0 %1901
        %1903 = vrot.lane.b32.xlu0 %v1403, 96
        %v1904 = vpop.permute.xlu0 %1903
        %v1906 = vsel %vm1310, %v1890, 0
        %v1909 = vsel %vm1310, %v1892, 0
        %v1912 = vsel %vm1310, %v1894, 0
        %v1915 = vsel %vm1310, %v1896, 0
        %v1918 = vsel %vm1310, %v1898, 0
        %v1921 = vsel %vm1310, %v1900, 0
        %v1924 = vsel %vm1310, %v1902, 0
        %v1927 = vsel %vm1310, %v1904, 0
        %1929 = vmatpush.bf16.xpose.msra.mxu0 0
        %1930 = vmatpush.bf16.xpose.msra.mxu0 0
        %1931 = vmatpush.bf16.xpose.msra.mxu0 0
        %1932 = vmatpush.bf16.xpose.msra.mxu0 0
        %1933 = vmatpush.bf16.xpose.msra.mxu0 %v1927
        %1934 = vmatpush.bf16.xpose.msra.mxu0 %v1924
        %1935 = vmatpush.bf16.xpose.msra.mxu0 %v1921
        %1936 = vmatpush.bf16.xpose.msra.mxu0 %v1918
        %1937 = vmatmul.bf16.gmra.mxu0 %v1906
        %v1938 = vpop.f32.mrf.mxu0
        %v1939 = vadd.f32 %v1262, %v1938
        %v1940 = vpop.f32.mrf.mxu0
        %v1941 = vadd.f32 %v1263, %v1940
        %1942 = vmatmul.bf16.gmra.mxu0 %v1909
        %v1943 = vpop.f32.mrf.mxu0
        %v1944 = vadd.f32 %v1264, %v1943
        %v1945 = vpop.f32.mrf.mxu0
        %v1946 = vadd.f32 %v1265, %v1945
        %1947 = vmatmul.bf16.gmra.mxu0 %v1912
        %v1948 = vpop.f32.mrf.mxu0
        %v1949 = vadd.f32 %v1266, %v1948
        %v1950 = vpop.f32.mrf.mxu0
        %v1951 = vadd.f32 %v1267, %v1950
        %1952 = vmatmul.bf16.gmra.mxu0 %v1915
        %v1953 = vpop.f32.mrf.mxu0
        %v1954 = vadd.f32 %v1268, %v1953
        %v1955 = vpop.f32.mrf.mxu0
        %v1956 = vadd.f32 %v1269, %v1955
        %1957 = vdwg.mxu0
        %v1958 = vsel %vm1457, %v1870, -inf
        %1959 = vmax.xlane.f32.xlu0 %v1958
        %v1960 = vpop.xlane.xlu0 %1959
        %v1961 = vsel %vm1457, %v1872, -inf
        %1962 = vmax.xlane.f32.xlu0 %v1961
        %v1963 = vpop.xlane.xlu0 %1962
        %v1964 = vsel %vm1457, %v1875, -inf
        %1965 = vmax.xlane.f32.xlu0 %v1964
        %v1966 = vpop.xlane.xlu0 %1965
        %v1967 = vsel %vm1457, %v1877, -inf
        %1968 = vmax.xlane.f32.xlu0 %v1967
        %v1969 = vpop.xlane.xlu0 %1968
        %v1970 = vsel %vm1457, %v1880, -inf
        %1971 = vmax.xlane.f32.xlu0 %v1970
        %v1972 = vpop.xlane.xlu0 %1971
        %v1973 = vsel %vm1457, %v1882, -inf
        %1974 = vmax.xlane.f32.xlu0 %v1973
        %v1975 = vpop.xlane.xlu0 %1974
        %v1976 = vsel %vm1457, %v1885, -inf
        %1977 = vmax.xlane.f32.xlu0 %v1976
        %v1978 = vpop.xlane.xlu0 %1977
        %v1979 = vsel %vm1457, %v1887, -inf
        %1980 = vmax.xlane.f32.xlu0 %v1979
        %v1981 = vpop.xlane.xlu0 %1980
        %v1982 = vsel %vm1457, %v1939, -inf
        %1983 = vmax.xlane.f32.xlu0 %v1982
        %v1984 = vpop.xlane.xlu0 %1983
        %v1985 = vsel %vm1457, %v1941, -inf
        %1986 = vmax.xlane.f32.xlu0 %v1985
        %v1987 = vpop.xlane.xlu0 %1986
        %v1988 = vsel %vm1457, %v1944, -inf
        %1989 = vmax.xlane.f32.xlu0 %v1988
        %v1990 = vpop.xlane.xlu0 %1989
        %v1991 = vsel %vm1457, %v1946, -inf
        %1992 = vmax.xlane.f32.xlu0 %v1991
        %v1993 = vpop.xlane.xlu0 %1992
        %v1994 = vsel %vm1457, %v1949, -inf
        %1995 = vmax.xlane.f32.xlu0 %v1994
        %v1996 = vpop.xlane.xlu0 %1995
        %v1997 = vsel %vm1457, %v1951, -inf
        %1998 = vmax.xlane.f32.xlu0 %v1997
        %v1999 = vpop.xlane.xlu0 %1998
        %v2000 = vsel %vm1457, %v1954, -inf
        %2001 = vmax.xlane.f32.xlu0 %v2000
        %v2002 = vpop.xlane.xlu0 %2001
        %v2003 = vsel %vm1457, %v1956, -inf
        %2004 = vmax.xlane.f32.xlu0 %v2003
        %v2005 = vpop.xlane.xlu0 %2004
        %v2006 = vsub.f32 %v1870, %v1960
        %v2007 = vsub.f32 %v1872, %v1963
        %v2008 = vsub.f32 %v1875, %v1966
        %v2009 = vsub.f32 %v1877, %v1969
        %v2010 = vsub.f32 %v1880, %v1972
        %v2011 = vsub.f32 %v1882, %v1975
        %v2012 = vsub.f32 %v1885, %v1978
        %v2013 = vsub.f32 %v1887, %v1981
        %v2014 = vsub.f32 %v1939, %v1984
        %v2015 = vsub.f32 %v1941, %v1987
        %v2016 = vsub.f32 %v1944, %v1990
        %v2017 = vsub.f32 %v1946, %v1993
        %v2018 = vsub.f32 %v1949, %v1996
        %v2019 = vsub.f32 %v1951, %v1999
        %v2020 = vsub.f32 %v1954, %v2002
        %v2021 = vsub.f32 %v1956, %v2005
        %v2022 = vmul.f32 %v2006, 1.442695
        %v2023 = vpow.pop %v2022
        %v2024 = vmul.f32 %v2007, 1.442695
        %v2025 = vpow.pop %v2024
        %v2026 = vmul.f32 %v2008, 1.442695
        %v2027 = vpow.pop %v2026
        %v2028 = vmul.f32 %v2009, 1.442695
        %v2029 = vpow.pop %v2028
        %v2030 = vmul.f32 %v2010, 1.442695
        %v2031 = vpow.pop %v2030
        %v2032 = vmul.f32 %v2011, 1.442695
        %v2033 = vpow.pop %v2032
        %v2034 = vmul.f32 %v2012, 1.442695
        %v2035 = vpow.pop %v2034
        %v2036 = vmul.f32 %v2013, 1.442695
        %v2037 = vpow.pop %v2036
        %v2038 = vmul.f32 %v2014, 1.442695
        %v2039 = vpow.pop %v2038
        %v2040 = vmul.f32 %v2015, 1.442695
        %v2041 = vpow.pop %v2040
        %v2042 = vmul.f32 %v2016, 1.442695
        %v2043 = vpow.pop %v2042
        %v2044 = vmul.f32 %v2017, 1.442695
        %v2045 = vpow.pop %v2044
        %v2046 = vmul.f32 %v2018, 1.442695
        %v2047 = vpow.pop %v2046
        %v2048 = vmul.f32 %v2019, 1.442695
        %v2049 = vpow.pop %v2048
        %v2050 = vmul.f32 %v2020, 1.442695
        %v2051 = vpow.pop %v2050
        %v2052 = vmul.f32 %v2021, 1.442695
        %v2053 = vpow.pop %v2052
        %v2054 = vsel %vm1457, %v2023, 0.0
        %2055 = vadd.xlane.f32.xlu0 %v2054
        %v2056 = vpop.xlane.xlu0 %2055
        %v2057 = vsel %vm1457, %v2025, 0.0
        %2058 = vadd.xlane.f32.xlu0 %v2057
        %v2059 = vpop.xlane.xlu0 %2058
        %v2060 = vsel %vm1457, %v2027, 0.0
        %2061 = vadd.xlane.f32.xlu0 %v2060
        %v2062 = vpop.xlane.xlu0 %2061
        %v2063 = vsel %vm1457, %v2029, 0.0
        %2064 = vadd.xlane.f32.xlu0 %v2063
        %v2065 = vpop.xlane.xlu0 %2064
        %v2066 = vsel %vm1457, %v2031, 0.0
        %2067 = vadd.xlane.f32.xlu0 %v2066
        %v2068 = vpop.xlane.xlu0 %2067
        %v2069 = vsel %vm1457, %v2033, 0.0
        %2070 = vadd.xlane.f32.xlu0 %v2069
        %v2071 = vpop.xlane.xlu0 %2070
        %v2072 = vsel %vm1457, %v2035, 0.0
        %2073 = vadd.xlane.f32.xlu0 %v2072
        %v2074 = vpop.xlane.xlu0 %2073
        %v2075 = vsel %vm1457, %v2037, 0.0
        %2076 = vadd.xlane.f32.xlu0 %v2075
        %v2077 = vpop.xlane.xlu0 %2076
        %v2078 = vsel %vm1457, %v2039, 0.0
        %2079 = vadd.xlane.f32.xlu0 %v2078
        %v2080 = vpop.xlane.xlu0 %2079
        %v2081 = vsel %vm1457, %v2041, 0.0
        %2082 = vadd.xlane.f32.xlu0 %v2081
        %v2083 = vpop.xlane.xlu0 %2082
        %v2084 = vsel %vm1457, %v2043, 0.0
        %2085 = vadd.xlane.f32.xlu0 %v2084
        %v2086 = vpop.xlane.xlu0 %2085
        %v2087 = vsel %vm1457, %v2045, 0.0
        %2088 = vadd.xlane.f32.xlu0 %v2087
        %v2089 = vpop.xlane.xlu0 %2088
        %v2090 = vsel %vm1457, %v2047, 0.0
        %2091 = vadd.xlane.f32.xlu0 %v2090
        %v2092 = vpop.xlane.xlu0 %2091
        %v2093 = vsel %vm1457, %v2049, 0.0
        %2094 = vadd.xlane.f32.xlu0 %v2093
        %v2095 = vpop.xlane.xlu0 %2094
        %v2096 = vsel %vm1457, %v2051, 0.0
        %2097 = vadd.xlane.f32.xlu0 %v2096
        %v2098 = vpop.xlane.xlu0 %2097
        %v2099 = vsel %vm1457, %v2053, 0.0
        %2100 = vadd.xlane.f32.xlu0 %v2099
        %v2101 = vpop.xlane.xlu0 %2100
        %v2102 = vrcp.pop %v2056
        %v2103 = vrcp.pop %v2059
        %v2104 = vrcp.pop %v2062
        %v2105 = vrcp.pop %v2065
        %v2106 = vrcp.pop %v2068
        %v2107 = vrcp.pop %v2071
        %v2108 = vrcp.pop %v2074
        %v2109 = vrcp.pop %v2077
        %v2110 = vrcp.pop %v2080
        %v2111 = vrcp.pop %v2083
        %v2112 = vrcp.pop %v2086
        %v2113 = vrcp.pop %v2089
        %v2114 = vrcp.pop %v2092
        %v2115 = vrcp.pop %v2095
        %v2116 = vrcp.pop %v2098
        %v2117 = vrcp.pop %v2101
        %v2118 = vmul.f32 %v2023, %v2102
        %v2119 = vmul.f32 %v2025, %v2103
        %v2120 = vmul.f32 %v2027, %v2104
        %v2121 = vmul.f32 %v2029, %v2105
        %v2122 = vmul.f32 %v2031, %v2106
        %v2123 = vmul.f32 %v2033, %v2107
        %v2124 = vmul.f32 %v2035, %v2108
        %v2125 = vmul.f32 %v2037, %v2109
        %v2126 = vmul.f32 %v2039, %v2110
        %v2127 = vmul.f32 %v2041, %v2111
        %v2128 = vmul.f32 %v2043, %v2112
        %v2129 = vmul.f32 %v2045, %v2113
        %v2130 = vmul.f32 %v2047, %v2114
        %v2131 = vmul.f32 %v2049, %v2115
        %v2132 = vmul.f32 %v2051, %v2116
        %v2133 = vmul.f32 %v2053, %v2117
        %v2134 = vpack.c.bf16 %v2118, %v2118
        %v2135 = vpack.c.bf16 %v2119, %v2119
        %v2136 = vpack.c.bf16 %v2120, %v2120
        %v2137 = vpack.c.bf16 %v2121, %v2121
        %v2138 = vpack.c.bf16 %v2122, %v2122
        %v2139 = vpack.c.bf16 %v2123, %v2123
        %v2140 = vpack.c.bf16 %v2124, %v2124
        %v2141 = vpack.c.bf16 %v2125, %v2125
        %v2142 = vpack.c.bf16 %v2126, %v2126
        %v2143 = vpack.c.bf16 %v2127, %v2127
        %v2144 = vpack.c.bf16 %v2128, %v2128
        %v2145 = vpack.c.bf16 %v2129, %v2129
        %v2146 = vpack.c.bf16 %v2130, %v2130
        %v2147 = vpack.c.bf16 %v2131, %v2131
        %v2148 = vpack.c.bf16 %v2132, %v2132
        %v2149 = vpack.c.bf16 %v2133, %v2133
        %v2158 = vunpack.c.l.b16 %v2134
        %v2159 = vunpack.c.l.b16 %v2135
        %v2160 = vunpack.c.l.b16 %v2136
        %v2161 = vunpack.c.l.b16 %v2137
        %v2162 = vunpack.c.l.b16 %v2138
        %v2163 = vunpack.c.l.b16 %v2139
        %v2164 = vunpack.c.l.b16 %v2140
        %v2165 = vunpack.c.l.b16 %v2141
        %v2166 = vpack.c.b16 %v2159, %v2158
        %v2167 = vpack.c.b16 %v2161, %v2160
        %v2168 = vpack.c.b16 %v2163, %v2162
        %v2169 = vpack.c.b16 %v2165, %v2164
        %2170 = vrot.lane.b32.xlu0 %v1686, 96
        %v2171 = vpop.permute.xlu0 %2170
        %2172 = vrot.lane.b32.xlu0 %v1687, 96
        %v2173 = vpop.permute.xlu0 %2172
        %2174 = vrot.lane.b32.xlu0 %v1688, 96
        %v2175 = vpop.permute.xlu0 %2174
        %2176 = vrot.lane.b32.xlu0 %v1689, 96
        %v2177 = vpop.permute.xlu0 %2176
        %v2183 = vsel %vm1457, %v2166, 0
        %v2186 = vsel %vm1457, %v2167, 0
        %v2189 = vsel %vm1457, %v2168, 0
        %v2192 = vsel %vm1457, %v2169, 0
        %2194 = vmatpush.bf16.msra.mxu0 0
        %2195 = vmatpush.bf16.msra.mxu0 0
        %2196 = vmatpush.bf16.msra.mxu0 0
        %2197 = vmatpush.bf16.msra.mxu0 0
        %2198 = vmatpush.bf16.msra.mxu0 %v2177
        %2199 = vmatpush.bf16.msra.mxu0 %v2175
        %2200 = vmatpush.bf16.msra.mxu0 %v2173
        %2201 = vmatpush.bf16.msra.mxu0 %v2171
        %2202 = vmatmul.bf16.gmra.mxu0 %v2183
        %v2203 = vpop.f32.mrf.mxu0
        %v2204 = vadd.f32 0.0, %v2203
        %v2205 = vpop.f32.mrf.mxu0
        %v2206 = vadd.f32 0.0, %v2205
        %2207 = vmatmul.bf16.gmra.mxu0 %v2186
        %v2208 = vpop.f32.mrf.mxu0
        %v2209 = vadd.f32 0.0, %v2208
        %v2210 = vpop.f32.mrf.mxu0
        %v2211 = vadd.f32 0.0, %v2210
        %2212 = vmatmul.bf16.gmra.mxu0 %v2189
        %v2213 = vpop.f32.mrf.mxu0
        %v2214 = vadd.f32 0.0, %v2213
        %v2215 = vpop.f32.mrf.mxu0
        %v2216 = vadd.f32 0.0, %v2215
        %2217 = vmatmul.bf16.gmra.mxu0 %v2192
        %v2218 = vpop.f32.mrf.mxu0
        %v2219 = vadd.f32 0.0, %v2218
        %v2220 = vpop.f32.mrf.mxu0
        %v2221 = vadd.f32 0.0, %v2220
        %2222 = vdwg.mxu0
        %v2231 = vunpack.c.l.b16 %v2142
        %v2232 = vunpack.c.l.b16 %v2143
        %v2233 = vunpack.c.l.b16 %v2144
        %v2234 = vunpack.c.l.b16 %v2145
        %v2235 = vunpack.c.l.b16 %v2146
        %v2236 = vunpack.c.l.b16 %v2147
        %v2237 = vunpack.c.l.b16 %v2148
        %v2238 = vunpack.c.l.b16 %v2149
        %v2239 = vpack.c.b16 %v2232, %v2231
        %v2240 = vpack.c.b16 %v2234, %v2233
        %v2241 = vpack.c.b16 %v2236, %v2235
        %v2242 = vpack.c.b16 %v2238, %v2237
        %2243 = vrot.lane.b32.xlu0 %v1771, 96
        %v2244 = vpop.permute.xlu0 %2243
        %2245 = vrot.lane.b32.xlu0 %v1772, 96
        %v2246 = vpop.permute.xlu0 %2245
        %2247 = vrot.lane.b32.xlu0 %v1773, 96
        %v2248 = vpop.permute.xlu0 %2247
        %2249 = vrot.lane.b32.xlu0 %v1774, 96
        %v2250 = vpop.permute.xlu0 %2249
        %v2256 = vsel %vm1457, %v2239, 0
        %v2259 = vsel %vm1457, %v2240, 0
        %v2262 = vsel %vm1457, %v2241, 0
        %v2265 = vsel %vm1457, %v2242, 0
        %2267 = vmatpush.bf16.msra.mxu0 0
        %2268 = vmatpush.bf16.msra.mxu0 0
        %2269 = vmatpush.bf16.msra.mxu0 0
        %2270 = vmatpush.bf16.msra.mxu0 0
        %2271 = vmatpush.bf16.msra.mxu0 %v2250
        %2272 = vmatpush.bf16.msra.mxu0 %v2248
        %2273 = vmatpush.bf16.msra.mxu0 %v2246
        %2274 = vmatpush.bf16.msra.mxu0 %v2244
        %2275 = vmatmul.bf16.gmra.mxu0 %v2256
        %v2276 = vpop.f32.mrf.mxu0
        %v2277 = vadd.f32 0.0, %v2276
        %v2278 = vpop.f32.mrf.mxu0
        %v2279 = vadd.f32 0.0, %v2278
        %2280 = vmatmul.bf16.gmra.mxu0 %v2259
        %v2281 = vpop.f32.mrf.mxu0
        %v2282 = vadd.f32 0.0, %v2281
        %v2283 = vpop.f32.mrf.mxu0
        %v2284 = vadd.f32 0.0, %v2283
        %2285 = vmatmul.bf16.gmra.mxu0 %v2262
        %v2286 = vpop.f32.mrf.mxu0
        %v2287 = vadd.f32 0.0, %v2286
        %v2288 = vpop.f32.mrf.mxu0
        %v2289 = vadd.f32 0.0, %v2288
        %2290 = vmatmul.bf16.gmra.mxu0 %v2265
        %v2291 = vpop.f32.mrf.mxu0
        %v2292 = vadd.f32 0.0, %v2291
        %v2293 = vpop.f32.mrf.mxu0
        %v2294 = vadd.f32 0.0, %v2293
        %2295 = vdwg.mxu0
        %2296 = vrot.lane.b32.xlu0 %v1286, 64
        %v2297 = vpop.permute.xlu0 %2296
        %2298 = vrot.lane.b32.xlu0 %v1287, 64
        %v2299 = vpop.permute.xlu0 %2298
        %2300 = vrot.lane.b32.xlu0 %v1288, 64
        %v2301 = vpop.permute.xlu0 %2300
        %2302 = vrot.lane.b32.xlu0 %v1289, 64
        %v2303 = vpop.permute.xlu0 %2302
        %2304 = vrot.lane.b32.xlu0 %v1306, 64
        %v2305 = vpop.permute.xlu0 %2304
        %2306 = vrot.lane.b32.xlu0 %v1307, 64
        %v2307 = vpop.permute.xlu0 %2306
        %2308 = vrot.lane.b32.xlu0 %v1308, 64
        %v2309 = vpop.permute.xlu0 %2308
        %2310 = vrot.lane.b32.xlu0 %v1309, 64
        %v2311 = vpop.permute.xlu0 %2310
        %v2313 = vsel %vm1310, %v2297, 0
        %v2316 = vsel %vm1310, %v2299, 0
        %v2319 = vsel %vm1310, %v2301, 0
        %v2322 = vsel %vm1310, %v2303, 0
        %v2325 = vsel %vm1310, %v2305, 0
        %v2328 = vsel %vm1310, %v2307, 0
        %v2331 = vsel %vm1310, %v2309, 0
        %v2334 = vsel %vm1310, %v2311, 0
        %2336 = vmatpush.bf16.xpose.msra.mxu0 0
        %2337 = vmatpush.bf16.xpose.msra.mxu0 0
        %2338 = vmatpush.bf16.xpose.msra.mxu0 0
        %2339 = vmatpush.bf16.xpose.msra.mxu0 0
        %2340 = vmatpush.bf16.xpose.msra.mxu0 %v2334
        %2341 = vmatpush.bf16.xpose.msra.mxu0 %v2331
        %2342 = vmatpush.bf16.xpose.msra.mxu0 %v2328
        %2343 = vmatpush.bf16.xpose.msra.mxu0 %v2325
        %2344 = vmatmul.bf16.gmra.mxu0 %v2313
        %v2345 = vpop.f32.mrf.mxu0
        %v2346 = vadd.f32 %v1262, %v2345
        %v2347 = vpop.f32.mrf.mxu0
        %v2348 = vadd.f32 %v1263, %v2347
        %2349 = vmatmul.bf16.gmra.mxu0 %v2316
        %v2350 = vpop.f32.mrf.mxu0
        %v2351 = vadd.f32 %v1264, %v2350
        %v2352 = vpop.f32.mrf.mxu0
        %v2353 = vadd.f32 %v1265, %v2352
        %2354 = vmatmul.bf16.gmra.mxu0 %v2319
        %v2355 = vpop.f32.mrf.mxu0
        %v2356 = vadd.f32 %v1266, %v2355
        %v2357 = vpop.f32.mrf.mxu0
        %v2358 = vadd.f32 %v1267, %v2357
        %2359 = vmatmul.bf16.gmra.mxu0 %v2322
        %v2360 = vpop.f32.mrf.mxu0
        %v2361 = vadd.f32 %v1268, %v2360
        %v2362 = vpop.f32.mrf.mxu0
        %v2363 = vadd.f32 %v1269, %v2362
        %2364 = vdwg.mxu0
        %2365 = vrot.lane.b32.xlu0 %v1380, 64
        %v2366 = vpop.permute.xlu0 %2365
        %2367 = vrot.lane.b32.xlu0 %v1381, 64
        %v2368 = vpop.permute.xlu0 %2367
        %2369 = vrot.lane.b32.xlu0 %v1382, 64
        %v2370 = vpop.permute.xlu0 %2369
        %2371 = vrot.lane.b32.xlu0 %v1383, 64
        %v2372 = vpop.permute.xlu0 %2371
        %2373 = vrot.lane.b32.xlu0 %v1400, 64
        %v2374 = vpop.permute.xlu0 %2373
        %2375 = vrot.lane.b32.xlu0 %v1401, 64
        %v2376 = vpop.permute.xlu0 %2375
        %2377 = vrot.lane.b32.xlu0 %v1402, 64
        %v2378 = vpop.permute.xlu0 %2377
        %2379 = vrot.lane.b32.xlu0 %v1403, 64
        %v2380 = vpop.permute.xlu0 %2379
        %v2382 = vsel %vm1310, %v2366, 0
        %v2385 = vsel %vm1310, %v2368, 0
        %v2388 = vsel %vm1310, %v2370, 0
        %v2391 = vsel %vm1310, %v2372, 0
        %v2394 = vsel %vm1310, %v2374, 0
        %v2397 = vsel %vm1310, %v2376, 0
        %v2400 = vsel %vm1310, %v2378, 0
        %v2403 = vsel %vm1310, %v2380, 0
        %2405 = vmatpush.bf16.xpose.msra.mxu0 0
        %2406 = vmatpush.bf16.xpose.msra.mxu0 0
        %2407 = vmatpush.bf16.xpose.msra.mxu0 0
        %2408 = vmatpush.bf16.xpose.msra.mxu0 0
        %2409 = vmatpush.bf16.xpose.msra.mxu0 %v2403
        %2410 = vmatpush.bf16.xpose.msra.mxu0 %v2400
        %2411 = vmatpush.bf16.xpose.msra.mxu0 %v2397
        %2412 = vmatpush.bf16.xpose.msra.mxu0 %v2394
        %2413 = vmatmul.bf16.gmra.mxu0 %v2382
        %v2414 = vpop.f32.mrf.mxu0
        %v2415 = vadd.f32 %v1262, %v2414
        %v2416 = vpop.f32.mrf.mxu0
        %v2417 = vadd.f32 %v1263, %v2416
        %2418 = vmatmul.bf16.gmra.mxu0 %v2385
        %v2419 = vpop.f32.mrf.mxu0
        %v2420 = vadd.f32 %v1264, %v2419
        %v2421 = vpop.f32.mrf.mxu0
        %v2422 = vadd.f32 %v1265, %v2421
        %2423 = vmatmul.bf16.gmra.mxu0 %v2388
        %v2424 = vpop.f32.mrf.mxu0
        %v2425 = vadd.f32 %v1266, %v2424
        %v2426 = vpop.f32.mrf.mxu0
        %v2427 = vadd.f32 %v1267, %v2426
        %2428 = vmatmul.bf16.gmra.mxu0 %v2391
        %v2429 = vpop.f32.mrf.mxu0
        %v2430 = vadd.f32 %v1268, %v2429
        %v2431 = vpop.f32.mrf.mxu0
        %v2432 = vadd.f32 %v1269, %v2431
        %2433 = vdwg.mxu0
        %v2434 = vsel %vm1457, %v2346, -inf
        %2435 = vmax.xlane.f32.xlu0 %v2434
        %v2436 = vpop.xlane.xlu0 %2435
        %v2437 = vsel %vm1457, %v2348, -inf
        %2438 = vmax.xlane.f32.xlu0 %v2437
        %v2439 = vpop.xlane.xlu0 %2438
        %v2440 = vsel %vm1457, %v2351, -inf
        %2441 = vmax.xlane.f32.xlu0 %v2440
        %v2442 = vpop.xlane.xlu0 %2441
        %v2443 = vsel %vm1457, %v2353, -inf
        %2444 = vmax.xlane.f32.xlu0 %v2443
        %v2445 = vpop.xlane.xlu0 %2444
        %v2446 = vsel %vm1457, %v2356, -inf
        %2447 = vmax.xlane.f32.xlu0 %v2446
        %v2448 = vpop.xlane.xlu0 %2447
        %v2449 = vsel %vm1457, %v2358, -inf
        %2450 = vmax.xlane.f32.xlu0 %v2449
        %v2451 = vpop.xlane.xlu0 %2450
        %v2452 = vsel %vm1457, %v2361, -inf
        %2453 = vmax.xlane.f32.xlu0 %v2452
        %v2454 = vpop.xlane.xlu0 %2453
        %v2455 = vsel %vm1457, %v2363, -inf
        %2456 = vmax.xlane.f32.xlu0 %v2455
        %v2457 = vpop.xlane.xlu0 %2456
        %v2458 = vsel %vm1457, %v2415, -inf
        %2459 = vmax.xlane.f32.xlu0 %v2458
        %v2460 = vpop.xlane.xlu0 %2459
        %v2461 = vsel %vm1457, %v2417, -inf
        %2462 = vmax.xlane.f32.xlu0 %v2461
        %v2463 = vpop.xlane.xlu0 %2462
        %v2464 = vsel %vm1457, %v2420, -inf
        %2465 = vmax.xlane.f32.xlu0 %v2464
        %v2466 = vpop.xlane.xlu0 %2465
        %v2467 = vsel %vm1457, %v2422, -inf
        %2468 = vmax.xlane.f32.xlu0 %v2467
        %v2469 = vpop.xlane.xlu0 %2468
        %v2470 = vsel %vm1457, %v2425, -inf
        %2471 = vmax.xlane.f32.xlu0 %v2470
        %v2472 = vpop.xlane.xlu0 %2471
        %v2473 = vsel %vm1457, %v2427, -inf
        %2474 = vmax.xlane.f32.xlu0 %v2473
        %v2475 = vpop.xlane.xlu0 %2474
        %v2476 = vsel %vm1457, %v2430, -inf
        %2477 = vmax.xlane.f32.xlu0 %v2476
        %v2478 = vpop.xlane.xlu0 %2477
        %v2479 = vsel %vm1457, %v2432, -inf
        %2480 = vmax.xlane.f32.xlu0 %v2479
        %v2481 = vpop.xlane.xlu0 %2480
        %v2482 = vsub.f32 %v2346, %v2436
        %v2483 = vsub.f32 %v2348, %v2439
        %v2484 = vsub.f32 %v2351, %v2442
        %v2485 = vsub.f32 %v2353, %v2445
        %v2486 = vsub.f32 %v2356, %v2448
        %v2487 = vsub.f32 %v2358, %v2451
        %v2488 = vsub.f32 %v2361, %v2454
        %v2489 = vsub.f32 %v2363, %v2457
        %v2490 = vsub.f32 %v2415, %v2460
        %v2491 = vsub.f32 %v2417, %v2463
        %v2492 = vsub.f32 %v2420, %v2466
        %v2493 = vsub.f32 %v2422, %v2469
        %v2494 = vsub.f32 %v2425, %v2472
        %v2495 = vsub.f32 %v2427, %v2475
        %v2496 = vsub.f32 %v2430, %v2478
        %v2497 = vsub.f32 %v2432, %v2481
        %v2498 = vmul.f32 %v2482, 1.442695
        %v2499 = vpow.pop %v2498
        %v2500 = vmul.f32 %v2483, 1.442695
        %v2501 = vpow.pop %v2500
        %v2502 = vmul.f32 %v2484, 1.442695
        %v2503 = vpow.pop %v2502
        %v2504 = vmul.f32 %v2485, 1.442695
        %v2505 = vpow.pop %v2504
        %v2506 = vmul.f32 %v2486, 1.442695
        %v2507 = vpow.pop %v2506
        %v2508 = vmul.f32 %v2487, 1.442695
        %v2509 = vpow.pop %v2508
        %v2510 = vmul.f32 %v2488, 1.442695
        %v2511 = vpow.pop %v2510
        %v2512 = vmul.f32 %v2489, 1.442695
        %v2513 = vpow.pop %v2512
        %v2514 = vmul.f32 %v2490, 1.442695
        %v2515 = vpow.pop %v2514
        %v2516 = vmul.f32 %v2491, 1.442695
        %v2517 = vpow.pop %v2516
        %v2518 = vmul.f32 %v2492, 1.442695
        %v2519 = vpow.pop %v2518
        %v2520 = vmul.f32 %v2493, 1.442695
        %v2521 = vpow.pop %v2520
        %v2522 = vmul.f32 %v2494, 1.442695
        %v2523 = vpow.pop %v2522
        %v2524 = vmul.f32 %v2495, 1.442695
        %v2525 = vpow.pop %v2524
        %v2526 = vmul.f32 %v2496, 1.442695
        %v2527 = vpow.pop %v2526
        %v2528 = vmul.f32 %v2497, 1.442695
        %v2529 = vpow.pop %v2528
        %v2530 = vsel %vm1457, %v2499, 0.0
        %2531 = vadd.xlane.f32.xlu0 %v2530
        %v2532 = vpop.xlane.xlu0 %2531
        %v2533 = vsel %vm1457, %v2501, 0.0
        %2534 = vadd.xlane.f32.xlu0 %v2533
        %v2535 = vpop.xlane.xlu0 %2534
        %v2536 = vsel %vm1457, %v2503, 0.0
        %2537 = vadd.xlane.f32.xlu0 %v2536
        %v2538 = vpop.xlane.xlu0 %2537
        %v2539 = vsel %vm1457, %v2505, 0.0
        %2540 = vadd.xlane.f32.xlu0 %v2539
        %v2541 = vpop.xlane.xlu0 %2540
        %v2542 = vsel %vm1457, %v2507, 0.0
        %2543 = vadd.xlane.f32.xlu0 %v2542
        %v2544 = vpop.xlane.xlu0 %2543
        %v2545 = vsel %vm1457, %v2509, 0.0
        %2546 = vadd.xlane.f32.xlu0 %v2545
        %v2547 = vpop.xlane.xlu0 %2546
        %v2548 = vsel %vm1457, %v2511, 0.0
        %2549 = vadd.xlane.f32.xlu0 %v2548
        %v2550 = vpop.xlane.xlu0 %2549
        %v2551 = vsel %vm1457, %v2513, 0.0
        %2552 = vadd.xlane.f32.xlu0 %v2551
        %v2553 = vpop.xlane.xlu0 %2552
        %v2554 = vsel %vm1457, %v2515, 0.0
        %2555 = vadd.xlane.f32.xlu0 %v2554
        %v2556 = vpop.xlane.xlu0 %2555
        %v2557 = vsel %vm1457, %v2517, 0.0
        %2558 = vadd.xlane.f32.xlu0 %v2557
        %v2559 = vpop.xlane.xlu0 %2558
        %v2560 = vsel %vm1457, %v2519, 0.0
        %2561 = vadd.xlane.f32.xlu0 %v2560
        %v2562 = vpop.xlane.xlu0 %2561
        %v2563 = vsel %vm1457, %v2521, 0.0
        %2564 = vadd.xlane.f32.xlu0 %v2563
        %v2565 = vpop.xlane.xlu0 %2564
        %v2566 = vsel %vm1457, %v2523, 0.0
        %2567 = vadd.xlane.f32.xlu0 %v2566
        %v2568 = vpop.xlane.xlu0 %2567
        %v2569 = vsel %vm1457, %v2525, 0.0
        %2570 = vadd.xlane.f32.xlu0 %v2569
        %v2571 = vpop.xlane.xlu0 %2570
        %v2572 = vsel %vm1457, %v2527, 0.0
        %2573 = vadd.xlane.f32.xlu0 %v2572
        %v2574 = vpop.xlane.xlu0 %2573
        %v2575 = vsel %vm1457, %v2529, 0.0
        %2576 = vadd.xlane.f32.xlu0 %v2575
        %v2577 = vpop.xlane.xlu0 %2576
        %v2578 = vrcp.pop %v2532
        %v2579 = vrcp.pop %v2535
        %v2580 = vrcp.pop %v2538
        %v2581 = vrcp.pop %v2541
        %v2582 = vrcp.pop %v2544
        %v2583 = vrcp.pop %v2547
        %v2584 = vrcp.pop %v2550
        %v2585 = vrcp.pop %v2553
        %v2586 = vrcp.pop %v2556
        %v2587 = vrcp.pop %v2559
        %v2588 = vrcp.pop %v2562
        %v2589 = vrcp.pop %v2565
        %v2590 = vrcp.pop %v2568
        %v2591 = vrcp.pop %v2571
        %v2592 = vrcp.pop %v2574
        %v2593 = vrcp.pop %v2577
        %v2594 = vmul.f32 %v2499, %v2578
        %v2595 = vmul.f32 %v2501, %v2579
        %v2596 = vmul.f32 %v2503, %v2580
        %v2597 = vmul.f32 %v2505, %v2581
        %v2598 = vmul.f32 %v2507, %v2582
        %v2599 = vmul.f32 %v2509, %v2583
        %v2600 = vmul.f32 %v2511, %v2584
        %v2601 = vmul.f32 %v2513, %v2585
        %v2602 = vmul.f32 %v2515, %v2586
        %v2603 = vmul.f32 %v2517, %v2587
        %v2604 = vmul.f32 %v2519, %v2588
        %v2605 = vmul.f32 %v2521, %v2589
        %v2606 = vmul.f32 %v2523, %v2590
        %v2607 = vmul.f32 %v2525, %v2591
        %v2608 = vmul.f32 %v2527, %v2592
        %v2609 = vmul.f32 %v2529, %v2593
        %v2610 = vpack.c.bf16 %v2594, %v2594
        %v2611 = vpack.c.bf16 %v2595, %v2595
        %v2612 = vpack.c.bf16 %v2596, %v2596
        %v2613 = vpack.c.bf16 %v2597, %v2597
        %v2614 = vpack.c.bf16 %v2598, %v2598
        %v2615 = vpack.c.bf16 %v2599, %v2599
        %v2616 = vpack.c.bf16 %v2600, %v2600
        %v2617 = vpack.c.bf16 %v2601, %v2601
        %v2618 = vpack.c.bf16 %v2602, %v2602
        %v2619 = vpack.c.bf16 %v2603, %v2603
        %v2620 = vpack.c.bf16 %v2604, %v2604
        %v2621 = vpack.c.bf16 %v2605, %v2605
        %v2622 = vpack.c.bf16 %v2606, %v2606
        %v2623 = vpack.c.bf16 %v2607, %v2607
        %v2624 = vpack.c.bf16 %v2608, %v2608
        %v2625 = vpack.c.bf16 %v2609, %v2609
        %v2634 = vunpack.c.l.b16 %v2610
        %v2635 = vunpack.c.l.b16 %v2611
        %v2636 = vunpack.c.l.b16 %v2612
        %v2637 = vunpack.c.l.b16 %v2613
        %v2638 = vunpack.c.l.b16 %v2614
        %v2639 = vunpack.c.l.b16 %v2615
        %v2640 = vunpack.c.l.b16 %v2616
        %v2641 = vunpack.c.l.b16 %v2617
        %v2642 = vpack.c.b16 %v2635, %v2634
        %v2643 = vpack.c.b16 %v2637, %v2636
        %v2644 = vpack.c.b16 %v2639, %v2638
        %v2645 = vpack.c.b16 %v2641, %v2640
        %2646 = vrot.lane.b32.xlu0 %v1686, 64
        %v2647 = vpop.permute.xlu0 %2646
        %2648 = vrot.lane.b32.xlu0 %v1687, 64
        %v2649 = vpop.permute.xlu0 %2648
        %2650 = vrot.lane.b32.xlu0 %v1688, 64
        %v2651 = vpop.permute.xlu0 %2650
        %2652 = vrot.lane.b32.xlu0 %v1689, 64
        %v2653 = vpop.permute.xlu0 %2652
        %v2659 = vsel %vm1457, %v2642, 0
        %v2662 = vsel %vm1457, %v2643, 0
        %v2665 = vsel %vm1457, %v2644, 0
        %v2668 = vsel %vm1457, %v2645, 0
        %2670 = vmatpush.bf16.msra.mxu0 0
        %2671 = vmatpush.bf16.msra.mxu0 0
        %2672 = vmatpush.bf16.msra.mxu0 0
        %2673 = vmatpush.bf16.msra.mxu0 0
        %2674 = vmatpush.bf16.msra.mxu0 %v2653
        %2675 = vmatpush.bf16.msra.mxu0 %v2651
        %2676 = vmatpush.bf16.msra.mxu0 %v2649
        %2677 = vmatpush.bf16.msra.mxu0 %v2647
        %2678 = vmatmul.bf16.gmra.mxu0 %v2659
        %v2679 = vpop.f32.mrf.mxu0
        %v2680 = vadd.f32 0.0, %v2679
        %v2681 = vpop.f32.mrf.mxu0
        %v2682 = vadd.f32 0.0, %v2681
        %2683 = vmatmul.bf16.gmra.mxu0 %v2662
        %v2684 = vpop.f32.mrf.mxu0
        %v2685 = vadd.f32 0.0, %v2684
        %v2686 = vpop.f32.mrf.mxu0
        %v2687 = vadd.f32 0.0, %v2686
        %2688 = vmatmul.bf16.gmra.mxu0 %v2665
        %v2689 = vpop.f32.mrf.mxu0
        %v2690 = vadd.f32 0.0, %v2689
        %v2691 = vpop.f32.mrf.mxu0
        %v2692 = vadd.f32 0.0, %v2691
        %2693 = vmatmul.bf16.gmra.mxu0 %v2668
        %v2694 = vpop.f32.mrf.mxu0
        %v2695 = vadd.f32 0.0, %v2694
        %v2696 = vpop.f32.mrf.mxu0
        %v2697 = vadd.f32 0.0, %v2696
        %2698 = vdwg.mxu0
        %v2707 = vunpack.c.l.b16 %v2618
        %v2708 = vunpack.c.l.b16 %v2619
        %v2709 = vunpack.c.l.b16 %v2620
        %v2710 = vunpack.c.l.b16 %v2621
        %v2711 = vunpack.c.l.b16 %v2622
        %v2712 = vunpack.c.l.b16 %v2623
        %v2713 = vunpack.c.l.b16 %v2624
        %v2714 = vunpack.c.l.b16 %v2625
        %v2715 = vpack.c.b16 %v2708, %v2707
        %v2716 = vpack.c.b16 %v2710, %v2709
        %v2717 = vpack.c.b16 %v2712, %v2711
        %v2718 = vpack.c.b16 %v2714, %v2713
        %2719 = vrot.lane.b32.xlu0 %v1771, 64
        %v2720 = vpop.permute.xlu0 %2719
        %2721 = vrot.lane.b32.xlu0 %v1772, 64
        %v2722 = vpop.permute.xlu0 %2721
        %2723 = vrot.lane.b32.xlu0 %v1773, 64
        %v2724 = vpop.permute.xlu0 %2723
        %2725 = vrot.lane.b32.xlu0 %v1774, 64
        %v2726 = vpop.permute.xlu0 %2725
        %v2732 = vsel %vm1457, %v2715, 0
        %v2735 = vsel %vm1457, %v2716, 0
        %v2738 = vsel %vm1457, %v2717, 0
        %v2741 = vsel %vm1457, %v2718, 0
        %2743 = vmatpush.bf16.msra.mxu0 0
        %2744 = vmatpush.bf16.msra.mxu0 0
        %2745 = vmatpush.bf16.msra.mxu0 0
        %2746 = vmatpush.bf16.msra.mxu0 0
        %2747 = vmatpush.bf16.msra.mxu0 %v2726
        %2748 = vmatpush.bf16.msra.mxu0 %v2724
        %2749 = vmatpush.bf16.msra.mxu0 %v2722
        %2750 = vmatpush.bf16.msra.mxu0 %v2720
        %2751 = vmatmul.bf16.gmra.mxu0 %v2732
        %v2752 = vpop.f32.mrf.mxu0
        %v2753 = vadd.f32 0.0, %v2752
        %v2754 = vpop.f32.mrf.mxu0
        %v2755 = vadd.f32 0.0, %v2754
        %2756 = vmatmul.bf16.gmra.mxu0 %v2735
        %v2757 = vpop.f32.mrf.mxu0
        %v2758 = vadd.f32 0.0, %v2757
        %v2759 = vpop.f32.mrf.mxu0
        %v2760 = vadd.f32 0.0, %v2759
        %2761 = vmatmul.bf16.gmra.mxu0 %v2738
        %v2762 = vpop.f32.mrf.mxu0
        %v2763 = vadd.f32 0.0, %v2762
        %v2764 = vpop.f32.mrf.mxu0
        %v2765 = vadd.f32 0.0, %v2764
        %2766 = vmatmul.bf16.gmra.mxu0 %v2741
        %v2767 = vpop.f32.mrf.mxu0
        %v2768 = vadd.f32 0.0, %v2767
        %v2769 = vpop.f32.mrf.mxu0
        %v2770 = vadd.f32 0.0, %v2769
        %2771 = vdwg.mxu0
        %2772 = vrot.lane.b32.xlu0 %v1286, 32
        %v2773 = vpop.permute.xlu0 %2772
        %2774 = vrot.lane.b32.xlu0 %v1287, 32
        %v2775 = vpop.permute.xlu0 %2774
        %2776 = vrot.lane.b32.xlu0 %v1288, 32
        %v2777 = vpop.permute.xlu0 %2776
        %2778 = vrot.lane.b32.xlu0 %v1289, 32
        %v2779 = vpop.permute.xlu0 %2778
        %2780 = vrot.lane.b32.xlu0 %v1306, 32
        %v2781 = vpop.permute.xlu0 %2780
        %2782 = vrot.lane.b32.xlu0 %v1307, 32
        %v2783 = vpop.permute.xlu0 %2782
        %2784 = vrot.lane.b32.xlu0 %v1308, 32
        %v2785 = vpop.permute.xlu0 %2784
        %2786 = vrot.lane.b32.xlu0 %v1309, 32
        %v2787 = vpop.permute.xlu0 %2786
        %v2789 = vsel %vm1310, %v2773, 0
        %v2792 = vsel %vm1310, %v2775, 0
        %v2795 = vsel %vm1310, %v2777, 0
        %v2798 = vsel %vm1310, %v2779, 0
        %v2801 = vsel %vm1310, %v2781, 0
        %v2804 = vsel %vm1310, %v2783, 0
        %v2807 = vsel %vm1310, %v2785, 0
        %v2810 = vsel %vm1310, %v2787, 0
        %2812 = vmatpush.bf16.xpose.msra.mxu0 0
        %2813 = vmatpush.bf16.xpose.msra.mxu0 0
        %2814 = vmatpush.bf16.xpose.msra.mxu0 0
        %2815 = vmatpush.bf16.xpose.msra.mxu0 0
        %2816 = vmatpush.bf16.xpose.msra.mxu0 %v2810
        %2817 = vmatpush.bf16.xpose.msra.mxu0 %v2807
        %2818 = vmatpush.bf16.xpose.msra.mxu0 %v2804
        %2819 = vmatpush.bf16.xpose.msra.mxu0 %v2801
        %2820 = vmatmul.bf16.gmra.mxu0 %v2789
        %v2821 = vpop.f32.mrf.mxu0
        %v2822 = vadd.f32 %v1262, %v2821
        %v2823 = vpop.f32.mrf.mxu0
        %v2824 = vadd.f32 %v1263, %v2823
        %2825 = vmatmul.bf16.gmra.mxu0 %v2792
        %v2826 = vpop.f32.mrf.mxu0
        %v2827 = vadd.f32 %v1264, %v2826
        %v2828 = vpop.f32.mrf.mxu0
        %v2829 = vadd.f32 %v1265, %v2828
        %2830 = vmatmul.bf16.gmra.mxu0 %v2795
        %v2831 = vpop.f32.mrf.mxu0
        %v2832 = vadd.f32 %v1266, %v2831
        %v2833 = vpop.f32.mrf.mxu0
        %v2834 = vadd.f32 %v1267, %v2833
        %2835 = vmatmul.bf16.gmra.mxu0 %v2798
        %v2836 = vpop.f32.mrf.mxu0
        %v2837 = vadd.f32 %v1268, %v2836
        %v2838 = vpop.f32.mrf.mxu0
        %v2839 = vadd.f32 %v1269, %v2838
        %2840 = vdwg.mxu0
        %2841 = vrot.lane.b32.xlu0 %v1380, 32
        %v2842 = vpop.permute.xlu0 %2841
        %2843 = vrot.lane.b32.xlu0 %v1381, 32
        %v2844 = vpop.permute.xlu0 %2843
        %2845 = vrot.lane.b32.xlu0 %v1382, 32
        %v2846 = vpop.permute.xlu0 %2845
        %2847 = vrot.lane.b32.xlu0 %v1383, 32
        %v2848 = vpop.permute.xlu0 %2847
        %2849 = vrot.lane.b32.xlu0 %v1400, 32
        %v2850 = vpop.permute.xlu0 %2849
        %2851 = vrot.lane.b32.xlu0 %v1401, 32
        %v2852 = vpop.permute.xlu0 %2851
        %2853 = vrot.lane.b32.xlu0 %v1402, 32
        %v2854 = vpop.permute.xlu0 %2853
        %2855 = vrot.lane.b32.xlu0 %v1403, 32
        %v2856 = vpop.permute.xlu0 %2855
        %v2858 = vsel %vm1310, %v2842, 0
        %v2861 = vsel %vm1310, %v2844, 0
        %v2864 = vsel %vm1310, %v2846, 0
        %v2867 = vsel %vm1310, %v2848, 0
        %v2870 = vsel %vm1310, %v2850, 0
        %v2873 = vsel %vm1310, %v2852, 0
        %v2876 = vsel %vm1310, %v2854, 0
        %v2879 = vsel %vm1310, %v2856, 0
        %2881 = vmatpush.bf16.xpose.msra.mxu0 0
        %2882 = vmatpush.bf16.xpose.msra.mxu0 0
        %2883 = vmatpush.bf16.xpose.msra.mxu0 0
        %2884 = vmatpush.bf16.xpose.msra.mxu0 0
        %2885 = vmatpush.bf16.xpose.msra.mxu0 %v2879
        %2886 = vmatpush.bf16.xpose.msra.mxu0 %v2876
        %2887 = vmatpush.bf16.xpose.msra.mxu0 %v2873
        %2888 = vmatpush.bf16.xpose.msra.mxu0 %v2870
        %2889 = vmatmul.bf16.gmra.mxu0 %v2858
        %v2890 = vpop.f32.mrf.mxu0
        %v2891 = vadd.f32 %v1262, %v2890
        %v2892 = vpop.f32.mrf.mxu0
        %v2893 = vadd.f32 %v1263, %v2892
        %2894 = vmatmul.bf16.gmra.mxu0 %v2861
        %v2895 = vpop.f32.mrf.mxu0
        %v2896 = vadd.f32 %v1264, %v2895
        %v2897 = vpop.f32.mrf.mxu0
        %v2898 = vadd.f32 %v1265, %v2897
        %2899 = vmatmul.bf16.gmra.mxu0 %v2864
        %v2900 = vpop.f32.mrf.mxu0
        %v2901 = vadd.f32 %v1266, %v2900
        %v2902 = vpop.f32.mrf.mxu0
        %v2903 = vadd.f32 %v1267, %v2902
        %2904 = vmatmul.bf16.gmra.mxu0 %v2867
        %v2905 = vpop.f32.mrf.mxu0
        %v2906 = vadd.f32 %v1268, %v2905
        %v2907 = vpop.f32.mrf.mxu0
        %v2908 = vadd.f32 %v1269, %v2907
        %2909 = vdwg.mxu0
        %v2910 = vsel %vm1457, %v2822, -inf
        %2911 = vmax.xlane.f32.xlu0 %v2910
        %v2912 = vpop.xlane.xlu0 %2911
        %v2913 = vsel %vm1457, %v2824, -inf
        %2914 = vmax.xlane.f32.xlu0 %v2913
        %v2915 = vpop.xlane.xlu0 %2914
        %v2916 = vsel %vm1457, %v2827, -inf
        %2917 = vmax.xlane.f32.xlu0 %v2916
        %v2918 = vpop.xlane.xlu0 %2917
        %v2919 = vsel %vm1457, %v2829, -inf
        %2920 = vmax.xlane.f32.xlu0 %v2919
        %v2921 = vpop.xlane.xlu0 %2920
        %v2922 = vsel %vm1457, %v2832, -inf
        %2923 = vmax.xlane.f32.xlu0 %v2922
        %v2924 = vpop.xlane.xlu0 %2923
        %v2925 = vsel %vm1457, %v2834, -inf
        %2926 = vmax.xlane.f32.xlu0 %v2925
        %v2927 = vpop.xlane.xlu0 %2926
        %v2928 = vsel %vm1457, %v2837, -inf
        %2929 = vmax.xlane.f32.xlu0 %v2928
        %v2930 = vpop.xlane.xlu0 %2929
        %v2931 = vsel %vm1457, %v2839, -inf
        %2932 = vmax.xlane.f32.xlu0 %v2931
        %v2933 = vpop.xlane.xlu0 %2932
        %v2934 = vsel %vm1457, %v2891, -inf
        %2935 = vmax.xlane.f32.xlu0 %v2934
        %v2936 = vpop.xlane.xlu0 %2935
        %v2937 = vsel %vm1457, %v2893, -inf
        %2938 = vmax.xlane.f32.xlu0 %v2937
        %v2939 = vpop.xlane.xlu0 %2938
        %v2940 = vsel %vm1457, %v2896, -inf
        %2941 = vmax.xlane.f32.xlu0 %v2940
        %v2942 = vpop.xlane.xlu0 %2941
        %v2943 = vsel %vm1457, %v2898, -inf
        %2944 = vmax.xlane.f32.xlu0 %v2943
        %v2945 = vpop.xlane.xlu0 %2944
        %v2946 = vsel %vm1457, %v2901, -inf
        %2947 = vmax.xlane.f32.xlu0 %v2946
        %v2948 = vpop.xlane.xlu0 %2947
        %v2949 = vsel %vm1457, %v2903, -inf
        %2950 = vmax.xlane.f32.xlu0 %v2949
        %v2951 = vpop.xlane.xlu0 %2950
        %v2952 = vsel %vm1457, %v2906, -inf
        %2953 = vmax.xlane.f32.xlu0 %v2952
        %v2954 = vpop.xlane.xlu0 %2953
        %v2955 = vsel %vm1457, %v2908, -inf
        %2956 = vmax.xlane.f32.xlu0 %v2955
        %v2957 = vpop.xlane.xlu0 %2956
        %v2958 = vsub.f32 %v2822, %v2912
        %v2959 = vsub.f32 %v2824, %v2915
        %v2960 = vsub.f32 %v2827, %v2918
        %v2961 = vsub.f32 %v2829, %v2921
        %v2962 = vsub.f32 %v2832, %v2924
        %v2963 = vsub.f32 %v2834, %v2927
        %v2964 = vsub.f32 %v2837, %v2930
        %v2965 = vsub.f32 %v2839, %v2933
        %v2966 = vsub.f32 %v2891, %v2936
        %v2967 = vsub.f32 %v2893, %v2939
        %v2968 = vsub.f32 %v2896, %v2942
        %v2969 = vsub.f32 %v2898, %v2945
        %v2970 = vsub.f32 %v2901, %v2948
        %v2971 = vsub.f32 %v2903, %v2951
        %v2972 = vsub.f32 %v2906, %v2954
        %v2973 = vsub.f32 %v2908, %v2957
        %v2974 = vmul.f32 %v2958, 1.442695
        %v2975 = vpow.pop %v2974
        %v2976 = vmul.f32 %v2959, 1.442695
        %v2977 = vpow.pop %v2976
        %v2978 = vmul.f32 %v2960, 1.442695
        %v2979 = vpow.pop %v2978
        %v2980 = vmul.f32 %v2961, 1.442695
        %v2981 = vpow.pop %v2980
        %v2982 = vmul.f32 %v2962, 1.442695
        %v2983 = vpow.pop %v2982
        %v2984 = vmul.f32 %v2963, 1.442695
        %v2985 = vpow.pop %v2984
        %v2986 = vmul.f32 %v2964, 1.442695
        %v2987 = vpow.pop %v2986
        %v2988 = vmul.f32 %v2965, 1.442695
        %v2989 = vpow.pop %v2988
        %v2990 = vmul.f32 %v2966, 1.442695
        %v2991 = vpow.pop %v2990
        %v2992 = vmul.f32 %v2967, 1.442695
        %v2993 = vpow.pop %v2992
        %v2994 = vmul.f32 %v2968, 1.442695
        %v2995 = vpow.pop %v2994
        %v2996 = vmul.f32 %v2969, 1.442695
        %v2997 = vpow.pop %v2996
        %v2998 = vmul.f32 %v2970, 1.442695
        %v2999 = vpow.pop %v2998
        %v3000 = vmul.f32 %v2971, 1.442695
        %v3001 = vpow.pop %v3000
        %v3002 = vmul.f32 %v2972, 1.442695
        %v3003 = vpow.pop %v3002
        %v3004 = vmul.f32 %v2973, 1.442695
        %v3005 = vpow.pop %v3004
        %v3006 = vsel %vm1457, %v2975, 0.0
        %3007 = vadd.xlane.f32.xlu0 %v3006
        %v3008 = vpop.xlane.xlu0 %3007
        %v3009 = vsel %vm1457, %v2977, 0.0
        %3010 = vadd.xlane.f32.xlu0 %v3009
        %v3011 = vpop.xlane.xlu0 %3010
        %v3012 = vsel %vm1457, %v2979, 0.0
        %3013 = vadd.xlane.f32.xlu0 %v3012
        %v3014 = vpop.xlane.xlu0 %3013
        %v3015 = vsel %vm1457, %v2981, 0.0
        %3016 = vadd.xlane.f32.xlu0 %v3015
        %v3017 = vpop.xlane.xlu0 %3016
        %v3018 = vsel %vm1457, %v2983, 0.0
        %3019 = vadd.xlane.f32.xlu0 %v3018
        %v3020 = vpop.xlane.xlu0 %3019
        %v3021 = vsel %vm1457, %v2985, 0.0
        %3022 = vadd.xlane.f32.xlu0 %v3021
        %v3023 = vpop.xlane.xlu0 %3022
        %v3024 = vsel %vm1457, %v2987, 0.0
        %3025 = vadd.xlane.f32.xlu0 %v3024
        %v3026 = vpop.xlane.xlu0 %3025
        %v3027 = vsel %vm1457, %v2989, 0.0
        %3028 = vadd.xlane.f32.xlu0 %v3027
        %v3029 = vpop.xlane.xlu0 %3028
        %v3030 = vsel %vm1457, %v2991, 0.0
        %3031 = vadd.xlane.f32.xlu0 %v3030
        %v3032 = vpop.xlane.xlu0 %3031
        %v3033 = vsel %vm1457, %v2993, 0.0
        %3034 = vadd.xlane.f32.xlu0 %v3033
        %v3035 = vpop.xlane.xlu0 %3034
        %v3036 = vsel %vm1457, %v2995, 0.0
        %3037 = vadd.xlane.f32.xlu0 %v3036
        %v3038 = vpop.xlane.xlu0 %3037
        %v3039 = vsel %vm1457, %v2997, 0.0
        %3040 = vadd.xlane.f32.xlu0 %v3039
        %v3041 = vpop.xlane.xlu0 %3040
        %v3042 = vsel %vm1457, %v2999, 0.0
        %3043 = vadd.xlane.f32.xlu0 %v3042
        %v3044 = vpop.xlane.xlu0 %3043
        %v3045 = vsel %vm1457, %v3001, 0.0
        %3046 = vadd.xlane.f32.xlu0 %v3045
        %v3047 = vpop.xlane.xlu0 %3046
        %v3048 = vsel %vm1457, %v3003, 0.0
        %3049 = vadd.xlane.f32.xlu0 %v3048
        %v3050 = vpop.xlane.xlu0 %3049
        %v3051 = vsel %vm1457, %v3005, 0.0
        %3052 = vadd.xlane.f32.xlu0 %v3051
        %v3053 = vpop.xlane.xlu0 %3052
        %v3054 = vrcp.pop %v3008
        %v3055 = vrcp.pop %v3011
        %v3056 = vrcp.pop %v3014
        %v3057 = vrcp.pop %v3017
        %v3058 = vrcp.pop %v3020
        %v3059 = vrcp.pop %v3023
        %v3060 = vrcp.pop %v3026
        %v3061 = vrcp.pop %v3029
        %v3062 = vrcp.pop %v3032
        %v3063 = vrcp.pop %v3035
        %v3064 = vrcp.pop %v3038
        %v3065 = vrcp.pop %v3041
        %v3066 = vrcp.pop %v3044
        %v3067 = vrcp.pop %v3047
        %v3068 = vrcp.pop %v3050
        %v3069 = vrcp.pop %v3053
        %v3070 = vmul.f32 %v2975, %v3054
        %v3071 = vmul.f32 %v2977, %v3055
        %v3072 = vmul.f32 %v2979, %v3056
        %v3073 = vmul.f32 %v2981, %v3057
        %v3074 = vmul.f32 %v2983, %v3058
        %v3075 = vmul.f32 %v2985, %v3059
        %v3076 = vmul.f32 %v2987, %v3060
        %v3077 = vmul.f32 %v2989, %v3061
        %v3078 = vmul.f32 %v2991, %v3062
        %v3079 = vmul.f32 %v2993, %v3063
        %v3080 = vmul.f32 %v2995, %v3064
        %v3081 = vmul.f32 %v2997, %v3065
        %v3082 = vmul.f32 %v2999, %v3066
        %v3083 = vmul.f32 %v3001, %v3067
        %v3084 = vmul.f32 %v3003, %v3068
        %v3085 = vmul.f32 %v3005, %v3069
        %v3086 = vpack.c.bf16 %v3070, %v3070
        %v3087 = vpack.c.bf16 %v3071, %v3071
        %v3088 = vpack.c.bf16 %v3072, %v3072
        %v3089 = vpack.c.bf16 %v3073, %v3073
        %v3090 = vpack.c.bf16 %v3074, %v3074
        %v3091 = vpack.c.bf16 %v3075, %v3075
        %v3092 = vpack.c.bf16 %v3076, %v3076
        %v3093 = vpack.c.bf16 %v3077, %v3077
        %v3094 = vpack.c.bf16 %v3078, %v3078
        %v3095 = vpack.c.bf16 %v3079, %v3079
        %v3096 = vpack.c.bf16 %v3080, %v3080
        %v3097 = vpack.c.bf16 %v3081, %v3081
        %v3098 = vpack.c.bf16 %v3082, %v3082
        %v3099 = vpack.c.bf16 %v3083, %v3083
        %v3100 = vpack.c.bf16 %v3084, %v3084
        %v3101 = vpack.c.bf16 %v3085, %v3085
        %v3110 = vunpack.c.l.b16 %v3086
        %v3111 = vunpack.c.l.b16 %v3087
        %v3112 = vunpack.c.l.b16 %v3088
        %v3113 = vunpack.c.l.b16 %v3089
        %v3114 = vunpack.c.l.b16 %v3090
        %v3115 = vunpack.c.l.b16 %v3091
        %v3116 = vunpack.c.l.b16 %v3092
        %v3117 = vunpack.c.l.b16 %v3093
        %v3118 = vpack.c.b16 %v3111, %v3110
        %v3119 = vpack.c.b16 %v3113, %v3112
        %v3120 = vpack.c.b16 %v3115, %v3114
        %v3121 = vpack.c.b16 %v3117, %v3116
        %3122 = vrot.lane.b32.xlu0 %v1686, 32
        %v3123 = vpop.permute.xlu0 %3122
        %3124 = vrot.lane.b32.xlu0 %v1687, 32
        %v3125 = vpop.permute.xlu0 %3124
        %3126 = vrot.lane.b32.xlu0 %v1688, 32
        %v3127 = vpop.permute.xlu0 %3126
        %3128 = vrot.lane.b32.xlu0 %v1689, 32
        %v3129 = vpop.permute.xlu0 %3128
        %v3135 = vsel %vm1457, %v3118, 0
        %v3138 = vsel %vm1457, %v3119, 0
        %v3141 = vsel %vm1457, %v3120, 0
        %v3144 = vsel %vm1457, %v3121, 0
        %3146 = vmatpush.bf16.msra.mxu0 0
        %3147 = vmatpush.bf16.msra.mxu0 0
        %3148 = vmatpush.bf16.msra.mxu0 0
        %3149 = vmatpush.bf16.msra.mxu0 0
        %3150 = vmatpush.bf16.msra.mxu0 %v3129
        %3151 = vmatpush.bf16.msra.mxu0 %v3127
        %3152 = vmatpush.bf16.msra.mxu0 %v3125
        %3153 = vmatpush.bf16.msra.mxu0 %v3123
        %3154 = vmatmul.bf16.gmra.mxu0 %v3135
        %v3155 = vpop.f32.mrf.mxu0
        %v3156 = vadd.f32 0.0, %v3155
        %v3157 = vpop.f32.mrf.mxu0
        %v3158 = vadd.f32 0.0, %v3157
        %3159 = vmatmul.bf16.gmra.mxu0 %v3138
        %v3160 = vpop.f32.mrf.mxu0
        %v3161 = vadd.f32 0.0, %v3160
        %v3162 = vpop.f32.mrf.mxu0
        %v3163 = vadd.f32 0.0, %v3162
        %3164 = vmatmul.bf16.gmra.mxu0 %v3141
        %v3165 = vpop.f32.mrf.mxu0
        %v3166 = vadd.f32 0.0, %v3165
        %v3167 = vpop.f32.mrf.mxu0
        %v3168 = vadd.f32 0.0, %v3167
        %3169 = vmatmul.bf16.gmra.mxu0 %v3144
        %v3170 = vpop.f32.mrf.mxu0
        %v3171 = vadd.f32 0.0, %v3170
        %v3172 = vpop.f32.mrf.mxu0
        %v3173 = vadd.f32 0.0, %v3172
        %3174 = vdwg.mxu0
        %v3183 = vunpack.c.l.b16 %v3094
        %v3184 = vunpack.c.l.b16 %v3095
        %v3185 = vunpack.c.l.b16 %v3096
        %v3186 = vunpack.c.l.b16 %v3097
        %v3187 = vunpack.c.l.b16 %v3098
        %v3188 = vunpack.c.l.b16 %v3099
        %v3189 = vunpack.c.l.b16 %v3100
        %v3190 = vunpack.c.l.b16 %v3101
        %v3191 = vpack.c.b16 %v3184, %v3183
        %v3192 = vpack.c.b16 %v3186, %v3185
        %v3193 = vpack.c.b16 %v3188, %v3187
        %v3194 = vpack.c.b16 %v3190, %v3189
        %3195 = vrot.lane.b32.xlu0 %v1771, 32
        %v3196 = vpop.permute.xlu0 %3195
        %3197 = vrot.lane.b32.xlu0 %v1772, 32
        %v3198 = vpop.permute.xlu0 %3197
        %3199 = vrot.lane.b32.xlu0 %v1773, 32
        %v3200 = vpop.permute.xlu0 %3199
        %3201 = vrot.lane.b32.xlu0 %v1774, 32
        %v3202 = vpop.permute.xlu0 %3201
        %v3208 = vsel %vm1457, %v3191, 0
        %v3211 = vsel %vm1457, %v3192, 0
        %v3214 = vsel %vm1457, %v3193, 0
        %v3217 = vsel %vm1457, %v3194, 0
        %3219 = vmatpush.bf16.msra.mxu0 0
        %3220 = vmatpush.bf16.msra.mxu0 0
        %3221 = vmatpush.bf16.msra.mxu0 0
        %3222 = vmatpush.bf16.msra.mxu0 0
        %3223 = vmatpush.bf16.msra.mxu0 %v3202
        %3224 = vmatpush.bf16.msra.mxu0 %v3200
        %3225 = vmatpush.bf16.msra.mxu0 %v3198
        %3226 = vmatpush.bf16.msra.mxu0 %v3196
        %3227 = vmatmul.bf16.gmra.mxu0 %v3208
        %v3228 = vpop.f32.mrf.mxu0
        %v3229 = vadd.f32 0.0, %v3228
        %v3230 = vpop.f32.mrf.mxu0
        %v3231 = vadd.f32 0.0, %v3230
        %3232 = vmatmul.bf16.gmra.mxu0 %v3211
        %v3233 = vpop.f32.mrf.mxu0
        %v3234 = vadd.f32 0.0, %v3233
        %v3235 = vpop.f32.mrf.mxu0
        %v3236 = vadd.f32 0.0, %v3235
        %3237 = vmatmul.bf16.gmra.mxu0 %v3214
        %v3238 = vpop.f32.mrf.mxu0
        %v3239 = vadd.f32 0.0, %v3238
        %v3240 = vpop.f32.mrf.mxu0
        %v3241 = vadd.f32 0.0, %v3240
        %3242 = vmatmul.bf16.gmra.mxu0 %v3217
        %v3243 = vpop.f32.mrf.mxu0
        %v3244 = vadd.f32 0.0, %v3243
        %v3245 = vpop.f32.mrf.mxu0
        %v3246 = vadd.f32 0.0, %v3245
        %3247 = vdwg.mxu0
        %3264 = vrot.lane.b32.xlu0 %v2204, 32
        %v3265 = vpop.permute.xlu0 %3264
        %3266 = vrot.lane.b32.xlu0 %v2206, 32
        %v3267 = vpop.permute.xlu0 %3266
        %3268 = vrot.lane.b32.xlu0 %v2209, 32
        %v3269 = vpop.permute.xlu0 %3268
        %3270 = vrot.lane.b32.xlu0 %v2211, 32
        %v3271 = vpop.permute.xlu0 %3270
        %3272 = vrot.lane.b32.xlu0 %v2214, 32
        %v3273 = vpop.permute.xlu0 %3272
        %3274 = vrot.lane.b32.xlu0 %v2216, 32
        %v3275 = vpop.permute.xlu0 %3274
        %3276 = vrot.lane.b32.xlu0 %v2219, 32
        %v3277 = vpop.permute.xlu0 %3276
        %3278 = vrot.lane.b32.xlu0 %v2221, 32
        %v3279 = vpop.permute.xlu0 %3278
        %3280 = vrot.lane.b32.xlu0 %v2277, 32
        %v3281 = vpop.permute.xlu0 %3280
        %3282 = vrot.lane.b32.xlu0 %v2279, 32
        %v3283 = vpop.permute.xlu0 %3282
        %3284 = vrot.lane.b32.xlu0 %v2282, 32
        %v3285 = vpop.permute.xlu0 %3284
        %3286 = vrot.lane.b32.xlu0 %v2284, 32
        %v3287 = vpop.permute.xlu0 %3286
        %3288 = vrot.lane.b32.xlu0 %v2287, 32
        %v3289 = vpop.permute.xlu0 %3288
        %3290 = vrot.lane.b32.xlu0 %v2289, 32
        %v3291 = vpop.permute.xlu0 %3290
        %3292 = vrot.lane.b32.xlu0 %v2292, 32
        %v3293 = vpop.permute.xlu0 %3292
        %3294 = vrot.lane.b32.xlu0 %v2294, 32
        %v3295 = vpop.permute.xlu0 %3294
        %3328 = vrot.lane.b32.xlu0 %v2680, 64
        %v3329 = vpop.permute.xlu0 %3328
        %3330 = vrot.lane.b32.xlu0 %v2682, 64
        %v3331 = vpop.permute.xlu0 %3330
        %3332 = vrot.lane.b32.xlu0 %v2685, 64
        %v3333 = vpop.permute.xlu0 %3332
        %3334 = vrot.lane.b32.xlu0 %v2687, 64
        %v3335 = vpop.permute.xlu0 %3334
        %3336 = vrot.lane.b32.xlu0 %v2690, 64
        %v3337 = vpop.permute.xlu0 %3336
        %3338 = vrot.lane.b32.xlu0 %v2692, 64
        %v3339 = vpop.permute.xlu0 %3338
        %3340 = vrot.lane.b32.xlu0 %v2695, 64
        %v3341 = vpop.permute.xlu0 %3340
        %3342 = vrot.lane.b32.xlu0 %v2697, 64
        %v3343 = vpop.permute.xlu0 %3342
        %3344 = vrot.lane.b32.xlu0 %v2753, 64
        %v3345 = vpop.permute.xlu0 %3344
        %3346 = vrot.lane.b32.xlu0 %v2755, 64
        %v3347 = vpop.permute.xlu0 %3346
        %3348 = vrot.lane.b32.xlu0 %v2758, 64
        %v3349 = vpop.permute.xlu0 %3348
        %3350 = vrot.lane.b32.xlu0 %v2760, 64
        %v3351 = vpop.permute.xlu0 %3350
        %3352 = vrot.lane.b32.xlu0 %v2763, 64
        %v3353 = vpop.permute.xlu0 %3352
        %3354 = vrot.lane.b32.xlu0 %v2765, 64
        %v3355 = vpop.permute.xlu0 %3354
        %3356 = vrot.lane.b32.xlu0 %v2768, 64
        %v3357 = vpop.permute.xlu0 %3356
        %3358 = vrot.lane.b32.xlu0 %v2770, 64
        %v3359 = vpop.permute.xlu0 %3358
        %3392 = vrot.lane.b32.xlu0 %v3156, 96
        %v3393 = vpop.permute.xlu0 %3392
        %3394 = vrot.lane.b32.xlu0 %v3158, 96
        %v3395 = vpop.permute.xlu0 %3394
        %3396 = vrot.lane.b32.xlu0 %v3161, 96
        %v3397 = vpop.permute.xlu0 %3396
        %3398 = vrot.lane.b32.xlu0 %v3163, 96
        %v3399 = vpop.permute.xlu0 %3398
        %3400 = vrot.lane.b32.xlu0 %v3166, 96
        %v3401 = vpop.permute.xlu0 %3400
        %3402 = vrot.lane.b32.xlu0 %v3168, 96
        %v3403 = vpop.permute.xlu0 %3402
        %3404 = vrot.lane.b32.xlu0 %v3171, 96
        %v3405 = vpop.permute.xlu0 %3404
        %3406 = vrot.lane.b32.xlu0 %v3173, 96
        %v3407 = vpop.permute.xlu0 %3406
        %3408 = vrot.lane.b32.xlu0 %v3229, 96
        %v3409 = vpop.permute.xlu0 %3408
        %3410 = vrot.lane.b32.xlu0 %v3231, 96
        %v3411 = vpop.permute.xlu0 %3410
        %3412 = vrot.lane.b32.xlu0 %v3234, 96
        %v3413 = vpop.permute.xlu0 %3412
        %3414 = vrot.lane.b32.xlu0 %v3236, 96
        %v3415 = vpop.permute.xlu0 %3414
        %3416 = vrot.lane.b32.xlu0 %v3239, 96
        %v3417 = vpop.permute.xlu0 %3416
        %3418 = vrot.lane.b32.xlu0 %v3241, 96
        %v3419 = vpop.permute.xlu0 %3418
        %3420 = vrot.lane.b32.xlu0 %v3244, 96
        %v3421 = vpop.permute.xlu0 %3420
        %3422 = vrot.lane.b32.xlu0 %v3246, 96
        %v3423 = vpop.permute.xlu0 %3422
        %v3440 = vsel %vm1310, %v1716, %v3265
        %v3441 = vsel %vm1310, %v1718, %v3267
        %v3442 = vsel %vm1310, %v1721, %v3269
        %v3443 = vsel %vm1310, %v1723, %v3271
        %v3444 = vsel %vm1310, %v1726, %v3273
        %v3445 = vsel %vm1310, %v1728, %v3275
        %v3446 = vsel %vm1310, %v1731, %v3277
        %v3447 = vsel %vm1310, %v1733, %v3279
        %v3448 = vsel %vm1310, %v1801, %v3281
        %v3449 = vsel %vm1310, %v1803, %v3283
        %v3450 = vsel %vm1310, %v1806, %v3285
        %v3451 = vsel %vm1310, %v1808, %v3287
        %v3452 = vsel %vm1310, %v1811, %v3289
        %v3453 = vsel %vm1310, %v1813, %v3291
        %v3454 = vsel %vm1310, %v1816, %v3293
        %v3455 = vsel %vm1310, %v1818, %v3295
        %v3456 = vsel %vm1457, %v3440, %v3329
        %v3457 = vsel %vm1457, %v3441, %v3331
        %v3458 = vsel %vm1457, %v3442, %v3333
        %v3459 = vsel %vm1457, %v3443, %v3335
        %v3460 = vsel %vm1457, %v3444, %v3337
        %v3461 = vsel %vm1457, %v3445, %v3339
        %v3462 = vsel %vm1457, %v3446, %v3341
        %v3463 = vsel %vm1457, %v3447, %v3343
        %v3464 = vsel %vm1457, %v3448, %v3345
        %v3465 = vsel %vm1457, %v3449, %v3347
        %v3466 = vsel %vm1457, %v3450, %v3349
        %v3467 = vsel %vm1457, %v3451, %v3351
        %v3468 = vsel %vm1457, %v3452, %v3353
        %v3469 = vsel %vm1457, %v3453, %v3355
        %v3470 = vsel %vm1457, %v3454, %v3357
        %v3471 = vsel %vm1457, %v3455, %v3359
        %vm3472 = vcmask 785408
        %v3473 = vsel %vm3472, %v3456, %v3393
        %v3474 = vsel %vm3472, %v3457, %v3395
        %v3475 = vsel %vm3472, %v3458, %v3397
        %v3476 = vsel %vm3472, %v3459, %v3399
        %v3477 = vsel %vm3472, %v3460, %v3401
        %v3478 = vsel %vm3472, %v3461, %v3403
        %v3479 = vsel %vm3472, %v3462, %v3405
        %v3480 = vsel %vm3472, %v3463, %v3407
        %v3481 = vsel %vm3472, %v3464, %v3409
        %v3482 = vsel %vm3472, %v3465, %v3411
        %v3483 = vsel %vm3472, %v3466, %v3413
        %v3484 = vsel %vm3472, %v3467, %v3415
        %v3485 = vsel %vm3472, %v3468, %v3417
        %v3486 = vsel %vm3472, %v3469, %v3419
        %v3487 = vsel %vm3472, %v3470, %v3421
        %v3488 = vsel %vm3472, %v3471, %v3423
        %v3489 = vld [vmem:[#allocation7] sm:$0xf]
        %v3490 = vld [vmem:[#allocation7 + $0x4] sm:$0xf]
        %v3491 = vld [vmem:[#allocation7 + $0x8] sm:$0xf]
        %v3492 = vld [vmem:[#allocation7 + $0xc] sm:$0xf]
        %v3493 = vld [vmem:[#allocation7 + $0x10] sm:$0xf]
        %v3494 = vld [vmem:[#allocation7 + $0x14] sm:$0xf]
        %v3495 = vld [vmem:[#allocation7 + $0x18] sm:$0xf]
        %v3496 = vld [vmem:[#allocation7 + $0x1c] sm:$0xf]
        %v3497 = vld [vmem:[#allocation7 + $0x20] sm:$0xf]
        %v3498 = vld [vmem:[#allocation7 + $0x24] sm:$0xf]
        %v3499 = vld [vmem:[#allocation7 + $0x28] sm:$0xf]
        %v3500 = vld [vmem:[#allocation7 + $0x2c] sm:$0xf]
        %v3501 = vld [vmem:[#allocation7 + $0x30] sm:$0xf]
        %v3502 = vld [vmem:[#allocation7 + $0x34] sm:$0xf]
        %v3503 = vld [vmem:[#allocation7 + $0x38] sm:$0xf]
        %v3504 = vld [vmem:[#allocation7 + $0x3c] sm:$0xf]
        %v3505 = vld [vmem:[%s5] sm:$0x1]
        %v3506 = vpack.c.bf16 %v3474, %v3473
        %v3507 = vpack.c.bf16 %v3476, %v3475
        %v3508 = vpack.c.bf16 %v3478, %v3477
        %v3509 = vpack.c.bf16 %v3480, %v3479
        %v3510 = vpack.c.bf16 %v3482, %v3481
        %v3511 = vpack.c.bf16 %v3484, %v3483
        %v3512 = vpack.c.bf16 %v3486, %v3485
        %v3513 = vpack.c.bf16 %v3488, %v3487
        %v3515 = vperm.slane %v3505, 0
        %v3533 = vunpack.c.l.b16 %v3489
        %v3534 = vunpack.c.l.b16 %v3490
        %v3535 = vunpack.c.l.b16 %v3491
        %v3536 = vunpack.c.l.b16 %v3492
        %v3537 = vunpack.c.l.b16 %v3493
        %v3538 = vunpack.c.l.b16 %v3494
        %v3539 = vunpack.c.l.b16 %v3495
        %v3540 = vunpack.c.l.b16 %v3496
        %v3541 = vunpack.c.l.b16 %v3497
        %v3542 = vunpack.c.l.b16 %v3498
        %v3543 = vunpack.c.l.b16 %v3499
        %v3544 = vunpack.c.l.b16 %v3500
        %v3545 = vunpack.c.l.b16 %v3501
        %v3546 = vunpack.c.l.b16 %v3502
        %v3547 = vunpack.c.l.b16 %v3503
        %v3548 = vunpack.c.l.b16 %v3504
        %v3549 = vpack.c.b16 %v3534, %v3533
        %v3550 = vpack.c.b16 %v3536, %v3535
        %v3551 = vpack.c.b16 %v3538, %v3537
        %v3552 = vpack.c.b16 %v3540, %v3539
        %v3553 = vpack.c.b16 %v3542, %v3541
        %v3554 = vpack.c.b16 %v3544, %v3543
        %v3555 = vpack.c.b16 %v3546, %v3545
        %v3556 = vpack.c.b16 %v3548, %v3547
        %3565 = vmatpush.bf16.msra.mxu0 %v3556
        %3566 = vmatpush.bf16.msra.mxu0 %v3555
        %3567 = vmatpush.bf16.msra.mxu0 %v3554
        %3568 = vmatpush.bf16.msra.mxu0 %v3553
        %3569 = vmatpush.bf16.msra.mxu0 %v3552
        %3570 = vmatpush.bf16.msra.mxu0 %v3551
        %3571 = vmatpush.bf16.msra.mxu0 %v3550
        %3572 = vmatpush.bf16.msra.mxu0 %v3549
        %3573 = vmatmul.bf16.gmra.mxu0 %v3506
        %v3574 = vpop.f32.mrf.mxu0
        %v3575 = vadd.f32 %v3515, %v3574
        %v3576 = vpop.f32.mrf.mxu0
        %v3577 = vadd.f32 %v3515, %v3576
        %3578 = vmatmul.bf16.gmra.mxu0 %v3507
        %v3579 = vpop.f32.mrf.mxu0
        %v3580 = vadd.f32 %v3515, %v3579
        %v3581 = vpop.f32.mrf.mxu0
        %v3582 = vadd.f32 %v3515, %v3581
        %3583 = vmatmul.bf16.gmra.mxu0 %v3508
        %v3584 = vpop.f32.mrf.mxu0
        %v3585 = vadd.f32 %v3515, %v3584
        %v3586 = vpop.f32.mrf.mxu0
        %v3587 = vadd.f32 %v3515, %v3586
        %3588 = vmatmul.bf16.gmra.mxu0 %v3509
        %v3589 = vpop.f32.mrf.mxu0
        %v3590 = vadd.f32 %v3515, %v3589
        %v3591 = vpop.f32.mrf.mxu0
        %v3592 = vadd.f32 %v3515, %v3591
        %3593 = vmatmul.bf16.gmra.mxu0 %v3510
        %v3594 = vpop.f32.mrf.mxu0
        %v3595 = vadd.f32 %v3515, %v3594
        %v3596 = vpop.f32.mrf.mxu0
        %v3597 = vadd.f32 %v3515, %v3596
        %3598 = vmatmul.bf16.gmra.mxu0 %v3511
        %v3599 = vpop.f32.mrf.mxu0
        %v3600 = vadd.f32 %v3515, %v3599
        %v3601 = vpop.f32.mrf.mxu0
        %v3602 = vadd.f32 %v3515, %v3601
        %3603 = vmatmul.bf16.gmra.mxu0 %v3512
        %v3604 = vpop.f32.mrf.mxu0
        %v3605 = vadd.f32 %v3515, %v3604
        %v3606 = vpop.f32.mrf.mxu0
        %v3607 = vadd.f32 %v3515, %v3606
        %3608 = vmatmul.bf16.gmra.mxu0 %v3513
        %v3609 = vpop.f32.mrf.mxu0
        %v3610 = vadd.f32 %v3515, %v3609
        %v3611 = vpop.f32.mrf.mxu0
        %v3612 = vadd.f32 %v3515, %v3611
        %3613 = vdwg.mxu0
        %v3614 = vadd.f32 %v3575, %v438
        %v3615 = vadd.f32 %v3577, %v439
        %v3616 = vadd.f32 %v3580, %v440
        %v3617 = vadd.f32 %v3582, %v441
        %v3618 = vadd.f32 %v3585, %v442
        %v3619 = vadd.f32 %v3587, %v443
        %v3620 = vadd.f32 %v3590, %v444
        %v3621 = vadd.f32 %v3592, %v445
        %v3622 = vadd.f32 %v3595, %v446
        %v3623 = vadd.f32 %v3597, %v447
        %v3624 = vadd.f32 %v3600, %v448
        %v3625 = vadd.f32 %v3602, %v449
        %v3626 = vadd.f32 %v3605, %v450
        %v3627 = vadd.f32 %v3607, %v451
        %v3628 = vadd.f32 %v3610, %v452
        %v3629 = vadd.f32 %v3612, %v453
        %3630 = vadd.xlane.f32.xlu0 %v3614
        %v3631 = vpop.xlane.xlu0 %3630
        %3632 = vadd.xlane.f32.xlu0 %v3615
        %v3633 = vpop.xlane.xlu0 %3632
        %3634 = vadd.xlane.f32.xlu0 %v3616
        %v3635 = vpop.xlane.xlu0 %3634
        %3636 = vadd.xlane.f32.xlu0 %v3617
        %v3637 = vpop.xlane.xlu0 %3636
        %3638 = vadd.xlane.f32.xlu0 %v3618
        %v3639 = vpop.xlane.xlu0 %3638
        %3640 = vadd.xlane.f32.xlu0 %v3619
        %v3641 = vpop.xlane.xlu0 %3640
        %3642 = vadd.xlane.f32.xlu0 %v3620
        %v3643 = vpop.xlane.xlu0 %3642
        %3644 = vadd.xlane.f32.xlu0 %v3621
        %v3645 = vpop.xlane.xlu0 %3644
        %3646 = vadd.xlane.f32.xlu0 %v3622
        %v3647 = vpop.xlane.xlu0 %3646
        %3648 = vadd.xlane.f32.xlu0 %v3623
        %v3649 = vpop.xlane.xlu0 %3648
        %3650 = vadd.xlane.f32.xlu0 %v3624
        %v3651 = vpop.xlane.xlu0 %3650
        %3652 = vadd.xlane.f32.xlu0 %v3625
        %v3653 = vpop.xlane.xlu0 %3652
        %3654 = vadd.xlane.f32.xlu0 %v3626
        %v3655 = vpop.xlane.xlu0 %3654
        %3656 = vadd.xlane.f32.xlu0 %v3627
        %v3657 = vpop.xlane.xlu0 %3656
        %3658 = vadd.xlane.f32.xlu0 %v3628
        %v3659 = vpop.xlane.xlu0 %3658
        %3660 = vadd.xlane.f32.xlu0 %v3629
        %v3661 = vpop.xlane.xlu0 %3660
        %v3662 = vmul.f32 %v3631, %v493
        %v3663 = vmul.f32 %v3633, %v493
        %v3664 = vmul.f32 %v3635, %v493
        %v3665 = vmul.f32 %v3637, %v493
        %v3666 = vmul.f32 %v3639, %v493
        %v3667 = vmul.f32 %v3641, %v493
        %v3668 = vmul.f32 %v3643, %v493
        %v3669 = vmul.f32 %v3645, %v493
        %v3670 = vmul.f32 %v3647, %v493
        %v3671 = vmul.f32 %v3649, %v493
        %v3672 = vmul.f32 %v3651, %v493
        %v3673 = vmul.f32 %v3653, %v493
        %v3674 = vmul.f32 %v3655, %v493
        %v3675 = vmul.f32 %v3657, %v493
        %v3676 = vmul.f32 %v3659, %v493
        %v3677 = vmul.f32 %v3661, %v493
        %v3678 = vmul.f32 %v3614, %v3614
        %v3679 = vmul.f32 %v3615, %v3615
        %v3680 = vmul.f32 %v3616, %v3616
        %v3681 = vmul.f32 %v3617, %v3617
        %v3682 = vmul.f32 %v3618, %v3618
        %v3683 = vmul.f32 %v3619, %v3619
        %v3684 = vmul.f32 %v3620, %v3620
        %v3685 = vmul.f32 %v3621, %v3621
        %v3686 = vmul.f32 %v3622, %v3622
        %v3687 = vmul.f32 %v3623, %v3623
        %v3688 = vmul.f32 %v3624, %v3624
        %v3689 = vmul.f32 %v3625, %v3625
        %v3690 = vmul.f32 %v3626, %v3626
        %v3691 = vmul.f32 %v3627, %v3627
        %v3692 = vmul.f32 %v3628, %v3628
        %v3693 = vmul.f32 %v3629, %v3629
        %3694 = vadd.xlane.f32.xlu0 %v3678
        %v3695 = vpop.xlane.xlu0 %3694
        %3696 = vadd.xlane.f32.xlu0 %v3679
        %v3697 = vpop.xlane.xlu0 %3696
        %3698 = vadd.xlane.f32.xlu0 %v3680
        %v3699 = vpop.xlane.xlu0 %3698
        %3700 = vadd.xlane.f32.xlu0 %v3681
        %v3701 = vpop.xlane.xlu0 %3700
        %3702 = vadd.xlane.f32.xlu0 %v3682
        %v3703 = vpop.xlane.xlu0 %3702
        %3704 = vadd.xlane.f32.xlu0 %v3683
        %v3705 = vpop.xlane.xlu0 %3704
        %3706 = vadd.xlane.f32.xlu0 %v3684
        %v3707 = vpop.xlane.xlu0 %3706
        %3708 = vadd.xlane.f32.xlu0 %v3685
        %v3709 = vpop.xlane.xlu0 %3708
        %3710 = vadd.xlane.f32.xlu0 %v3686
        %v3711 = vpop.xlane.xlu0 %3710
        %3712 = vadd.xlane.f32.xlu0 %v3687
        %v3713 = vpop.xlane.xlu0 %3712
        %3714 = vadd.xlane.f32.xlu0 %v3688
        %v3715 = vpop.xlane.xlu0 %3714
        %3716 = vadd.xlane.f32.xlu0 %v3689
        %v3717 = vpop.xlane.xlu0 %3716
        %3718 = vadd.xlane.f32.xlu0 %v3690
        %v3719 = vpop.xlane.xlu0 %3718
        %3720 = vadd.xlane.f32.xlu0 %v3691
        %v3721 = vpop.xlane.xlu0 %3720
        %3722 = vadd.xlane.f32.xlu0 %v3692
        %v3723 = vpop.xlane.xlu0 %3722
        %3724 = vadd.xlane.f32.xlu0 %v3693
        %v3725 = vpop.xlane.xlu0 %3724
        %v3726 = vmul.f32 %v3695, %v493
        %v3727 = vmul.f32 %v3697, %v493
        %v3728 = vmul.f32 %v3699, %v493
        %v3729 = vmul.f32 %v3701, %v493
        %v3730 = vmul.f32 %v3703, %v493
        %v3731 = vmul.f32 %v3705, %v493
        %v3732 = vmul.f32 %v3707, %v493
        %v3733 = vmul.f32 %v3709, %v493
        %v3734 = vmul.f32 %v3711, %v493
        %v3735 = vmul.f32 %v3713, %v493
        %v3736 = vmul.f32 %v3715, %v493
        %v3737 = vmul.f32 %v3717, %v493
        %v3738 = vmul.f32 %v3719, %v493
        %v3739 = vmul.f32 %v3721, %v493
        %v3740 = vmul.f32 %v3723, %v493
        %v3741 = vmul.f32 %v3725, %v493
        %v3742 = vmul.f32 %v3662, %v3662
        %v3743 = vmul.f32 %v3663, %v3663
        %v3744 = vmul.f32 %v3664, %v3664
        %v3745 = vmul.f32 %v3665, %v3665
        %v3746 = vmul.f32 %v3666, %v3666
        %v3747 = vmul.f32 %v3667, %v3667
        %v3748 = vmul.f32 %v3668, %v3668
        %v3749 = vmul.f32 %v3669, %v3669
        %v3750 = vmul.f32 %v3670, %v3670
        %v3751 = vmul.f32 %v3671, %v3671
        %v3752 = vmul.f32 %v3672, %v3672
        %v3753 = vmul.f32 %v3673, %v3673
        %v3754 = vmul.f32 %v3674, %v3674
        %v3755 = vmul.f32 %v3675, %v3675
        %v3756 = vmul.f32 %v3676, %v3676
        %v3757 = vmul.f32 %v3677, %v3677
        %v3758 = vsub.f32 %v3726, %v3742
        %v3759 = vsub.f32 %v3727, %v3743
        %v3760 = vsub.f32 %v3728, %v3744
        %v3761 = vsub.f32 %v3729, %v3745
        %v3762 = vsub.f32 %v3730, %v3746
        %v3763 = vsub.f32 %v3731, %v3747
        %v3764 = vsub.f32 %v3732, %v3748
        %v3765 = vsub.f32 %v3733, %v3749
        %v3766 = vsub.f32 %v3734, %v3750
        %v3767 = vsub.f32 %v3735, %v3751
        %v3768 = vsub.f32 %v3736, %v3752
        %v3769 = vsub.f32 %v3737, %v3753
        %v3770 = vsub.f32 %v3738, %v3754
        %v3771 = vsub.f32 %v3739, %v3755
        %v3772 = vsub.f32 %v3740, %v3756
        %v3773 = vsub.f32 %v3741, %v3757
        %v3774 = vmax.f32 %v3758, 0.0
        %v3775 = vmax.f32 %v3759, 0.0
        %v3776 = vmax.f32 %v3760, 0.0
        %v3777 = vmax.f32 %v3761, 0.0
        %v3778 = vmax.f32 %v3762, 0.0
        %v3779 = vmax.f32 %v3763, 0.0
        %v3780 = vmax.f32 %v3764, 0.0
        %v3781 = vmax.f32 %v3765, 0.0
        %v3782 = vmax.f32 %v3766, 0.0
        %v3783 = vmax.f32 %v3767, 0.0
        %v3784 = vmax.f32 %v3768, 0.0
        %v3785 = vmax.f32 %v3769, 0.0
        %v3786 = vmax.f32 %v3770, 0.0
        %v3787 = vmax.f32 %v3771, 0.0
        %v3788 = vmax.f32 %v3772, 0.0
        %v3789 = vmax.f32 %v3773, 0.0
        %v3790 = vsub.f32 %v3614, %v3662
        %v3791 = vsub.f32 %v3615, %v3663
        %v3792 = vsub.f32 %v3616, %v3664
        %v3793 = vsub.f32 %v3617, %v3665
        %v3794 = vsub.f32 %v3618, %v3666
        %v3795 = vsub.f32 %v3619, %v3667
        %v3796 = vsub.f32 %v3620, %v3668
        %v3797 = vsub.f32 %v3621, %v3669
        %v3798 = vsub.f32 %v3622, %v3670
        %v3799 = vsub.f32 %v3623, %v3671
        %v3800 = vsub.f32 %v3624, %v3672
        %v3801 = vsub.f32 %v3625, %v3673
        %v3802 = vsub.f32 %v3626, %v3674
        %v3803 = vsub.f32 %v3627, %v3675
        %v3804 = vsub.f32 %v3628, %v3676
        %v3805 = vsub.f32 %v3629, %v3677
        %v3806 = vadd.f32 %v3774, 1e-05
        %v3807 = vadd.f32 %v3775, 1e-05
        %v3808 = vadd.f32 %v3776, 1e-05
        %v3809 = vadd.f32 %v3777, 1e-05
        %v3810 = vadd.f32 %v3778, 1e-05
        %v3811 = vadd.f32 %v3779, 1e-05
        %v3812 = vadd.f32 %v3780, 1e-05
        %v3813 = vadd.f32 %v3781, 1e-05
        %v3814 = vadd.f32 %v3782, 1e-05
        %v3815 = vadd.f32 %v3783, 1e-05
        %v3816 = vadd.f32 %v3784, 1e-05
        %v3817 = vadd.f32 %v3785, 1e-05
        %v3818 = vadd.f32 %v3786, 1e-05
        %v3819 = vadd.f32 %v3787, 1e-05
        %v3820 = vadd.f32 %v3788, 1e-05
        %v3821 = vadd.f32 %v3789, 1e-05
        %v3822 = vrsqrt.pop %v3806
        %v3823 = vmul.f32 %v3822, %v3806
        %v3824 = vmul.f32 %v3823, %v3822
        %v3825 = vmul.f32 0.5, %v3824
        %v3826 = vsub.f32 1.5, %v3825
        %v3827 = vmul.f32 %v3822, %v3826
        %vm3828 = vweird.f32 %v3806
        %vm3829 = vweird.f32 %v3822
        %vm3830 = vmor %vm3828, %vm3829
        %v3831 = vsel %vm3830, %v3822, %v3827
        %v3832 = vrsqrt.pop %v3807
        %v3833 = vmul.f32 %v3832, %v3807
        %v3834 = vmul.f32 %v3833, %v3832
        %v3835 = vmul.f32 0.5, %v3834
        %v3836 = vsub.f32 1.5, %v3835
        %v3837 = vmul.f32 %v3832, %v3836
        %vm3838 = vweird.f32 %v3807
        %vm3839 = vweird.f32 %v3832
        %vm3840 = vmor %vm3838, %vm3839
        %v3841 = vsel %vm3840, %v3832, %v3837
        %v3842 = vrsqrt.pop %v3808
        %v3843 = vmul.f32 %v3842, %v3808
        %v3844 = vmul.f32 %v3843, %v3842
        %v3845 = vmul.f32 0.5, %v3844
        %v3846 = vsub.f32 1.5, %v3845
        %v3847 = vmul.f32 %v3842, %v3846
        %vm3848 = vweird.f32 %v3808
        %vm3849 = vweird.f32 %v3842
        %vm3850 = vmor %vm3848, %vm3849
        %v3851 = vsel %vm3850, %v3842, %v3847
        %v3852 = vrsqrt.pop %v3809
        %v3853 = vmul.f32 %v3852, %v3809
        %v3854 = vmul.f32 %v3853, %v3852
        %v3855 = vmul.f32 0.5, %v3854
        %v3856 = vsub.f32 1.5, %v3855
        %v3857 = vmul.f32 %v3852, %v3856
        %vm3858 = vweird.f32 %v3809
        %vm3859 = vweird.f32 %v3852
        %vm3860 = vmor %vm3858, %vm3859
        %v3861 = vsel %vm3860, %v3852, %v3857
        %v3862 = vrsqrt.pop %v3810
        %v3863 = vmul.f32 %v3862, %v3810
        %v3864 = vmul.f32 %v3863, %v3862
        %v3865 = vmul.f32 0.5, %v3864
        %v3866 = vsub.f32 1.5, %v3865
        %v3867 = vmul.f32 %v3862, %v3866
        %vm3868 = vweird.f32 %v3810
        %vm3869 = vweird.f32 %v3862
        %vm3870 = vmor %vm3868, %vm3869
        %v3871 = vsel %vm3870, %v3862, %v3867
        %v3872 = vrsqrt.pop %v3811
        %v3873 = vmul.f32 %v3872, %v3811
        %v3874 = vmul.f32 %v3873, %v3872
        %v3875 = vmul.f32 0.5, %v3874
        %v3876 = vsub.f32 1.5, %v3875
        %v3877 = vmul.f32 %v3872, %v3876
        %vm3878 = vweird.f32 %v3811
        %vm3879 = vweird.f32 %v3872
        %vm3880 = vmor %vm3878, %vm3879
        %v3881 = vsel %vm3880, %v3872, %v3877
        %v3882 = vrsqrt.pop %v3812
        %v3883 = vmul.f32 %v3882, %v3812
        %v3884 = vmul.f32 %v3883, %v3882
        %v3885 = vmul.f32 0.5, %v3884
        %v3886 = vsub.f32 1.5, %v3885
        %v3887 = vmul.f32 %v3882, %v3886
        %vm3888 = vweird.f32 %v3812
        %vm3889 = vweird.f32 %v3882
        %vm3890 = vmor %vm3888, %vm3889
        %v3891 = vsel %vm3890, %v3882, %v3887
        %v3892 = vrsqrt.pop %v3813
        %v3893 = vmul.f32 %v3892, %v3813
        %v3894 = vmul.f32 %v3893, %v3892
        %v3895 = vmul.f32 0.5, %v3894
        %v3896 = vsub.f32 1.5, %v3895
        %v3897 = vmul.f32 %v3892, %v3896
        %vm3898 = vweird.f32 %v3813
        %vm3899 = vweird.f32 %v3892
        %vm3900 = vmor %vm3898, %vm3899
        %v3901 = vsel %vm3900, %v3892, %v3897
        %v3902 = vrsqrt.pop %v3814
        %v3903 = vmul.f32 %v3902, %v3814
        %v3904 = vmul.f32 %v3903, %v3902
        %v3905 = vmul.f32 0.5, %v3904
        %v3906 = vsub.f32 1.5, %v3905
        %v3907 = vmul.f32 %v3902, %v3906
        %vm3908 = vweird.f32 %v3814
        %vm3909 = vweird.f32 %v3902
        %vm3910 = vmor %vm3908, %vm3909
        %v3911 = vsel %vm3910, %v3902, %v3907
        %v3912 = vrsqrt.pop %v3815
        %v3913 = vmul.f32 %v3912, %v3815
        %v3914 = vmul.f32 %v3913, %v3912
        %v3915 = vmul.f32 0.5, %v3914
        %v3916 = vsub.f32 1.5, %v3915
        %v3917 = vmul.f32 %v3912, %v3916
        %vm3918 = vweird.f32 %v3815
        %vm3919 = vweird.f32 %v3912
        %vm3920 = vmor %vm3918, %vm3919
        %v3921 = vsel %vm3920, %v3912, %v3917
        %v3922 = vrsqrt.pop %v3816
        %v3923 = vmul.f32 %v3922, %v3816
        %v3924 = vmul.f32 %v3923, %v3922
        %v3925 = vmul.f32 0.5, %v3924
        %v3926 = vsub.f32 1.5, %v3925
        %v3927 = vmul.f32 %v3922, %v3926
        %vm3928 = vweird.f32 %v3816
        %vm3929 = vweird.f32 %v3922
        %vm3930 = vmor %vm3928, %vm3929
        %v3931 = vsel %vm3930, %v3922, %v3927
        %v3932 = vrsqrt.pop %v3817
        %v3933 = vmul.f32 %v3932, %v3817
        %v3934 = vmul.f32 %v3933, %v3932
        %v3935 = vmul.f32 0.5, %v3934
        %v3936 = vsub.f32 1.5, %v3935
        %v3937 = vmul.f32 %v3932, %v3936
        %vm3938 = vweird.f32 %v3817
        %vm3939 = vweird.f32 %v3932
        %vm3940 = vmor %vm3938, %vm3939
        %v3941 = vsel %vm3940, %v3932, %v3937
        %v3942 = vrsqrt.pop %v3818
        %v3943 = vmul.f32 %v3942, %v3818
        %v3944 = vmul.f32 %v3943, %v3942
        %v3945 = vmul.f32 0.5, %v3944
        %v3946 = vsub.f32 1.5, %v3945
        %v3947 = vmul.f32 %v3942, %v3946
        %vm3948 = vweird.f32 %v3818
        %vm3949 = vweird.f32 %v3942
        %vm3950 = vmor %vm3948, %vm3949
        %v3951 = vsel %vm3950, %v3942, %v3947
        %v3952 = vrsqrt.pop %v3819
        %v3953 = vmul.f32 %v3952, %v3819
        %v3954 = vmul.f32 %v3953, %v3952
        %v3955 = vmul.f32 0.5, %v3954
        %v3956 = vsub.f32 1.5, %v3955
        %v3957 = vmul.f32 %v3952, %v3956
        %vm3958 = vweird.f32 %v3819
        %vm3959 = vweird.f32 %v3952
        %vm3960 = vmor %vm3958, %vm3959
        %v3961 = vsel %vm3960, %v3952, %v3957
        %v3962 = vrsqrt.pop %v3820
        %v3963 = vmul.f32 %v3962, %v3820
        %v3964 = vmul.f32 %v3963, %v3962
        %v3965 = vmul.f32 0.5, %v3964
        %v3966 = vsub.f32 1.5, %v3965
        %v3967 = vmul.f32 %v3962, %v3966
        %vm3968 = vweird.f32 %v3820
        %vm3969 = vweird.f32 %v3962
        %vm3970 = vmor %vm3968, %vm3969
        %v3971 = vsel %vm3970, %v3962, %v3967
        %v3972 = vrsqrt.pop %v3821
        %v3973 = vmul.f32 %v3972, %v3821
        %v3974 = vmul.f32 %v3973, %v3972
        %v3975 = vmul.f32 0.5, %v3974
        %v3976 = vsub.f32 1.5, %v3975
        %v3977 = vmul.f32 %v3972, %v3976
        %vm3978 = vweird.f32 %v3821
        %vm3979 = vweird.f32 %v3972
        %vm3980 = vmor %vm3978, %vm3979
        %v3981 = vsel %vm3980, %v3972, %v3977
        %v3982 = vmul.f32 %v3790, %v3831
        %v3983 = vmul.f32 %v3791, %v3841
        %v3984 = vmul.f32 %v3792, %v3851
        %v3985 = vmul.f32 %v3793, %v3861
        %v3986 = vmul.f32 %v3794, %v3871
        %v3987 = vmul.f32 %v3795, %v3881
        %v3988 = vmul.f32 %v3796, %v3891
        %v3989 = vmul.f32 %v3797, %v3901
        %v3990 = vmul.f32 %v3798, %v3911
        %v3991 = vmul.f32 %v3799, %v3921
        %v3992 = vmul.f32 %v3800, %v3931
        %v3993 = vmul.f32 %v3801, %v3941
        %v3994 = vmul.f32 %v3802, %v3951
        %v3995 = vmul.f32 %v3803, %v3961
        %v3996 = vmul.f32 %v3804, %v3971
        %v3997 = vmul.f32 %v3805, %v3981
        %v3998 = vperm.slane %v454, 2
        %v3999 = vmul.f32 %v3998, %v3982
        %v4000 = vmul.f32 %v3998, %v3983
        %v4001 = vmul.f32 %v3998, %v3984
        %v4002 = vmul.f32 %v3998, %v3985
        %v4003 = vmul.f32 %v3998, %v3986
        %v4004 = vmul.f32 %v3998, %v3987
        %v4005 = vmul.f32 %v3998, %v3988
        %v4006 = vmul.f32 %v3998, %v3989
        %v4007 = vmul.f32 %v3998, %v3990
        %v4008 = vmul.f32 %v3998, %v3991
        %v4009 = vmul.f32 %v3998, %v3992
        %v4010 = vmul.f32 %v3998, %v3993
        %v4011 = vmul.f32 %v3998, %v3994
        %v4012 = vmul.f32 %v3998, %v3995
        %v4013 = vmul.f32 %v3998, %v3996
        %v4014 = vmul.f32 %v3998, %v3997
        %v4015 = vperm.slane %v454, 3
        %v4016 = vadd.f32 %v3999, %v4015
        %v4017 = vadd.f32 %v4000, %v4015
        %v4018 = vadd.f32 %v4001, %v4015
        %v4019 = vadd.f32 %v4002, %v4015
        %v4020 = vadd.f32 %v4003, %v4015
        %v4021 = vadd.f32 %v4004, %v4015
        %v4022 = vadd.f32 %v4005, %v4015
        %v4023 = vadd.f32 %v4006, %v4015
        %v4024 = vadd.f32 %v4007, %v4015
        %v4025 = vadd.f32 %v4008, %v4015
        %v4026 = vadd.f32 %v4009, %v4015
        %v4027 = vadd.f32 %v4010, %v4015
        %v4028 = vadd.f32 %v4011, %v4015
        %v4029 = vadd.f32 %v4012, %v4015
        %v4030 = vadd.f32 %v4013, %v4015
        %v4031 = vadd.f32 %v4014, %v4015
        %v4032 = vld [vmem:[#allocation8] sm:$0xff]
        %v4033 = vld [vmem:[#allocation8 + $0x8] sm:$0xff]
        %v4034 = vld [vmem:[#allocation8 + $0x10] sm:$0xff]
        %v4035 = vld [vmem:[#allocation8 + $0x18] sm:$0xff]
        %v4036 = vld [vmem:[#allocation8 + $0x20] sm:$0xff]
        %v4037 = vld [vmem:[#allocation8 + $0x28] sm:$0xff]
        %v4038 = vld [vmem:[#allocation8 + $0x30] sm:$0xff]
        %v4039 = vld [vmem:[#allocation8 + $0x38] sm:$0xff]
        %v4040 = vld [vmem:[#allocation8 + $0x40] sm:$0xff]
        %v4041 = vld [vmem:[#allocation8 + $0x48] sm:$0xff]
        %v4042 = vld [vmem:[#allocation8 + $0x50] sm:$0xff]
        %v4043 = vld [vmem:[#allocation8 + $0x58] sm:$0xff]
        %v4044 = vld [vmem:[#allocation8 + $0x60] sm:$0xff]
        %v4045 = vld [vmem:[#allocation8 + $0x68] sm:$0xff]
        %v4046 = vld [vmem:[#allocation8 + $0x70] sm:$0xff]
        %v4047 = vld [vmem:[#allocation8 + $0x78] sm:$0xff]
        %v4048 = vld [vmem:[#allocation8 + $0x80] sm:$0xff]
        %v4049 = vld [vmem:[#allocation8 + $0x88] sm:$0xff]
        %v4050 = vld [vmem:[#allocation8 + $0x90] sm:$0xff]
        %v4051 = vld [vmem:[#allocation8 + $0x98] sm:$0xff]
        %v4052 = vld [vmem:[#allocation8 + $0xa0] sm:$0xff]
        %v4053 = vld [vmem:[#allocation8 + $0xa8] sm:$0xff]
        %v4054 = vld [vmem:[#allocation8 + $0xb0] sm:$0xff]
        %v4055 = vld [vmem:[#allocation8 + $0xb8] sm:$0xff]
        %v4056 = vld [vmem:[#allocation8 + $0xc0] sm:$0xff]
        %v4057 = vld [vmem:[#allocation8 + $0xc8] sm:$0xff]
        %v4058 = vld [vmem:[#allocation8 + $0xd0] sm:$0xff]
        %v4059 = vld [vmem:[#allocation8 + $0xd8] sm:$0xff]
        %v4060 = vld [vmem:[#allocation8 + $0xe0] sm:$0xff]
        %v4061 = vld [vmem:[#allocation8 + $0xe8] sm:$0xff]
        %v4062 = vld [vmem:[#allocation8 + $0xf0] sm:$0xff]
        %v4063 = vld [vmem:[#allocation8 + $0xf8] sm:$0xff]
        %v4064 = vld [vmem:[%s6] sm:$0xf]
        %v4065 = vpack.c.bf16 %v4017, %v4016
        %v4066 = vpack.c.bf16 %v4019, %v4018
        %v4067 = vpack.c.bf16 %v4021, %v4020
        %v4068 = vpack.c.bf16 %v4023, %v4022
        %v4069 = vpack.c.bf16 %v4025, %v4024
        %v4070 = vpack.c.bf16 %v4027, %v4026
        %v4071 = vpack.c.bf16 %v4029, %v4028
        %v4072 = vpack.c.bf16 %v4031, %v4030
        %v4074 = vperm.slane %v4064, 0
        %v4075 = vperm.slane %v4064, 1
        %v4076 = vperm.slane %v4064, 2
        %v4077 = vperm.slane %v4064, 3
        %v4114 = vunpack.c.l.b16 %v4032
        %v4115 = vunpack.c.h.b16 %v4032
        %v4116 = vunpack.c.l.b16 %v4033
        %v4117 = vunpack.c.h.b16 %v4033
        %v4118 = vunpack.c.l.b16 %v4034
        %v4119 = vunpack.c.h.b16 %v4034
        %v4120 = vunpack.c.l.b16 %v4035
        %v4121 = vunpack.c.h.b16 %v4035
        %v4122 = vunpack.c.l.b16 %v4036
        %v4123 = vunpack.c.h.b16 %v4036
        %v4124 = vunpack.c.l.b16 %v4037
        %v4125 = vunpack.c.h.b16 %v4037
        %v4126 = vunpack.c.l.b16 %v4038
        %v4127 = vunpack.c.h.b16 %v4038
        %v4128 = vunpack.c.l.b16 %v4039
        %v4129 = vunpack.c.h.b16 %v4039
        %v4130 = vunpack.c.l.b16 %v4040
        %v4131 = vunpack.c.h.b16 %v4040
        %v4132 = vunpack.c.l.b16 %v4041
        %v4133 = vunpack.c.h.b16 %v4041
        %v4134 = vunpack.c.l.b16 %v4042
        %v4135 = vunpack.c.h.b16 %v4042
        %v4136 = vunpack.c.l.b16 %v4043
        %v4137 = vunpack.c.h.b16 %v4043
        %v4138 = vunpack.c.l.b16 %v4044
        %v4139 = vunpack.c.h.b16 %v4044
        %v4140 = vunpack.c.l.b16 %v4045
        %v4141 = vunpack.c.h.b16 %v4045
        %v4142 = vunpack.c.l.b16 %v4046
        %v4143 = vunpack.c.h.b16 %v4046
        %v4144 = vunpack.c.l.b16 %v4047
        %v4145 = vunpack.c.h.b16 %v4047
        %v4146 = vunpack.c.l.b16 %v4048
        %v4147 = vunpack.c.h.b16 %v4048
        %v4148 = vunpack.c.l.b16 %v4049
        %v4149 = vunpack.c.h.b16 %v4049
        %v4150 = vunpack.c.l.b16 %v4050
        %v4151 = vunpack.c.h.b16 %v4050
        %v4152 = vunpack.c.l.b16 %v4051
        %v4153 = vunpack.c.h.b16 %v4051
        %v4154 = vunpack.c.l.b16 %v4052
        %v4155 = vunpack.c.h.b16 %v4052
        %v4156 = vunpack.c.l.b16 %v4053
        %v4157 = vunpack.c.h.b16 %v4053
        %v4158 = vunpack.c.l.b16 %v4054
        %v4159 = vunpack.c.h.b16 %v4054
        %v4160 = vunpack.c.l.b16 %v4055
        %v4161 = vunpack.c.h.b16 %v4055
        %v4162 = vunpack.c.l.b16 %v4056
        %v4163 = vunpack.c.h.b16 %v4056
        %v4164 = vunpack.c.l.b16 %v4057
        %v4165 = vunpack.c.h.b16 %v4057
        %v4166 = vunpack.c.l.b16 %v4058
        %v4167 = vunpack.c.h.b16 %v4058
        %v4168 = vunpack.c.l.b16 %v4059
        %v4169 = vunpack.c.h.b16 %v4059
        %v4170 = vunpack.c.l.b16 %v4060
        %v4171 = vunpack.c.h.b16 %v4060
        %v4172 = vunpack.c.l.b16 %v4061
        %v4173 = vunpack.c.h.b16 %v4061
        %v4174 = vunpack.c.l.b16 %v4062
        %v4175 = vunpack.c.h.b16 %v4062
        %v4176 = vunpack.c.l.b16 %v4063
        %v4177 = vunpack.c.h.b16 %v4063
        %v4178 = vpack.c.b16 %v4118, %v4114
        %v4179 = vpack.c.b16 %v4119, %v4115
        %v4180 = vpack.c.b16 %v4120, %v4116
        %v4181 = vpack.c.b16 %v4121, %v4117
        %v4182 = vpack.c.b16 %v4126, %v4122
        %v4183 = vpack.c.b16 %v4127, %v4123
        %v4184 = vpack.c.b16 %v4128, %v4124
        %v4185 = vpack.c.b16 %v4129, %v4125
        %v4186 = vpack.c.b16 %v4134, %v4130
        %v4187 = vpack.c.b16 %v4135, %v4131
        %v4188 = vpack.c.b16 %v4136, %v4132
        %v4189 = vpack.c.b16 %v4137, %v4133
        %v4190 = vpack.c.b16 %v4142, %v4138
        %v4191 = vpack.c.b16 %v4143, %v4139
        %v4192 = vpack.c.b16 %v4144, %v4140
        %v4193 = vpack.c.b16 %v4145, %v4141
        %v4194 = vpack.c.b16 %v4150, %v4146
        %v4195 = vpack.c.b16 %v4151, %v4147
        %v4196 = vpack.c.b16 %v4152, %v4148
        %v4197 = vpack.c.b16 %v4153, %v4149
        %v4198 = vpack.c.b16 %v4158, %v4154
        %v4199 = vpack.c.b16 %v4159, %v4155
        %v4200 = vpack.c.b16 %v4160, %v4156
        %v4201 = vpack.c.b16 %v4161, %v4157
        %v4202 = vpack.c.b16 %v4166, %v4162
        %v4203 = vpack.c.b16 %v4167, %v4163
        %v4204 = vpack.c.b16 %v4168, %v4164
        %v4205 = vpack.c.b16 %v4169, %v4165
        %v4206 = vpack.c.b16 %v4174, %v4170
        %v4207 = vpack.c.b16 %v4175, %v4171
        %v4208 = vpack.c.b16 %v4176, %v4172
        %v4209 = vpack.c.b16 %v4177, %v4173
        %4242 = vmatpush.bf16.msra.mxu0 %v4206
        %4243 = vmatpush.bf16.msra.mxu0 %v4202
        %4244 = vmatpush.bf16.msra.mxu0 %v4198
        %4245 = vmatpush.bf16.msra.mxu0 %v4194
        %4246 = vmatpush.bf16.msra.mxu0 %v4190
        %4247 = vmatpush.bf16.msra.mxu0 %v4186
        %4248 = vmatpush.bf16.msra.mxu0 %v4182
        %4249 = vmatpush.bf16.msra.mxu0 %v4178
        %4250 = vmatmul.bf16.gmra.mxu0 %v4065
        %v4251 = vpop.f32.mrf.mxu0
        %v4252 = vadd.f32 %v4074, %v4251
        %v4253 = vpop.f32.mrf.mxu0
        %v4254 = vadd.f32 %v4074, %v4253
        %4255 = vmatmul.bf16.gmra.mxu0 %v4066
        %v4256 = vpop.f32.mrf.mxu0
        %v4257 = vadd.f32 %v4074, %v4256
        %v4258 = vpop.f32.mrf.mxu0
        %v4259 = vadd.f32 %v4074, %v4258
        %4260 = vmatmul.bf16.gmra.mxu0 %v4067
        %v4261 = vpop.f32.mrf.mxu0
        %v4262 = vadd.f32 %v4074, %v4261
        %v4263 = vpop.f32.mrf.mxu0
        %v4264 = vadd.f32 %v4074, %v4263
        %4265 = vmatmul.bf16.gmra.mxu0 %v4068
        %v4266 = vpop.f32.mrf.mxu0
        %v4267 = vadd.f32 %v4074, %v4266
        %v4268 = vpop.f32.mrf.mxu0
        %v4269 = vadd.f32 %v4074, %v4268
        %4270 = vmatmul.bf16.gmra.mxu0 %v4069
        %v4271 = vpop.f32.mrf.mxu0
        %v4272 = vadd.f32 %v4074, %v4271
        %v4273 = vpop.f32.mrf.mxu0
        %v4274 = vadd.f32 %v4074, %v4273
        %4275 = vmatmul.bf16.gmra.mxu0 %v4070
        %v4276 = vpop.f32.mrf.mxu0
        %v4277 = vadd.f32 %v4074, %v4276
        %v4278 = vpop.f32.mrf.mxu0
        %v4279 = vadd.f32 %v4074, %v4278
        %4280 = vmatmul.bf16.gmra.mxu0 %v4071
        %v4281 = vpop.f32.mrf.mxu0
        %v4282 = vadd.f32 %v4074, %v4281
        %v4283 = vpop.f32.mrf.mxu0
        %v4284 = vadd.f32 %v4074, %v4283
        %4285 = vmatmul.bf16.gmra.mxu0 %v4072
        %v4286 = vpop.f32.mrf.mxu0
        %v4287 = vadd.f32 %v4074, %v4286
        %v4288 = vpop.f32.mrf.mxu0
        %v4289 = vadd.f32 %v4074, %v4288
        %4290 = vdwg.mxu0
        %4291 = vmatpush.bf16.msra.mxu0 %v4207
        %4292 = vmatpush.bf16.msra.mxu0 %v4203
        %4293 = vmatpush.bf16.msra.mxu0 %v4199
        %4294 = vmatpush.bf16.msra.mxu0 %v4195
        %4295 = vmatpush.bf16.msra.mxu0 %v4191
        %4296 = vmatpush.bf16.msra.mxu0 %v4187
        %4297 = vmatpush.bf16.msra.mxu0 %v4183
        %4298 = vmatpush.bf16.msra.mxu0 %v4179
        %4299 = vmatmul.bf16.gmra.mxu0 %v4065
        %v4300 = vpop.f32.mrf.mxu0
        %v4301 = vadd.f32 %v4075, %v4300
        %v4302 = vpop.f32.mrf.mxu0
        %v4303 = vadd.f32 %v4075, %v4302
        %4304 = vmatmul.bf16.gmra.mxu0 %v4066
        %v4305 = vpop.f32.mrf.mxu0
        %v4306 = vadd.f32 %v4075, %v4305
        %v4307 = vpop.f32.mrf.mxu0
        %v4308 = vadd.f32 %v4075, %v4307
        %4309 = vmatmul.bf16.gmra.mxu0 %v4067
        %v4310 = vpop.f32.mrf.mxu0
        %v4311 = vadd.f32 %v4075, %v4310
        %v4312 = vpop.f32.mrf.mxu0
        %v4313 = vadd.f32 %v4075, %v4312
        %4314 = vmatmul.bf16.gmra.mxu0 %v4068
        %v4315 = vpop.f32.mrf.mxu0
        %v4316 = vadd.f32 %v4075, %v4315
        %v4317 = vpop.f32.mrf.mxu0
        %v4318 = vadd.f32 %v4075, %v4317
        %4319 = vmatmul.bf16.gmra.mxu0 %v4069
        %v4320 = vpop.f32.mrf.mxu0
        %v4321 = vadd.f32 %v4075, %v4320
        %v4322 = vpop.f32.mrf.mxu0
        %v4323 = vadd.f32 %v4075, %v4322
        %4324 = vmatmul.bf16.gmra.mxu0 %v4070
        %v4325 = vpop.f32.mrf.mxu0
        %v4326 = vadd.f32 %v4075, %v4325
        %v4327 = vpop.f32.mrf.mxu0
        %v4328 = vadd.f32 %v4075, %v4327
        %4329 = vmatmul.bf16.gmra.mxu0 %v4071
        %v4330 = vpop.f32.mrf.mxu0
        %v4331 = vadd.f32 %v4075, %v4330
        %v4332 = vpop.f32.mrf.mxu0
        %v4333 = vadd.f32 %v4075, %v4332
        %4334 = vmatmul.bf16.gmra.mxu0 %v4072
        %v4335 = vpop.f32.mrf.mxu0
        %v4336 = vadd.f32 %v4075, %v4335
        %v4337 = vpop.f32.mrf.mxu0
        %v4338 = vadd.f32 %v4075, %v4337
        %4339 = vdwg.mxu0
        %4340 = vmatpush.bf16.msra.mxu0 %v4208
        %4341 = vmatpush.bf16.msra.mxu0 %v4204
        %4342 = vmatpush.bf16.msra.mxu0 %v4200
        %4343 = vmatpush.bf16.msra.mxu0 %v4196
        %4344 = vmatpush.bf16.msra.mxu0 %v4192
        %4345 = vmatpush.bf16.msra.mxu0 %v4188
        %4346 = vmatpush.bf16.msra.mxu0 %v4184
        %4347 = vmatpush.bf16.msra.mxu0 %v4180
        %4348 = vmatmul.bf16.gmra.mxu0 %v4065
        %v4349 = vpop.f32.mrf.mxu0
        %v4350 = vadd.f32 %v4076, %v4349
        %v4351 = vpop.f32.mrf.mxu0
        %v4352 = vadd.f32 %v4076, %v4351
        %4353 = vmatmul.bf16.gmra.mxu0 %v4066
        %v4354 = vpop.f32.mrf.mxu0
        %v4355 = vadd.f32 %v4076, %v4354
        %v4356 = vpop.f32.mrf.mxu0
        %v4357 = vadd.f32 %v4076, %v4356
        %4358 = vmatmul.bf16.gmra.mxu0 %v4067
        %v4359 = vpop.f32.mrf.mxu0
        %v4360 = vadd.f32 %v4076, %v4359
        %v4361 = vpop.f32.mrf.mxu0
        %v4362 = vadd.f32 %v4076, %v4361
        %4363 = vmatmul.bf16.gmra.mxu0 %v4068
        %v4364 = vpop.f32.mrf.mxu0
        %v4365 = vadd.f32 %v4076, %v4364
        %v4366 = vpop.f32.mrf.mxu0
        %v4367 = vadd.f32 %v4076, %v4366
        %4368 = vmatmul.bf16.gmra.mxu0 %v4069
        %v4369 = vpop.f32.mrf.mxu0
        %v4370 = vadd.f32 %v4076, %v4369
        %v4371 = vpop.f32.mrf.mxu0
        %v4372 = vadd.f32 %v4076, %v4371
        %4373 = vmatmul.bf16.gmra.mxu0 %v4070
        %v4374 = vpop.f32.mrf.mxu0
        %v4375 = vadd.f32 %v4076, %v4374
        %v4376 = vpop.f32.mrf.mxu0
        %v4377 = vadd.f32 %v4076, %v4376
        %4378 = vmatmul.bf16.gmra.mxu0 %v4071
        %v4379 = vpop.f32.mrf.mxu0
        %v4380 = vadd.f32 %v4076, %v4379
        %v4381 = vpop.f32.mrf.mxu0
        %v4382 = vadd.f32 %v4076, %v4381
        %4383 = vmatmul.bf16.gmra.mxu0 %v4072
        %v4384 = vpop.f32.mrf.mxu0
        %v4385 = vadd.f32 %v4076, %v4384
        %v4386 = vpop.f32.mrf.mxu0
        %v4387 = vadd.f32 %v4076, %v4386
        %4388 = vdwg.mxu0
        %4389 = vmatpush.bf16.msra.mxu0 %v4209
        %4390 = vmatpush.bf16.msra.mxu0 %v4205
        %4391 = vmatpush.bf16.msra.mxu0 %v4201
        %4392 = vmatpush.bf16.msra.mxu0 %v4197
        %4393 = vmatpush.bf16.msra.mxu0 %v4193
        %4394 = vmatpush.bf16.msra.mxu0 %v4189
        %4395 = vmatpush.bf16.msra.mxu0 %v4185
        %4396 = vmatpush.bf16.msra.mxu0 %v4181
        %4397 = vmatmul.bf16.gmra.mxu0 %v4065
        %v4398 = vpop.f32.mrf.mxu0
        %v4399 = vadd.f32 %v4077, %v4398
        %v4400 = vpop.f32.mrf.mxu0
        %v4401 = vadd.f32 %v4077, %v4400
        %4402 = vmatmul.bf16.gmra.mxu0 %v4066
        %v4403 = vpop.f32.mrf.mxu0
        %v4404 = vadd.f32 %v4077, %v4403
        %v4405 = vpop.f32.mrf.mxu0
        %v4406 = vadd.f32 %v4077, %v4405
        %4407 = vmatmul.bf16.gmra.mxu0 %v4067
        %v4408 = vpop.f32.mrf.mxu0
        %v4409 = vadd.f32 %v4077, %v4408
        %v4410 = vpop.f32.mrf.mxu0
        %v4411 = vadd.f32 %v4077, %v4410
        %4412 = vmatmul.bf16.gmra.mxu0 %v4068
        %v4413 = vpop.f32.mrf.mxu0
        %v4414 = vadd.f32 %v4077, %v4413
        %v4415 = vpop.f32.mrf.mxu0
        %v4416 = vadd.f32 %v4077, %v4415
        %4417 = vmatmul.bf16.gmra.mxu0 %v4069
        %v4418 = vpop.f32.mrf.mxu0
        %v4419 = vadd.f32 %v4077, %v4418
        %v4420 = vpop.f32.mrf.mxu0
        %v4421 = vadd.f32 %v4077, %v4420
        %4422 = vmatmul.bf16.gmra.mxu0 %v4070
        %v4423 = vpop.f32.mrf.mxu0
        %v4424 = vadd.f32 %v4077, %v4423
        %v4425 = vpop.f32.mrf.mxu0
        %v4426 = vadd.f32 %v4077, %v4425
        %4427 = vmatmul.bf16.gmra.mxu0 %v4071
        %v4428 = vpop.f32.mrf.mxu0
        %v4429 = vadd.f32 %v4077, %v4428
        %v4430 = vpop.f32.mrf.mxu0
        %v4431 = vadd.f32 %v4077, %v4430
        %4432 = vmatmul.bf16.gmra.mxu0 %v4072
        %v4433 = vpop.f32.mrf.mxu0
        %v4434 = vadd.f32 %v4077, %v4433
        %v4435 = vpop.f32.mrf.mxu0
        %v4436 = vadd.f32 %v4077, %v4435
        %4437 = vdwg.mxu0
        %v4438 = vmul.f32 %v4252, 0.5
        %v4439 = vmul.f32 %v4301, 0.5
        %v4440 = vmul.f32 %v4350, 0.5
        %v4441 = vmul.f32 %v4399, 0.5
        %v4442 = vmul.f32 %v4254, 0.5
        %v4443 = vmul.f32 %v4303, 0.5
        %v4444 = vmul.f32 %v4352, 0.5
        %v4445 = vmul.f32 %v4401, 0.5
        %v4446 = vmul.f32 %v4257, 0.5
        %v4447 = vmul.f32 %v4306, 0.5
        %v4448 = vmul.f32 %v4355, 0.5
        %v4449 = vmul.f32 %v4404, 0.5
        %v4450 = vmul.f32 %v4259, 0.5
        %v4451 = vmul.f32 %v4308, 0.5
        %v4452 = vmul.f32 %v4357, 0.5
        %v4453 = vmul.f32 %v4406, 0.5
        %v4454 = vmul.f32 %v4262, 0.5
        %v4455 = vmul.f32 %v4311, 0.5
        %v4456 = vmul.f32 %v4360, 0.5
        %v4457 = vmul.f32 %v4409, 0.5
        %v4458 = vmul.f32 %v4264, 0.5
        %v4459 = vmul.f32 %v4313, 0.5
        %v4460 = vmul.f32 %v4362, 0.5
        %v4461 = vmul.f32 %v4411, 0.5
        %v4462 = vmul.f32 %v4267, 0.5
        %v4463 = vmul.f32 %v4316, 0.5
        %v4464 = vmul.f32 %v4365, 0.5
        %v4465 = vmul.f32 %v4414, 0.5
        %v4466 = vmul.f32 %v4269, 0.5
        %v4467 = vmul.f32 %v4318, 0.5
        %v4468 = vmul.f32 %v4367, 0.5
        %v4469 = vmul.f32 %v4416, 0.5
        %v4470 = vmul.f32 %v4272, 0.5
        %v4471 = vmul.f32 %v4321, 0.5
        %v4472 = vmul.f32 %v4370, 0.5
        %v4473 = vmul.f32 %v4419, 0.5
        %v4474 = vmul.f32 %v4274, 0.5
        %v4475 = vmul.f32 %v4323, 0.5
        %v4476 = vmul.f32 %v4372, 0.5
        %v4477 = vmul.f32 %v4421, 0.5
        %v4478 = vmul.f32 %v4277, 0.5
        %v4479 = vmul.f32 %v4326, 0.5
        %v4480 = vmul.f32 %v4375, 0.5
        %v4481 = vmul.f32 %v4424, 0.5
        %v4482 = vmul.f32 %v4279, 0.5
        %v4483 = vmul.f32 %v4328, 0.5
        %v4484 = vmul.f32 %v4377, 0.5
        %v4485 = vmul.f32 %v4426, 0.5
        %v4486 = vmul.f32 %v4282, 0.5
        %v4487 = vmul.f32 %v4331, 0.5
        %v4488 = vmul.f32 %v4380, 0.5
        %v4489 = vmul.f32 %v4429, 0.5
        %v4490 = vmul.f32 %v4284, 0.5
        %v4491 = vmul.f32 %v4333, 0.5
        %v4492 = vmul.f32 %v4382, 0.5
        %v4493 = vmul.f32 %v4431, 0.5
        %v4494 = vmul.f32 %v4287, 0.5
        %v4495 = vmul.f32 %v4336, 0.5
        %v4496 = vmul.f32 %v4385, 0.5
        %v4497 = vmul.f32 %v4434, 0.5
        %v4498 = vmul.f32 %v4289, 0.5
        %v4499 = vmul.f32 %v4338, 0.5
        %v4500 = vmul.f32 %v4387, 0.5
        %v4501 = vmul.f32 %v4436, 0.5
        %v4502 = vmul.f32 %v4252, 0.044715
        %v4503 = vmul.f32 %v4301, 0.044715
        %v4504 = vmul.f32 %v4350, 0.044715
        %v4505 = vmul.f32 %v4399, 0.044715
        %v4506 = vmul.f32 %v4254, 0.044715
        %v4507 = vmul.f32 %v4303, 0.044715
        %v4508 = vmul.f32 %v4352, 0.044715
        %v4509 = vmul.f32 %v4401, 0.044715
        %v4510 = vmul.f32 %v4257, 0.044715
        %v4511 = vmul.f32 %v4306, 0.044715
        %v4512 = vmul.f32 %v4355, 0.044715
        %v4513 = vmul.f32 %v4404, 0.044715
        %v4514 = vmul.f32 %v4259, 0.044715
        %v4515 = vmul.f32 %v4308, 0.044715
        %v4516 = vmul.f32 %v4357, 0.044715
        %v4517 = vmul.f32 %v4406, 0.044715
        %v4518 = vmul.f32 %v4262, 0.044715
        %v4519 = vmul.f32 %v4311, 0.044715
        %v4520 = vmul.f32 %v4360, 0.044715
        %v4521 = vmul.f32 %v4409, 0.044715
        %v4522 = vmul.f32 %v4264, 0.044715
        %v4523 = vmul.f32 %v4313, 0.044715
        %v4524 = vmul.f32 %v4362, 0.044715
        %v4525 = vmul.f32 %v4411, 0.044715
        %v4526 = vmul.f32 %v4267, 0.044715
        %v4527 = vmul.f32 %v4316, 0.044715
        %v4528 = vmul.f32 %v4365, 0.044715
        %v4529 = vmul.f32 %v4414, 0.044715
        %v4530 = vmul.f32 %v4269, 0.044715
        %v4531 = vmul.f32 %v4318, 0.044715
        %v4532 = vmul.f32 %v4367, 0.044715
        %v4533 = vmul.f32 %v4416, 0.044715
        %v4534 = vmul.f32 %v4272, 0.044715
        %v4535 = vmul.f32 %v4321, 0.044715
        %v4536 = vmul.f32 %v4370, 0.044715
        %v4537 = vmul.f32 %v4419, 0.044715
        %v4538 = vmul.f32 %v4274, 0.044715
        %v4539 = vmul.f32 %v4323, 0.044715
        %v4540 = vmul.f32 %v4372, 0.044715
        %v4541 = vmul.f32 %v4421, 0.044715
        %v4542 = vmul.f32 %v4277, 0.044715
        %v4543 = vmul.f32 %v4326, 0.044715
        %v4544 = vmul.f32 %v4375, 0.044715
        %v4545 = vmul.f32 %v4424, 0.044715
        %v4546 = vmul.f32 %v4279, 0.044715
        %v4547 = vmul.f32 %v4328, 0.044715
        %v4548 = vmul.f32 %v4377, 0.044715
        %v4549 = vmul.f32 %v4426, 0.044715
        %v4550 = vmul.f32 %v4282, 0.044715
        %v4551 = vmul.f32 %v4331, 0.044715
        %v4552 = vmul.f32 %v4380, 0.044715
        %v4553 = vmul.f32 %v4429, 0.044715
        %v4554 = vmul.f32 %v4284, 0.044715
        %v4555 = vmul.f32 %v4333, 0.044715
        %v4556 = vmul.f32 %v4382, 0.044715
        %v4557 = vmul.f32 %v4431, 0.044715
        %v4558 = vmul.f32 %v4287, 0.044715
        %v4559 = vmul.f32 %v4336, 0.044715
        %v4560 = vmul.f32 %v4385, 0.044715
        %v4561 = vmul.f32 %v4434, 0.044715
        %v4562 = vmul.f32 %v4289, 0.044715
        %v4563 = vmul.f32 %v4338, 0.044715
        %v4564 = vmul.f32 %v4387, 0.044715
        %v4565 = vmul.f32 %v4436, 0.044715
        %v4566 = vmul.f32 %v4502, %v4252
        %v4567 = vmul.f32 %v4503, %v4301
        %v4568 = vmul.f32 %v4504, %v4350
        %v4569 = vmul.f32 %v4505, %v4399
        %v4570 = vmul.f32 %v4506, %v4254
        %v4571 = vmul.f32 %v4507, %v4303
        %v4572 = vmul.f32 %v4508, %v4352
        %v4573 = vmul.f32 %v4509, %v4401
        %v4574 = vmul.f32 %v4510, %v4257
        %v4575 = vmul.f32 %v4511, %v4306
        %v4576 = vmul.f32 %v4512, %v4355
        %v4577 = vmul.f32 %v4513, %v4404
        %v4578 = vmul.f32 %v4514, %v4259
        %v4579 = vmul.f32 %v4515, %v4308
        %v4580 = vmul.f32 %v4516, %v4357
        %v4581 = vmul.f32 %v4517, %v4406
        %v4582 = vmul.f32 %v4518, %v4262
        %v4583 = vmul.f32 %v4519, %v4311
        %v4584 = vmul.f32 %v4520, %v4360
        %v4585 = vmul.f32 %v4521, %v4409
        %v4586 = vmul.f32 %v4522, %v4264
        %v4587 = vmul.f32 %v4523, %v4313
        %v4588 = vmul.f32 %v4524, %v4362
        %v4589 = vmul.f32 %v4525, %v4411
        %v4590 = vmul.f32 %v4526, %v4267
        %v4591 = vmul.f32 %v4527, %v4316
        %v4592 = vmul.f32 %v4528, %v4365
        %v4593 = vmul.f32 %v4529, %v4414
        %v4594 = vmul.f32 %v4530, %v4269
        %v4595 = vmul.f32 %v4531, %v4318
        %v4596 = vmul.f32 %v4532, %v4367
        %v4597 = vmul.f32 %v4533, %v4416
        %v4598 = vmul.f32 %v4534, %v4272
        %v4599 = vmul.f32 %v4535, %v4321
        %v4600 = vmul.f32 %v4536, %v4370
        %v4601 = vmul.f32 %v4537, %v4419
        %v4602 = vmul.f32 %v4538, %v4274
        %v4603 = vmul.f32 %v4539, %v4323
        %v4604 = vmul.f32 %v4540, %v4372
        %v4605 = vmul.f32 %v4541, %v4421
        %v4606 = vmul.f32 %v4542, %v4277
        %v4607 = vmul.f32 %v4543, %v4326
        %v4608 = vmul.f32 %v4544, %v4375
        %v4609 = vmul.f32 %v4545, %v4424
        %v4610 = vmul.f32 %v4546, %v4279
        %v4611 = vmul.f32 %v4547, %v4328
        %v4612 = vmul.f32 %v4548, %v4377
        %v4613 = vmul.f32 %v4549, %v4426
        %v4614 = vmul.f32 %v4550, %v4282
        %v4615 = vmul.f32 %v4551, %v4331
        %v4616 = vmul.f32 %v4552, %v4380
        %v4617 = vmul.f32 %v4553, %v4429
        %v4618 = vmul.f32 %v4554, %v4284
        %v4619 = vmul.f32 %v4555, %v4333
        %v4620 = vmul.f32 %v4556, %v4382
        %v4621 = vmul.f32 %v4557, %v4431
        %v4622 = vmul.f32 %v4558, %v4287
        %v4623 = vmul.f32 %v4559, %v4336
        %v4624 = vmul.f32 %v4560, %v4385
        %v4625 = vmul.f32 %v4561, %v4434
        %v4626 = vmul.f32 %v4562, %v4289
        %v4627 = vmul.f32 %v4563, %v4338
        %v4628 = vmul.f32 %v4564, %v4387
        %v4629 = vmul.f32 %v4565, %v4436
        %v4630 = vmul.f32 %v4566, %v4252
        %v4631 = vmul.f32 %v4567, %v4301
        %v4632 = vmul.f32 %v4568, %v4350
        %v4633 = vmul.f32 %v4569, %v4399
        %v4634 = vmul.f32 %v4570, %v4254
        %v4635 = vmul.f32 %v4571, %v4303
        %v4636 = vmul.f32 %v4572, %v4352
        %v4637 = vmul.f32 %v4573, %v4401
        %v4638 = vmul.f32 %v4574, %v4257
        %v4639 = vmul.f32 %v4575, %v4306
        %v4640 = vmul.f32 %v4576, %v4355
        %v4641 = vmul.f32 %v4577, %v4404
        %v4642 = vmul.f32 %v4578, %v4259
        %v4643 = vmul.f32 %v4579, %v4308
        %v4644 = vmul.f32 %v4580, %v4357
        %v4645 = vmul.f32 %v4581, %v4406
        %v4646 = vmul.f32 %v4582, %v4262
        %v4647 = vmul.f32 %v4583, %v4311
        %v4648 = vmul.f32 %v4584, %v4360
        %v4649 = vmul.f32 %v4585, %v4409
        %v4650 = vmul.f32 %v4586, %v4264
        %v4651 = vmul.f32 %v4587, %v4313
        %v4652 = vmul.f32 %v4588, %v4362
        %v4653 = vmul.f32 %v4589, %v4411
        %v4654 = vmul.f32 %v4590, %v4267
        %v4655 = vmul.f32 %v4591, %v4316
        %v4656 = vmul.f32 %v4592, %v4365
        %v4657 = vmul.f32 %v4593, %v4414
        %v4658 = vmul.f32 %v4594, %v4269
        %v4659 = vmul.f32 %v4595, %v4318
        %v4660 = vmul.f32 %v4596, %v4367
        %v4661 = vmul.f32 %v4597, %v4416
        %v4662 = vmul.f32 %v4598, %v4272
        %v4663 = vmul.f32 %v4599, %v4321
        %v4664 = vmul.f32 %v4600, %v4370
        %v4665 = vmul.f32 %v4601, %v4419
        %v4666 = vmul.f32 %v4602, %v4274
        %v4667 = vmul.f32 %v4603, %v4323
        %v4668 = vmul.f32 %v4604, %v4372
        %v4669 = vmul.f32 %v4605, %v4421
        %v4670 = vmul.f32 %v4606, %v4277
        %v4671 = vmul.f32 %v4607, %v4326
        %v4672 = vmul.f32 %v4608, %v4375
        %v4673 = vmul.f32 %v4609, %v4424
        %v4674 = vmul.f32 %v4610, %v4279
        %v4675 = vmul.f32 %v4611, %v4328
        %v4676 = vmul.f32 %v4612, %v4377
        %v4677 = vmul.f32 %v4613, %v4426
        %v4678 = vmul.f32 %v4614, %v4282
        %v4679 = vmul.f32 %v4615, %v4331
        %v4680 = vmul.f32 %v4616, %v4380
        %v4681 = vmul.f32 %v4617, %v4429
        %v4682 = vmul.f32 %v4618, %v4284
        %v4683 = vmul.f32 %v4619, %v4333
        %v4684 = vmul.f32 %v4620, %v4382
        %v4685 = vmul.f32 %v4621, %v4431
        %v4686 = vmul.f32 %v4622, %v4287
        %v4687 = vmul.f32 %v4623, %v4336
        %v4688 = vmul.f32 %v4624, %v4385
        %v4689 = vmul.f32 %v4625, %v4434
        %v4690 = vmul.f32 %v4626, %v4289
        %v4691 = vmul.f32 %v4627, %v4338
        %v4692 = vmul.f32 %v4628, %v4387
        %v4693 = vmul.f32 %v4629, %v4436
        %v4694 = vadd.f32 %v4252, %v4630
        %v4695 = vadd.f32 %v4301, %v4631
        %v4696 = vadd.f32 %v4350, %v4632
        %v4697 = vadd.f32 %v4399, %v4633
        %v4698 = vadd.f32 %v4254, %v4634
        %v4699 = vadd.f32 %v4303, %v4635
        %v4700 = vadd.f32 %v4352, %v4636
        %v4701 = vadd.f32 %v4401, %v4637
        %v4702 = vadd.f32 %v4257, %v4638
        %v4703 = vadd.f32 %v4306, %v4639
        %v4704 = vadd.f32 %v4355, %v4640
        %v4705 = vadd.f32 %v4404, %v4641
        %v4706 = vadd.f32 %v4259, %v4642
        %v4707 = vadd.f32 %v4308, %v4643
        %v4708 = vadd.f32 %v4357, %v4644
        %v4709 = vadd.f32 %v4406, %v4645
        %v4710 = vadd.f32 %v4262, %v4646
        %v4711 = vadd.f32 %v4311, %v4647
        %v4712 = vadd.f32 %v4360, %v4648
        %v4713 = vadd.f32 %v4409, %v4649
        %v4714 = vadd.f32 %v4264, %v4650
        %v4715 = vadd.f32 %v4313, %v4651
        %v4716 = vadd.f32 %v4362, %v4652
        %v4717 = vadd.f32 %v4411, %v4653
        %v4718 = vadd.f32 %v4267, %v4654
        %v4719 = vadd.f32 %v4316, %v4655
        %v4720 = vadd.f32 %v4365, %v4656
        %v4721 = vadd.f32 %v4414, %v4657
        %v4722 = vadd.f32 %v4269, %v4658
        %v4723 = vadd.f32 %v4318, %v4659
        %v4724 = vadd.f32 %v4367, %v4660
        %v4725 = vadd.f32 %v4416, %v4661
        %v4726 = vadd.f32 %v4272, %v4662
        %v4727 = vadd.f32 %v4321, %v4663
        %v4728 = vadd.f32 %v4370, %v4664
        %v4729 = vadd.f32 %v4419, %v4665
        %v4730 = vadd.f32 %v4274, %v4666
        %v4731 = vadd.f32 %v4323, %v4667
        %v4732 = vadd.f32 %v4372, %v4668
        %v4733 = vadd.f32 %v4421, %v4669
        %v4734 = vadd.f32 %v4277, %v4670
        %v4735 = vadd.f32 %v4326, %v4671
        %v4736 = vadd.f32 %v4375, %v4672
        %v4737 = vadd.f32 %v4424, %v4673
        %v4738 = vadd.f32 %v4279, %v4674
        %v4739 = vadd.f32 %v4328, %v4675
        %v4740 = vadd.f32 %v4377, %v4676
        %v4741 = vadd.f32 %v4426, %v4677
        %v4742 = vadd.f32 %v4282, %v4678
        %v4743 = vadd.f32 %v4331, %v4679
        %v4744 = vadd.f32 %v4380, %v4680
        %v4745 = vadd.f32 %v4429, %v4681
        %v4746 = vadd.f32 %v4284, %v4682
        %v4747 = vadd.f32 %v4333, %v4683
        %v4748 = vadd.f32 %v4382, %v4684
        %v4749 = vadd.f32 %v4431, %v4685
        %v4750 = vadd.f32 %v4287, %v4686
        %v4751 = vadd.f32 %v4336, %v4687
        %v4752 = vadd.f32 %v4385, %v4688
        %v4753 = vadd.f32 %v4434, %v4689
        %v4754 = vadd.f32 %v4289, %v4690
        %v4755 = vadd.f32 %v4338, %v4691
        %v4756 = vadd.f32 %v4387, %v4692
        %v4757 = vadd.f32 %v4436, %v4693
        %v4758 = vmul.f32 %v4694, 0.7978846
        %v4759 = vmul.f32 %v4695, 0.7978846
        %v4760 = vmul.f32 %v4696, 0.7978846
        %v4761 = vmul.f32 %v4697, 0.7978846
        %v4762 = vmul.f32 %v4698, 0.7978846
        %v4763 = vmul.f32 %v4699, 0.7978846
        %v4764 = vmul.f32 %v4700, 0.7978846
        %v4765 = vmul.f32 %v4701, 0.7978846
        %v4766 = vmul.f32 %v4702, 0.7978846
        %v4767 = vmul.f32 %v4703, 0.7978846
        %v4768 = vmul.f32 %v4704, 0.7978846
        %v4769 = vmul.f32 %v4705, 0.7978846
        %v4770 = vmul.f32 %v4706, 0.7978846
        %v4771 = vmul.f32 %v4707, 0.7978846
        %v4772 = vmul.f32 %v4708, 0.7978846
        %v4773 = vmul.f32 %v4709, 0.7978846
        %v4774 = vmul.f32 %v4710, 0.7978846
        %v4775 = vmul.f32 %v4711, 0.7978846
        %v4776 = vmul.f32 %v4712, 0.7978846
        %v4777 = vmul.f32 %v4713, 0.7978846
        %v4778 = vmul.f32 %v4714, 0.7978846
        %v4779 = vmul.f32 %v4715, 0.7978846
        %v4780 = vmul.f32 %v4716, 0.7978846
        %v4781 = vmul.f32 %v4717, 0.7978846
        %v4782 = vmul.f32 %v4718, 0.7978846
        %v4783 = vmul.f32 %v4719, 0.7978846
        %v4784 = vmul.f32 %v4720, 0.7978846
        %v4785 = vmul.f32 %v4721, 0.7978846
        %v4786 = vmul.f32 %v4722, 0.7978846
        %v4787 = vmul.f32 %v4723, 0.7978846
        %v4788 = vmul.f32 %v4724, 0.7978846
        %v4789 = vmul.f32 %v4725, 0.7978846
        %v4790 = vmul.f32 %v4726, 0.7978846
        %v4791 = vmul.f32 %v4727, 0.7978846
        %v4792 = vmul.f32 %v4728, 0.7978846
        %v4793 = vmul.f32 %v4729, 0.7978846
        %v4794 = vmul.f32 %v4730, 0.7978846
        %v4795 = vmul.f32 %v4731, 0.7978846
        %v4796 = vmul.f32 %v4732, 0.7978846
        %v4797 = vmul.f32 %v4733, 0.7978846
        %v4798 = vmul.f32 %v4734, 0.7978846
        %v4799 = vmul.f32 %v4735, 0.7978846
        %v4800 = vmul.f32 %v4736, 0.7978846
        %v4801 = vmul.f32 %v4737, 0.7978846
        %v4802 = vmul.f32 %v4738, 0.7978846
        %v4803 = vmul.f32 %v4739, 0.7978846
        %v4804 = vmul.f32 %v4740, 0.7978846
        %v4805 = vmul.f32 %v4741, 0.7978846
        %v4806 = vmul.f32 %v4742, 0.7978846
        %v4807 = vmul.f32 %v4743, 0.7978846
        %v4808 = vmul.f32 %v4744, 0.7978846
        %v4809 = vmul.f32 %v4745, 0.7978846
        %v4810 = vmul.f32 %v4746, 0.7978846
        %v4811 = vmul.f32 %v4747, 0.7978846
        %v4812 = vmul.f32 %v4748, 0.7978846
        %v4813 = vmul.f32 %v4749, 0.7978846
        %v4814 = vmul.f32 %v4750, 0.7978846
        %v4815 = vmul.f32 %v4751, 0.7978846
        %v4816 = vmul.f32 %v4752, 0.7978846
        %v4817 = vmul.f32 %v4753, 0.7978846
        %v4818 = vmul.f32 %v4754, 0.7978846
        %v4819 = vmul.f32 %v4755, 0.7978846
        %v4820 = vmul.f32 %v4756, 0.7978846
        %v4821 = vmul.f32 %v4757, 0.7978846
        %v4822 = vtanh.pop %v4758
        %v4823 = vtanh.pop %v4759
        %v4824 = vtanh.pop %v4760
        %v4825 = vtanh.pop %v4761
        %v4826 = vtanh.pop %v4762
        %v4827 = vtanh.pop %v4763
        %v4828 = vtanh.pop %v4764
        %v4829 = vtanh.pop %v4765
        %v4830 = vtanh.pop %v4766
        %v4831 = vtanh.pop %v4767
        %v4832 = vtanh.pop %v4768
        %v4833 = vtanh.pop %v4769
        %v4834 = vtanh.pop %v4770
        %v4835 = vtanh.pop %v4771
        %v4836 = vtanh.pop %v4772
        %v4837 = vtanh.pop %v4773
        %v4838 = vtanh.pop %v4774
        %v4839 = vtanh.pop %v4775
        %v4840 = vtanh.pop %v4776
        %v4841 = vtanh.pop %v4777
        %v4842 = vtanh.pop %v4778
        %v4843 = vtanh.pop %v4779
        %v4844 = vtanh.pop %v4780
        %v4845 = vtanh.pop %v4781
        %v4846 = vtanh.pop %v4782
        %v4847 = vtanh.pop %v4783
        %v4848 = vtanh.pop %v4784
        %v4849 = vtanh.pop %v4785
        %v4850 = vtanh.pop %v4786
        %v4851 = vtanh.pop %v4787
        %v4852 = vtanh.pop %v4788
        %v4853 = vtanh.pop %v4789
        %v4854 = vtanh.pop %v4790
        %v4855 = vtanh.pop %v4791
        %v4856 = vtanh.pop %v4792
        %v4857 = vtanh.pop %v4793
        %v4858 = vtanh.pop %v4794
        %v4859 = vtanh.pop %v4795
        %v4860 = vtanh.pop %v4796
        %v4861 = vtanh.pop %v4797
        %v4862 = vtanh.pop %v4798
        %v4863 = vtanh.pop %v4799
        %v4864 = vtanh.pop %v4800
        %v4865 = vtanh.pop %v4801
        %v4866 = vtanh.pop %v4802
        %v4867 = vtanh.pop %v4803
        %v4868 = vtanh.pop %v4804
        %v4869 = vtanh.pop %v4805
        %v4870 = vtanh.pop %v4806
        %v4871 = vtanh.pop %v4807
        %v4872 = vtanh.pop %v4808
        %v4873 = vtanh.pop %v4809
        %v4874 = vtanh.pop %v4810
        %v4875 = vtanh.pop %v4811
        %v4876 = vtanh.pop %v4812
        %v4877 = vtanh.pop %v4813
        %v4878 = vtanh.pop %v4814
        %v4879 = vtanh.pop %v4815
        %v4880 = vtanh.pop %v4816
        %v4881 = vtanh.pop %v4817
        %v4882 = vtanh.pop %v4818
        %v4883 = vtanh.pop %v4819
        %v4884 = vtanh.pop %v4820
        %v4885 = vtanh.pop %v4821
        %v4886 = vadd.f32 %v4822, 1.0
        %v4887 = vadd.f32 %v4823, 1.0
        %v4888 = vadd.f32 %v4824, 1.0
        %v4889 = vadd.f32 %v4825, 1.0
        %v4890 = vadd.f32 %v4826, 1.0
        %v4891 = vadd.f32 %v4827, 1.0
        %v4892 = vadd.f32 %v4828, 1.0
        %v4893 = vadd.f32 %v4829, 1.0
        %v4894 = vadd.f32 %v4830, 1.0
        %v4895 = vadd.f32 %v4831, 1.0
        %v4896 = vadd.f32 %v4832, 1.0
        %v4897 = vadd.f32 %v4833, 1.0
        %v4898 = vadd.f32 %v4834, 1.0
        %v4899 = vadd.f32 %v4835, 1.0
        %v4900 = vadd.f32 %v4836, 1.0
        %v4901 = vadd.f32 %v4837, 1.0
        %v4902 = vadd.f32 %v4838, 1.0
        %v4903 = vadd.f32 %v4839, 1.0
        %v4904 = vadd.f32 %v4840, 1.0
        %v4905 = vadd.f32 %v4841, 1.0
        %v4906 = vadd.f32 %v4842, 1.0
        %v4907 = vadd.f32 %v4843, 1.0
        %v4908 = vadd.f32 %v4844, 1.0
        %v4909 = vadd.f32 %v4845, 1.0
        %v4910 = vadd.f32 %v4846, 1.0
        %v4911 = vadd.f32 %v4847, 1.0
        %v4912 = vadd.f32 %v4848, 1.0
        %v4913 = vadd.f32 %v4849, 1.0
        %v4914 = vadd.f32 %v4850, 1.0
        %v4915 = vadd.f32 %v4851, 1.0
        %v4916 = vadd.f32 %v4852, 1.0
        %v4917 = vadd.f32 %v4853, 1.0
        %v4918 = vadd.f32 %v4854, 1.0
        %v4919 = vadd.f32 %v4855, 1.0
        %v4920 = vadd.f32 %v4856, 1.0
        %v4921 = vadd.f32 %v4857, 1.0
        %v4922 = vadd.f32 %v4858, 1.0
        %v4923 = vadd.f32 %v4859, 1.0
        %v4924 = vadd.f32 %v4860, 1.0
        %v4925 = vadd.f32 %v4861, 1.0
        %v4926 = vadd.f32 %v4862, 1.0
        %v4927 = vadd.f32 %v4863, 1.0
        %v4928 = vadd.f32 %v4864, 1.0
        %v4929 = vadd.f32 %v4865, 1.0
        %v4930 = vadd.f32 %v4866, 1.0
        %v4931 = vadd.f32 %v4867, 1.0
        %v4932 = vadd.f32 %v4868, 1.0
        %v4933 = vadd.f32 %v4869, 1.0
        %v4934 = vadd.f32 %v4870, 1.0
        %v4935 = vadd.f32 %v4871, 1.0
        %v4936 = vadd.f32 %v4872, 1.0
        %v4937 = vadd.f32 %v4873, 1.0
        %v4938 = vadd.f32 %v4874, 1.0
        %v4939 = vadd.f32 %v4875, 1.0
        %v4940 = vadd.f32 %v4876, 1.0
        %v4941 = vadd.f32 %v4877, 1.0
        %v4942 = vadd.f32 %v4878, 1.0
        %v4943 = vadd.f32 %v4879, 1.0
        %v4944 = vadd.f32 %v4880, 1.0
        %v4945 = vadd.f32 %v4881, 1.0
        %v4946 = vadd.f32 %v4882, 1.0
        %v4947 = vadd.f32 %v4883, 1.0
        %v4948 = vadd.f32 %v4884, 1.0
        %v4949 = vadd.f32 %v4885, 1.0
        %v4950 = vmul.f32 %v4438, %v4886
        %v4951 = vmul.f32 %v4439, %v4887
        %v4952 = vmul.f32 %v4440, %v4888
        %v4953 = vmul.f32 %v4441, %v4889
        %v4954 = vmul.f32 %v4442, %v4890
        %v4955 = vmul.f32 %v4443, %v4891
        %v4956 = vmul.f32 %v4444, %v4892
        %v4957 = vmul.f32 %v4445, %v4893
        %v4958 = vmul.f32 %v4446, %v4894
        %v4959 = vmul.f32 %v4447, %v4895
        %v4960 = vmul.f32 %v4448, %v4896
        %v4961 = vmul.f32 %v4449, %v4897
        %v4962 = vmul.f32 %v4450, %v4898
        %v4963 = vmul.f32 %v4451, %v4899
        %v4964 = vmul.f32 %v4452, %v4900
        %v4965 = vmul.f32 %v4453, %v4901
        %v4966 = vmul.f32 %v4454, %v4902
        %v4967 = vmul.f32 %v4455, %v4903
        %v4968 = vmul.f32 %v4456, %v4904
        %v4969 = vmul.f32 %v4457, %v4905
        %v4970 = vmul.f32 %v4458, %v4906
        %v4971 = vmul.f32 %v4459, %v4907
        %v4972 = vmul.f32 %v4460, %v4908
        %v4973 = vmul.f32 %v4461, %v4909
        %v4974 = vmul.f32 %v4462, %v4910
        %v4975 = vmul.f32 %v4463, %v4911
        %v4976 = vmul.f32 %v4464, %v4912
        %v4977 = vmul.f32 %v4465, %v4913
        %v4978 = vmul.f32 %v4466, %v4914
        %v4979 = vmul.f32 %v4467, %v4915
        %v4980 = vmul.f32 %v4468, %v4916
        %v4981 = vmul.f32 %v4469, %v4917
        %v4982 = vmul.f32 %v4470, %v4918
        %v4983 = vmul.f32 %v4471, %v4919
        %v4984 = vmul.f32 %v4472, %v4920
        %v4985 = vmul.f32 %v4473, %v4921
        %v4986 = vmul.f32 %v4474, %v4922
        %v4987 = vmul.f32 %v4475, %v4923
        %v4988 = vmul.f32 %v4476, %v4924
        %v4989 = vmul.f32 %v4477, %v4925
        %v4990 = vmul.f32 %v4478, %v4926
        %v4991 = vmul.f32 %v4479, %v4927
        %v4992 = vmul.f32 %v4480, %v4928
        %v4993 = vmul.f32 %v4481, %v4929
        %v4994 = vmul.f32 %v4482, %v4930
        %v4995 = vmul.f32 %v4483, %v4931
        %v4996 = vmul.f32 %v4484, %v4932
        %v4997 = vmul.f32 %v4485, %v4933
        %v4998 = vmul.f32 %v4486, %v4934
        %v4999 = vmul.f32 %v4487, %v4935
        %v5000 = vmul.f32 %v4488, %v4936
        %v5001 = vmul.f32 %v4489, %v4937
        %v5002 = vmul.f32 %v4490, %v4938
        %v5003 = vmul.f32 %v4491, %v4939
        %v5004 = vmul.f32 %v4492, %v4940
        %v5005 = vmul.f32 %v4493, %v4941
        %v5006 = vmul.f32 %v4494, %v4942
        %v5007 = vmul.f32 %v4495, %v4943
        %v5008 = vmul.f32 %v4496, %v4944
        %v5009 = vmul.f32 %v4497, %v4945
        %v5010 = vmul.f32 %v4498, %v4946
        %v5011 = vmul.f32 %v4499, %v4947
        %v5012 = vmul.f32 %v4500, %v4948
        %v5013 = vmul.f32 %v4501, %v4949
        %v5014 = vld [vmem:[#allocation10] sm:$0xf]
        %v5015 = vld [vmem:[#allocation10 + $0x4] sm:$0xf]
        %v5016 = vld [vmem:[#allocation10 + $0x8] sm:$0xf]
        %v5017 = vld [vmem:[#allocation10 + $0xc] sm:$0xf]
        %v5018 = vld [vmem:[#allocation10 + $0x10] sm:$0xf]
        %v5019 = vld [vmem:[#allocation10 + $0x14] sm:$0xf]
        %v5020 = vld [vmem:[#allocation10 + $0x18] sm:$0xf]
        %v5021 = vld [vmem:[#allocation10 + $0x1c] sm:$0xf]
        %v5022 = vld [vmem:[#allocation10 + $0x20] sm:$0xf]
        %v5023 = vld [vmem:[#allocation10 + $0x24] sm:$0xf]
        %v5024 = vld [vmem:[#allocation10 + $0x28] sm:$0xf]
        %v5025 = vld [vmem:[#allocation10 + $0x2c] sm:$0xf]
        %v5026 = vld [vmem:[#allocation10 + $0x30] sm:$0xf]
        %v5027 = vld [vmem:[#allocation10 + $0x34] sm:$0xf]
        %v5028 = vld [vmem:[#allocation10 + $0x38] sm:$0xf]
        %v5029 = vld [vmem:[#allocation10 + $0x3c] sm:$0xf]
        %v5030 = vld [vmem:[#allocation10 + $0x40] sm:$0xf]
        %v5031 = vld [vmem:[#allocation10 + $0x44] sm:$0xf]
        %v5032 = vld [vmem:[#allocation10 + $0x48] sm:$0xf]
        %v5033 = vld [vmem:[#allocation10 + $0x4c] sm:$0xf]
        %v5034 = vld [vmem:[#allocation10 + $0x50] sm:$0xf]
        %v5035 = vld [vmem:[#allocation10 + $0x54] sm:$0xf]
        %v5036 = vld [vmem:[#allocation10 + $0x58] sm:$0xf]
        %v5037 = vld [vmem:[#allocation10 + $0x5c] sm:$0xf]
        %v5038 = vld [vmem:[#allocation10 + $0x60] sm:$0xf]
        %v5039 = vld [vmem:[#allocation10 + $0x64] sm:$0xf]
        %v5040 = vld [vmem:[#allocation10 + $0x68] sm:$0xf]
        %v5041 = vld [vmem:[#allocation10 + $0x6c] sm:$0xf]
        %v5042 = vld [vmem:[#allocation10 + $0x70] sm:$0xf]
        %v5043 = vld [vmem:[#allocation10 + $0x74] sm:$0xf]
        %v5044 = vld [vmem:[#allocation10 + $0x78] sm:$0xf]
        %v5045 = vld [vmem:[#allocation10 + $0x7c] sm:$0xf]
        %v5046 = vld [vmem:[#allocation10 + $0x80] sm:$0xf]
        %v5047 = vld [vmem:[#allocation10 + $0x84] sm:$0xf]
        %v5048 = vld [vmem:[#allocation10 + $0x88] sm:$0xf]
        %v5049 = vld [vmem:[#allocation10 + $0x8c] sm:$0xf]
        %v5050 = vld [vmem:[#allocation10 + $0x90] sm:$0xf]
        %v5051 = vld [vmem:[#allocation10 + $0x94] sm:$0xf]
        %v5052 = vld [vmem:[#allocation10 + $0x98] sm:$0xf]
        %v5053 = vld [vmem:[#allocation10 + $0x9c] sm:$0xf]
        %v5054 = vld [vmem:[#allocation10 + $0xa0] sm:$0xf]
        %v5055 = vld [vmem:[#allocation10 + $0xa4] sm:$0xf]
        %v5056 = vld [vmem:[#allocation10 + $0xa8] sm:$0xf]
        %v5057 = vld [vmem:[#allocation10 + $0xac] sm:$0xf]
        %v5058 = vld [vmem:[#allocation10 + $0xb0] sm:$0xf]
        %v5059 = vld [vmem:[#allocation10 + $0xb4] sm:$0xf]
        %v5060 = vld [vmem:[#allocation10 + $0xb8] sm:$0xf]
        %v5061 = vld [vmem:[#allocation10 + $0xbc] sm:$0xf]
        %v5062 = vld [vmem:[#allocation10 + $0xc0] sm:$0xf]
        %v5063 = vld [vmem:[#allocation10 + $0xc4] sm:$0xf]
        %v5064 = vld [vmem:[#allocation10 + $0xc8] sm:$0xf]
        %v5065 = vld [vmem:[#allocation10 + $0xcc] sm:$0xf]
        %v5066 = vld [vmem:[#allocation10 + $0xd0] sm:$0xf]
        %v5067 = vld [vmem:[#allocation10 + $0xd4] sm:$0xf]
        %v5068 = vld [vmem:[#allocation10 + $0xd8] sm:$0xf]
        %v5069 = vld [vmem:[#allocation10 + $0xdc] sm:$0xf]
        %v5070 = vld [vmem:[#allocation10 + $0xe0] sm:$0xf]
        %v5071 = vld [vmem:[#allocation10 + $0xe4] sm:$0xf]
        %v5072 = vld [vmem:[#allocation10 + $0xe8] sm:$0xf]
        %v5073 = vld [vmem:[#allocation10 + $0xec] sm:$0xf]
        %v5074 = vld [vmem:[#allocation10 + $0xf0] sm:$0xf]
        %v5075 = vld [vmem:[#allocation10 + $0xf4] sm:$0xf]
        %v5076 = vld [vmem:[#allocation10 + $0xf8] sm:$0xf]
        %v5077 = vld [vmem:[#allocation10 + $0xfc] sm:$0xf]
        %v5078 = vld [vmem:[%s7] sm:$0x1]
        %v5079 = vpack.c.bf16 %v4954, %v4950
        %v5080 = vpack.c.bf16 %v4955, %v4951
        %v5081 = vpack.c.bf16 %v4956, %v4952
        %v5082 = vpack.c.bf16 %v4957, %v4953
        %v5083 = vpack.c.bf16 %v4962, %v4958
        %v5084 = vpack.c.bf16 %v4963, %v4959
        %v5085 = vpack.c.bf16 %v4964, %v4960
        %v5086 = vpack.c.bf16 %v4965, %v4961
        %v5087 = vpack.c.bf16 %v4970, %v4966
        %v5088 = vpack.c.bf16 %v4971, %v4967
        %v5089 = vpack.c.bf16 %v4972, %v4968
        %v5090 = vpack.c.bf16 %v4973, %v4969
        %v5091 = vpack.c.bf16 %v4978, %v4974
        %v5092 = vpack.c.bf16 %v4979, %v4975
        %v5093 = vpack.c.bf16 %v4980, %v4976
        %v5094 = vpack.c.bf16 %v4981, %v4977
        %v5095 = vpack.c.bf16 %v4986, %v4982
        %v5096 = vpack.c.bf16 %v4987, %v4983
        %v5097 = vpack.c.bf16 %v4988, %v4984
        %v5098 = vpack.c.bf16 %v4989, %v4985
        %v5099 = vpack.c.bf16 %v4994, %v4990
        %v5100 = vpack.c.bf16 %v4995, %v4991
        %v5101 = vpack.c.bf16 %v4996, %v4992
        %v5102 = vpack.c.bf16 %v4997, %v4993
        %v5103 = vpack.c.bf16 %v5002, %v4998
        %v5104 = vpack.c.bf16 %v5003, %v4999
        %v5105 = vpack.c.bf16 %v5004, %v5000
        %v5106 = vpack.c.bf16 %v5005, %v5001
        %v5107 = vpack.c.bf16 %v5010, %v5006
        %v5108 = vpack.c.bf16 %v5011, %v5007
        %v5109 = vpack.c.bf16 %v5012, %v5008
        %v5110 = vpack.c.bf16 %v5013, %v5009
        %v5112 = vperm.slane %v5078, 0
        %v5178 = vunpack.c.l.b16 %v5014
        %v5179 = vunpack.c.l.b16 %v5015
        %v5180 = vunpack.c.l.b16 %v5016
        %v5181 = vunpack.c.l.b16 %v5017
        %v5182 = vunpack.c.l.b16 %v5018
        %v5183 = vunpack.c.l.b16 %v5019
        %v5184 = vunpack.c.l.b16 %v5020
        %v5185 = vunpack.c.l.b16 %v5021
        %v5186 = vunpack.c.l.b16 %v5022
        %v5187 = vunpack.c.l.b16 %v5023
        %v5188 = vunpack.c.l.b16 %v5024
        %v5189 = vunpack.c.l.b16 %v5025
        %v5190 = vunpack.c.l.b16 %v5026
        %v5191 = vunpack.c.l.b16 %v5027
        %v5192 = vunpack.c.l.b16 %v5028
        %v5193 = vunpack.c.l.b16 %v5029
        %v5194 = vunpack.c.l.b16 %v5030
        %v5195 = vunpack.c.l.b16 %v5031
        %v5196 = vunpack.c.l.b16 %v5032
        %v5197 = vunpack.c.l.b16 %v5033
        %v5198 = vunpack.c.l.b16 %v5034
        %v5199 = vunpack.c.l.b16 %v5035
        %v5200 = vunpack.c.l.b16 %v5036
        %v5201 = vunpack.c.l.b16 %v5037
        %v5202 = vunpack.c.l.b16 %v5038
        %v5203 = vunpack.c.l.b16 %v5039
        %v5204 = vunpack.c.l.b16 %v5040
        %v5205 = vunpack.c.l.b16 %v5041
        %v5206 = vunpack.c.l.b16 %v5042
        %v5207 = vunpack.c.l.b16 %v5043
        %v5208 = vunpack.c.l.b16 %v5044
        %v5209 = vunpack.c.l.b16 %v5045
        %v5210 = vunpack.c.l.b16 %v5046
        %v5211 = vunpack.c.l.b16 %v5047
        %v5212 = vunpack.c.l.b16 %v5048
        %v5213 = vunpack.c.l.b16 %v5049
        %v5214 = vunpack.c.l.b16 %v5050
        %v5215 = vunpack.c.l.b16 %v5051
        %v5216 = vunpack.c.l.b16 %v5052
        %v5217 = vunpack.c.l.b16 %v5053
        %v5218 = vunpack.c.l.b16 %v5054
        %v5219 = vunpack.c.l.b16 %v5055
        %v5220 = vunpack.c.l.b16 %v5056
        %v5221 = vunpack.c.l.b16 %v5057
        %v5222 = vunpack.c.l.b16 %v5058
        %v5223 = vunpack.c.l.b16 %v5059
        %v5224 = vunpack.c.l.b16 %v5060
        %v5225 = vunpack.c.l.b16 %v5061
        %v5226 = vunpack.c.l.b16 %v5062
        %v5227 = vunpack.c.l.b16 %v5063
        %v5228 = vunpack.c.l.b16 %v5064
        %v5229 = vunpack.c.l.b16 %v5065
        %v5230 = vunpack.c.l.b16 %v5066
        %v5231 = vunpack.c.l.b16 %v5067
        %v5232 = vunpack.c.l.b16 %v5068
        %v5233 = vunpack.c.l.b16 %v5069
        %v5234 = vunpack.c.l.b16 %v5070
        %v5235 = vunpack.c.l.b16 %v5071
        %v5236 = vunpack.c.l.b16 %v5072
        %v5237 = vunpack.c.l.b16 %v5073
        %v5238 = vunpack.c.l.b16 %v5074
        %v5239 = vunpack.c.l.b16 %v5075
        %v5240 = vunpack.c.l.b16 %v5076
        %v5241 = vunpack.c.l.b16 %v5077
        %v5242 = vpack.c.b16 %v5179, %v5178
        %v5243 = vpack.c.b16 %v5181, %v5180
        %v5244 = vpack.c.b16 %v5183, %v5182
        %v5245 = vpack.c.b16 %v5185, %v5184
        %v5246 = vpack.c.b16 %v5187, %v5186
        %v5247 = vpack.c.b16 %v5189, %v5188
        %v5248 = vpack.c.b16 %v5191, %v5190
        %v5249 = vpack.c.b16 %v5193, %v5192
        %v5250 = vpack.c.b16 %v5195, %v5194
        %v5251 = vpack.c.b16 %v5197, %v5196
        %v5252 = vpack.c.b16 %v5199, %v5198
        %v5253 = vpack.c.b16 %v5201, %v5200
        %v5254 = vpack.c.b16 %v5203, %v5202
        %v5255 = vpack.c.b16 %v5205, %v5204
        %v5256 = vpack.c.b16 %v5207, %v5206
        %v5257 = vpack.c.b16 %v5209, %v5208
        %v5258 = vpack.c.b16 %v5211, %v5210
        %v5259 = vpack.c.b16 %v5213, %v5212
        %v5260 = vpack.c.b16 %v5215, %v5214
        %v5261 = vpack.c.b16 %v5217, %v5216
        %v5262 = vpack.c.b16 %v5219, %v5218
        %v5263 = vpack.c.b16 %v5221, %v5220
        %v5264 = vpack.c.b16 %v5223, %v5222
        %v5265 = vpack.c.b16 %v5225, %v5224
        %v5266 = vpack.c.b16 %v5227, %v5226
        %v5267 = vpack.c.b16 %v5229, %v5228
        %v5268 = vpack.c.b16 %v5231, %v5230
        %v5269 = vpack.c.b16 %v5233, %v5232
        %v5270 = vpack.c.b16 %v5235, %v5234
        %v5271 = vpack.c.b16 %v5237, %v5236
        %v5272 = vpack.c.b16 %v5239, %v5238
        %v5273 = vpack.c.b16 %v5241, %v5240
        %5306 = vmatpush.bf16.msra.mxu0 %v5249
        %5307 = vmatpush.bf16.msra.mxu0 %v5248
        %5308 = vmatpush.bf16.msra.mxu0 %v5247
        %5309 = vmatpush.bf16.msra.mxu0 %v5246
        %5310 = vmatpush.bf16.msra.mxu0 %v5245
        %5311 = vmatpush.bf16.msra.mxu0 %v5244
        %5312 = vmatpush.bf16.msra.mxu0 %v5243
        %5313 = vmatpush.bf16.msra.mxu0 %v5242
        %5314 = vmatmul.bf16.gmra.mxu0 %v5079
        %v5315 = vpop.f32.mrf.mxu0
        %v5316 = vadd.f32 %v5112, %v5315
        %v5317 = vpop.f32.mrf.mxu0
        %v5318 = vadd.f32 %v5112, %v5317
        %5319 = vmatmul.bf16.gmra.mxu0 %v5083
        %v5320 = vpop.f32.mrf.mxu0
        %v5321 = vadd.f32 %v5112, %v5320
        %v5322 = vpop.f32.mrf.mxu0
        %v5323 = vadd.f32 %v5112, %v5322
        %5324 = vmatmul.bf16.gmra.mxu0 %v5087
        %v5325 = vpop.f32.mrf.mxu0
        %v5326 = vadd.f32 %v5112, %v5325
        %v5327 = vpop.f32.mrf.mxu0
        %v5328 = vadd.f32 %v5112, %v5327
        %5329 = vmatmul.bf16.gmra.mxu0 %v5091
        %v5330 = vpop.f32.mrf.mxu0
        %v5331 = vadd.f32 %v5112, %v5330
        %v5332 = vpop.f32.mrf.mxu0
        %v5333 = vadd.f32 %v5112, %v5332
        %5334 = vmatmul.bf16.gmra.mxu0 %v5095
        %v5335 = vpop.f32.mrf.mxu0
        %v5336 = vadd.f32 %v5112, %v5335
        %v5337 = vpop.f32.mrf.mxu0
        %v5338 = vadd.f32 %v5112, %v5337
        %5339 = vmatmul.bf16.gmra.mxu0 %v5099
        %v5340 = vpop.f32.mrf.mxu0
        %v5341 = vadd.f32 %v5112, %v5340
        %v5342 = vpop.f32.mrf.mxu0
        %v5343 = vadd.f32 %v5112, %v5342
        %5344 = vmatmul.bf16.gmra.mxu0 %v5103
        %v5345 = vpop.f32.mrf.mxu0
        %v5346 = vadd.f32 %v5112, %v5345
        %v5347 = vpop.f32.mrf.mxu0
        %v5348 = vadd.f32 %v5112, %v5347
        %5349 = vmatmul.bf16.gmra.mxu0 %v5107
        %v5350 = vpop.f32.mrf.mxu0
        %v5351 = vadd.f32 %v5112, %v5350
        %v5352 = vpop.f32.mrf.mxu0
        %v5353 = vadd.f32 %v5112, %v5352
        %5354 = vdwg.mxu0
        %5355 = vmatpush.bf16.msra.mxu0 %v5257
        %5356 = vmatpush.bf16.msra.mxu0 %v5256
        %5357 = vmatpush.bf16.msra.mxu0 %v5255
        %5358 = vmatpush.bf16.msra.mxu0 %v5254
        %5359 = vmatpush.bf16.msra.mxu0 %v5253
        %5360 = vmatpush.bf16.msra.mxu0 %v5252
        %5361 = vmatpush.bf16.msra.mxu0 %v5251
        %5362 = vmatpush.bf16.msra.mxu0 %v5250
        %5363 = vmatmul.bf16.gmra.mxu0 %v5080
        %v5364 = vpop.f32.mrf.mxu0
        %v5365 = vadd.f32 %v5316, %v5364
        %v5366 = vpop.f32.mrf.mxu0
        %v5367 = vadd.f32 %v5318, %v5366
        %5368 = vmatmul.bf16.gmra.mxu0 %v5084
        %v5369 = vpop.f32.mrf.mxu0
        %v5370 = vadd.f32 %v5321, %v5369
        %v5371 = vpop.f32.mrf.mxu0
        %v5372 = vadd.f32 %v5323, %v5371
        %5373 = vmatmul.bf16.gmra.mxu0 %v5088
        %v5374 = vpop.f32.mrf.mxu0
        %v5375 = vadd.f32 %v5326, %v5374
        %v5376 = vpop.f32.mrf.mxu0
        %v5377 = vadd.f32 %v5328, %v5376
        %5378 = vmatmul.bf16.gmra.mxu0 %v5092
        %v5379 = vpop.f32.mrf.mxu0
        %v5380 = vadd.f32 %v5331, %v5379
        %v5381 = vpop.f32.mrf.mxu0
        %v5382 = vadd.f32 %v5333, %v5381
        %5383 = vmatmul.bf16.gmra.mxu0 %v5096
        %v5384 = vpop.f32.mrf.mxu0
        %v5385 = vadd.f32 %v5336, %v5384
        %v5386 = vpop.f32.mrf.mxu0
        %v5387 = vadd.f32 %v5338, %v5386
        %5388 = vmatmul.bf16.gmra.mxu0 %v5100
        %v5389 = vpop.f32.mrf.mxu0
        %v5390 = vadd.f32 %v5341, %v5389
        %v5391 = vpop.f32.mrf.mxu0
        %v5392 = vadd.f32 %v5343, %v5391
        %5393 = vmatmul.bf16.gmra.mxu0 %v5104
        %v5394 = vpop.f32.mrf.mxu0
        %v5395 = vadd.f32 %v5346, %v5394
        %v5396 = vpop.f32.mrf.mxu0
        %v5397 = vadd.f32 %v5348, %v5396
        %5398 = vmatmul.bf16.gmra.mxu0 %v5108
        %v5399 = vpop.f32.mrf.mxu0
        %v5400 = vadd.f32 %v5351, %v5399
        %v5401 = vpop.f32.mrf.mxu0
        %v5402 = vadd.f32 %v5353, %v5401
        %5403 = vdwg.mxu0
        %5404 = vmatpush.bf16.msra.mxu0 %v5265
        %5405 = vmatpush.bf16.msra.mxu0 %v5264
        %5406 = vmatpush.bf16.msra.mxu0 %v5263
        %5407 = vmatpush.bf16.msra.mxu0 %v5262
        %5408 = vmatpush.bf16.msra.mxu0 %v5261
        %5409 = vmatpush.bf16.msra.mxu0 %v5260
        %5410 = vmatpush.bf16.msra.mxu0 %v5259
        %5411 = vmatpush.bf16.msra.mxu0 %v5258
        %5412 = vmatmul.bf16.gmra.mxu0 %v5081
        %v5413 = vpop.f32.mrf.mxu0
        %v5414 = vadd.f32 %v5365, %v5413
        %v5415 = vpop.f32.mrf.mxu0
        %v5416 = vadd.f32 %v5367, %v5415
        %5417 = vmatmul.bf16.gmra.mxu0 %v5085
        %v5418 = vpop.f32.mrf.mxu0
        %v5419 = vadd.f32 %v5370, %v5418
        %v5420 = vpop.f32.mrf.mxu0
        %v5421 = vadd.f32 %v5372, %v5420
        %5422 = vmatmul.bf16.gmra.mxu0 %v5089
        %v5423 = vpop.f32.mrf.mxu0
        %v5424 = vadd.f32 %v5375, %v5423
        %v5425 = vpop.f32.mrf.mxu0
        %v5426 = vadd.f32 %v5377, %v5425
        %5427 = vmatmul.bf16.gmra.mxu0 %v5093
        %v5428 = vpop.f32.mrf.mxu0
        %v5429 = vadd.f32 %v5380, %v5428
        %v5430 = vpop.f32.mrf.mxu0
        %v5431 = vadd.f32 %v5382, %v5430
        %5432 = vmatmul.bf16.gmra.mxu0 %v5097
        %v5433 = vpop.f32.mrf.mxu0
        %v5434 = vadd.f32 %v5385, %v5433
        %v5435 = vpop.f32.mrf.mxu0
        %v5436 = vadd.f32 %v5387, %v5435
        %5437 = vmatmul.bf16.gmra.mxu0 %v5101
        %v5438 = vpop.f32.mrf.mxu0
        %v5439 = vadd.f32 %v5390, %v5438
        %v5440 = vpop.f32.mrf.mxu0
        %v5441 = vadd.f32 %v5392, %v5440
        %5442 = vmatmul.bf16.gmra.mxu0 %v5105
        %v5443 = vpop.f32.mrf.mxu0
        %v5444 = vadd.f32 %v5395, %v5443
        %v5445 = vpop.f32.mrf.mxu0
        %v5446 = vadd.f32 %v5397, %v5445
        %5447 = vmatmul.bf16.gmra.mxu0 %v5109
        %v5448 = vpop.f32.mrf.mxu0
        %v5449 = vadd.f32 %v5400, %v5448
        %v5450 = vpop.f32.mrf.mxu0
        %v5451 = vadd.f32 %v5402, %v5450
        %5452 = vdwg.mxu0
        %5453 = vmatpush.bf16.msra.mxu0 %v5273
        %5454 = vmatpush.bf16.msra.mxu0 %v5272
        %5455 = vmatpush.bf16.msra.mxu0 %v5271
        %5456 = vmatpush.bf16.msra.mxu0 %v5270
        %5457 = vmatpush.bf16.msra.mxu0 %v5269
        %5458 = vmatpush.bf16.msra.mxu0 %v5268
        %5459 = vmatpush.bf16.msra.mxu0 %v5267
        %5460 = vmatpush.bf16.msra.mxu0 %v5266
        %5461 = vmatmul.bf16.gmra.mxu0 %v5082
        %v5462 = vpop.f32.mrf.mxu0
        %v5463 = vadd.f32 %v5414, %v5462
        %v5464 = vpop.f32.mrf.mxu0
        %v5465 = vadd.f32 %v5416, %v5464
        %5466 = vmatmul.bf16.gmra.mxu0 %v5086
        %v5467 = vpop.f32.mrf.mxu0
        %v5468 = vadd.f32 %v5419, %v5467
        %v5469 = vpop.f32.mrf.mxu0
        %v5470 = vadd.f32 %v5421, %v5469
        %5471 = vmatmul.bf16.gmra.mxu0 %v5090
        %v5472 = vpop.f32.mrf.mxu0
        %v5473 = vadd.f32 %v5424, %v5472
        %v5474 = vpop.f32.mrf.mxu0
        %v5475 = vadd.f32 %v5426, %v5474
        %5476 = vmatmul.bf16.gmra.mxu0 %v5094
        %v5477 = vpop.f32.mrf.mxu0
        %v5478 = vadd.f32 %v5429, %v5477
        %v5479 = vpop.f32.mrf.mxu0
        %v5480 = vadd.f32 %v5431, %v5479
        %5481 = vmatmul.bf16.gmra.mxu0 %v5098
        %v5482 = vpop.f32.mrf.mxu0
        %v5483 = vadd.f32 %v5434, %v5482
        %v5484 = vpop.f32.mrf.mxu0
        %v5485 = vadd.f32 %v5436, %v5484
        %5486 = vmatmul.bf16.gmra.mxu0 %v5102
        %v5487 = vpop.f32.mrf.mxu0
        %v5488 = vadd.f32 %v5439, %v5487
        %v5489 = vpop.f32.mrf.mxu0
        %v5490 = vadd.f32 %v5441, %v5489
        %5491 = vmatmul.bf16.gmra.mxu0 %v5106
        %v5492 = vpop.f32.mrf.mxu0
        %v5493 = vadd.f32 %v5444, %v5492
        %v5494 = vpop.f32.mrf.mxu0
        %v5495 = vadd.f32 %v5446, %v5494
        %5496 = vmatmul.bf16.gmra.mxu0 %v5110
        %v5497 = vpop.f32.mrf.mxu0
        %v5498 = vadd.f32 %v5449, %v5497
        %v5499 = vpop.f32.mrf.mxu0
        %v5500 = vadd.f32 %v5451, %v5499
        %5501 = vdwg.mxu0
        %v5502 = vadd.f32 %v5463, %v3614
        %v5503 = vadd.f32 %v5465, %v3615
        %v5504 = vadd.f32 %v5468, %v3616
        %v5505 = vadd.f32 %v5470, %v3617
        %v5506 = vadd.f32 %v5473, %v3618
        %v5507 = vadd.f32 %v5475, %v3619
        %v5508 = vadd.f32 %v5478, %v3620
        %v5509 = vadd.f32 %v5480, %v3621
        %v5510 = vadd.f32 %v5483, %v3622
        %v5511 = vadd.f32 %v5485, %v3623
        %v5512 = vadd.f32 %v5488, %v3624
        %v5513 = vadd.f32 %v5490, %v3625
        %v5514 = vadd.f32 %v5493, %v3626
        %v5515 = vadd.f32 %v5495, %v3627
        %v5516 = vadd.f32 %v5498, %v3628
        %v5517 = vadd.f32 %v5500, %v3629
        %5518 = vadd.xlane.f32.xlu0 %v5502
        %v5519 = vpop.xlane.xlu0 %5518
        %5520 = vadd.xlane.f32.xlu0 %v5503
        %v5521 = vpop.xlane.xlu0 %5520
        %5522 = vadd.xlane.f32.xlu0 %v5504
        %v5523 = vpop.xlane.xlu0 %5522
        %5524 = vadd.xlane.f32.xlu0 %v5505
        %v5525 = vpop.xlane.xlu0 %5524
        %5526 = vadd.xlane.f32.xlu0 %v5506
        %v5527 = vpop.xlane.xlu0 %5526
        %5528 = vadd.xlane.f32.xlu0 %v5507
        %v5529 = vpop.xlane.xlu0 %5528
        %5530 = vadd.xlane.f32.xlu0 %v5508
        %v5531 = vpop.xlane.xlu0 %5530
        %5532 = vadd.xlane.f32.xlu0 %v5509
        %v5533 = vpop.xlane.xlu0 %5532
        %5534 = vadd.xlane.f32.xlu0 %v5510
        %v5535 = vpop.xlane.xlu0 %5534
        %5536 = vadd.xlane.f32.xlu0 %v5511
        %v5537 = vpop.xlane.xlu0 %5536
        %5538 = vadd.xlane.f32.xlu0 %v5512
        %v5539 = vpop.xlane.xlu0 %5538
        %5540 = vadd.xlane.f32.xlu0 %v5513
        %v5541 = vpop.xlane.xlu0 %5540
        %5542 = vadd.xlane.f32.xlu0 %v5514
        %v5543 = vpop.xlane.xlu0 %5542
        %5544 = vadd.xlane.f32.xlu0 %v5515
        %v5545 = vpop.xlane.xlu0 %5544
        %5546 = vadd.xlane.f32.xlu0 %v5516
        %v5547 = vpop.xlane.xlu0 %5546
        %5548 = vadd.xlane.f32.xlu0 %v5517
        %v5549 = vpop.xlane.xlu0 %5548
        %v5550 = vmul.f32 %v5519, %v493
        %v5551 = vmul.f32 %v5521, %v493
        %v5552 = vmul.f32 %v5523, %v493
        %v5553 = vmul.f32 %v5525, %v493
        %v5554 = vmul.f32 %v5527, %v493
        %v5555 = vmul.f32 %v5529, %v493
        %v5556 = vmul.f32 %v5531, %v493
        %v5557 = vmul.f32 %v5533, %v493
        %v5558 = vmul.f32 %v5535, %v493
        %v5559 = vmul.f32 %v5537, %v493
        %v5560 = vmul.f32 %v5539, %v493
        %v5561 = vmul.f32 %v5541, %v493
        %v5562 = vmul.f32 %v5543, %v493
        %v5563 = vmul.f32 %v5545, %v493
        %v5564 = vmul.f32 %v5547, %v493
        %v5565 = vmul.f32 %v5549, %v493
        %v5566 = vmul.f32 %v5502, %v5502
        %v5567 = vmul.f32 %v5503, %v5503
        %v5568 = vmul.f32 %v5504, %v5504
        %v5569 = vmul.f32 %v5505, %v5505
        %v5570 = vmul.f32 %v5506, %v5506
        %v5571 = vmul.f32 %v5507, %v5507
        %v5572 = vmul.f32 %v5508, %v5508
        %v5573 = vmul.f32 %v5509, %v5509
        %v5574 = vmul.f32 %v5510, %v5510
        %v5575 = vmul.f32 %v5511, %v5511
        %v5576 = vmul.f32 %v5512, %v5512
        %v5577 = vmul.f32 %v5513, %v5513
        %v5578 = vmul.f32 %v5514, %v5514
        %v5579 = vmul.f32 %v5515, %v5515
        %v5580 = vmul.f32 %v5516, %v5516
        %v5581 = vmul.f32 %v5517, %v5517
        %5582 = vadd.xlane.f32.xlu0 %v5566
        %v5583 = vpop.xlane.xlu0 %5582
        %5584 = vadd.xlane.f32.xlu0 %v5567
        %v5585 = vpop.xlane.xlu0 %5584
        %5586 = vadd.xlane.f32.xlu0 %v5568
        %v5587 = vpop.xlane.xlu0 %5586
        %5588 = vadd.xlane.f32.xlu0 %v5569
        %v5589 = vpop.xlane.xlu0 %5588
        %5590 = vadd.xlane.f32.xlu0 %v5570
        %v5591 = vpop.xlane.xlu0 %5590
        %5592 = vadd.xlane.f32.xlu0 %v5571
        %v5593 = vpop.xlane.xlu0 %5592
        %5594 = vadd.xlane.f32.xlu0 %v5572
        %v5595 = vpop.xlane.xlu0 %5594
        %5596 = vadd.xlane.f32.xlu0 %v5573
        %v5597 = vpop.xlane.xlu0 %5596
        %5598 = vadd.xlane.f32.xlu0 %v5574
        %v5599 = vpop.xlane.xlu0 %5598
        %5600 = vadd.xlane.f32.xlu0 %v5575
        %v5601 = vpop.xlane.xlu0 %5600
        %5602 = vadd.xlane.f32.xlu0 %v5576
        %v5603 = vpop.xlane.xlu0 %5602
        %5604 = vadd.xlane.f32.xlu0 %v5577
        %v5605 = vpop.xlane.xlu0 %5604
        %5606 = vadd.xlane.f32.xlu0 %v5578
        %v5607 = vpop.xlane.xlu0 %5606
        %5608 = vadd.xlane.f32.xlu0 %v5579
        %v5609 = vpop.xlane.xlu0 %5608
        %5610 = vadd.xlane.f32.xlu0 %v5580
        %v5611 = vpop.xlane.xlu0 %5610
        %5612 = vadd.xlane.f32.xlu0 %v5581
        %v5613 = vpop.xlane.xlu0 %5612
        %v5614 = vmul.f32 %v5583, %v493
        %v5615 = vmul.f32 %v5585, %v493
        %v5616 = vmul.f32 %v5587, %v493
        %v5617 = vmul.f32 %v5589, %v493
        %v5618 = vmul.f32 %v5591, %v493
        %v5619 = vmul.f32 %v5593, %v493
        %v5620 = vmul.f32 %v5595, %v493
        %v5621 = vmul.f32 %v5597, %v493
        %v5622 = vmul.f32 %v5599, %v493
        %v5623 = vmul.f32 %v5601, %v493
        %v5624 = vmul.f32 %v5603, %v493
        %v5625 = vmul.f32 %v5605, %v493
        %v5626 = vmul.f32 %v5607, %v493
        %v5627 = vmul.f32 %v5609, %v493
        %v5628 = vmul.f32 %v5611, %v493
        %v5629 = vmul.f32 %v5613, %v493
        %v5630 = vmul.f32 %v5550, %v5550
        %v5631 = vmul.f32 %v5551, %v5551
        %v5632 = vmul.f32 %v5552, %v5552
        %v5633 = vmul.f32 %v5553, %v5553
        %v5634 = vmul.f32 %v5554, %v5554
        %v5635 = vmul.f32 %v5555, %v5555
        %v5636 = vmul.f32 %v5556, %v5556
        %v5637 = vmul.f32 %v5557, %v5557
        %v5638 = vmul.f32 %v5558, %v5558
        %v5639 = vmul.f32 %v5559, %v5559
        %v5640 = vmul.f32 %v5560, %v5560
        %v5641 = vmul.f32 %v5561, %v5561
        %v5642 = vmul.f32 %v5562, %v5562
        %v5643 = vmul.f32 %v5563, %v5563
        %v5644 = vmul.f32 %v5564, %v5564
        %v5645 = vmul.f32 %v5565, %v5565
        %v5646 = vsub.f32 %v5614, %v5630
        %v5647 = vsub.f32 %v5615, %v5631
        %v5648 = vsub.f32 %v5616, %v5632
        %v5649 = vsub.f32 %v5617, %v5633
        %v5650 = vsub.f32 %v5618, %v5634
        %v5651 = vsub.f32 %v5619, %v5635
        %v5652 = vsub.f32 %v5620, %v5636
        %v5653 = vsub.f32 %v5621, %v5637
        %v5654 = vsub.f32 %v5622, %v5638
        %v5655 = vsub.f32 %v5623, %v5639
        %v5656 = vsub.f32 %v5624, %v5640
        %v5657 = vsub.f32 %v5625, %v5641
        %v5658 = vsub.f32 %v5626, %v5642
        %v5659 = vsub.f32 %v5627, %v5643
        %v5660 = vsub.f32 %v5628, %v5644
        %v5661 = vsub.f32 %v5629, %v5645
        %v5662 = vmax.f32 %v5646, 0.0
        %v5663 = vmax.f32 %v5647, 0.0
        %v5664 = vmax.f32 %v5648, 0.0
        %v5665 = vmax.f32 %v5649, 0.0
        %v5666 = vmax.f32 %v5650, 0.0
        %v5667 = vmax.f32 %v5651, 0.0
        %v5668 = vmax.f32 %v5652, 0.0
        %v5669 = vmax.f32 %v5653, 0.0
        %v5670 = vmax.f32 %v5654, 0.0
        %v5671 = vmax.f32 %v5655, 0.0
        %v5672 = vmax.f32 %v5656, 0.0
        %v5673 = vmax.f32 %v5657, 0.0
        %v5674 = vmax.f32 %v5658, 0.0
        %v5675 = vmax.f32 %v5659, 0.0
        %v5676 = vmax.f32 %v5660, 0.0
        %v5677 = vmax.f32 %v5661, 0.0
        %v5678 = vsub.f32 %v5502, %v5550
        %v5679 = vsub.f32 %v5503, %v5551
        %v5680 = vsub.f32 %v5504, %v5552
        %v5681 = vsub.f32 %v5505, %v5553
        %v5682 = vsub.f32 %v5506, %v5554
        %v5683 = vsub.f32 %v5507, %v5555
        %v5684 = vsub.f32 %v5508, %v5556
        %v5685 = vsub.f32 %v5509, %v5557
        %v5686 = vsub.f32 %v5510, %v5558
        %v5687 = vsub.f32 %v5511, %v5559
        %v5688 = vsub.f32 %v5512, %v5560
        %v5689 = vsub.f32 %v5513, %v5561
        %v5690 = vsub.f32 %v5514, %v5562
        %v5691 = vsub.f32 %v5515, %v5563
        %v5692 = vsub.f32 %v5516, %v5564
        %v5693 = vsub.f32 %v5517, %v5565
        %v5694 = vadd.f32 %v5662, 1e-05
        %v5695 = vadd.f32 %v5663, 1e-05
        %v5696 = vadd.f32 %v5664, 1e-05
        %v5697 = vadd.f32 %v5665, 1e-05
        %v5698 = vadd.f32 %v5666, 1e-05
        %v5699 = vadd.f32 %v5667, 1e-05
        %v5700 = vadd.f32 %v5668, 1e-05
        %v5701 = vadd.f32 %v5669, 1e-05
        %v5702 = vadd.f32 %v5670, 1e-05
        %v5703 = vadd.f32 %v5671, 1e-05
        %v5704 = vadd.f32 %v5672, 1e-05
        %v5705 = vadd.f32 %v5673, 1e-05
        %v5706 = vadd.f32 %v5674, 1e-05
        %v5707 = vadd.f32 %v5675, 1e-05
        %v5708 = vadd.f32 %v5676, 1e-05
        %v5709 = vadd.f32 %v5677, 1e-05
        %v5710 = vrsqrt.pop %v5694
        %v5711 = vmul.f32 %v5710, %v5694
        %v5712 = vmul.f32 %v5711, %v5710
        %v5713 = vmul.f32 0.5, %v5712
        %v5714 = vsub.f32 1.5, %v5713
        %v5715 = vmul.f32 %v5710, %v5714
        %vm5716 = vweird.f32 %v5694
        %vm5717 = vweird.f32 %v5710
        %vm5718 = vmor %vm5716, %vm5717
        %v5719 = vsel %vm5718, %v5710, %v5715
        %v5720 = vrsqrt.pop %v5695
        %v5721 = vmul.f32 %v5720, %v5695
        %v5722 = vmul.f32 %v5721, %v5720
        %v5723 = vmul.f32 0.5, %v5722
        %v5724 = vsub.f32 1.5, %v5723
        %v5725 = vmul.f32 %v5720, %v5724
        %vm5726 = vweird.f32 %v5695
        %vm5727 = vweird.f32 %v5720
        %vm5728 = vmor %vm5726, %vm5727
        %v5729 = vsel %vm5728, %v5720, %v5725
        %v5730 = vrsqrt.pop %v5696
        %v5731 = vmul.f32 %v5730, %v5696
        %v5732 = vmul.f32 %v5731, %v5730
        %v5733 = vmul.f32 0.5, %v5732
        %v5734 = vsub.f32 1.5, %v5733
        %v5735 = vmul.f32 %v5730, %v5734
        %vm5736 = vweird.f32 %v5696
        %vm5737 = vweird.f32 %v5730
        %vm5738 = vmor %vm5736, %vm5737
        %v5739 = vsel %vm5738, %v5730, %v5735
        %v5740 = vrsqrt.pop %v5697
        %v5741 = vmul.f32 %v5740, %v5697
        %v5742 = vmul.f32 %v5741, %v5740
        %v5743 = vmul.f32 0.5, %v5742
        %v5744 = vsub.f32 1.5, %v5743
        %v5745 = vmul.f32 %v5740, %v5744
        %vm5746 = vweird.f32 %v5697
        %vm5747 = vweird.f32 %v5740
        %vm5748 = vmor %vm5746, %vm5747
        %v5749 = vsel %vm5748, %v5740, %v5745
        %v5750 = vrsqrt.pop %v5698
        %v5751 = vmul.f32 %v5750, %v5698
        %v5752 = vmul.f32 %v5751, %v5750
        %v5753 = vmul.f32 0.5, %v5752
        %v5754 = vsub.f32 1.5, %v5753
        %v5755 = vmul.f32 %v5750, %v5754
        %vm5756 = vweird.f32 %v5698
        %vm5757 = vweird.f32 %v5750
        %vm5758 = vmor %vm5756, %vm5757
        %v5759 = vsel %vm5758, %v5750, %v5755
        %v5760 = vrsqrt.pop %v5699
        %v5761 = vmul.f32 %v5760, %v5699
        %v5762 = vmul.f32 %v5761, %v5760
        %v5763 = vmul.f32 0.5, %v5762
        %v5764 = vsub.f32 1.5, %v5763
        %v5765 = vmul.f32 %v5760, %v5764
        %vm5766 = vweird.f32 %v5699
        %vm5767 = vweird.f32 %v5760
        %vm5768 = vmor %vm5766, %vm5767
        %v5769 = vsel %vm5768, %v5760, %v5765
        %v5770 = vrsqrt.pop %v5700
        %v5771 = vmul.f32 %v5770, %v5700
        %v5772 = vmul.f32 %v5771, %v5770
        %v5773 = vmul.f32 0.5, %v5772
        %v5774 = vsub.f32 1.5, %v5773
        %v5775 = vmul.f32 %v5770, %v5774
        %vm5776 = vweird.f32 %v5700
        %vm5777 = vweird.f32 %v5770
        %vm5778 = vmor %vm5776, %vm5777
        %v5779 = vsel %vm5778, %v5770, %v5775
        %v5780 = vrsqrt.pop %v5701
        %v5781 = vmul.f32 %v5780, %v5701
        %v5782 = vmul.f32 %v5781, %v5780
        %v5783 = vmul.f32 0.5, %v5782
        %v5784 = vsub.f32 1.5, %v5783
        %v5785 = vmul.f32 %v5780, %v5784
        %vm5786 = vweird.f32 %v5701
        %vm5787 = vweird.f32 %v5780
        %vm5788 = vmor %vm5786, %vm5787
        %v5789 = vsel %vm5788, %v5780, %v5785
        %v5790 = vrsqrt.pop %v5702
        %v5791 = vmul.f32 %v5790, %v5702
        %v5792 = vmul.f32 %v5791, %v5790
        %v5793 = vmul.f32 0.5, %v5792
        %v5794 = vsub.f32 1.5, %v5793
        %v5795 = vmul.f32 %v5790, %v5794
        %vm5796 = vweird.f32 %v5702
        %vm5797 = vweird.f32 %v5790
        %vm5798 = vmor %vm5796, %vm5797
        %v5799 = vsel %vm5798, %v5790, %v5795
        %v5800 = vrsqrt.pop %v5703
        %v5801 = vmul.f32 %v5800, %v5703
        %v5802 = vmul.f32 %v5801, %v5800
        %v5803 = vmul.f32 0.5, %v5802
        %v5804 = vsub.f32 1.5, %v5803
        %v5805 = vmul.f32 %v5800, %v5804
        %vm5806 = vweird.f32 %v5703
        %vm5807 = vweird.f32 %v5800
        %vm5808 = vmor %vm5806, %vm5807
        %v5809 = vsel %vm5808, %v5800, %v5805
        %v5810 = vrsqrt.pop %v5704
        %v5811 = vmul.f32 %v5810, %v5704
        %v5812 = vmul.f32 %v5811, %v5810
        %v5813 = vmul.f32 0.5, %v5812
        %v5814 = vsub.f32 1.5, %v5813
        %v5815 = vmul.f32 %v5810, %v5814
        %vm5816 = vweird.f32 %v5704
        %vm5817 = vweird.f32 %v5810
        %vm5818 = vmor %vm5816, %vm5817
        %v5819 = vsel %vm5818, %v5810, %v5815
        %v5820 = vrsqrt.pop %v5705
        %v5821 = vmul.f32 %v5820, %v5705
        %v5822 = vmul.f32 %v5821, %v5820
        %v5823 = vmul.f32 0.5, %v5822
        %v5824 = vsub.f32 1.5, %v5823
        %v5825 = vmul.f32 %v5820, %v5824
        %vm5826 = vweird.f32 %v5705
        %vm5827 = vweird.f32 %v5820
        %vm5828 = vmor %vm5826, %vm5827
        %v5829 = vsel %vm5828, %v5820, %v5825
        %v5830 = vrsqrt.pop %v5706
        %v5831 = vmul.f32 %v5830, %v5706
        %v5832 = vmul.f32 %v5831, %v5830
        %v5833 = vmul.f32 0.5, %v5832
        %v5834 = vsub.f32 1.5, %v5833
        %v5835 = vmul.f32 %v5830, %v5834
        %vm5836 = vweird.f32 %v5706
        %vm5837 = vweird.f32 %v5830
        %vm5838 = vmor %vm5836, %vm5837
        %v5839 = vsel %vm5838, %v5830, %v5835
        %v5840 = vrsqrt.pop %v5707
        %v5841 = vmul.f32 %v5840, %v5707
        %v5842 = vmul.f32 %v5841, %v5840
        %v5843 = vmul.f32 0.5, %v5842
        %v5844 = vsub.f32 1.5, %v5843
        %v5845 = vmul.f32 %v5840, %v5844
        %vm5846 = vweird.f32 %v5707
        %vm5847 = vweird.f32 %v5840
        %vm5848 = vmor %vm5846, %vm5847
        %v5849 = vsel %vm5848, %v5840, %v5845
        %v5850 = vrsqrt.pop %v5708
        %v5851 = vmul.f32 %v5850, %v5708
        %v5852 = vmul.f32 %v5851, %v5850
        %v5853 = vmul.f32 0.5, %v5852
        %v5854 = vsub.f32 1.5, %v5853
        %v5855 = vmul.f32 %v5850, %v5854
        %vm5856 = vweird.f32 %v5708
        %vm5857 = vweird.f32 %v5850
        %vm5858 = vmor %vm5856, %vm5857
        %v5859 = vsel %vm5858, %v5850, %v5855
        %v5860 = vrsqrt.pop %v5709
        %v5861 = vmul.f32 %v5860, %v5709
        %v5862 = vmul.f32 %v5861, %v5860
        %v5863 = vmul.f32 0.5, %v5862
        %v5864 = vsub.f32 1.5, %v5863
        %v5865 = vmul.f32 %v5860, %v5864
        %vm5866 = vweird.f32 %v5709
        %vm5867 = vweird.f32 %v5860
        %vm5868 = vmor %vm5866, %vm5867
        %v5869 = vsel %vm5868, %v5860, %v5865
        %v5870 = vmul.f32 %v5678, %v5719
        %v5871 = vmul.f32 %v5679, %v5729
        %v5872 = vmul.f32 %v5680, %v5739
        %v5873 = vmul.f32 %v5681, %v5749
        %v5874 = vmul.f32 %v5682, %v5759
        %v5875 = vmul.f32 %v5683, %v5769
        %v5876 = vmul.f32 %v5684, %v5779
        %v5877 = vmul.f32 %v5685, %v5789
        %v5878 = vmul.f32 %v5686, %v5799
        %v5879 = vmul.f32 %v5687, %v5809
        %v5880 = vmul.f32 %v5688, %v5819
        %v5881 = vmul.f32 %v5689, %v5829
        %v5882 = vmul.f32 %v5690, %v5839
        %v5883 = vmul.f32 %v5691, %v5849
        %v5884 = vmul.f32 %v5692, %v5859
        %v5885 = vmul.f32 %v5693, %v5869
        %v5886 = vperm.slane %v454, 4
        %v5887 = vmul.f32 %v5886, %v5870
        %v5888 = vmul.f32 %v5886, %v5871
        %v5889 = vmul.f32 %v5886, %v5872
        %v5890 = vmul.f32 %v5886, %v5873
        %v5891 = vmul.f32 %v5886, %v5874
        %v5892 = vmul.f32 %v5886, %v5875
        %v5893 = vmul.f32 %v5886, %v5876
        %v5894 = vmul.f32 %v5886, %v5877
        %v5895 = vmul.f32 %v5886, %v5878
        %v5896 = vmul.f32 %v5886, %v5879
        %v5897 = vmul.f32 %v5886, %v5880
        %v5898 = vmul.f32 %v5886, %v5881
        %v5899 = vmul.f32 %v5886, %v5882
        %v5900 = vmul.f32 %v5886, %v5883
        %v5901 = vmul.f32 %v5886, %v5884
        %v5902 = vmul.f32 %v5886, %v5885
        %v5903 = vperm.slane %v454, 5
        %v5904 = vadd.f32 %v5887, %v5903
        %v5905 = vadd.f32 %v5888, %v5903
        %v5906 = vadd.f32 %v5889, %v5903
        %v5907 = vadd.f32 %v5890, %v5903
        %v5908 = vadd.f32 %v5891, %v5903
        %v5909 = vadd.f32 %v5892, %v5903
        %v5910 = vadd.f32 %v5893, %v5903
        %v5911 = vadd.f32 %v5894, %v5903
        %v5912 = vadd.f32 %v5895, %v5903
        %v5913 = vadd.f32 %v5896, %v5903
        %v5914 = vadd.f32 %v5897, %v5903
        %v5915 = vadd.f32 %v5898, %v5903
        %v5916 = vadd.f32 %v5899, %v5903
        %v5917 = vadd.f32 %v5900, %v5903
        %v5918 = vadd.f32 %v5901, %v5903
        %v5919 = vadd.f32 %v5902, %v5903
        %v5920 = vpack.c.bf16 %v5905, %v5904
        %v5921 = vpack.c.bf16 %v5907, %v5906
        %v5922 = vpack.c.bf16 %v5909, %v5908
        %v5923 = vpack.c.bf16 %v5911, %v5910
        %v5924 = vpack.c.bf16 %v5913, %v5912
        %v5925 = vpack.c.bf16 %v5915, %v5914
        %v5926 = vpack.c.bf16 %v5917, %v5916
        %v5927 = vpack.c.bf16 %v5919, %v5918
        %5928 = vmatpush.bf16.msra.mxu0 %v4206
        %5929 = vmatpush.bf16.msra.mxu0 %v4202
        %5930 = vmatpush.bf16.msra.mxu0 %v4198
        %5931 = vmatpush.bf16.msra.mxu0 %v4194
        %5932 = vmatpush.bf16.msra.mxu0 %v4190
        %5933 = vmatpush.bf16.msra.mxu0 %v4186
        %5934 = vmatpush.bf16.msra.mxu0 %v4182
        %5935 = vmatpush.bf16.msra.mxu0 %v4178
        %5936 = vmatmul.bf16.gmra.mxu0 %v5920
        %v5937 = vpop.f32.mrf.mxu0
        %v5938 = vadd.f32 %v4074, %v5937
        %v5939 = vpop.f32.mrf.mxu0
        %v5940 = vadd.f32 %v4074, %v5939
        %5941 = vmatmul.bf16.gmra.mxu0 %v5921
        %v5942 = vpop.f32.mrf.mxu0
        %v5943 = vadd.f32 %v4074, %v5942
        %v5944 = vpop.f32.mrf.mxu0
        %v5945 = vadd.f32 %v4074, %v5944
        %5946 = vmatmul.bf16.gmra.mxu0 %v5922
        %v5947 = vpop.f32.mrf.mxu0
        %v5948 = vadd.f32 %v4074, %v5947
        %v5949 = vpop.f32.mrf.mxu0
        %v5950 = vadd.f32 %v4074, %v5949
        %5951 = vmatmul.bf16.gmra.mxu0 %v5923
        %v5952 = vpop.f32.mrf.mxu0
        %v5953 = vadd.f32 %v4074, %v5952
        %v5954 = vpop.f32.mrf.mxu0
        %v5955 = vadd.f32 %v4074, %v5954
        %5956 = vmatmul.bf16.gmra.mxu0 %v5924
        %v5957 = vpop.f32.mrf.mxu0
        %v5958 = vadd.f32 %v4074, %v5957
        %v5959 = vpop.f32.mrf.mxu0
        %v5960 = vadd.f32 %v4074, %v5959
        %5961 = vmatmul.bf16.gmra.mxu0 %v5925
        %v5962 = vpop.f32.mrf.mxu0
        %v5963 = vadd.f32 %v4074, %v5962
        %v5964 = vpop.f32.mrf.mxu0
        %v5965 = vadd.f32 %v4074, %v5964
        %5966 = vmatmul.bf16.gmra.mxu0 %v5926
        %v5967 = vpop.f32.mrf.mxu0
        %v5968 = vadd.f32 %v4074, %v5967
        %v5969 = vpop.f32.mrf.mxu0
        %v5970 = vadd.f32 %v4074, %v5969
        %5971 = vmatmul.bf16.gmra.mxu0 %v5927
        %v5972 = vpop.f32.mrf.mxu0
        %v5973 = vadd.f32 %v4074, %v5972
        %v5974 = vpop.f32.mrf.mxu0
        %v5975 = vadd.f32 %v4074, %v5974
        %5976 = vdwg.mxu0
        %5977 = vmatpush.bf16.msra.mxu0 %v4207
        %5978 = vmatpush.bf16.msra.mxu0 %v4203
        %5979 = vmatpush.bf16.msra.mxu0 %v4199
        %5980 = vmatpush.bf16.msra.mxu0 %v4195
        %5981 = vmatpush.bf16.msra.mxu0 %v4191
        %5982 = vmatpush.bf16.msra.mxu0 %v4187
        %5983 = vmatpush.bf16.msra.mxu0 %v4183
        %5984 = vmatpush.bf16.msra.mxu0 %v4179
        %5985 = vmatmul.bf16.gmra.mxu0 %v5920
        %v5986 = vpop.f32.mrf.mxu0
        %v5987 = vadd.f32 %v4075, %v5986
        %v5988 = vpop.f32.mrf.mxu0
        %v5989 = vadd.f32 %v4075, %v5988
        %5990 = vmatmul.bf16.gmra.mxu0 %v5921
        %v5991 = vpop.f32.mrf.mxu0
        %v5992 = vadd.f32 %v4075, %v5991
        %v5993 = vpop.f32.mrf.mxu0
        %v5994 = vadd.f32 %v4075, %v5993
        %5995 = vmatmul.bf16.gmra.mxu0 %v5922
        %v5996 = vpop.f32.mrf.mxu0
        %v5997 = vadd.f32 %v4075, %v5996
        %v5998 = vpop.f32.mrf.mxu0
        %v5999 = vadd.f32 %v4075, %v5998
        %6000 = vmatmul.bf16.gmra.mxu0 %v5923
        %v6001 = vpop.f32.mrf.mxu0
        %v6002 = vadd.f32 %v4075, %v6001
        %v6003 = vpop.f32.mrf.mxu0
        %v6004 = vadd.f32 %v4075, %v6003
        %6005 = vmatmul.bf16.gmra.mxu0 %v5924
        %v6006 = vpop.f32.mrf.mxu0
        %v6007 = vadd.f32 %v4075, %v6006
        %v6008 = vpop.f32.mrf.mxu0
        %v6009 = vadd.f32 %v4075, %v6008
        %6010 = vmatmul.bf16.gmra.mxu0 %v5925
        %v6011 = vpop.f32.mrf.mxu0
        %v6012 = vadd.f32 %v4075, %v6011
        %v6013 = vpop.f32.mrf.mxu0
        %v6014 = vadd.f32 %v4075, %v6013
        %6015 = vmatmul.bf16.gmra.mxu0 %v5926
        %v6016 = vpop.f32.mrf.mxu0
        %v6017 = vadd.f32 %v4075, %v6016
        %v6018 = vpop.f32.mrf.mxu0
        %v6019 = vadd.f32 %v4075, %v6018
        %6020 = vmatmul.bf16.gmra.mxu0 %v5927
        %v6021 = vpop.f32.mrf.mxu0
        %v6022 = vadd.f32 %v4075, %v6021
        %v6023 = vpop.f32.mrf.mxu0
        %v6024 = vadd.f32 %v4075, %v6023
        %6025 = vdwg.mxu0
        %6026 = vmatpush.bf16.msra.mxu0 %v4208
        %6027 = vmatpush.bf16.msra.mxu0 %v4204
        %6028 = vmatpush.bf16.msra.mxu0 %v4200
        %6029 = vmatpush.bf16.msra.mxu0 %v4196
        %6030 = vmatpush.bf16.msra.mxu0 %v4192
        %6031 = vmatpush.bf16.msra.mxu0 %v4188
        %6032 = vmatpush.bf16.msra.mxu0 %v4184
        %6033 = vmatpush.bf16.msra.mxu0 %v4180
        %6034 = vmatmul.bf16.gmra.mxu0 %v5920
        %v6035 = vpop.f32.mrf.mxu0
        %v6036 = vadd.f32 %v4076, %v6035
        %v6037 = vpop.f32.mrf.mxu0
        %v6038 = vadd.f32 %v4076, %v6037
        %6039 = vmatmul.bf16.gmra.mxu0 %v5921
        %v6040 = vpop.f32.mrf.mxu0
        %v6041 = vadd.f32 %v4076, %v6040
        %v6042 = vpop.f32.mrf.mxu0
        %v6043 = vadd.f32 %v4076, %v6042
        %6044 = vmatmul.bf16.gmra.mxu0 %v5922
        %v6045 = vpop.f32.mrf.mxu0
        %v6046 = vadd.f32 %v4076, %v6045
        %v6047 = vpop.f32.mrf.mxu0
        %v6048 = vadd.f32 %v4076, %v6047
        %6049 = vmatmul.bf16.gmra.mxu0 %v5923
        %v6050 = vpop.f32.mrf.mxu0
        %v6051 = vadd.f32 %v4076, %v6050
        %v6052 = vpop.f32.mrf.mxu0
        %v6053 = vadd.f32 %v4076, %v6052
        %6054 = vmatmul.bf16.gmra.mxu0 %v5924
        %v6055 = vpop.f32.mrf.mxu0
        %v6056 = vadd.f32 %v4076, %v6055
        %v6057 = vpop.f32.mrf.mxu0
        %v6058 = vadd.f32 %v4076, %v6057
        %6059 = vmatmul.bf16.gmra.mxu0 %v5925
        %v6060 = vpop.f32.mrf.mxu0
        %v6061 = vadd.f32 %v4076, %v6060
        %v6062 = vpop.f32.mrf.mxu0
        %v6063 = vadd.f32 %v4076, %v6062
        %6064 = vmatmul.bf16.gmra.mxu0 %v5926
        %v6065 = vpop.f32.mrf.mxu0
        %v6066 = vadd.f32 %v4076, %v6065
        %v6067 = vpop.f32.mrf.mxu0
        %v6068 = vadd.f32 %v4076, %v6067
        %6069 = vmatmul.bf16.gmra.mxu0 %v5927
        %v6070 = vpop.f32.mrf.mxu0
        %v6071 = vadd.f32 %v4076, %v6070
        %v6072 = vpop.f32.mrf.mxu0
        %v6073 = vadd.f32 %v4076, %v6072
        %6074 = vdwg.mxu0
        %6075 = vmatpush.bf16.msra.mxu0 %v4209
        %6076 = vmatpush.bf16.msra.mxu0 %v4205
        %6077 = vmatpush.bf16.msra.mxu0 %v4201
        %6078 = vmatpush.bf16.msra.mxu0 %v4197
        %6079 = vmatpush.bf16.msra.mxu0 %v4193
        %6080 = vmatpush.bf16.msra.mxu0 %v4189
        %6081 = vmatpush.bf16.msra.mxu0 %v4185
        %6082 = vmatpush.bf16.msra.mxu0 %v4181
        %6083 = vmatmul.bf16.gmra.mxu0 %v5920
        %v6084 = vpop.f32.mrf.mxu0
        %v6085 = vadd.f32 %v4077, %v6084
        %v6086 = vpop.f32.mrf.mxu0
        %v6087 = vadd.f32 %v4077, %v6086
        %6088 = vmatmul.bf16.gmra.mxu0 %v5921
        %v6089 = vpop.f32.mrf.mxu0
        %v6090 = vadd.f32 %v4077, %v6089
        %v6091 = vpop.f32.mrf.mxu0
        %v6092 = vadd.f32 %v4077, %v6091
        %6093 = vmatmul.bf16.gmra.mxu0 %v5922
        %v6094 = vpop.f32.mrf.mxu0
        %v6095 = vadd.f32 %v4077, %v6094
        %v6096 = vpop.f32.mrf.mxu0
        %v6097 = vadd.f32 %v4077, %v6096
        %6098 = vmatmul.bf16.gmra.mxu0 %v5923
        %v6099 = vpop.f32.mrf.mxu0
        %v6100 = vadd.f32 %v4077, %v6099
        %v6101 = vpop.f32.mrf.mxu0
        %v6102 = vadd.f32 %v4077, %v6101
        %6103 = vmatmul.bf16.gmra.mxu0 %v5924
        %v6104 = vpop.f32.mrf.mxu0
        %v6105 = vadd.f32 %v4077, %v6104
        %v6106 = vpop.f32.mrf.mxu0
        %v6107 = vadd.f32 %v4077, %v6106
        %6108 = vmatmul.bf16.gmra.mxu0 %v5925
        %v6109 = vpop.f32.mrf.mxu0
        %v6110 = vadd.f32 %v4077, %v6109
        %v6111 = vpop.f32.mrf.mxu0
        %v6112 = vadd.f32 %v4077, %v6111
        %6113 = vmatmul.bf16.gmra.mxu0 %v5926
        %v6114 = vpop.f32.mrf.mxu0
        %v6115 = vadd.f32 %v4077, %v6114
        %v6116 = vpop.f32.mrf.mxu0
        %v6117 = vadd.f32 %v4077, %v6116
        %6118 = vmatmul.bf16.gmra.mxu0 %v5927
        %v6119 = vpop.f32.mrf.mxu0
        %v6120 = vadd.f32 %v4077, %v6119
        %v6121 = vpop.f32.mrf.mxu0
        %v6122 = vadd.f32 %v4077, %v6121
        %6123 = vdwg.mxu0
        %v6124 = vmul.f32 %v5938, 0.5
        %v6125 = vmul.f32 %v5987, 0.5
        %v6126 = vmul.f32 %v6036, 0.5
        %v6127 = vmul.f32 %v6085, 0.5
        %v6128 = vmul.f32 %v5940, 0.5
        %v6129 = vmul.f32 %v5989, 0.5
        %v6130 = vmul.f32 %v6038, 0.5
        %v6131 = vmul.f32 %v6087, 0.5
        %v6132 = vmul.f32 %v5943, 0.5
        %v6133 = vmul.f32 %v5992, 0.5
        %v6134 = vmul.f32 %v6041, 0.5
        %v6135 = vmul.f32 %v6090, 0.5
        %v6136 = vmul.f32 %v5945, 0.5
        %v6137 = vmul.f32 %v5994, 0.5
        %v6138 = vmul.f32 %v6043, 0.5
        %v6139 = vmul.f32 %v6092, 0.5
        %v6140 = vmul.f32 %v5948, 0.5
        %v6141 = vmul.f32 %v5997, 0.5
        %v6142 = vmul.f32 %v6046, 0.5
        %v6143 = vmul.f32 %v6095, 0.5
        %v6144 = vmul.f32 %v5950, 0.5
        %v6145 = vmul.f32 %v5999, 0.5
        %v6146 = vmul.f32 %v6048, 0.5
        %v6147 = vmul.f32 %v6097, 0.5
        %v6148 = vmul.f32 %v5953, 0.5
        %v6149 = vmul.f32 %v6002, 0.5
        %v6150 = vmul.f32 %v6051, 0.5
        %v6151 = vmul.f32 %v6100, 0.5
        %v6152 = vmul.f32 %v5955, 0.5
        %v6153 = vmul.f32 %v6004, 0.5
        %v6154 = vmul.f32 %v6053, 0.5
        %v6155 = vmul.f32 %v6102, 0.5
        %v6156 = vmul.f32 %v5958, 0.5
        %v6157 = vmul.f32 %v6007, 0.5
        %v6158 = vmul.f32 %v6056, 0.5
        %v6159 = vmul.f32 %v6105, 0.5
        %v6160 = vmul.f32 %v5960, 0.5
        %v6161 = vmul.f32 %v6009, 0.5
        %v6162 = vmul.f32 %v6058, 0.5
        %v6163 = vmul.f32 %v6107, 0.5
        %v6164 = vmul.f32 %v5963, 0.5
        %v6165 = vmul.f32 %v6012, 0.5
        %v6166 = vmul.f32 %v6061, 0.5
        %v6167 = vmul.f32 %v6110, 0.5
        %v6168 = vmul.f32 %v5965, 0.5
        %v6169 = vmul.f32 %v6014, 0.5
        %v6170 = vmul.f32 %v6063, 0.5
        %v6171 = vmul.f32 %v6112, 0.5
        %v6172 = vmul.f32 %v5968, 0.5
        %v6173 = vmul.f32 %v6017, 0.5
        %v6174 = vmul.f32 %v6066, 0.5
        %v6175 = vmul.f32 %v6115, 0.5
        %v6176 = vmul.f32 %v5970, 0.5
        %v6177 = vmul.f32 %v6019, 0.5
        %v6178 = vmul.f32 %v6068, 0.5
        %v6179 = vmul.f32 %v6117, 0.5
        %v6180 = vmul.f32 %v5973, 0.5
        %v6181 = vmul.f32 %v6022, 0.5
        %v6182 = vmul.f32 %v6071, 0.5
        %v6183 = vmul.f32 %v6120, 0.5
        %v6184 = vmul.f32 %v5975, 0.5
        %v6185 = vmul.f32 %v6024, 0.5
        %v6186 = vmul.f32 %v6073, 0.5
        %v6187 = vmul.f32 %v6122, 0.5
        %v6188 = vmul.f32 %v5938, 0.044715
        %v6189 = vmul.f32 %v5987, 0.044715
        %v6190 = vmul.f32 %v6036, 0.044715
        %v6191 = vmul.f32 %v6085, 0.044715
        %v6192 = vmul.f32 %v5940, 0.044715
        %v6193 = vmul.f32 %v5989, 0.044715
        %v6194 = vmul.f32 %v6038, 0.044715
        %v6195 = vmul.f32 %v6087, 0.044715
        %v6196 = vmul.f32 %v5943, 0.044715
        %v6197 = vmul.f32 %v5992, 0.044715
        %v6198 = vmul.f32 %v6041, 0.044715
        %v6199 = vmul.f32 %v6090, 0.044715
        %v6200 = vmul.f32 %v5945, 0.044715
        %v6201 = vmul.f32 %v5994, 0.044715
        %v6202 = vmul.f32 %v6043, 0.044715
        %v6203 = vmul.f32 %v6092, 0.044715
        %v6204 = vmul.f32 %v5948, 0.044715
        %v6205 = vmul.f32 %v5997, 0.044715
        %v6206 = vmul.f32 %v6046, 0.044715
        %v6207 = vmul.f32 %v6095, 0.044715
        %v6208 = vmul.f32 %v5950, 0.044715
        %v6209 = vmul.f32 %v5999, 0.044715
        %v6210 = vmul.f32 %v6048, 0.044715
        %v6211 = vmul.f32 %v6097, 0.044715
        %v6212 = vmul.f32 %v5953, 0.044715
        %v6213 = vmul.f32 %v6002, 0.044715
        %v6214 = vmul.f32 %v6051, 0.044715
        %v6215 = vmul.f32 %v6100, 0.044715
        %v6216 = vmul.f32 %v5955, 0.044715
        %v6217 = vmul.f32 %v6004, 0.044715
        %v6218 = vmul.f32 %v6053, 0.044715
        %v6219 = vmul.f32 %v6102, 0.044715
        %v6220 = vmul.f32 %v5958, 0.044715
        %v6221 = vmul.f32 %v6007, 0.044715
        %v6222 = vmul.f32 %v6056, 0.044715
        %v6223 = vmul.f32 %v6105, 0.044715
        %v6224 = vmul.f32 %v5960, 0.044715
        %v6225 = vmul.f32 %v6009, 0.044715
        %v6226 = vmul.f32 %v6058, 0.044715
        %v6227 = vmul.f32 %v6107, 0.044715
        %v6228 = vmul.f32 %v5963, 0.044715
        %v6229 = vmul.f32 %v6012, 0.044715
        %v6230 = vmul.f32 %v6061, 0.044715
        %v6231 = vmul.f32 %v6110, 0.044715
        %v6232 = vmul.f32 %v5965, 0.044715
        %v6233 = vmul.f32 %v6014, 0.044715
        %v6234 = vmul.f32 %v6063, 0.044715
        %v6235 = vmul.f32 %v6112, 0.044715
        %v6236 = vmul.f32 %v5968, 0.044715
        %v6237 = vmul.f32 %v6017, 0.044715
        %v6238 = vmul.f32 %v6066, 0.044715
        %v6239 = vmul.f32 %v6115, 0.044715
        %v6240 = vmul.f32 %v5970, 0.044715
        %v6241 = vmul.f32 %v6019, 0.044715
        %v6242 = vmul.f32 %v6068, 0.044715
        %v6243 = vmul.f32 %v6117, 0.044715
        %v6244 = vmul.f32 %v5973, 0.044715
        %v6245 = vmul.f32 %v6022, 0.044715
        %v6246 = vmul.f32 %v6071, 0.044715
        %v6247 = vmul.f32 %v6120, 0.044715
        %v6248 = vmul.f32 %v5975, 0.044715
        %v6249 = vmul.f32 %v6024, 0.044715
        %v6250 = vmul.f32 %v6073, 0.044715
        %v6251 = vmul.f32 %v6122, 0.044715
        %v6252 = vmul.f32 %v6188, %v5938
        %v6253 = vmul.f32 %v6189, %v5987
        %v6254 = vmul.f32 %v6190, %v6036
        %v6255 = vmul.f32 %v6191, %v6085
        %v6256 = vmul.f32 %v6192, %v5940
        %v6257 = vmul.f32 %v6193, %v5989
        %v6258 = vmul.f32 %v6194, %v6038
        %v6259 = vmul.f32 %v6195, %v6087
        %v6260 = vmul.f32 %v6196, %v5943
        %v6261 = vmul.f32 %v6197, %v5992
        %v6262 = vmul.f32 %v6198, %v6041
        %v6263 = vmul.f32 %v6199, %v6090
        %v6264 = vmul.f32 %v6200, %v5945
        %v6265 = vmul.f32 %v6201, %v5994
        %v6266 = vmul.f32 %v6202, %v6043
        %v6267 = vmul.f32 %v6203, %v6092
        %v6268 = vmul.f32 %v6204, %v5948
        %v6269 = vmul.f32 %v6205, %v5997
        %v6270 = vmul.f32 %v6206, %v6046
        %v6271 = vmul.f32 %v6207, %v6095
        %v6272 = vmul.f32 %v6208, %v5950
        %v6273 = vmul.f32 %v6209, %v5999
        %v6274 = vmul.f32 %v6210, %v6048
        %v6275 = vmul.f32 %v6211, %v6097
        %v6276 = vmul.f32 %v6212, %v5953
        %v6277 = vmul.f32 %v6213, %v6002
        %v6278 = vmul.f32 %v6214, %v6051
        %v6279 = vmul.f32 %v6215, %v6100
        %v6280 = vmul.f32 %v6216, %v5955
        %v6281 = vmul.f32 %v6217, %v6004
        %v6282 = vmul.f32 %v6218, %v6053
        %v6283 = vmul.f32 %v6219, %v6102
        %v6284 = vmul.f32 %v6220, %v5958
        %v6285 = vmul.f32 %v6221, %v6007
        %v6286 = vmul.f32 %v6222, %v6056
        %v6287 = vmul.f32 %v6223, %v6105
        %v6288 = vmul.f32 %v6224, %v5960
        %v6289 = vmul.f32 %v6225, %v6009
        %v6290 = vmul.f32 %v6226, %v6058
        %v6291 = vmul.f32 %v6227, %v6107
        %v6292 = vmul.f32 %v6228, %v5963
        %v6293 = vmul.f32 %v6229, %v6012
        %v6294 = vmul.f32 %v6230, %v6061
        %v6295 = vmul.f32 %v6231, %v6110
        %v6296 = vmul.f32 %v6232, %v5965
        %v6297 = vmul.f32 %v6233, %v6014
        %v6298 = vmul.f32 %v6234, %v6063
        %v6299 = vmul.f32 %v6235, %v6112
        %v6300 = vmul.f32 %v6236, %v5968
        %v6301 = vmul.f32 %v6237, %v6017
        %v6302 = vmul.f32 %v6238, %v6066
        %v6303 = vmul.f32 %v6239, %v6115
        %v6304 = vmul.f32 %v6240, %v5970
        %v6305 = vmul.f32 %v6241, %v6019
        %v6306 = vmul.f32 %v6242, %v6068
        %v6307 = vmul.f32 %v6243, %v6117
        %v6308 = vmul.f32 %v6244, %v5973
        %v6309 = vmul.f32 %v6245, %v6022
        %v6310 = vmul.f32 %v6246, %v6071
        %v6311 = vmul.f32 %v6247, %v6120
        %v6312 = vmul.f32 %v6248, %v5975
        %v6313 = vmul.f32 %v6249, %v6024
        %v6314 = vmul.f32 %v6250, %v6073
        %v6315 = vmul.f32 %v6251, %v6122
        %v6316 = vmul.f32 %v6252, %v5938
        %v6317 = vmul.f32 %v6253, %v5987
        %v6318 = vmul.f32 %v6254, %v6036
        %v6319 = vmul.f32 %v6255, %v6085
        %v6320 = vmul.f32 %v6256, %v5940
        %v6321 = vmul.f32 %v6257, %v5989
        %v6322 = vmul.f32 %v6258, %v6038
        %v6323 = vmul.f32 %v6259, %v6087
        %v6324 = vmul.f32 %v6260, %v5943
        %v6325 = vmul.f32 %v6261, %v5992
        %v6326 = vmul.f32 %v6262, %v6041
        %v6327 = vmul.f32 %v6263, %v6090
        %v6328 = vmul.f32 %v6264, %v5945
        %v6329 = vmul.f32 %v6265, %v5994
        %v6330 = vmul.f32 %v6266, %v6043
        %v6331 = vmul.f32 %v6267, %v6092
        %v6332 = vmul.f32 %v6268, %v5948
        %v6333 = vmul.f32 %v6269, %v5997
        %v6334 = vmul.f32 %v6270, %v6046
        %v6335 = vmul.f32 %v6271, %v6095
        %v6336 = vmul.f32 %v6272, %v5950
        %v6337 = vmul.f32 %v6273, %v5999
        %v6338 = vmul.f32 %v6274, %v6048
        %v6339 = vmul.f32 %v6275, %v6097
        %v6340 = vmul.f32 %v6276, %v5953
        %v6341 = vmul.f32 %v6277, %v6002
        %v6342 = vmul.f32 %v6278, %v6051
        %v6343 = vmul.f32 %v6279, %v6100
        %v6344 = vmul.f32 %v6280, %v5955
        %v6345 = vmul.f32 %v6281, %v6004
        %v6346 = vmul.f32 %v6282, %v6053
        %v6347 = vmul.f32 %v6283, %v6102
        %v6348 = vmul.f32 %v6284, %v5958
        %v6349 = vmul.f32 %v6285, %v6007
        %v6350 = vmul.f32 %v6286, %v6056
        %v6351 = vmul.f32 %v6287, %v6105
        %v6352 = vmul.f32 %v6288, %v5960
        %v6353 = vmul.f32 %v6289, %v6009
        %v6354 = vmul.f32 %v6290, %v6058
        %v6355 = vmul.f32 %v6291, %v6107
        %v6356 = vmul.f32 %v6292, %v5963
        %v6357 = vmul.f32 %v6293, %v6012
        %v6358 = vmul.f32 %v6294, %v6061
        %v6359 = vmul.f32 %v6295, %v6110
        %v6360 = vmul.f32 %v6296, %v5965
        %v6361 = vmul.f32 %v6297, %v6014
        %v6362 = vmul.f32 %v6298, %v6063
        %v6363 = vmul.f32 %v6299, %v6112
        %v6364 = vmul.f32 %v6300, %v5968
        %v6365 = vmul.f32 %v6301, %v6017
        %v6366 = vmul.f32 %v6302, %v6066
        %v6367 = vmul.f32 %v6303, %v6115
        %v6368 = vmul.f32 %v6304, %v5970
        %v6369 = vmul.f32 %v6305, %v6019
        %v6370 = vmul.f32 %v6306, %v6068
        %v6371 = vmul.f32 %v6307, %v6117
        %v6372 = vmul.f32 %v6308, %v5973
        %v6373 = vmul.f32 %v6309, %v6022
        %v6374 = vmul.f32 %v6310, %v6071
        %v6375 = vmul.f32 %v6311, %v6120
        %v6376 = vmul.f32 %v6312, %v5975
        %v6377 = vmul.f32 %v6313, %v6024
        %v6378 = vmul.f32 %v6314, %v6073
        %v6379 = vmul.f32 %v6315, %v6122
        %v6380 = vadd.f32 %v5938, %v6316
        %v6381 = vadd.f32 %v5987, %v6317
        %v6382 = vadd.f32 %v6036, %v6318
        %v6383 = vadd.f32 %v6085, %v6319
        %v6384 = vadd.f32 %v5940, %v6320
        %v6385 = vadd.f32 %v5989, %v6321
        %v6386 = vadd.f32 %v6038, %v6322
        %v6387 = vadd.f32 %v6087, %v6323
        %v6388 = vadd.f32 %v5943, %v6324
        %v6389 = vadd.f32 %v5992, %v6325
        %v6390 = vadd.f32 %v6041, %v6326
        %v6391 = vadd.f32 %v6090, %v6327
        %v6392 = vadd.f32 %v5945, %v6328
        %v6393 = vadd.f32 %v5994, %v6329
        %v6394 = vadd.f32 %v6043, %v6330
        %v6395 = vadd.f32 %v6092, %v6331
        %v6396 = vadd.f32 %v5948, %v6332
        %v6397 = vadd.f32 %v5997, %v6333
        %v6398 = vadd.f32 %v6046, %v6334
        %v6399 = vadd.f32 %v6095, %v6335
        %v6400 = vadd.f32 %v5950, %v6336
        %v6401 = vadd.f32 %v5999, %v6337
        %v6402 = vadd.f32 %v6048, %v6338
        %v6403 = vadd.f32 %v6097, %v6339
        %v6404 = vadd.f32 %v5953, %v6340
        %v6405 = vadd.f32 %v6002, %v6341
        %v6406 = vadd.f32 %v6051, %v6342
        %v6407 = vadd.f32 %v6100, %v6343
        %v6408 = vadd.f32 %v5955, %v6344
        %v6409 = vadd.f32 %v6004, %v6345
        %v6410 = vadd.f32 %v6053, %v6346
        %v6411 = vadd.f32 %v6102, %v6347
        %v6412 = vadd.f32 %v5958, %v6348
        %v6413 = vadd.f32 %v6007, %v6349
        %v6414 = vadd.f32 %v6056, %v6350
        %v6415 = vadd.f32 %v6105, %v6351
        %v6416 = vadd.f32 %v5960, %v6352
        %v6417 = vadd.f32 %v6009, %v6353
        %v6418 = vadd.f32 %v6058, %v6354
        %v6419 = vadd.f32 %v6107, %v6355
        %v6420 = vadd.f32 %v5963, %v6356
        %v6421 = vadd.f32 %v6012, %v6357
        %v6422 = vadd.f32 %v6061, %v6358
        %v6423 = vadd.f32 %v6110, %v6359
        %v6424 = vadd.f32 %v5965, %v6360
        %v6425 = vadd.f32 %v6014, %v6361
        %v6426 = vadd.f32 %v6063, %v6362
        %v6427 = vadd.f32 %v6112, %v6363
        %v6428 = vadd.f32 %v5968, %v6364
        %v6429 = vadd.f32 %v6017, %v6365
        %v6430 = vadd.f32 %v6066, %v6366
        %v6431 = vadd.f32 %v6115, %v6367
        %v6432 = vadd.f32 %v5970, %v6368
        %v6433 = vadd.f32 %v6019, %v6369
        %v6434 = vadd.f32 %v6068, %v6370
        %v6435 = vadd.f32 %v6117, %v6371
        %v6436 = vadd.f32 %v5973, %v6372
        %v6437 = vadd.f32 %v6022, %v6373
        %v6438 = vadd.f32 %v6071, %v6374
        %v6439 = vadd.f32 %v6120, %v6375
        %v6440 = vadd.f32 %v5975, %v6376
        %v6441 = vadd.f32 %v6024, %v6377
        %v6442 = vadd.f32 %v6073, %v6378
        %v6443 = vadd.f32 %v6122, %v6379
        %v6444 = vmul.f32 %v6380, 0.7978846
        %v6445 = vmul.f32 %v6381, 0.7978846
        %v6446 = vmul.f32 %v6382, 0.7978846
        %v6447 = vmul.f32 %v6383, 0.7978846
        %v6448 = vmul.f32 %v6384, 0.7978846
        %v6449 = vmul.f32 %v6385, 0.7978846
        %v6450 = vmul.f32 %v6386, 0.7978846
        %v6451 = vmul.f32 %v6387, 0.7978846
        %v6452 = vmul.f32 %v6388, 0.7978846
        %v6453 = vmul.f32 %v6389, 0.7978846
        %v6454 = vmul.f32 %v6390, 0.7978846
        %v6455 = vmul.f32 %v6391, 0.7978846
        %v6456 = vmul.f32 %v6392, 0.7978846
        %v6457 = vmul.f32 %v6393, 0.7978846
        %v6458 = vmul.f32 %v6394, 0.7978846
        %v6459 = vmul.f32 %v6395, 0.7978846
        %v6460 = vmul.f32 %v6396, 0.7978846
        %v6461 = vmul.f32 %v6397, 0.7978846
        %v6462 = vmul.f32 %v6398, 0.7978846
        %v6463 = vmul.f32 %v6399, 0.7978846
        %v6464 = vmul.f32 %v6400, 0.7978846
        %v6465 = vmul.f32 %v6401, 0.7978846
        %v6466 = vmul.f32 %v6402, 0.7978846
        %v6467 = vmul.f32 %v6403, 0.7978846
        %v6468 = vmul.f32 %v6404, 0.7978846
        %v6469 = vmul.f32 %v6405, 0.7978846
        %v6470 = vmul.f32 %v6406, 0.7978846
        %v6471 = vmul.f32 %v6407, 0.7978846
        %v6472 = vmul.f32 %v6408, 0.7978846
        %v6473 = vmul.f32 %v6409, 0.7978846
        %v6474 = vmul.f32 %v6410, 0.7978846
        %v6475 = vmul.f32 %v6411, 0.7978846
        %v6476 = vmul.f32 %v6412, 0.7978846
        %v6477 = vmul.f32 %v6413, 0.7978846
        %v6478 = vmul.f32 %v6414, 0.7978846
        %v6479 = vmul.f32 %v6415, 0.7978846
        %v6480 = vmul.f32 %v6416, 0.7978846
        %v6481 = vmul.f32 %v6417, 0.7978846
        %v6482 = vmul.f32 %v6418, 0.7978846
        %v6483 = vmul.f32 %v6419, 0.7978846
        %v6484 = vmul.f32 %v6420, 0.7978846
        %v6485 = vmul.f32 %v6421, 0.7978846
        %v6486 = vmul.f32 %v6422, 0.7978846
        %v6487 = vmul.f32 %v6423, 0.7978846
        %v6488 = vmul.f32 %v6424, 0.7978846
        %v6489 = vmul.f32 %v6425, 0.7978846
        %v6490 = vmul.f32 %v6426, 0.7978846
        %v6491 = vmul.f32 %v6427, 0.7978846
        %v6492 = vmul.f32 %v6428, 0.7978846
        %v6493 = vmul.f32 %v6429, 0.7978846
        %v6494 = vmul.f32 %v6430, 0.7978846
        %v6495 = vmul.f32 %v6431, 0.7978846
        %v6496 = vmul.f32 %v6432, 0.7978846
        %v6497 = vmul.f32 %v6433, 0.7978846
        %v6498 = vmul.f32 %v6434, 0.7978846
        %v6499 = vmul.f32 %v6435, 0.7978846
        %v6500 = vmul.f32 %v6436, 0.7978846
        %v6501 = vmul.f32 %v6437, 0.7978846
        %v6502 = vmul.f32 %v6438, 0.7978846
        %v6503 = vmul.f32 %v6439, 0.7978846
        %v6504 = vmul.f32 %v6440, 0.7978846
        %v6505 = vmul.f32 %v6441, 0.7978846
        %v6506 = vmul.f32 %v6442, 0.7978846
        %v6507 = vmul.f32 %v6443, 0.7978846
        %v6508 = vtanh.pop %v6444
        %v6509 = vtanh.pop %v6445
        %v6510 = vtanh.pop %v6446
        %v6511 = vtanh.pop %v6447
        %v6512 = vtanh.pop %v6448
        %v6513 = vtanh.pop %v6449
        %v6514 = vtanh.pop %v6450
        %v6515 = vtanh.pop %v6451
        %v6516 = vtanh.pop %v6452
        %v6517 = vtanh.pop %v6453
        %v6518 = vtanh.pop %v6454
        %v6519 = vtanh.pop %v6455
        %v6520 = vtanh.pop %v6456
        %v6521 = vtanh.pop %v6457
        %v6522 = vtanh.pop %v6458
        %v6523 = vtanh.pop %v6459
        %v6524 = vtanh.pop %v6460
        %v6525 = vtanh.pop %v6461
        %v6526 = vtanh.pop %v6462
        %v6527 = vtanh.pop %v6463
        %v6528 = vtanh.pop %v6464
        %v6529 = vtanh.pop %v6465
        %v6530 = vtanh.pop %v6466
        %v6531 = vtanh.pop %v6467
        %v6532 = vtanh.pop %v6468
        %v6533 = vtanh.pop %v6469
        %v6534 = vtanh.pop %v6470
        %v6535 = vtanh.pop %v6471
        %v6536 = vtanh.pop %v6472
        %v6537 = vtanh.pop %v6473
        %v6538 = vtanh.pop %v6474
        %v6539 = vtanh.pop %v6475
        %v6540 = vtanh.pop %v6476
        %v6541 = vtanh.pop %v6477
        %v6542 = vtanh.pop %v6478
        %v6543 = vtanh.pop %v6479
        %v6544 = vtanh.pop %v6480
        %v6545 = vtanh.pop %v6481
        %v6546 = vtanh.pop %v6482
        %v6547 = vtanh.pop %v6483
        %v6548 = vtanh.pop %v6484
        %v6549 = vtanh.pop %v6485
        %v6550 = vtanh.pop %v6486
        %v6551 = vtanh.pop %v6487
        %v6552 = vtanh.pop %v6488
        %v6553 = vtanh.pop %v6489
        %v6554 = vtanh.pop %v6490
        %v6555 = vtanh.pop %v6491
        %v6556 = vtanh.pop %v6492
        %v6557 = vtanh.pop %v6493
        %v6558 = vtanh.pop %v6494
        %v6559 = vtanh.pop %v6495
        %v6560 = vtanh.pop %v6496
        %v6561 = vtanh.pop %v6497
        %v6562 = vtanh.pop %v6498
        %v6563 = vtanh.pop %v6499
        %v6564 = vtanh.pop %v6500
        %v6565 = vtanh.pop %v6501
        %v6566 = vtanh.pop %v6502
        %v6567 = vtanh.pop %v6503
        %v6568 = vtanh.pop %v6504
        %v6569 = vtanh.pop %v6505
        %v6570 = vtanh.pop %v6506
        %v6571 = vtanh.pop %v6507
        %v6572 = vadd.f32 %v6508, 1.0
        %v6573 = vadd.f32 %v6509, 1.0
        %v6574 = vadd.f32 %v6510, 1.0
        %v6575 = vadd.f32 %v6511, 1.0
        %v6576 = vadd.f32 %v6512, 1.0
        %v6577 = vadd.f32 %v6513, 1.0
        %v6578 = vadd.f32 %v6514, 1.0
        %v6579 = vadd.f32 %v6515, 1.0
        %v6580 = vadd.f32 %v6516, 1.0
        %v6581 = vadd.f32 %v6517, 1.0
        %v6582 = vadd.f32 %v6518, 1.0
        %v6583 = vadd.f32 %v6519, 1.0
        %v6584 = vadd.f32 %v6520, 1.0
        %v6585 = vadd.f32 %v6521, 1.0
        %v6586 = vadd.f32 %v6522, 1.0
        %v6587 = vadd.f32 %v6523, 1.0
        %v6588 = vadd.f32 %v6524, 1.0
        %v6589 = vadd.f32 %v6525, 1.0
        %v6590 = vadd.f32 %v6526, 1.0
        %v6591 = vadd.f32 %v6527, 1.0
        %v6592 = vadd.f32 %v6528, 1.0
        %v6593 = vadd.f32 %v6529, 1.0
        %v6594 = vadd.f32 %v6530, 1.0
        %v6595 = vadd.f32 %v6531, 1.0
        %v6596 = vadd.f32 %v6532, 1.0
        %v6597 = vadd.f32 %v6533, 1.0
        %v6598 = vadd.f32 %v6534, 1.0
        %v6599 = vadd.f32 %v6535, 1.0
        %v6600 = vadd.f32 %v6536, 1.0
        %v6601 = vadd.f32 %v6537, 1.0
        %v6602 = vadd.f32 %v6538, 1.0
        %v6603 = vadd.f32 %v6539, 1.0
        %v6604 = vadd.f32 %v6540, 1.0
        %v6605 = vadd.f32 %v6541, 1.0
        %v6606 = vadd.f32 %v6542, 1.0
        %v6607 = vadd.f32 %v6543, 1.0
        %v6608 = vadd.f32 %v6544, 1.0
        %v6609 = vadd.f32 %v6545, 1.0
        %v6610 = vadd.f32 %v6546, 1.0
        %v6611 = vadd.f32 %v6547, 1.0
        %v6612 = vadd.f32 %v6548, 1.0
        %v6613 = vadd.f32 %v6549, 1.0
        %v6614 = vadd.f32 %v6550, 1.0
        %v6615 = vadd.f32 %v6551, 1.0
        %v6616 = vadd.f32 %v6552, 1.0
        %v6617 = vadd.f32 %v6553, 1.0
        %v6618 = vadd.f32 %v6554, 1.0
        %v6619 = vadd.f32 %v6555, 1.0
        %v6620 = vadd.f32 %v6556, 1.0
        %v6621 = vadd.f32 %v6557, 1.0
        %v6622 = vadd.f32 %v6558, 1.0
        %v6623 = vadd.f32 %v6559, 1.0
        %v6624 = vadd.f32 %v6560, 1.0
        %v6625 = vadd.f32 %v6561, 1.0
        %v6626 = vadd.f32 %v6562, 1.0
        %v6627 = vadd.f32 %v6563, 1.0
        %v6628 = vadd.f32 %v6564, 1.0
        %v6629 = vadd.f32 %v6565, 1.0
        %v6630 = vadd.f32 %v6566, 1.0
        %v6631 = vadd.f32 %v6567, 1.0
        %v6632 = vadd.f32 %v6568, 1.0
        %v6633 = vadd.f32 %v6569, 1.0
        %v6634 = vadd.f32 %v6570, 1.0
        %v6635 = vadd.f32 %v6571, 1.0
        %v6636 = vmul.f32 %v6124, %v6572
        %v6637 = vmul.f32 %v6125, %v6573
        %v6638 = vmul.f32 %v6126, %v6574
        %v6639 = vmul.f32 %v6127, %v6575
        %v6640 = vmul.f32 %v6128, %v6576
        %v6641 = vmul.f32 %v6129, %v6577
        %v6642 = vmul.f32 %v6130, %v6578
        %v6643 = vmul.f32 %v6131, %v6579
        %v6644 = vmul.f32 %v6132, %v6580
        %v6645 = vmul.f32 %v6133, %v6581
        %v6646 = vmul.f32 %v6134, %v6582
        %v6647 = vmul.f32 %v6135, %v6583
        %v6648 = vmul.f32 %v6136, %v6584
        %v6649 = vmul.f32 %v6137, %v6585
        %v6650 = vmul.f32 %v6138, %v6586
        %v6651 = vmul.f32 %v6139, %v6587
        %v6652 = vmul.f32 %v6140, %v6588
        %v6653 = vmul.f32 %v6141, %v6589
        %v6654 = vmul.f32 %v6142, %v6590
        %v6655 = vmul.f32 %v6143, %v6591
        %v6656 = vmul.f32 %v6144, %v6592
        %v6657 = vmul.f32 %v6145, %v6593
        %v6658 = vmul.f32 %v6146, %v6594
        %v6659 = vmul.f32 %v6147, %v6595
        %v6660 = vmul.f32 %v6148, %v6596
        %v6661 = vmul.f32 %v6149, %v6597
        %v6662 = vmul.f32 %v6150, %v6598
        %v6663 = vmul.f32 %v6151, %v6599
        %v6664 = vmul.f32 %v6152, %v6600
        %v6665 = vmul.f32 %v6153, %v6601
        %v6666 = vmul.f32 %v6154, %v6602
        %v6667 = vmul.f32 %v6155, %v6603
        %v6668 = vmul.f32 %v6156, %v6604
        %v6669 = vmul.f32 %v6157, %v6605
        %v6670 = vmul.f32 %v6158, %v6606
        %v6671 = vmul.f32 %v6159, %v6607
        %v6672 = vmul.f32 %v6160, %v6608
        %v6673 = vmul.f32 %v6161, %v6609
        %v6674 = vmul.f32 %v6162, %v6610
        %v6675 = vmul.f32 %v6163, %v6611
        %v6676 = vmul.f32 %v6164, %v6612
        %v6677 = vmul.f32 %v6165, %v6613
        %v6678 = vmul.f32 %v6166, %v6614
        %v6679 = vmul.f32 %v6167, %v6615
        %v6680 = vmul.f32 %v6168, %v6616
        %v6681 = vmul.f32 %v6169, %v6617
        %v6682 = vmul.f32 %v6170, %v6618
        %v6683 = vmul.f32 %v6171, %v6619
        %v6684 = vmul.f32 %v6172, %v6620
        %v6685 = vmul.f32 %v6173, %v6621
        %v6686 = vmul.f32 %v6174, %v6622
        %v6687 = vmul.f32 %v6175, %v6623
        %v6688 = vmul.f32 %v6176, %v6624
        %v6689 = vmul.f32 %v6177, %v6625
        %v6690 = vmul.f32 %v6178, %v6626
        %v6691 = vmul.f32 %v6179, %v6627
        %v6692 = vmul.f32 %v6180, %v6628
        %v6693 = vmul.f32 %v6181, %v6629
        %v6694 = vmul.f32 %v6182, %v6630
        %v6695 = vmul.f32 %v6183, %v6631
        %v6696 = vmul.f32 %v6184, %v6632
        %v6697 = vmul.f32 %v6185, %v6633
        %v6698 = vmul.f32 %v6186, %v6634
        %v6699 = vmul.f32 %v6187, %v6635
        %v6700 = vpack.c.bf16 %v6640, %v6636
        %v6701 = vpack.c.bf16 %v6641, %v6637
        %v6702 = vpack.c.bf16 %v6642, %v6638
        %v6703 = vpack.c.bf16 %v6643, %v6639
        %v6704 = vpack.c.bf16 %v6648, %v6644
        %v6705 = vpack.c.bf16 %v6649, %v6645
        %v6706 = vpack.c.bf16 %v6650, %v6646
        %v6707 = vpack.c.bf16 %v6651, %v6647
        %v6708 = vpack.c.bf16 %v6656, %v6652
        %v6709 = vpack.c.bf16 %v6657, %v6653
        %v6710 = vpack.c.bf16 %v6658, %v6654
        %v6711 = vpack.c.bf16 %v6659, %v6655
        %v6712 = vpack.c.bf16 %v6664, %v6660
        %v6713 = vpack.c.bf16 %v6665, %v6661
        %v6714 = vpack.c.bf16 %v6666, %v6662
        %v6715 = vpack.c.bf16 %v6667, %v6663
        %v6716 = vpack.c.bf16 %v6672, %v6668
        %v6717 = vpack.c.bf16 %v6673, %v6669
        %v6718 = vpack.c.bf16 %v6674, %v6670
        %v6719 = vpack.c.bf16 %v6675, %v6671
        %v6720 = vpack.c.bf16 %v6680, %v6676
        %v6721 = vpack.c.bf16 %v6681, %v6677
        %v6722 = vpack.c.bf16 %v6682, %v6678
        %v6723 = vpack.c.bf16 %v6683, %v6679
        %v6724 = vpack.c.bf16 %v6688, %v6684
        %v6725 = vpack.c.bf16 %v6689, %v6685
        %v6726 = vpack.c.bf16 %v6690, %v6686
        %v6727 = vpack.c.bf16 %v6691, %v6687
        %v6728 = vpack.c.bf16 %v6696, %v6692
        %v6729 = vpack.c.bf16 %v6697, %v6693
        %v6730 = vpack.c.bf16 %v6698, %v6694
        %v6731 = vpack.c.bf16 %v6699, %v6695
        %6732 = vmatpush.bf16.msra.mxu0 %v5249
        %6733 = vmatpush.bf16.msra.mxu0 %v5248
        %6734 = vmatpush.bf16.msra.mxu0 %v5247
        %6735 = vmatpush.bf16.msra.mxu0 %v5246
        %6736 = vmatpush.bf16.msra.mxu0 %v5245
        %6737 = vmatpush.bf16.msra.mxu0 %v5244
        %6738 = vmatpush.bf16.msra.mxu0 %v5243
        %6739 = vmatpush.bf16.msra.mxu0 %v5242
        %6740 = vmatmul.bf16.gmra.mxu0 %v6700
        %v6741 = vpop.f32.mrf.mxu0
        %v6742 = vadd.f32 %v5112, %v6741
        %v6743 = vpop.f32.mrf.mxu0
        %v6744 = vadd.f32 %v5112, %v6743
        %6745 = vmatmul.bf16.gmra.mxu0 %v6704
        %v6746 = vpop.f32.mrf.mxu0
        %v6747 = vadd.f32 %v5112, %v6746
        %v6748 = vpop.f32.mrf.mxu0
        %v6749 = vadd.f32 %v5112, %v6748
        %6750 = vmatmul.bf16.gmra.mxu0 %v6708
        %v6751 = vpop.f32.mrf.mxu0
        %v6752 = vadd.f32 %v5112, %v6751
        %v6753 = vpop.f32.mrf.mxu0
        %v6754 = vadd.f32 %v5112, %v6753
        %6755 = vmatmul.bf16.gmra.mxu0 %v6712
        %v6756 = vpop.f32.mrf.mxu0
        %v6757 = vadd.f32 %v5112, %v6756
        %v6758 = vpop.f32.mrf.mxu0
        %v6759 = vadd.f32 %v5112, %v6758
        %6760 = vmatmul.bf16.gmra.mxu0 %v6716
        %v6761 = vpop.f32.mrf.mxu0
        %v6762 = vadd.f32 %v5112, %v6761
        %v6763 = vpop.f32.mrf.mxu0
        %v6764 = vadd.f32 %v5112, %v6763
        %6765 = vmatmul.bf16.gmra.mxu0 %v6720
        %v6766 = vpop.f32.mrf.mxu0
        %v6767 = vadd.f32 %v5112, %v6766
        %v6768 = vpop.f32.mrf.mxu0
        %v6769 = vadd.f32 %v5112, %v6768
        %6770 = vmatmul.bf16.gmra.mxu0 %v6724
        %v6771 = vpop.f32.mrf.mxu0
        %v6772 = vadd.f32 %v5112, %v6771
        %v6773 = vpop.f32.mrf.mxu0
        %v6774 = vadd.f32 %v5112, %v6773
        %6775 = vmatmul.bf16.gmra.mxu0 %v6728
        %v6776 = vpop.f32.mrf.mxu0
        %v6777 = vadd.f32 %v5112, %v6776
        %v6778 = vpop.f32.mrf.mxu0
        %v6779 = vadd.f32 %v5112, %v6778
        %6780 = vdwg.mxu0
        %6781 = vmatpush.bf16.msra.mxu0 %v5257
        %6782 = vmatpush.bf16.msra.mxu0 %v5256
        %6783 = vmatpush.bf16.msra.mxu0 %v5255
        %6784 = vmatpush.bf16.msra.mxu0 %v5254
        %6785 = vmatpush.bf16.msra.mxu0 %v5253
        %6786 = vmatpush.bf16.msra.mxu0 %v5252
        %6787 = vmatpush.bf16.msra.mxu0 %v5251
        %6788 = vmatpush.bf16.msra.mxu0 %v5250
        %6789 = vmatmul.bf16.gmra.mxu0 %v6701
        %v6790 = vpop.f32.mrf.mxu0
        %v6791 = vadd.f32 %v6742, %v6790
        %v6792 = vpop.f32.mrf.mxu0
        %v6793 = vadd.f32 %v6744, %v6792
        %6794 = vmatmul.bf16.gmra.mxu0 %v6705
        %v6795 = vpop.f32.mrf.mxu0
        %v6796 = vadd.f32 %v6747, %v6795
        %v6797 = vpop.f32.mrf.mxu0
        %v6798 = vadd.f32 %v6749, %v6797
        %6799 = vmatmul.bf16.gmra.mxu0 %v6709
        %v6800 = vpop.f32.mrf.mxu0
        %v6801 = vadd.f32 %v6752, %v6800
        %v6802 = vpop.f32.mrf.mxu0
        %v6803 = vadd.f32 %v6754, %v6802
        %6804 = vmatmul.bf16.gmra.mxu0 %v6713
        %v6805 = vpop.f32.mrf.mxu0
        %v6806 = vadd.f32 %v6757, %v6805
        %v6807 = vpop.f32.mrf.mxu0
        %v6808 = vadd.f32 %v6759, %v6807
        %6809 = vmatmul.bf16.gmra.mxu0 %v6717
        %v6810 = vpop.f32.mrf.mxu0
        %v6811 = vadd.f32 %v6762, %v6810
        %v6812 = vpop.f32.mrf.mxu0
        %v6813 = vadd.f32 %v6764, %v6812
        %6814 = vmatmul.bf16.gmra.mxu0 %v6721
        %v6815 = vpop.f32.mrf.mxu0
        %v6816 = vadd.f32 %v6767, %v6815
        %v6817 = vpop.f32.mrf.mxu0
        %v6818 = vadd.f32 %v6769, %v6817
        %6819 = vmatmul.bf16.gmra.mxu0 %v6725
        %v6820 = vpop.f32.mrf.mxu0
        %v6821 = vadd.f32 %v6772, %v6820
        %v6822 = vpop.f32.mrf.mxu0
        %v6823 = vadd.f32 %v6774, %v6822
        %6824 = vmatmul.bf16.gmra.mxu0 %v6729
        %v6825 = vpop.f32.mrf.mxu0
        %v6826 = vadd.f32 %v6777, %v6825
        %v6827 = vpop.f32.mrf.mxu0
        %v6828 = vadd.f32 %v6779, %v6827
        %6829 = vdwg.mxu0
        %6830 = vmatpush.bf16.msra.mxu0 %v5265
        %6831 = vmatpush.bf16.msra.mxu0 %v5264
        %6832 = vmatpush.bf16.msra.mxu0 %v5263
        %6833 = vmatpush.bf16.msra.mxu0 %v5262
        %6834 = vmatpush.bf16.msra.mxu0 %v5261
        %6835 = vmatpush.bf16.msra.mxu0 %v5260
        %6836 = vmatpush.bf16.msra.mxu0 %v5259
        %6837 = vmatpush.bf16.msra.mxu0 %v5258
        %6838 = vmatmul.bf16.gmra.mxu0 %v6702
        %v6839 = vpop.f32.mrf.mxu0
        %v6840 = vadd.f32 %v6791, %v6839
        %v6841 = vpop.f32.mrf.mxu0
        %v6842 = vadd.f32 %v6793, %v6841
        %6843 = vmatmul.bf16.gmra.mxu0 %v6706
        %v6844 = vpop.f32.mrf.mxu0
        %v6845 = vadd.f32 %v6796, %v6844
        %v6846 = vpop.f32.mrf.mxu0
        %v6847 = vadd.f32 %v6798, %v6846
        %6848 = vmatmul.bf16.gmra.mxu0 %v6710
        %v6849 = vpop.f32.mrf.mxu0
        %v6850 = vadd.f32 %v6801, %v6849
        %v6851 = vpop.f32.mrf.mxu0
        %v6852 = vadd.f32 %v6803, %v6851
        %6853 = vmatmul.bf16.gmra.mxu0 %v6714
        %v6854 = vpop.f32.mrf.mxu0
        %v6855 = vadd.f32 %v6806, %v6854
        %v6856 = vpop.f32.mrf.mxu0
        %v6857 = vadd.f32 %v6808, %v6856
        %6858 = vmatmul.bf16.gmra.mxu0 %v6718
        %v6859 = vpop.f32.mrf.mxu0
        %v6860 = vadd.f32 %v6811, %v6859
        %v6861 = vpop.f32.mrf.mxu0
        %v6862 = vadd.f32 %v6813, %v6861
        %6863 = vmatmul.bf16.gmra.mxu0 %v6722
        %v6864 = vpop.f32.mrf.mxu0
        %v6865 = vadd.f32 %v6816, %v6864
        %v6866 = vpop.f32.mrf.mxu0
        %v6867 = vadd.f32 %v6818, %v6866
        %6868 = vmatmul.bf16.gmra.mxu0 %v6726
        %v6869 = vpop.f32.mrf.mxu0
        %v6870 = vadd.f32 %v6821, %v6869
        %v6871 = vpop.f32.mrf.mxu0
        %v6872 = vadd.f32 %v6823, %v6871
        %6873 = vmatmul.bf16.gmra.mxu0 %v6730
        %v6874 = vpop.f32.mrf.mxu0
        %v6875 = vadd.f32 %v6826, %v6874
        %v6876 = vpop.f32.mrf.mxu0
        %v6877 = vadd.f32 %v6828, %v6876
        %6878 = vdwg.mxu0
        %6879 = vmatpush.bf16.msra.mxu0 %v5273
        %6880 = vmatpush.bf16.msra.mxu0 %v5272
        %6881 = vmatpush.bf16.msra.mxu0 %v5271
        %6882 = vmatpush.bf16.msra.mxu0 %v5270
        %6883 = vmatpush.bf16.msra.mxu0 %v5269
        %6884 = vmatpush.bf16.msra.mxu0 %v5268
        %6885 = vmatpush.bf16.msra.mxu0 %v5267
        %6886 = vmatpush.bf16.msra.mxu0 %v5266
        %6887 = vmatmul.bf16.gmra.mxu0 %v6703
        %v6888 = vpop.f32.mrf.mxu0
        %v6889 = vadd.f32 %v6840, %v6888
        %v6890 = vpop.f32.mrf.mxu0
        %v6891 = vadd.f32 %v6842, %v6890
        %6892 = vmatmul.bf16.gmra.mxu0 %v6707
        %v6893 = vpop.f32.mrf.mxu0
        %v6894 = vadd.f32 %v6845, %v6893
        %v6895 = vpop.f32.mrf.mxu0
        %v6896 = vadd.f32 %v6847, %v6895
        %6897 = vmatmul.bf16.gmra.mxu0 %v6711
        %v6898 = vpop.f32.mrf.mxu0
        %v6899 = vadd.f32 %v6850, %v6898
        %v6900 = vpop.f32.mrf.mxu0
        %v6901 = vadd.f32 %v6852, %v6900
        %6902 = vmatmul.bf16.gmra.mxu0 %v6715
        %v6903 = vpop.f32.mrf.mxu0
        %v6904 = vadd.f32 %v6855, %v6903
        %v6905 = vpop.f32.mrf.mxu0
        %v6906 = vadd.f32 %v6857, %v6905
        %6907 = vmatmul.bf16.gmra.mxu0 %v6719
        %v6908 = vpop.f32.mrf.mxu0
        %v6909 = vadd.f32 %v6860, %v6908
        %v6910 = vpop.f32.mrf.mxu0
        %v6911 = vadd.f32 %v6862, %v6910
        %6912 = vmatmul.bf16.gmra.mxu0 %v6723
        %v6913 = vpop.f32.mrf.mxu0
        %v6914 = vadd.f32 %v6865, %v6913
        %v6915 = vpop.f32.mrf.mxu0
        %v6916 = vadd.f32 %v6867, %v6915
        %6917 = vmatmul.bf16.gmra.mxu0 %v6727
        %v6918 = vpop.f32.mrf.mxu0
        %v6919 = vadd.f32 %v6870, %v6918
        %v6920 = vpop.f32.mrf.mxu0
        %v6921 = vadd.f32 %v6872, %v6920
        %6922 = vmatmul.bf16.gmra.mxu0 %v6731
        %v6923 = vpop.f32.mrf.mxu0
        %v6924 = vadd.f32 %v6875, %v6923
        %v6925 = vpop.f32.mrf.mxu0
        %v6926 = vadd.f32 %v6877, %v6925
        %6927 = vdwg.mxu0
        %v6928 = vadd.f32 %v6889, %v5502
        %v6929 = vadd.f32 %v6891, %v5503
        %v6930 = vadd.f32 %v6894, %v5504
        %v6931 = vadd.f32 %v6896, %v5505
        %v6932 = vadd.f32 %v6899, %v5506
        %v6933 = vadd.f32 %v6901, %v5507
        %v6934 = vadd.f32 %v6904, %v5508
        %v6935 = vadd.f32 %v6906, %v5509
        %v6936 = vadd.f32 %v6909, %v5510
        %v6937 = vadd.f32 %v6911, %v5511
        %v6938 = vadd.f32 %v6914, %v5512
        %v6939 = vadd.f32 %v6916, %v5513
        %v6940 = vadd.f32 %v6919, %v5514
        %v6941 = vadd.f32 %v6921, %v5515
        %v6942 = vadd.f32 %v6924, %v5516
        %v6943 = vadd.f32 %v6926, %v5517
        %6944 = vst [vmem:[%s434] sm:$0xff] %v6928
        %6945 = vst [vmem:[%s434 + $0x8] sm:$0xff] %v6929
        %6946 = vst [vmem:[%s434 + $0x10] sm:$0xff] %v6930
        %6947 = vst [vmem:[%s434 + $0x18] sm:$0xff] %v6931
        %6948 = vst [vmem:[%s434 + $0x20] sm:$0xff] %v6932
        %6949 = vst [vmem:[%s434 + $0x28] sm:$0xff] %v6933
        %6950 = vst [vmem:[%s434 + $0x30] sm:$0xff] %v6934
        %6951 = vst [vmem:[%s434 + $0x38] sm:$0xff] %v6935
        %6952 = vst [vmem:[%s434 + $0x40] sm:$0xff] %v6936
        %6953 = vst [vmem:[%s434 + $0x48] sm:$0xff] %v6937
        %6954 = vst [vmem:[%s434 + $0x50] sm:$0xff] %v6938
        %6955 = vst [vmem:[%s434 + $0x58] sm:$0xff] %v6939
        %6956 = vst [vmem:[%s434 + $0x60] sm:$0xff] %v6940
        %6957 = vst [vmem:[%s434 + $0x68] sm:$0xff] %v6941
        %6958 = vst [vmem:[%s434 + $0x70] sm:$0xff] %v6942
        %6959 = vst [vmem:[%s434 + $0x78] sm:$0xff] %v6943
        %s6960 = sand.u32 %s231, 1
        %s6961 = scalar_lea.sflag [#allocation4], %s6960
        %s6962 = sand.u32 %s231, 1
        %s6963 = smul.addr %s6962, 128
        %s6964 = scalar_lea.vmem [#allocation13], %s6963
        // Predicated region
        $region81: #{tpu_custom_call.1} parent=55 // pred_check
          %p6965 = pneg %p241
        $region82: #{tpu_custom_call.1} parent=55 // pred_check_branch
          %6967 = sbr.rel (%p6965) target = $region84
        $region83: #{tpu_custom_call.1} parent=55 // pred_region
          %s6968 = smul.u32 2, %s29
          %6970 = vsyncadd %s6961, 0
          %s6971 = smul.addr %s6968, 8
          %s6972 = smul.addr %s6971, 8
          %s6973 = scalar_lea.hbm %s9, %s6972
          %s6974 = sshll.u32 %s6964, 4
          %s6975 = int_to_ptr.vmem [resolvable:$true] %s6974
          %s6976 = sshll.u32 %s6973, 4
          %s6977 = int_to_ptr.hbm [resolvable:$true] %s6976
          %6982 = dma.vmem_to_hbm [thread:$0]  %s6975, 2048, %s6977, %s6961, 128, 128, 8
        $region84: #{tpu_custom_call.1} parent=55 // pred_fallthru
          _
      $region56: #{tpu_custom_call.1} parent=5 // pred_fallthru
        _
      %p6983 = scmp.le.s32.totalorder 2, %s24
      // Predicated region
      $region85: #{tpu_custom_call.1} parent=5 // pred_check
        %p6984 = pneg %p6983
      $region86: #{tpu_custom_call.1} parent=5 // pred_check_branch
        %6986 = sbr.rel (%p6984) target = $region88
      $region87: #{tpu_custom_call.1} parent=5 // pred_region
        %s6987 = ssub.s32 %s24, 2
        // Predicated region
        $region89: #{tpu_custom_call.1} parent=87 // pred_check
          %p6988 = pneg %p247
        $region90: #{tpu_custom_call.1} parent=87 // pred_check_branch
          %6990 = sbr.rel (%p6988) target = $region92
        $region91: #{tpu_custom_call.1} parent=87 // pred_region
          %s6991 = sand.u32 %s232, 1
          %s6992 = scalar_lea.sflag [#allocation4], %s6991
          %s6993 = sand.u32 %s232, 1
          %s6994 = smul.addr %s6993, 128
          %s6995 = scalar_lea.vmem [#allocation13], %s6994
          %6997 = dma.done %s6992, 2048
        $region92: #{tpu_custom_call.1} parent=87 // pred_fallthru
          _
      $region88: #{tpu_custom_call.1} parent=5 // pred_fallthru
        _
    $region6: #{tpu_custom_call.1} parent=1 // loop_footer
      %s28 = sadd.s32 1, %s24
    $region7: #{tpu_custom_call.1} parent=1 // loop_footer_branch
      %23 = sbr.rel target = $region3
    $region8: #{tpu_custom_call.1} parent=1 // loop_exit
      _
    %6998 = vsyncpa [#allocation3], 1
    %s6999 = scalar_lea.sflag [#allocation3], 1
    %7000 = vsyncpa %s6999, 1
    %7001 = vsyncpa [#allocation6], 1
    %7002 = vsyncpa [#allocation9], 1
    %7003 = vsyncpa [#allocation12], 1
    %7004 = vsyncpa [#allocation4], 1
    %s7005 = scalar_lea.sflag [#allocation4], 1
    %7006 = vsyncpa %s7005, 1

</llo_original>
